<compile_context>
chip_gen: v7x
topology: tpu7x:2x2x1
jax: 0.10.0
libtpu: 0.0.40
codegen_flags: <defaults>
</compile_context>

<pallas_src>
import jax
import jax.numpy as jnp
from jax.experimental import pallas as pl
from jax.experimental.pallas import tpu as pltpu

# ----------------------------------------------------------------------------
# Problem-size constants (features output must be (N, 512, 3, 2))
# ----------------------------------------------------------------------------
N = 2                       # batch
H, W = 12, 8                # input spatial -> (3, 2) after two 2x2 pools
CIN = 3                     # input channels
CIN_TILE = 8                # conv1 contraction dim (3 real + 5 zero rows, 1 sublane tile)
C1 = 64                     # conv1 out channels (== conv2 contraction dim, unpadded)
H2, W2 = H // 2, W // 2     # 6, 4 after pool1
C2 = 512                    # conv2 out channels
H3, W3 = H2 // 2, W2 // 2   # 3, 2 after pool2
W2S = 8                     # conv2 slab width (W2=4 over-padded to one sublane tile)
                            # TODO(synk): wasted conv2 rows only matter if compute-bound (v5e)
NUM_CLASSES = 16

M1 = N * H * W              # 192 conv1 matmul rows
M2 = N * H2 * W2S           # 96  conv2 matmul rows (cols >= W2 are discarded)


# ----------------------------------------------------------------------------
# Fused forward kernel
# ----------------------------------------------------------------------------
def _yolov2_fused_kernel(x_ref, w1_ref, b1_ref, w2_hbm, b2_ref, wc_hbm, bc_ref,
                         out_ref,
                         xp1_ref, acc1_ref, xp2_ref, acc2_ref,
                         w2_vmem, wc_vmem, sems):
    f32, bf16 = jnp.float32, jnp.bfloat16

    # ---- prefetch the two large weights (HBM -> VMEM) behind conv1/pool1 -------
    cp_w2 = pltpu.make_async_copy(w2_hbm, w2_vmem, sems.at[0])
    cp_wc = pltpu.make_async_copy(wc_hbm, wc_vmem, sems.at[1])
    cp_w2.start()
    cp_wc.start()

    # ---- conv1: 3x3 / pad=1 as 9 shifted-slab MXU matmuls (in-kernel im2col) ----
    xp1_ref[...] = jnp.zeros_like(xp1_ref)                # zero halo + pad channels
    xp1_ref[:, 1:1 + H, 1:1 + W, :CIN] = x_ref[...]
    for t in range(9):
        dh, dw = t // 3, t % 3
        a = xp1_ref[:, dh:dh + H, dw:dw + W, :]           # (N, H, W, CIN_TILE)
        a = a.reshape(M1, CIN_TILE).astype(bf16)          # (192, 8) bf16 MXU feed
        contrib = jnp.dot(a, w1_ref[t], preferred_element_type=f32)   # (192, 64)
        # acc1 dim2 = hp*W + w (hp = h parity); grouping is layout-consistent
        contrib = contrib.reshape(N, H2, 2 * W, C1)
        if t == 0:
            acc1_ref[...] = contrib                       # init from tap 0 (no memset)
        else:
            acc1_ref[...] += contrib

    # ---- maxpool1 2x2 + bias + ReLU (vectorized epilogue, one block store) -----
    a1 = acc1_ref[...]
    th = jnp.maximum(a1[:, :, 0:W, :], a1[:, :, W:2 * W, :])        # h-parity max
    p1 = jnp.stack(
        [jnp.maximum(th[:, :, 2 * w, :], th[:, :, 2 * w + 1, :]) for w in range(W2)],
        axis=2)                                                      # (N, H2, W2, C1)
    p1 = jnp.maximum(p1 + b1_ref[...], 0.0)               # bias+ReLU commute with pool
    xp2_ref[...] = jnp.zeros_like(xp2_ref)                # zero halo + junk columns
    xp2_ref[:, 1:1 + H2, 1:1 + W2, :] = p1

    # ---- conv2: 3x3 / pad=1, K=64 unpadded (slab width over-padded to 8) -------
    cp_w2.wait()                                          # w2 prefetch done
    for t in range(9):
        dh, dw = t // 3, t % 3
        a = xp2_ref[:, dh:dh + H2, dw:dw + W2S, :]        # (N, H2, 8, C1)
        a = a.reshape(M2, C1).astype(bf16)                # (96, 64)
        contrib = jnp.dot(a, w2_vmem[t], preferred_element_type=f32)  # (96, 512)
        contrib = contrib.reshape(N, H3, 2 * W2S, C2)
        if t == 0:
            acc2_ref[...] = contrib
        else:
            acc2_ref[...] += contrib

    # ---- maxpool2 2x2 + bias + ReLU (values only; junk cols >= W2 dropped) -----
    a2 = acc2_ref[...]
    th2 = jnp.maximum(a2[:, :, 0:W2S, :], a2[:, :, W2S:2 * W2S, :])  # (N, H3, 8, C2)
    feats = []
    for w3 in range(W3):
        col = jnp.maximum(th2[:, :, 2 * w3, :], th2[:, :, 2 * w3 + 1, :])
        feats.append(jnp.maximum(col + b2_ref[...], 0.0))            # (N, H3, C2)

    # ---- classifier: Linear(512*3*2 -> 16), weight pre-permuted to NHWC order --
    cp_wc.wait()                                          # wc prefetch done
    acc = None
    for s in range(H3 * W3):
        h3, w3 = s // W3, s % W3
        feat = feats[w3][:, h3, :].astype(bf16)           # (N, 512)
        d = jnp.dot(feat, wc_vmem[s], preferred_element_type=f32)    # (N, 16)
        acc = d if acc is None else acc + d
    out_ref[...] = acc + bc_ref[...]


# ----------------------------------------------------------------------------
# Parameter init (mirrors _initialize_weights; layouts pre-permuted, unpadded)
# ----------------------------------------------------------------------------
def init_params(key, num_classes=NUM_CLASSES):
    k1, k2, k3 = jax.random.split(key, 3)

    def conv_taps(k, cin, cout, cin_tile):
        # kaiming_normal_(mode='fan_out', relu): std = sqrt(2 / (cout * kh * kw))
        std = (2.0 / (cout * 9)) ** 0.5
        w = jax.random.normal(k, (cout, cin, 3, 3), jnp.float32) * std
        # (cout, cin, kh, kw) -> (tap = kh*3+kw, cin, cout); pad cin only up to a
        # sublane tile (conv1: 3 -> 8); conv2 ships fully unpadded (64).
        w = jnp.transpose(w, (2, 3, 1, 0)).reshape(9, cin, cout)
        w = jnp.pad(w, ((0, 0), (0, cin_tile - cin), (0, 0)))
        return w.astype(jnp.bfloat16)

    # classifier: PyTorch weight (num_classes, 512*3*2) over the NCHW flatten
    # (index = c*6 + h3*2 + w3).  Pre-permute to (s = h3*2 + w3, c, k) so the
    # kernel consumes the NHWC-resident features directly; no lane padding.
    wc = jax.random.normal(k3, (num_classes, C2 * H3 * W3), jnp.float32) * 0.01
    wc = wc.reshape(num_classes, C2, H3, W3)
    wc = jnp.transpose(wc, (2, 3, 1, 0)).reshape(H3 * W3, C2, num_classes)

    return {
        "w1": conv_taps(k1, CIN, C1, CIN_TILE),            # (9, 8, 64)   bf16
        "b1": jnp.zeros((1, C1), jnp.float32),
        "w2": conv_taps(k2, C1, C2, C1),                   # (9, 64, 512) bf16
        "b2": jnp.zeros((1, C2), jnp.float32),
        "wc": wc.astype(jnp.bfloat16),                     # (6, 512, 16) bf16
        "bc": jnp.zeros((1, num_classes), jnp.float32),
    }


# ----------------------------------------------------------------------------
# Forward pass (single pallas_call)
# ----------------------------------------------------------------------------
def yolov2_backbone_forward(x_nchw, params):
    # x_nchw: (N, 3, 12, 8) float32, like the PyTorch module.  Only a tiny
    # (2.3 KiB) transpose happens outside the kernel; no channel zero-pad.
    x = jnp.transpose(x_nchw, (0, 2, 3, 1)).astype(jnp.float32)      # NHWC

    vmem = pl.BlockSpec(memory_space=pltpu.MemorySpace.VMEM)
    anyspec = pl.BlockSpec(memory_space=pl.ANY)                      # manual DMA

    # TODO(synk): at real YOLO resolutions these whole-array-resident specs must
    # become an M-tiled grid (dimension_semantics=("parallel", ...)) sized for
    # v7x's 64 MiB VMEM and its two TensorCores; at this toy size everything
    # (< ~2 MB live) stays resident in a single grid point.
    out = pl.pallas_call(
        _yolov2_fused_kernel,
        out_shape=jax.ShapeDtypeStruct((N, NUM_CLASSES), jnp.float32),
        in_specs=[vmem, vmem, vmem, anyspec, vmem, anyspec, vmem],
        out_specs=vmem,
        scratch_shapes=[
            pltpu.VMEM((N, H + 2, W + 2, CIN_TILE), jnp.float32),    # xp1: padded input
            pltpu.VMEM((N, H2, 2 * W, C1), jnp.float32),             # acc1
            pltpu.VMEM((N, H2 + 2, W2S + 2, C1), jnp.float32),       # xp2: padded act
            pltpu.VMEM((N, H3, 2 * W2S, C2), jnp.float32),           # acc2
            pltpu.VMEM((9, C1, C2), jnp.bfloat16),                   # w2 prefetch buffer
            pltpu.VMEM((H3 * W3, C2, NUM_CLASSES), jnp.bfloat16),    # wc prefetch buffer
            pltpu.SemaphoreType.DMA((2,)),                           # w2/wc DMA sems
        ],
    )(x, params["w1"], params["b1"], params["w2"], params["b2"],
      params["wc"], params["bc"])
    return out


if __name__ == "__main__":
    key = jax.random.PRNGKey(0)
    kx, kp = jax.random.split(key)

    x = jax.random.normal(kx, (N, CIN, H, W), jnp.float32)   # NCHW like PyTorch
    params = init_params(kp, NUM_CLASSES)

    fwd = jax.jit(yolov2_backbone_forward)
    out = fwd(x, params)
    jax.block_until_ready(out)
    assert out.shape == (N, NUM_CLASSES), out.shape
    print("KERNEL_OK")
</pallas_src>

<mosaic_0001>
module attributes {stable_mosaic.version = 11 : i64} {
  func.func @_yolov2_fused_kernel(%arg0: memref<2x12x8x3xf32, #tpu.memory_space<vmem>>, %arg1: memref<9x8x64xbf16, #tpu.memory_space<vmem>>, %arg2: memref<1x64xf32, #tpu.memory_space<vmem>>, %arg3: memref<9x64x512xbf16, #tpu.memory_space<any>>, %arg4: memref<1x512xf32, #tpu.memory_space<vmem>>, %arg5: memref<6x512x16xbf16, #tpu.memory_space<any>>, %arg6: memref<1x16xf32, #tpu.memory_space<vmem>>, %arg7: memref<2x16xf32, #tpu.memory_space<vmem>>, %arg8: memref<2x14x10x8xf32, #tpu.memory_space<vmem>>, %arg9: memref<2x6x16x64xf32, #tpu.memory_space<vmem>>, %arg10: memref<2x8x10x64xf32, #tpu.memory_space<vmem>>, %arg11: memref<2x3x16x512xf32, #tpu.memory_space<vmem>>, %arg12: memref<9x64x512xbf16, #tpu.memory_space<vmem>>, %arg13: memref<6x512x16xbf16, #tpu.memory_space<vmem>>, %arg14: memref<2x!tpu.dma_semaphore, #tpu.memory_space<semaphore_mem>>) attributes {dimension_semantics = [], scalar_prefetch = 0 : i64, scratch_operands = 7 : i64, tpu.core_type = #tpu.core_type<tc>} {
    %c0_i32 = arith.constant 0 : i32
    %0 = tpu.memref_slice %arg14[%c0_i32] : memref<2x!tpu.dma_semaphore, #tpu.memory_space<semaphore_mem>> -> memref<1x!tpu.dma_semaphore, #tpu.memory_space<semaphore_mem>>
    %1 = tpu.memref_squeeze %0 : memref<1x!tpu.dma_semaphore, #tpu.memory_space<semaphore_mem>> -> memref<!tpu.dma_semaphore, #tpu.memory_space<semaphore_mem>>
    tpu.enqueue_dma source(%arg3 : memref<9x64x512xbf16, #tpu.memory_space<any>>) target(%arg12 : memref<9x64x512xbf16, #tpu.memory_space<vmem>>) target_semaphore(%1 : memref<!tpu.dma_semaphore, #tpu.memory_space<semaphore_mem>>)
    %c1_i32 = arith.constant 1 : i32
    %2 = tpu.memref_slice %arg14[%c1_i32] : memref<2x!tpu.dma_semaphore, #tpu.memory_space<semaphore_mem>> -> memref<1x!tpu.dma_semaphore, #tpu.memory_space<semaphore_mem>>
    %3 = tpu.memref_squeeze %2 : memref<1x!tpu.dma_semaphore, #tpu.memory_space<semaphore_mem>> -> memref<!tpu.dma_semaphore, #tpu.memory_space<semaphore_mem>>
    tpu.enqueue_dma source(%arg5 : memref<6x512x16xbf16, #tpu.memory_space<any>>) target(%arg13 : memref<6x512x16xbf16, #tpu.memory_space<vmem>>) target_semaphore(%3 : memref<!tpu.dma_semaphore, #tpu.memory_space<semaphore_mem>>)
    %cst = arith.constant 0.000000e+00 : f32
    %4 = vector.broadcast %cst : f32 to vector<2x14x10x8xf32>
    %c0 = arith.constant 0 : index
    %c0_0 = arith.constant 0 : index
    %c0_1 = arith.constant 0 : index
    %c0_2 = arith.constant 0 : index
    %5 = vector.load %arg8[%c0, %c0_0, %c0_1, %c0_2] : memref<2x14x10x8xf32, #tpu.memory_space<vmem>>, vector<2x14x10x8xf32>
    tpu.vector_store %arg8[%c0, %c0_0, %c0_1, %c0_2], %4 {strides = array<i32>} : memref<2x14x10x8xf32, #tpu.memory_space<vmem>>, vector<2x14x10x8xf32>,
    %c0_3 = arith.constant 0 : index
    %c0_4 = arith.constant 0 : index
    %c0_5 = arith.constant 0 : index
    %c0_6 = arith.constant 0 : index
    %6 = vector.load %arg0[%c0_3, %c0_4, %c0_5, %c0_6] : memref<2x12x8x3xf32, #tpu.memory_space<vmem>>, vector<2x12x8x3xf32>
    %c0_7 = arith.constant 0 : index
    %c1 = arith.constant 1 : index
    %c1_8 = arith.constant 1 : index
    %c0_9 = arith.constant 0 : index
    %7 = vector.load %arg8[%c0_7, %c1, %c1_8, %c0_9] : memref<2x14x10x8xf32, #tpu.memory_space<vmem>>, vector<2x12x8x3xf32>
    tpu.vector_store %arg8[%c0_7, %c1, %c1_8, %c0_9], %6 {strides = array<i32>} : memref<2x14x10x8xf32, #tpu.memory_space<vmem>>, vector<2x12x8x3xf32>,
    %c0_10 = arith.constant 0 : index
    %c0_11 = arith.constant 0 : index
    %c0_12 = arith.constant 0 : index
    %c0_13 = arith.constant 0 : index
    %8 = vector.load %arg8[%c0_10, %c0_11, %c0_12, %c0_13] : memref<2x14x10x8xf32, #tpu.memory_space<vmem>>, vector<2x12x8x8xf32>
    %9 = vector.shape_cast %8 : vector<2x12x8x8xf32> to vector<192x8xf32>
    %10 = arith.truncf %9 : vector<192x8xf32> to vector<192x8xbf16>
    %c0_14 = arith.constant 0 : index
    %c0_15 = arith.constant 0 : index
    %c0_16 = arith.constant 0 : index
    %11 = vector.load %arg1[%c0_14, %c0_15, %c0_16] : memref<9x8x64xbf16, #tpu.memory_space<vmem>>, vector<1x8x64xbf16>
    %12 = vector.shape_cast %11 : vector<1x8x64xbf16> to vector<8x64xbf16>
    %cst_17 = arith.constant dense<0.000000e+00> : vector<192x64xf32>
    %13 = tpu.matmul %10, %12, %cst_17 {dimension_numbers = #tpu.dot_dimension_numbers<[1], [0], [0], [1], [0, 0, 1, 1], [], []>} : vector<192x8xbf16>, vector<8x64xbf16>, vector<192x64xf32> -> vector<192x64xf32>
    %14 = vector.shape_cast %13 : vector<192x64xf32> to vector<2x6x16x64xf32>
    %c0_18 = arith.constant 0 : index
    %c0_19 = arith.constant 0 : index
    %c0_20 = arith.constant 0 : index
    %c0_21 = arith.constant 0 : index
    %15 = vector.load %arg9[%c0_18, %c0_19, %c0_20, %c0_21] : memref<2x6x16x64xf32, #tpu.memory_space<vmem>>, vector<2x6x16x64xf32>
    tpu.vector_store %arg9[%c0_18, %c0_19, %c0_20, %c0_21], %14 {strides = array<i32>} : memref<2x6x16x64xf32, #tpu.memory_space<vmem>>, vector<2x6x16x64xf32>,
    %c0_22 = arith.constant 0 : index
    %c0_23 = arith.constant 0 : index
    %c1_24 = arith.constant 1 : index
    %c0_25 = arith.constant 0 : index
    %16 = vector.load %arg8[%c0_22, %c0_23, %c1_24, %c0_25] : memref<2x14x10x8xf32, #tpu.memory_space<vmem>>, vector<2x12x8x8xf32>
    %17 = vector.shape_cast %16 : vector<2x12x8x8xf32> to vector<192x8xf32>
    %18 = arith.truncf %17 : vector<192x8xf32> to vector<192x8xbf16>
    %c1_26 = arith.constant 1 : index
    %c0_27 = arith.constant 0 : index
    %c0_28 = arith.constant 0 : index
    %19 = vector.load %arg1[%c1_26, %c0_27, %c0_28] : memref<9x8x64xbf16, #tpu.memory_space<vmem>>, vector<1x8x64xbf16>
    %20 = vector.shape_cast %19 : vector<1x8x64xbf16> to vector<8x64xbf16>
    %cst_29 = arith.constant dense<0.000000e+00> : vector<192x64xf32>
    %21 = tpu.matmul %18, %20, %cst_29 {dimension_numbers = #tpu.dot_dimension_numbers<[1], [0], [0], [1], [0, 0, 1, 1], [], []>} : vector<192x8xbf16>, vector<8x64xbf16>, vector<192x64xf32> -> vector<192x64xf32>
    %22 = vector.shape_cast %21 : vector<192x64xf32> to vector<2x6x16x64xf32>
    %c0_30 = arith.constant 0 : index
    %c0_31 = arith.constant 0 : index
    %c0_32 = arith.constant 0 : index
    %c0_33 = arith.constant 0 : index
    %23 = vector.load %arg9[%c0_30, %c0_31, %c0_32, %c0_33] : memref<2x6x16x64xf32, #tpu.memory_space<vmem>>, vector<2x6x16x64xf32>
    %24 = arith.addf %23, %22 : vector<2x6x16x64xf32>
    %c0_34 = arith.constant 0 : index
    %c0_35 = arith.constant 0 : index
    %c0_36 = arith.constant 0 : index
    %c0_37 = arith.constant 0 : index
    %25 = vector.load %arg9[%c0_34, %c0_35, %c0_36, %c0_37] : memref<2x6x16x64xf32, #tpu.memory_space<vmem>>, vector<2x6x16x64xf32>
    tpu.vector_store %arg9[%c0_34, %c0_35, %c0_36, %c0_37], %24 {strides = array<i32>} : memref<2x6x16x64xf32, #tpu.memory_space<vmem>>, vector<2x6x16x64xf32>,
    %c0_38 = arith.constant 0 : index
    %c0_39 = arith.constant 0 : index
    %c2 = arith.constant 2 : index
    %c0_40 = arith.constant 0 : index
    %26 = vector.load %arg8[%c0_38, %c0_39, %c2, %c0_40] : memref<2x14x10x8xf32, #tpu.memory_space<vmem>>, vector<2x12x8x8xf32>
    %27 = vector.shape_cast %26 : vector<2x12x8x8xf32> to vector<192x8xf32>
    %28 = arith.truncf %27 : vector<192x8xf32> to vector<192x8xbf16>
    %c2_41 = arith.constant 2 : index
    %c0_42 = arith.constant 0 : index
    %c0_43 = arith.constant 0 : index
    %29 = vector.load %arg1[%c2_41, %c0_42, %c0_43] : memref<9x8x64xbf16, #tpu.memory_space<vmem>>, vector<1x8x64xbf16>
    %30 = vector.shape_cast %29 : vector<1x8x64xbf16> to vector<8x64xbf16>
    %cst_44 = arith.constant dense<0.000000e+00> : vector<192x64xf32>
    %31 = tpu.matmul %28, %30, %cst_44 {dimension_numbers = #tpu.dot_dimension_numbers<[1], [0], [0], [1], [0, 0, 1, 1], [], []>} : vector<192x8xbf16>, vector<8x64xbf16>, vector<192x64xf32> -> vector<192x64xf32>
    %32 = vector.shape_cast %31 : vector<192x64xf32> to vector<2x6x16x64xf32>
    %c0_45 = arith.constant 0 : index
    %c0_46 = arith.constant 0 : index
    %c0_47 = arith.constant 0 : index
    %c0_48 = arith.constant 0 : index
    %33 = vector.load %arg9[%c0_45, %c0_46, %c0_47, %c0_48] : memref<2x6x16x64xf32, #tpu.memory_space<vmem>>, vector<2x6x16x64xf32>
    %34 = arith.addf %33, %32 : vector<2x6x16x64xf32>
    %c0_49 = arith.constant 0 : index
    %c0_50 = arith.constant 0 : index
    %c0_51 = arith.constant 0 : index
    %c0_52 = arith.constant 0 : index
    %35 = vector.load %arg9[%c0_49, %c0_50, %c0_51, %c0_52] : memref<2x6x16x64xf32, #tpu.memory_space<vmem>>, vector<2x6x16x64xf32>
    tpu.vector_store %arg9[%c0_49, %c0_50, %c0_51, %c0_52], %34 {strides = array<i32>} : memref<2x6x16x64xf32, #tpu.memory_space<vmem>>, vector<2x6x16x64xf32>,
    %c0_53 = arith.constant 0 : index
    %c1_54 = arith.constant 1 : index
    %c0_55 = arith.constant 0 : index
    %c0_56 = arith.constant 0 : index
    %36 = vector.load %arg8[%c0_53, %c1_54, %c0_55, %c0_56] : memref<2x14x10x8xf32, #tpu.memory_space<vmem>>, vector<2x12x8x8xf32>
    %37 = vector.shape_cast %36 : vector<2x12x8x8xf32> to vector<192x8xf32>
    %38 = arith.truncf %37 : vector<192x8xf32> to vector<192x8xbf16>
    %c3 = arith.constant 3 : index
    %c0_57 = arith.constant 0 : index
    %c0_58 = arith.constant 0 : index
    %39 = vector.load %arg1[%c3, %c0_57, %c0_58] : memref<9x8x64xbf16, #tpu.memory_space<vmem>>, vector<1x8x64xbf16>
    %40 = vector.shape_cast %39 : vector<1x8x64xbf16> to vector<8x64xbf16>
    %cst_59 = arith.constant dense<0.000000e+00> : vector<192x64xf32>
    %41 = tpu.matmul %38, %40, %cst_59 {dimension_numbers = #tpu.dot_dimension_numbers<[1], [0], [0], [1], [0, 0, 1, 1], [], []>} : vector<192x8xbf16>, vector<8x64xbf16>, vector<192x64xf32> -> vector<192x64xf32>
    %42 = vector.shape_cast %41 : vector<192x64xf32> to vector<2x6x16x64xf32>
    %c0_60 = arith.constant 0 : index
    %c0_61 = arith.constant 0 : index
    %c0_62 = arith.constant 0 : index
    %c0_63 = arith.constant 0 : index
    %43 = vector.load %arg9[%c0_60, %c0_61, %c0_62, %c0_63] : memref<2x6x16x64xf32, #tpu.memory_space<vmem>>, vector<2x6x16x64xf32>
    %44 = arith.addf %43, %42 : vector<2x6x16x64xf32>
    %c0_64 = arith.constant 0 : index
    %c0_65 = arith.constant 0 : index
    %c0_66 = arith.constant 0 : index
    %c0_67 = arith.constant 0 : index
    %45 = vector.load %arg9[%c0_64, %c0_65, %c0_66, %c0_67] : memref<2x6x16x64xf32, #tpu.memory_space<vmem>>, vector<2x6x16x64xf32>
    tpu.vector_store %arg9[%c0_64, %c0_65, %c0_66, %c0_67], %44 {strides = array<i32>} : memref<2x6x16x64xf32, #tpu.memory_space<vmem>>, vector<2x6x16x64xf32>,
    %c0_68 = arith.constant 0 : index
    %c1_69 = arith.constant 1 : index
    %c1_70 = arith.constant 1 : index
    %c0_71 = arith.constant 0 : index
    %46 = vector.load %arg8[%c0_68, %c1_69, %c1_70, %c0_71] : memref<2x14x10x8xf32, #tpu.memory_space<vmem>>, vector<2x12x8x8xf32>
    %47 = vector.shape_cast %46 : vector<2x12x8x8xf32> to vector<192x8xf32>
    %48 = arith.truncf %47 : vector<192x8xf32> to vector<192x8xbf16>
    %c4 = arith.constant 4 : index
    %c0_72 = arith.constant 0 : index
    %c0_73 = arith.constant 0 : index
    %49 = vector.load %arg1[%c4, %c0_72, %c0_73] : memref<9x8x64xbf16, #tpu.memory_space<vmem>>, vector<1x8x64xbf16>
    %50 = vector.shape_cast %49 : vector<1x8x64xbf16> to vector<8x64xbf16>
    %cst_74 = arith.constant dense<0.000000e+00> : vector<192x64xf32>
    %51 = tpu.matmul %48, %50, %cst_74 {dimension_numbers = #tpu.dot_dimension_numbers<[1], [0], [0], [1], [0, 0, 1, 1], [], []>} : vector<192x8xbf16>, vector<8x64xbf16>, vector<192x64xf32> -> vector<192x64xf32>
    %52 = vector.shape_cast %51 : vector<192x64xf32> to vector<2x6x16x64xf32>
    %c0_75 = arith.constant 0 : index
    %c0_76 = arith.constant 0 : index
    %c0_77 = arith.constant 0 : index
    %c0_78 = arith.constant 0 : index
    %53 = vector.load %arg9[%c0_75, %c0_76, %c0_77, %c0_78] : memref<2x6x16x64xf32, #tpu.memory_space<vmem>>, vector<2x6x16x64xf32>
    %54 = arith.addf %53, %52 : vector<2x6x16x64xf32>
    %c0_79 = arith.constant 0 : index
    %c0_80 = arith.constant 0 : index
    %c0_81 = arith.constant 0 : index
    %c0_82 = arith.constant 0 : index
    %55 = vector.load %arg9[%c0_79, %c0_80, %c0_81, %c0_82] : memref<2x6x16x64xf32, #tpu.memory_space<vmem>>, vector<2x6x16x64xf32>
    tpu.vector_store %arg9[%c0_79, %c0_80, %c0_81, %c0_82], %54 {strides = array<i32>} : memref<2x6x16x64xf32, #tpu.memory_space<vmem>>, vector<2x6x16x64xf32>,
    %c0_83 = arith.constant 0 : index
    %c1_84 = arith.constant 1 : index
    %c2_85 = arith.constant 2 : index
    %c0_86 = arith.constant 0 : index
    %56 = vector.load %arg8[%c0_83, %c1_84, %c2_85, %c0_86] : memref<2x14x10x8xf32, #tpu.memory_space<vmem>>, vector<2x12x8x8xf32>
    %57 = vector.shape_cast %56 : vector<2x12x8x8xf32> to vector<192x8xf32>
    %58 = arith.truncf %57 : vector<192x8xf32> to vector<192x8xbf16>
    %c5 = arith.constant 5 : index
    %c0_87 = arith.constant 0 : index
    %c0_88 = arith.constant 0 : index
    %59 = vector.load %arg1[%c5, %c0_87, %c0_88] : memref<9x8x64xbf16, #tpu.memory_space<vmem>>, vector<1x8x64xbf16>
    %60 = vector.shape_cast %59 : vector<1x8x64xbf16> to vector<8x64xbf16>
    %cst_89 = arith.constant dense<0.000000e+00> : vector<192x64xf32>
    %61 = tpu.matmul %58, %60, %cst_89 {dimension_numbers = #tpu.dot_dimension_numbers<[1], [0], [0], [1], [0, 0, 1, 1], [], []>} : vector<192x8xbf16>, vector<8x64xbf16>, vector<192x64xf32> -> vector<192x64xf32>
    %62 = vector.shape_cast %61 : vector<192x64xf32> to vector<2x6x16x64xf32>
    %c0_90 = arith.constant 0 : index
    %c0_91 = arith.constant 0 : index
    %c0_92 = arith.constant 0 : index
    %c0_93 = arith.constant 0 : index
    %63 = vector.load %arg9[%c0_90, %c0_91, %c0_92, %c0_93] : memref<2x6x16x64xf32, #tpu.memory_space<vmem>>, vector<2x6x16x64xf32>
    %64 = arith.addf %63, %62 : vector<2x6x16x64xf32>
    %c0_94 = arith.constant 0 : index
    %c0_95 = arith.constant 0 : index
    %c0_96 = arith.constant 0 : index
    %c0_97 = arith.constant 0 : index
    %65 = vector.load %arg9[%c0_94, %c0_95, %c0_96, %c0_97] : memref<2x6x16x64xf32, #tpu.memory_space<vmem>>, vector<2x6x16x64xf32>
    tpu.vector_store %arg9[%c0_94, %c0_95, %c0_96, %c0_97], %64 {strides = array<i32>} : memref<2x6x16x64xf32, #tpu.memory_space<vmem>>, vector<2x6x16x64xf32>,
    %c0_98 = arith.constant 0 : index
    %c2_99 = arith.constant 2 : index
    %c0_100 = arith.constant 0 : index
    %c0_101 = arith.constant 0 : index
    %66 = vector.load %arg8[%c0_98, %c2_99, %c0_100, %c0_101] : memref<2x14x10x8xf32, #tpu.memory_space<vmem>>, vector<2x12x8x8xf32>
    %67 = vector.shape_cast %66 : vector<2x12x8x8xf32> to vector<192x8xf32>
    %68 = arith.truncf %67 : vector<192x8xf32> to vector<192x8xbf16>
    %c6 = arith.constant 6 : index
    %c0_102 = arith.constant 0 : index
    %c0_103 = arith.constant 0 : index
    %69 = vector.load %arg1[%c6, %c0_102, %c0_103] : memref<9x8x64xbf16, #tpu.memory_space<vmem>>, vector<1x8x64xbf16>
    %70 = vector.shape_cast %69 : vector<1x8x64xbf16> to vector<8x64xbf16>
    %cst_104 = arith.constant dense<0.000000e+00> : vector<192x64xf32>
    %71 = tpu.matmul %68, %70, %cst_104 {dimension_numbers = #tpu.dot_dimension_numbers<[1], [0], [0], [1], [0, 0, 1, 1], [], []>} : vector<192x8xbf16>, vector<8x64xbf16>, vector<192x64xf32> -> vector<192x64xf32>
    %72 = vector.shape_cast %71 : vector<192x64xf32> to vector<2x6x16x64xf32>
    %c0_105 = arith.constant 0 : index
    %c0_106 = arith.constant 0 : index
    %c0_107 = arith.constant 0 : index
    %c0_108 = arith.constant 0 : index
    %73 = vector.load %arg9[%c0_105, %c0_106, %c0_107, %c0_108] : memref<2x6x16x64xf32, #tpu.memory_space<vmem>>, vector<2x6x16x64xf32>
    %74 = arith.addf %73, %72 : vector<2x6x16x64xf32>
    %c0_109 = arith.constant 0 : index
    %c0_110 = arith.constant 0 : index
    %c0_111 = arith.constant 0 : index
    %c0_112 = arith.constant 0 : index
    %75 = vector.load %arg9[%c0_109, %c0_110, %c0_111, %c0_112] : memref<2x6x16x64xf32, #tpu.memory_space<vmem>>, vector<2x6x16x64xf32>
    tpu.vector_store %arg9[%c0_109, %c0_110, %c0_111, %c0_112], %74 {strides = array<i32>} : memref<2x6x16x64xf32, #tpu.memory_space<vmem>>, vector<2x6x16x64xf32>,
    %c0_113 = arith.constant 0 : index
    %c2_114 = arith.constant 2 : index
    %c1_115 = arith.constant 1 : index
    %c0_116 = arith.constant 0 : index
    %76 = vector.load %arg8[%c0_113, %c2_114, %c1_115, %c0_116] : memref<2x14x10x8xf32, #tpu.memory_space<vmem>>, vector<2x12x8x8xf32>
    %77 = vector.shape_cast %76 : vector<2x12x8x8xf32> to vector<192x8xf32>
    %78 = arith.truncf %77 : vector<192x8xf32> to vector<192x8xbf16>
    %c7 = arith.constant 7 : index
    %c0_117 = arith.constant 0 : index
    %c0_118 = arith.constant 0 : index
    %79 = vector.load %arg1[%c7, %c0_117, %c0_118] : memref<9x8x64xbf16, #tpu.memory_space<vmem>>, vector<1x8x64xbf16>
    %80 = vector.shape_cast %79 : vector<1x8x64xbf16> to vector<8x64xbf16>
    %cst_119 = arith.constant dense<0.000000e+00> : vector<192x64xf32>
    %81 = tpu.matmul %78, %80, %cst_119 {dimension_numbers = #tpu.dot_dimension_numbers<[1], [0], [0], [1], [0, 0, 1, 1], [], []>} : vector<192x8xbf16>, vector<8x64xbf16>, vector<192x64xf32> -> vector<192x64xf32>
    %82 = vector.shape_cast %81 : vector<192x64xf32> to vector<2x6x16x64xf32>
    %c0_120 = arith.constant 0 : index
    %c0_121 = arith.constant 0 : index
    %c0_122 = arith.constant 0 : index
    %c0_123 = arith.constant 0 : index
    %83 = vector.load %arg9[%c0_120, %c0_121, %c0_122, %c0_123] : memref<2x6x16x64xf32, #tpu.memory_space<vmem>>, vector<2x6x16x64xf32>
    %84 = arith.addf %83, %82 : vector<2x6x16x64xf32>
    %c0_124 = arith.constant 0 : index
    %c0_125 = arith.constant 0 : index
    %c0_126 = arith.constant 0 : index
    %c0_127 = arith.constant 0 : index
    %85 = vector.load %arg9[%c0_124, %c0_125, %c0_126, %c0_127] : memref<2x6x16x64xf32, #tpu.memory_space<vmem>>, vector<2x6x16x64xf32>
    tpu.vector_store %arg9[%c0_124, %c0_125, %c0_126, %c0_127], %84 {strides = array<i32>} : memref<2x6x16x64xf32, #tpu.memory_space<vmem>>, vector<2x6x16x64xf32>,
    %c0_128 = arith.constant 0 : index
    %c2_129 = arith.constant 2 : index
    %c2_130 = arith.constant 2 : index
    %c0_131 = arith.constant 0 : index
    %86 = vector.load %arg8[%c0_128, %c2_129, %c2_130, %c0_131] : memref<2x14x10x8xf32, #tpu.memory_space<vmem>>, vector<2x12x8x8xf32>
    %87 = vector.shape_cast %86 : vector<2x12x8x8xf32> to vector<192x8xf32>
    %88 = arith.truncf %87 : vector<192x8xf32> to vector<192x8xbf16>
    %c8 = arith.constant 8 : index
    %c0_132 = arith.constant 0 : index
    %c0_133 = arith.constant 0 : index
    %89 = vector.load %arg1[%c8, %c0_132, %c0_133] : memref<9x8x64xbf16, #tpu.memory_space<vmem>>, vector<1x8x64xbf16>
    %90 = vector.shape_cast %89 : vector<1x8x64xbf16> to vector<8x64xbf16>
    %cst_134 = arith.constant dense<0.000000e+00> : vector<192x64xf32>
    %91 = tpu.matmul %88, %90, %cst_134 {dimension_numbers = #tpu.dot_dimension_numbers<[1], [0], [0], [1], [0, 0, 1, 1], [], []>} : vector<192x8xbf16>, vector<8x64xbf16>, vector<192x64xf32> -> vector<192x64xf32>
    %92 = vector.shape_cast %91 : vector<192x64xf32> to vector<2x6x16x64xf32>
    %c0_135 = arith.constant 0 : index
    %c0_136 = arith.constant 0 : index
    %c0_137 = arith.constant 0 : index
    %c0_138 = arith.constant 0 : index
    %93 = vector.load %arg9[%c0_135, %c0_136, %c0_137, %c0_138] : memref<2x6x16x64xf32, #tpu.memory_space<vmem>>, vector<2x6x16x64xf32>
    %94 = arith.addf %93, %92 : vector<2x6x16x64xf32>
    %c0_139 = arith.constant 0 : index
    %c0_140 = arith.constant 0 : index
    %c0_141 = arith.constant 0 : index
    %c0_142 = arith.constant 0 : index
    %95 = vector.load %arg9[%c0_139, %c0_140, %c0_141, %c0_142] : memref<2x6x16x64xf32, #tpu.memory_space<vmem>>, vector<2x6x16x64xf32>
    tpu.vector_store %arg9[%c0_139, %c0_140, %c0_141, %c0_142], %94 {strides = array<i32>} : memref<2x6x16x64xf32, #tpu.memory_space<vmem>>, vector<2x6x16x64xf32>,
    %c0_143 = arith.constant 0 : index
    %c0_144 = arith.constant 0 : index
    %c0_145 = arith.constant 0 : index
    %c0_146 = arith.constant 0 : index
    %96 = vector.load %arg9[%c0_143, %c0_144, %c0_145, %c0_146] : memref<2x6x16x64xf32, #tpu.memory_space<vmem>>, vector<2x6x16x64xf32>
    %97 = vector.extract_strided_slice %96 {offsets = [0, 0, 0, 0], sizes = [2, 6, 8, 64], strides = [1, 1, 1, 1]} : vector<2x6x16x64xf32> to vector<2x6x8x64xf32>
    %98 = vector.extract_strided_slice %96 {offsets = [0, 0, 8, 0], sizes = [2, 6, 8, 64], strides = [1, 1, 1, 1]} : vector<2x6x16x64xf32> to vector<2x6x8x64xf32>
    %99 = arith.maximumf %97, %98 : vector<2x6x8x64xf32>
    %100 = vector.extract_strided_slice %99 {offsets = [0, 0, 0, 0], sizes = [2, 6, 1, 64], strides = [1, 1, 1, 1]} : vector<2x6x8x64xf32> to vector<2x6x1x64xf32>
    %101 = vector.shape_cast %100 : vector<2x6x1x64xf32> to vector<2x6x64xf32>
    %102 = vector.extract_strided_slice %99 {offsets = [0, 0, 1, 0], sizes = [2, 6, 1, 64], strides = [1, 1, 1, 1]} : vector<2x6x8x64xf32> to vector<2x6x1x64xf32>
    %103 = vector.shape_cast %102 : vector<2x6x1x64xf32> to vector<2x6x64xf32>
    %104 = arith.maximumf %101, %103 : vector<2x6x64xf32>
    %105 = vector.extract_strided_slice %99 {offsets = [0, 0, 2, 0], sizes = [2, 6, 1, 64], strides = [1, 1, 1, 1]} : vector<2x6x8x64xf32> to vector<2x6x1x64xf32>
    %106 = vector.shape_cast %105 : vector<2x6x1x64xf32> to vector<2x6x64xf32>
    %107 = vector.extract_strided_slice %99 {offsets = [0, 0, 3, 0], sizes = [2, 6, 1, 64], strides = [1, 1, 1, 1]} : vector<2x6x8x64xf32> to vector<2x6x1x64xf32>
    %108 = vector.shape_cast %107 : vector<2x6x1x64xf32> to vector<2x6x64xf32>
    %109 = arith.maximumf %106, %108 : vector<2x6x64xf32>
    %110 = vector.extract_strided_slice %99 {offsets = [0, 0, 4, 0], sizes = [2, 6, 1, 64], strides = [1, 1, 1, 1]} : vector<2x6x8x64xf32> to vector<2x6x1x64xf32>
    %111 = vector.shape_cast %110 : vector<2x6x1x64xf32> to vector<2x6x64xf32>
    %112 = vector.extract_strided_slice %99 {offsets = [0, 0, 5, 0], sizes = [2, 6, 1, 64], strides = [1, 1, 1, 1]} : vector<2x6x8x64xf32> to vector<2x6x1x64xf32>
    %113 = vector.shape_cast %112 : vector<2x6x1x64xf32> to vector<2x6x64xf32>
    %114 = arith.maximumf %111, %113 : vector<2x6x64xf32>
    %115 = vector.extract_strided_slice %99 {offsets = [0, 0, 6, 0], sizes = [2, 6, 1, 64], strides = [1, 1, 1, 1]} : vector<2x6x8x64xf32> to vector<2x6x1x64xf32>
    %116 = vector.shape_cast %115 : vector<2x6x1x64xf32> to vector<2x6x64xf32>
    %117 = vector.extract_strided_slice %99 {offsets = [0, 0, 7, 0], sizes = [2, 6, 1, 64], strides = [1, 1, 1, 1]} : vector<2x6x8x64xf32> to vector<2x6x1x64xf32>
    %118 = vector.shape_cast %117 : vector<2x6x1x64xf32> to vector<2x6x64xf32>
    %119 = arith.maximumf %116, %118 : vector<2x6x64xf32>
    %120 = vector.shape_cast %104 : vector<2x6x64xf32> to vector<2x6x1x64xf32>
    %121 = vector.shape_cast %109 : vector<2x6x64xf32> to vector<2x6x1x64xf32>
    %122 = vector.shape_cast %114 : vector<2x6x64xf32> to vector<2x6x1x64xf32>
    %123 = vector.shape_cast %119 : vector<2x6x64xf32> to vector<2x6x1x64xf32>
    %124 = tpu.concatenate %120, %121, %122, %123 in 2 : vector<2x6x1x64xf32>, vector<2x6x1x64xf32>, vector<2x6x1x64xf32>, vector<2x6x1x64xf32> -> vector<2x6x4x64xf32>
    %c0_147 = arith.constant 0 : index
    %c0_148 = arith.constant 0 : index
    %125 = vector.load %arg2[%c0_147, %c0_148] : memref<1x64xf32, #tpu.memory_space<vmem>>, vector<1x64xf32>
    %126 = vector.shape_cast %125 : vector<1x64xf32> to vector<1x1x1x64xf32>
    %127 = vector.broadcast %126 : vector<1x1x1x64xf32> to vector<2x6x4x64xf32>
    %128 = arith.addf %124, %127 : vector<2x6x4x64xf32>
    %cst_149 = arith.constant 0.000000e+00 : f32
    %129 = vector.broadcast %cst_149 : f32 to vector<2x6x4x64xf32>
    %130 = arith.maximumf %128, %129 : vector<2x6x4x64xf32>
    %cst_150 = arith.constant 0.000000e+00 : f32
    %131 = vector.broadcast %cst_150 : f32 to vector<2x8x10x64xf32>
    %c0_151 = arith.constant 0 : index
    %c0_152 = arith.constant 0 : index
    %c0_153 = arith.constant 0 : index
    %c0_154 = arith.constant 0 : index
    %132 = vector.load %arg10[%c0_151, %c0_152, %c0_153, %c0_154] : memref<2x8x10x64xf32, #tpu.memory_space<vmem>>, vector<2x8x10x64xf32>
    tpu.vector_store %arg10[%c0_151, %c0_152, %c0_153, %c0_154], %131 {strides = array<i32>} : memref<2x8x10x64xf32, #tpu.memory_space<vmem>>, vector<2x8x10x64xf32>,
    %c0_155 = arith.constant 0 : index
    %c1_156 = arith.constant 1 : index
    %c1_157 = arith.constant 1 : index
    %c0_158 = arith.constant 0 : index
    %133 = vector.load %arg10[%c0_155, %c1_156, %c1_157, %c0_158] : memref<2x8x10x64xf32, #tpu.memory_space<vmem>>, vector<2x6x4x64xf32>
    tpu.vector_store %arg10[%c0_155, %c1_156, %c1_157, %c0_158], %130 {strides = array<i32>} : memref<2x8x10x64xf32, #tpu.memory_space<vmem>>, vector<2x6x4x64xf32>,
    %c0_i32_159 = arith.constant 0 : i32
    %134 = tpu.memref_slice %arg14[%c0_i32_159] : memref<2x!tpu.dma_semaphore, #tpu.memory_space<semaphore_mem>> -> memref<1x!tpu.dma_semaphore, #tpu.memory_space<semaphore_mem>>
    %135 = tpu.memref_squeeze %134 : memref<1x!tpu.dma_semaphore, #tpu.memory_space<semaphore_mem>> -> memref<!tpu.dma_semaphore, #tpu.memory_space<semaphore_mem>>
    tpu.wait_dma2 semaphore(%135 : memref<!tpu.dma_semaphore, #tpu.memory_space<semaphore_mem>>) src(%arg3 : memref<9x64x512xbf16, #tpu.memory_space<any>>) dst(%arg12 : memref<9x64x512xbf16, #tpu.memory_space<vmem>>)
    %c0_160 = arith.constant 0 : index
    %c0_161 = arith.constant 0 : index
    %c0_162 = arith.constant 0 : index
    %c0_163 = arith.constant 0 : index
    %136 = vector.load %arg10[%c0_160, %c0_161, %c0_162, %c0_163] : memref<2x8x10x64xf32, #tpu.memory_space<vmem>>, vector<2x6x8x64xf32>
    %137 = vector.shape_cast %136 : vector<2x6x8x64xf32> to vector<96x64xf32>
    %138 = arith.truncf %137 : vector<96x64xf32> to vector<96x64xbf16>
    %c0_164 = arith.constant 0 : index
    %c0_165 = arith.constant 0 : index
    %c0_166 = arith.constant 0 : index
    %139 = vector.load %arg12[%c0_164, %c0_165, %c0_166] : memref<9x64x512xbf16, #tpu.memory_space<vmem>>, vector<1x64x512xbf16>
    %140 = vector.shape_cast %139 : vector<1x64x512xbf16> to vector<64x512xbf16>
    %cst_167 = arith.constant dense<0.000000e+00> : vector<96x512xf32>
    %141 = tpu.matmul %138, %140, %cst_167 {dimension_numbers = #tpu.dot_dimension_numbers<[1], [0], [0], [1], [0, 0, 1, 1], [], []>} : vector<96x64xbf16>, vector<64x512xbf16>, vector<96x512xf32> -> vector<96x512xf32>
    %142 = vector.shape_cast %141 : vector<96x512xf32> to vector<2x3x16x512xf32>
    %c0_168 = arith.constant 0 : index
    %c0_169 = arith.constant 0 : index
    %c0_170 = arith.constant 0 : index
    %c0_171 = arith.constant 0 : index
    %143 = vector.load %arg11[%c0_168, %c0_169, %c0_170, %c0_171] : memref<2x3x16x512xf32, #tpu.memory_space<vmem>>, vector<2x3x16x512xf32>
    tpu.vector_store %arg11[%c0_168, %c0_169, %c0_170, %c0_171], %142 {strides = array<i32>} : memref<2x3x16x512xf32, #tpu.memory_space<vmem>>, vector<2x3x16x512xf32>,
    %c0_172 = arith.constant 0 : index
    %c0_173 = arith.constant 0 : index
    %c1_174 = arith.constant 1 : index
    %c0_175 = arith.constant 0 : index
    %144 = vector.load %arg10[%c0_172, %c0_173, %c1_174, %c0_175] : memref<2x8x10x64xf32, #tpu.memory_space<vmem>>, vector<2x6x8x64xf32>
    %145 = vector.shape_cast %144 : vector<2x6x8x64xf32> to vector<96x64xf32>
    %146 = arith.truncf %145 : vector<96x64xf32> to vector<96x64xbf16>
    %c1_176 = arith.constant 1 : index
    %c0_177 = arith.constant 0 : index
    %c0_178 = arith.constant 0 : index
    %147 = vector.load %arg12[%c1_176, %c0_177, %c0_178] : memref<9x64x512xbf16, #tpu.memory_space<vmem>>, vector<1x64x512xbf16>
    %148 = vector.shape_cast %147 : vector<1x64x512xbf16> to vector<64x512xbf16>
    %cst_179 = arith.constant dense<0.000000e+00> : vector<96x512xf32>
    %149 = tpu.matmul %146, %148, %cst_179 {dimension_numbers = #tpu.dot_dimension_numbers<[1], [0], [0], [1], [0, 0, 1, 1], [], []>} : vector<96x64xbf16>, vector<64x512xbf16>, vector<96x512xf32> -> vector<96x512xf32>
    %150 = vector.shape_cast %149 : vector<96x512xf32> to vector<2x3x16x512xf32>
    %c0_180 = arith.constant 0 : index
    %c0_181 = arith.constant 0 : index
    %c0_182 = arith.constant 0 : index
    %c0_183 = arith.constant 0 : index
    %151 = vector.load %arg11[%c0_180, %c0_181, %c0_182, %c0_183] : memref<2x3x16x512xf32, #tpu.memory_space<vmem>>, vector<2x3x16x512xf32>
    %152 = arith.addf %151, %150 : vector<2x3x16x512xf32>
    %c0_184 = arith.constant 0 : index
    %c0_185 = arith.constant 0 : index
    %c0_186 = arith.constant 0 : index
    %c0_187 = arith.constant 0 : index
    %153 = vector.load %arg11[%c0_184, %c0_185, %c0_186, %c0_187] : memref<2x3x16x512xf32, #tpu.memory_space<vmem>>, vector<2x3x16x512xf32>
    tpu.vector_store %arg11[%c0_184, %c0_185, %c0_186, %c0_187], %152 {strides = array<i32>} : memref<2x3x16x512xf32, #tpu.memory_space<vmem>>, vector<2x3x16x512xf32>,
    %c0_188 = arith.constant 0 : index
    %c0_189 = arith.constant 0 : index
    %c2_190 = arith.constant 2 : index
    %c0_191 = arith.constant 0 : index
    %154 = vector.load %arg10[%c0_188, %c0_189, %c2_190, %c0_191] : memref<2x8x10x64xf32, #tpu.memory_space<vmem>>, vector<2x6x8x64xf32>
    %155 = vector.shape_cast %154 : vector<2x6x8x64xf32> to vector<96x64xf32>
    %156 = arith.truncf %155 : vector<96x64xf32> to vector<96x64xbf16>
    %c2_192 = arith.constant 2 : index
    %c0_193 = arith.constant 0 : index
    %c0_194 = arith.constant 0 : index
    %157 = vector.load %arg12[%c2_192, %c0_193, %c0_194] : memref<9x64x512xbf16, #tpu.memory_space<vmem>>, vector<1x64x512xbf16>
    %158 = vector.shape_cast %157 : vector<1x64x512xbf16> to vector<64x512xbf16>
    %cst_195 = arith.constant dense<0.000000e+00> : vector<96x512xf32>
    %159 = tpu.matmul %156, %158, %cst_195 {dimension_numbers = #tpu.dot_dimension_numbers<[1], [0], [0], [1], [0, 0, 1, 1], [], []>} : vector<96x64xbf16>, vector<64x512xbf16>, vector<96x512xf32> -> vector<96x512xf32>
    %160 = vector.shape_cast %159 : vector<96x512xf32> to vector<2x3x16x512xf32>
    %c0_196 = arith.constant 0 : index
    %c0_197 = arith.constant 0 : index
    %c0_198 = arith.constant 0 : index
    %c0_199 = arith.constant 0 : index
    %161 = vector.load %arg11[%c0_196, %c0_197, %c0_198, %c0_199] : memref<2x3x16x512xf32, #tpu.memory_space<vmem>>, vector<2x3x16x512xf32>
    %162 = arith.addf %161, %160 : vector<2x3x16x512xf32>
    %c0_200 = arith.constant 0 : index
    %c0_201 = arith.constant 0 : index
    %c0_202 = arith.constant 0 : index
    %c0_203 = arith.constant 0 : index
    %163 = vector.load %arg11[%c0_200, %c0_201, %c0_202, %c0_203] : memref<2x3x16x512xf32, #tpu.memory_space<vmem>>, vector<2x3x16x512xf32>
    tpu.vector_store %arg11[%c0_200, %c0_201, %c0_202, %c0_203], %162 {strides = array<i32>} : memref<2x3x16x512xf32, #tpu.memory_space<vmem>>, vector<2x3x16x512xf32>,
    %c0_204 = arith.constant 0 : index
    %c1_205 = arith.constant 1 : index
    %c0_206 = arith.constant 0 : index
    %c0_207 = arith.constant 0 : index
    %164 = vector.load %arg10[%c0_204, %c1_205, %c0_206, %c0_207] : memref<2x8x10x64xf32, #tpu.memory_space<vmem>>, vector<2x6x8x64xf32>
    %165 = vector.shape_cast %164 : vector<2x6x8x64xf32> to vector<96x64xf32>
    %166 = arith.truncf %165 : vector<96x64xf32> to vector<96x64xbf16>
    %c3_208 = arith.constant 3 : index
    %c0_209 = arith.constant 0 : index
    %c0_210 = arith.constant 0 : index
    %167 = vector.load %arg12[%c3_208, %c0_209, %c0_210] : memref<9x64x512xbf16, #tpu.memory_space<vmem>>, vector<1x64x512xbf16>
    %168 = vector.shape_cast %167 : vector<1x64x512xbf16> to vector<64x512xbf16>
    %cst_211 = arith.constant dense<0.000000e+00> : vector<96x512xf32>
    %169 = tpu.matmul %166, %168, %cst_211 {dimension_numbers = #tpu.dot_dimension_numbers<[1], [0], [0], [1], [0, 0, 1, 1], [], []>} : vector<96x64xbf16>, vector<64x512xbf16>, vector<96x512xf32> -> vector<96x512xf32>
    %170 = vector.shape_cast %169 : vector<96x512xf32> to vector<2x3x16x512xf32>
    %c0_212 = arith.constant 0 : index
    %c0_213 = arith.constant 0 : index
    %c0_214 = arith.constant 0 : index
    %c0_215 = arith.constant 0 : index
    %171 = vector.load %arg11[%c0_212, %c0_213, %c0_214, %c0_215] : memref<2x3x16x512xf32, #tpu.memory_space<vmem>>, vector<2x3x16x512xf32>
    %172 = arith.addf %171, %170 : vector<2x3x16x512xf32>
    %c0_216 = arith.constant 0 : index
    %c0_217 = arith.constant 0 : index
    %c0_218 = arith.constant 0 : index
    %c0_219 = arith.constant 0 : index
    %173 = vector.load %arg11[%c0_216, %c0_217, %c0_218, %c0_219] : memref<2x3x16x512xf32, #tpu.memory_space<vmem>>, vector<2x3x16x512xf32>
    tpu.vector_store %arg11[%c0_216, %c0_217, %c0_218, %c0_219], %172 {strides = array<i32>} : memref<2x3x16x512xf32, #tpu.memory_space<vmem>>, vector<2x3x16x512xf32>,
    %c0_220 = arith.constant 0 : index
    %c1_221 = arith.constant 1 : index
    %c1_222 = arith.constant 1 : index
    %c0_223 = arith.constant 0 : index
    %174 = vector.load %arg10[%c0_220, %c1_221, %c1_222, %c0_223] : memref<2x8x10x64xf32, #tpu.memory_space<vmem>>, vector<2x6x8x64xf32>
    %175 = vector.shape_cast %174 : vector<2x6x8x64xf32> to vector<96x64xf32>
    %176 = arith.truncf %175 : vector<96x64xf32> to vector<96x64xbf16>
    %c4_224 = arith.constant 4 : index
    %c0_225 = arith.constant 0 : index
    %c0_226 = arith.constant 0 : index
    %177 = vector.load %arg12[%c4_224, %c0_225, %c0_226] : memref<9x64x512xbf16, #tpu.memory_space<vmem>>, vector<1x64x512xbf16>
    %178 = vector.shape_cast %177 : vector<1x64x512xbf16> to vector<64x512xbf16>
    %cst_227 = arith.constant dense<0.000000e+00> : vector<96x512xf32>
    %179 = tpu.matmul %176, %178, %cst_227 {dimension_numbers = #tpu.dot_dimension_numbers<[1], [0], [0], [1], [0, 0, 1, 1], [], []>} : vector<96x64xbf16>, vector<64x512xbf16>, vector<96x512xf32> -> vector<96x512xf32>
    %180 = vector.shape_cast %179 : vector<96x512xf32> to vector<2x3x16x512xf32>
    %c0_228 = arith.constant 0 : index
    %c0_229 = arith.constant 0 : index
    %c0_230 = arith.constant 0 : index
    %c0_231 = arith.constant 0 : index
    %181 = vector.load %arg11[%c0_228, %c0_229, %c0_230, %c0_231] : memref<2x3x16x512xf32, #tpu.memory_space<vmem>>, vector<2x3x16x512xf32>
    %182 = arith.addf %181, %180 : vector<2x3x16x512xf32>
    %c0_232 = arith.constant 0 : index
    %c0_233 = arith.constant 0 : index
    %c0_234 = arith.constant 0 : index
    %c0_235 = arith.constant 0 : index
    %183 = vector.load %arg11[%c0_232, %c0_233, %c0_234, %c0_235] : memref<2x3x16x512xf32, #tpu.memory_space<vmem>>, vector<2x3x16x512xf32>
    tpu.vector_store %arg11[%c0_232, %c0_233, %c0_234, %c0_235], %182 {strides = array<i32>} : memref<2x3x16x512xf32, #tpu.memory_space<vmem>>, vector<2x3x16x512xf32>,
    %c0_236 = arith.constant 0 : index
    %c1_237 = arith.constant 1 : index
    %c2_238 = arith.constant 2 : index
    %c0_239 = arith.constant 0 : index
    %184 = vector.load %arg10[%c0_236, %c1_237, %c2_238, %c0_239] : memref<2x8x10x64xf32, #tpu.memory_space<vmem>>, vector<2x6x8x64xf32>
    %185 = vector.shape_cast %184 : vector<2x6x8x64xf32> to vector<96x64xf32>
    %186 = arith.truncf %185 : vector<96x64xf32> to vector<96x64xbf16>
    %c5_240 = arith.constant 5 : index
    %c0_241 = arith.constant 0 : index
    %c0_242 = arith.constant 0 : index
    %187 = vector.load %arg12[%c5_240, %c0_241, %c0_242] : memref<9x64x512xbf16, #tpu.memory_space<vmem>>, vector<1x64x512xbf16>
    %188 = vector.shape_cast %187 : vector<1x64x512xbf16> to vector<64x512xbf16>
    %cst_243 = arith.constant dense<0.000000e+00> : vector<96x512xf32>
    %189 = tpu.matmul %186, %188, %cst_243 {dimension_numbers = #tpu.dot_dimension_numbers<[1], [0], [0], [1], [0, 0, 1, 1], [], []>} : vector<96x64xbf16>, vector<64x512xbf16>, vector<96x512xf32> -> vector<96x512xf32>
    %190 = vector.shape_cast %189 : vector<96x512xf32> to vector<2x3x16x512xf32>
    %c0_244 = arith.constant 0 : index
    %c0_245 = arith.constant 0 : index
    %c0_246 = arith.constant 0 : index
    %c0_247 = arith.constant 0 : index
    %191 = vector.load %arg11[%c0_244, %c0_245, %c0_246, %c0_247] : memref<2x3x16x512xf32, #tpu.memory_space<vmem>>, vector<2x3x16x512xf32>
    %192 = arith.addf %191, %190 : vector<2x3x16x512xf32>
    %c0_248 = arith.constant 0 : index
    %c0_249 = arith.constant 0 : index
    %c0_250 = arith.constant 0 : index
    %c0_251 = arith.constant 0 : index
    %193 = vector.load %arg11[%c0_248, %c0_249, %c0_250, %c0_251] : memref<2x3x16x512xf32, #tpu.memory_space<vmem>>, vector<2x3x16x512xf32>
    tpu.vector_store %arg11[%c0_248, %c0_249, %c0_250, %c0_251], %192 {strides = array<i32>} : memref<2x3x16x512xf32, #tpu.memory_space<vmem>>, vector<2x3x16x512xf32>,
    %c0_252 = arith.constant 0 : index
    %c2_253 = arith.constant 2 : index
    %c0_254 = arith.constant 0 : index
    %c0_255 = arith.constant 0 : index
    %194 = vector.load %arg10[%c0_252, %c2_253, %c0_254, %c0_255] : memref<2x8x10x64xf32, #tpu.memory_space<vmem>>, vector<2x6x8x64xf32>
    %195 = vector.shape_cast %194 : vector<2x6x8x64xf32> to vector<96x64xf32>
    %196 = arith.truncf %195 : vector<96x64xf32> to vector<96x64xbf16>
    %c6_256 = arith.constant 6 : index
    %c0_257 = arith.constant 0 : index
    %c0_258 = arith.constant 0 : index
    %197 = vector.load %arg12[%c6_256, %c0_257, %c0_258] : memref<9x64x512xbf16, #tpu.memory_space<vmem>>, vector<1x64x512xbf16>
    %198 = vector.shape_cast %197 : vector<1x64x512xbf16> to vector<64x512xbf16>
    %cst_259 = arith.constant dense<0.000000e+00> : vector<96x512xf32>
    %199 = tpu.matmul %196, %198, %cst_259 {dimension_numbers = #tpu.dot_dimension_numbers<[1], [0], [0], [1], [0, 0, 1, 1], [], []>} : vector<96x64xbf16>, vector<64x512xbf16>, vector<96x512xf32> -> vector<96x512xf32>
    %200 = vector.shape_cast %199 : vector<96x512xf32> to vector<2x3x16x512xf32>
    %c0_260 = arith.constant 0 : index
    %c0_261 = arith.constant 0 : index
    %c0_262 = arith.constant 0 : index
    %c0_263 = arith.constant 0 : index
    %201 = vector.load %arg11[%c0_260, %c0_261, %c0_262, %c0_263] : memref<2x3x16x512xf32, #tpu.memory_space<vmem>>, vector<2x3x16x512xf32>
    %202 = arith.addf %201, %200 : vector<2x3x16x512xf32>
    %c0_264 = arith.constant 0 : index
    %c0_265 = arith.constant 0 : index
    %c0_266 = arith.constant 0 : index
    %c0_267 = arith.constant 0 : index
    %203 = vector.load %arg11[%c0_264, %c0_265, %c0_266, %c0_267] : memref<2x3x16x512xf32, #tpu.memory_space<vmem>>, vector<2x3x16x512xf32>
    tpu.vector_store %arg11[%c0_264, %c0_265, %c0_266, %c0_267], %202 {strides = array<i32>} : memref<2x3x16x512xf32, #tpu.memory_space<vmem>>, vector<2x3x16x512xf32>,
    %c0_268 = arith.constant 0 : index
    %c2_269 = arith.constant 2 : index
    %c1_270 = arith.constant 1 : index
    %c0_271 = arith.constant 0 : index
    %204 = vector.load %arg10[%c0_268, %c2_269, %c1_270, %c0_271] : memref<2x8x10x64xf32, #tpu.memory_space<vmem>>, vector<2x6x8x64xf32>
    %205 = vector.shape_cast %204 : vector<2x6x8x64xf32> to vector<96x64xf32>
    %206 = arith.truncf %205 : vector<96x64xf32> to vector<96x64xbf16>
    %c7_272 = arith.constant 7 : index
    %c0_273 = arith.constant 0 : index
    %c0_274 = arith.constant 0 : index
    %207 = vector.load %arg12[%c7_272, %c0_273, %c0_274] : memref<9x64x512xbf16, #tpu.memory_space<vmem>>, vector<1x64x512xbf16>
    %208 = vector.shape_cast %207 : vector<1x64x512xbf16> to vector<64x512xbf16>
    %cst_275 = arith.constant dense<0.000000e+00> : vector<96x512xf32>
    %209 = tpu.matmul %206, %208, %cst_275 {dimension_numbers = #tpu.dot_dimension_numbers<[1], [0], [0], [1], [0, 0, 1, 1], [], []>} : vector<96x64xbf16>, vector<64x512xbf16>, vector<96x512xf32> -> vector<96x512xf32>
    %210 = vector.shape_cast %209 : vector<96x512xf32> to vector<2x3x16x512xf32>
    %c0_276 = arith.constant 0 : index
    %c0_277 = arith.constant 0 : index
    %c0_278 = arith.constant 0 : index
    %c0_279 = arith.constant 0 : index
    %211 = vector.load %arg11[%c0_276, %c0_277, %c0_278, %c0_279] : memref<2x3x16x512xf32, #tpu.memory_space<vmem>>, vector<2x3x16x512xf32>
    %212 = arith.addf %211, %210 : vector<2x3x16x512xf32>
    %c0_280 = arith.constant 0 : index
    %c0_281 = arith.constant 0 : index
    %c0_282 = arith.constant 0 : index
    %c0_283 = arith.constant 0 : index
    %213 = vector.load %arg11[%c0_280, %c0_281, %c0_282, %c0_283] : memref<2x3x16x512xf32, #tpu.memory_space<vmem>>, vector<2x3x16x512xf32>
    tpu.vector_store %arg11[%c0_280, %c0_281, %c0_282, %c0_283], %212 {strides = array<i32>} : memref<2x3x16x512xf32, #tpu.memory_space<vmem>>, vector<2x3x16x512xf32>,
    %c0_284 = arith.constant 0 : index
    %c2_285 = arith.constant 2 : index
    %c2_286 = arith.constant 2 : index
    %c0_287 = arith.constant 0 : index
    %214 = vector.load %arg10[%c0_284, %c2_285, %c2_286, %c0_287] : memref<2x8x10x64xf32, #tpu.memory_space<vmem>>, vector<2x6x8x64xf32>
    %215 = vector.shape_cast %214 : vector<2x6x8x64xf32> to vector<96x64xf32>
    %216 = arith.truncf %215 : vector<96x64xf32> to vector<96x64xbf16>
    %c8_288 = arith.constant 8 : index
    %c0_289 = arith.constant 0 : index
    %c0_290 = arith.constant 0 : index
    %217 = vector.load %arg12[%c8_288, %c0_289, %c0_290] : memref<9x64x512xbf16, #tpu.memory_space<vmem>>, vector<1x64x512xbf16>
    %218 = vector.shape_cast %217 : vector<1x64x512xbf16> to vector<64x512xbf16>
    %cst_291 = arith.constant dense<0.000000e+00> : vector<96x512xf32>
    %219 = tpu.matmul %216, %218, %cst_291 {dimension_numbers = #tpu.dot_dimension_numbers<[1], [0], [0], [1], [0, 0, 1, 1], [], []>} : vector<96x64xbf16>, vector<64x512xbf16>, vector<96x512xf32> -> vector<96x512xf32>
    %220 = vector.shape_cast %219 : vector<96x512xf32> to vector<2x3x16x512xf32>
    %c0_292 = arith.constant 0 : index
    %c0_293 = arith.constant 0 : index
    %c0_294 = arith.constant 0 : index
    %c0_295 = arith.constant 0 : index
    %221 = vector.load %arg11[%c0_292, %c0_293, %c0_294, %c0_295] : memref<2x3x16x512xf32, #tpu.memory_space<vmem>>, vector<2x3x16x512xf32>
    %222 = arith.addf %221, %220 : vector<2x3x16x512xf32>
    %c0_296 = arith.constant 0 : index
    %c0_297 = arith.constant 0 : index
    %c0_298 = arith.constant 0 : index
    %c0_299 = arith.constant 0 : index
    %223 = vector.load %arg11[%c0_296, %c0_297, %c0_298, %c0_299] : memref<2x3x16x512xf32, #tpu.memory_space<vmem>>, vector<2x3x16x512xf32>
    tpu.vector_store %arg11[%c0_296, %c0_297, %c0_298, %c0_299], %222 {strides = array<i32>} : memref<2x3x16x512xf32, #tpu.memory_space<vmem>>, vector<2x3x16x512xf32>,
    %c0_300 = arith.constant 0 : index
    %c0_301 = arith.constant 0 : index
    %c0_302 = arith.constant 0 : index
    %c0_303 = arith.constant 0 : index
    %224 = vector.load %arg11[%c0_300, %c0_301, %c0_302, %c0_303] : memref<2x3x16x512xf32, #tpu.memory_space<vmem>>, vector<2x3x16x512xf32>
    %225 = vector.extract_strided_slice %224 {offsets = [0, 0, 0, 0], sizes = [2, 3, 8, 512], strides = [1, 1, 1, 1]} : vector<2x3x16x512xf32> to vector<2x3x8x512xf32>
    %226 = vector.extract_strided_slice %224 {offsets = [0, 0, 8, 0], sizes = [2, 3, 8, 512], strides = [1, 1, 1, 1]} : vector<2x3x16x512xf32> to vector<2x3x8x512xf32>
    %227 = arith.maximumf %225, %226 : vector<2x3x8x512xf32>
    %228 = vector.extract_strided_slice %227 {offsets = [0, 0, 0, 0], sizes = [2, 3, 1, 512], strides = [1, 1, 1, 1]} : vector<2x3x8x512xf32> to vector<2x3x1x512xf32>
    %229 = vector.shape_cast %228 : vector<2x3x1x512xf32> to vector<2x3x512xf32>
    %230 = vector.extract_strided_slice %227 {offsets = [0, 0, 1, 0], sizes = [2, 3, 1, 512], strides = [1, 1, 1, 1]} : vector<2x3x8x512xf32> to vector<2x3x1x512xf32>
    %231 = vector.shape_cast %230 : vector<2x3x1x512xf32> to vector<2x3x512xf32>
    %232 = arith.maximumf %229, %231 : vector<2x3x512xf32>
    %c0_304 = arith.constant 0 : index
    %c0_305 = arith.constant 0 : index
    %233 = vector.load %arg4[%c0_304, %c0_305] : memref<1x512xf32, #tpu.memory_space<vmem>>, vector<1x512xf32>
    %234 = vector.shape_cast %233 : vector<1x512xf32> to vector<1x1x512xf32>
    %235 = vector.broadcast %234 : vector<1x1x512xf32> to vector<2x3x512xf32>
    %236 = arith.addf %232, %235 : vector<2x3x512xf32>
    %cst_306 = arith.constant 0.000000e+00 : f32
    %237 = vector.broadcast %cst_306 : f32 to vector<2x3x512xf32>
    %238 = arith.maximumf %236, %237 : vector<2x3x512xf32>
    %239 = vector.extract_strided_slice %227 {offsets = [0, 0, 2, 0], sizes = [2, 3, 1, 512], strides = [1, 1, 1, 1]} : vector<2x3x8x512xf32> to vector<2x3x1x512xf32>
    %240 = vector.shape_cast %239 : vector<2x3x1x512xf32> to vector<2x3x512xf32>
    %241 = vector.extract_strided_slice %227 {offsets = [0, 0, 3, 0], sizes = [2, 3, 1, 512], strides = [1, 1, 1, 1]} : vector<2x3x8x512xf32> to vector<2x3x1x512xf32>
    %242 = vector.shape_cast %241 : vector<2x3x1x512xf32> to vector<2x3x512xf32>
    %243 = arith.maximumf %240, %242 : vector<2x3x512xf32>
    %c0_307 = arith.constant 0 : index
    %c0_308 = arith.constant 0 : index
    %244 = vector.load %arg4[%c0_307, %c0_308] : memref<1x512xf32, #tpu.memory_space<vmem>>, vector<1x512xf32>
    %245 = vector.shape_cast %244 : vector<1x512xf32> to vector<1x1x512xf32>
    %246 = vector.broadcast %245 : vector<1x1x512xf32> to vector<2x3x512xf32>
    %247 = arith.addf %243, %246 : vector<2x3x512xf32>
    %cst_309 = arith.constant 0.000000e+00 : f32
    %248 = vector.broadcast %cst_309 : f32 to vector<2x3x512xf32>
    %249 = arith.maximumf %247, %248 : vector<2x3x512xf32>
    %c1_i32_310 = arith.constant 1 : i32
    %250 = tpu.memref_slice %arg14[%c1_i32_310] : memref<2x!tpu.dma_semaphore, #tpu.memory_space<semaphore_mem>> -> memref<1x!tpu.dma_semaphore, #tpu.memory_space<semaphore_mem>>
    %251 = tpu.memref_squeeze %250 : memref<1x!tpu.dma_semaphore, #tpu.memory_space<semaphore_mem>> -> memref<!tpu.dma_semaphore, #tpu.memory_space<semaphore_mem>>
    tpu.wait_dma2 semaphore(%251 : memref<!tpu.dma_semaphore, #tpu.memory_space<semaphore_mem>>) src(%arg5 : memref<6x512x16xbf16, #tpu.memory_space<any>>) dst(%arg13 : memref<6x512x16xbf16, #tpu.memory_space<vmem>>)
    %252 = vector.extract_strided_slice %238 {offsets = [0, 0, 0], sizes = [2, 1, 512], strides = [1, 1, 1]} : vector<2x3x512xf32> to vector<2x1x512xf32>
    %253 = vector.shape_cast %252 : vector<2x1x512xf32> to vector<2x512xf32>
    %254 = arith.truncf %253 : vector<2x512xf32> to vector<2x512xbf16>
    %c0_311 = arith.constant 0 : index
    %c0_312 = arith.constant 0 : index
    %c0_313 = arith.constant 0 : index
    %255 = vector.load %arg13[%c0_311, %c0_312, %c0_313] : memref<6x512x16xbf16, #tpu.memory_space<vmem>>, vector<1x512x16xbf16>
    %256 = vector.shape_cast %255 : vector<1x512x16xbf16> to vector<512x16xbf16>
    %cst_314 = arith.constant dense<0.000000e+00> : vector<2x16xf32>
    %257 = tpu.matmul %254, %256, %cst_314 {dimension_numbers = #tpu.dot_dimension_numbers<[1], [0], [0], [1], [0, 0, 1, 1], [], []>} : vector<2x512xbf16>, vector<512x16xbf16>, vector<2x16xf32> -> vector<2x16xf32>
    %258 = vector.extract_strided_slice %249 {offsets = [0, 0, 0], sizes = [2, 1, 512], strides = [1, 1, 1]} : vector<2x3x512xf32> to vector<2x1x512xf32>
    %259 = vector.shape_cast %258 : vector<2x1x512xf32> to vector<2x512xf32>
    %260 = arith.truncf %259 : vector<2x512xf32> to vector<2x512xbf16>
    %c1_315 = arith.constant 1 : index
    %c0_316 = arith.constant 0 : index
    %c0_317 = arith.constant 0 : index
    %261 = vector.load %arg13[%c1_315, %c0_316, %c0_317] : memref<6x512x16xbf16, #tpu.memory_space<vmem>>, vector<1x512x16xbf16>
    %262 = vector.shape_cast %261 : vector<1x512x16xbf16> to vector<512x16xbf16>
    %cst_318 = arith.constant dense<0.000000e+00> : vector<2x16xf32>
    %263 = tpu.matmul %260, %262, %cst_318 {dimension_numbers = #tpu.dot_dimension_numbers<[1], [0], [0], [1], [0, 0, 1, 1], [], []>} : vector<2x512xbf16>, vector<512x16xbf16>, vector<2x16xf32> -> vector<2x16xf32>
    %264 = arith.addf %257, %263 : vector<2x16xf32>
    %265 = vector.extract_strided_slice %238 {offsets = [0, 1, 0], sizes = [2, 1, 512], strides = [1, 1, 1]} : vector<2x3x512xf32> to vector<2x1x512xf32>
    %266 = vector.shape_cast %265 : vector<2x1x512xf32> to vector<2x512xf32>
    %267 = arith.truncf %266 : vector<2x512xf32> to vector<2x512xbf16>
    %c2_319 = arith.constant 2 : index
    %c0_320 = arith.constant 0 : index
    %c0_321 = arith.constant 0 : index
    %268 = vector.load %arg13[%c2_319, %c0_320, %c0_321] : memref<6x512x16xbf16, #tpu.memory_space<vmem>>, vector<1x512x16xbf16>
    %269 = vector.shape_cast %268 : vector<1x512x16xbf16> to vector<512x16xbf16>
    %cst_322 = arith.constant dense<0.000000e+00> : vector<2x16xf32>
    %270 = tpu.matmul %267, %269, %cst_322 {dimension_numbers = #tpu.dot_dimension_numbers<[1], [0], [0], [1], [0, 0, 1, 1], [], []>} : vector<2x512xbf16>, vector<512x16xbf16>, vector<2x16xf32> -> vector<2x16xf32>
    %271 = arith.addf %264, %270 : vector<2x16xf32>
    %272 = vector.extract_strided_slice %249 {offsets = [0, 1, 0], sizes = [2, 1, 512], strides = [1, 1, 1]} : vector<2x3x512xf32> to vector<2x1x512xf32>
    %273 = vector.shape_cast %272 : vector<2x1x512xf32> to vector<2x512xf32>
    %274 = arith.truncf %273 : vector<2x512xf32> to vector<2x512xbf16>
    %c3_323 = arith.constant 3 : index
    %c0_324 = arith.constant 0 : index
    %c0_325 = arith.constant 0 : index
    %275 = vector.load %arg13[%c3_323, %c0_324, %c0_325] : memref<6x512x16xbf16, #tpu.memory_space<vmem>>, vector<1x512x16xbf16>
    %276 = vector.shape_cast %275 : vector<1x512x16xbf16> to vector<512x16xbf16>
    %cst_326 = arith.constant dense<0.000000e+00> : vector<2x16xf32>
    %277 = tpu.matmul %274, %276, %cst_326 {dimension_numbers = #tpu.dot_dimension_numbers<[1], [0], [0], [1], [0, 0, 1, 1], [], []>} : vector<2x512xbf16>, vector<512x16xbf16>, vector<2x16xf32> -> vector<2x16xf32>
    %278 = arith.addf %271, %277 : vector<2x16xf32>
    %279 = vector.extract_strided_slice %238 {offsets = [0, 2, 0], sizes = [2, 1, 512], strides = [1, 1, 1]} : vector<2x3x512xf32> to vector<2x1x512xf32>
    %280 = vector.shape_cast %279 : vector<2x1x512xf32> to vector<2x512xf32>
    %281 = arith.truncf %280 : vector<2x512xf32> to vector<2x512xbf16>
    %c4_327 = arith.constant 4 : index
    %c0_328 = arith.constant 0 : index
    %c0_329 = arith.constant 0 : index
    %282 = vector.load %arg13[%c4_327, %c0_328, %c0_329] : memref<6x512x16xbf16, #tpu.memory_space<vmem>>, vector<1x512x16xbf16>
    %283 = vector.shape_cast %282 : vector<1x512x16xbf16> to vector<512x16xbf16>
    %cst_330 = arith.constant dense<0.000000e+00> : vector<2x16xf32>
    %284 = tpu.matmul %281, %283, %cst_330 {dimension_numbers = #tpu.dot_dimension_numbers<[1], [0], [0], [1], [0, 0, 1, 1], [], []>} : vector<2x512xbf16>, vector<512x16xbf16>, vector<2x16xf32> -> vector<2x16xf32>
    %285 = arith.addf %278, %284 : vector<2x16xf32>
    %286 = vector.extract_strided_slice %249 {offsets = [0, 2, 0], sizes = [2, 1, 512], strides = [1, 1, 1]} : vector<2x3x512xf32> to vector<2x1x512xf32>
    %287 = vector.shape_cast %286 : vector<2x1x512xf32> to vector<2x512xf32>
    %288 = arith.truncf %287 : vector<2x512xf32> to vector<2x512xbf16>
    %c5_331 = arith.constant 5 : index
    %c0_332 = arith.constant 0 : index
    %c0_333 = arith.constant 0 : index
    %289 = vector.load %arg13[%c5_331, %c0_332, %c0_333] : memref<6x512x16xbf16, #tpu.memory_space<vmem>>, vector<1x512x16xbf16>
    %290 = vector.shape_cast %289 : vector<1x512x16xbf16> to vector<512x16xbf16>
    %cst_334 = arith.constant dense<0.000000e+00> : vector<2x16xf32>
    %291 = tpu.matmul %288, %290, %cst_334 {dimension_numbers = #tpu.dot_dimension_numbers<[1], [0], [0], [1], [0, 0, 1, 1], [], []>} : vector<2x512xbf16>, vector<512x16xbf16>, vector<2x16xf32> -> vector<2x16xf32>
    %292 = arith.addf %285, %291 : vector<2x16xf32>
    %c0_335 = arith.constant 0 : index
    %c0_336 = arith.constant 0 : index
    %293 = vector.load %arg6[%c0_335, %c0_336] : memref<1x16xf32, #tpu.memory_space<vmem>>, vector<1x16xf32>
    %294 = vector.broadcast %293 : vector<1x16xf32> to vector<2x16xf32>
    %295 = arith.addf %292, %294 : vector<2x16xf32>
    %c0_337 = arith.constant 0 : index
    %c0_338 = arith.constant 0 : index
    %296 = vector.load %arg7[%c0_337, %c0_338] : memref<2x16xf32, #tpu.memory_space<vmem>>, vector<2x16xf32>
    tpu.vector_store %arg7[%c0_337, %c0_338], %295 {strides = array<i32>} : memref<2x16xf32, #tpu.memory_space<vmem>>, vector<2x16xf32>,
    return
  }
}

</mosaic_0001>

<llo_original>
// kernel: yolov2_backbone_forward.1
$region0: #{yolov2_backbone_forward.1}
  #allocation0 [shape = 'u32[]', space=smem, size = 0x4, offset = 0x4, fixed_abs, tag = 'smem constant byte address 0x4 - core index']
  #allocation1 [shape = 'u32[144,128]{1,0:T(1,128)}', space=vmem, size = 0x12000, scoped, tag = 'internal scratch']
  #allocation2 [shape = 'f32[2,14,10,8]{3,2,1,0:T(8,128)}', space=vmem, size = 0x38000, scoped, tag = 'scratch operand']
  #allocation3 [shape = 'f32[2,6,16,64]{3,2,1,0:T(8,128)}', space=vmem, size = 0x18000, scoped, tag = 'scratch operand']
  #allocation4 [shape = 'f32[2,8,10,64]{3,2,1,0:T(8,128)}', space=vmem, size = 0x20000, scoped, tag = 'scratch operand']
  #allocation5 [shape = 'f32[2,3,16,512]{3,2,1,0:T(8,128)}', space=vmem, size = 0x30000, scoped, tag = 'scratch operand']
  #allocation6 [shape = 'bf16[9,64,512]{2,1,0:T(16,128)(2,1)}', space=vmem, size = 0x90000, scoped, tag = 'scratch operand']
  #allocation7 [shape = 'bf16[6,512,16]{2,1,0:T(16,128)(2,1)}', space=vmem, size = 0xc0000, scoped, tag = 'scratch operand']
  #allocation8 [shape = 's32[2]{0}', space=sflag, size = 0x8, scoped, tag = 'scratch operand']
  #allocation11 [shape = 's32[]', space=sflag, size = 0x4, offset = 0, fixed_abs, tag = 'sflag constant byte address 0x0 - dummy sync flag']
  #allocation12 [shape = 's32[]', space=sflag, size = 0x4, offset = 0, fixed_abs, tag = 'sflag constant byte address 0x0 - dummy sync flag']
  %s0 = inlined_call_operand.vmem [shape: f32[2,12,8,3], index: 0, kind: input, shape index: {}]
  %s1 = inlined_call_operand.vmem [shape: bf16[9,8,64], index: 1, kind: input, shape index: {}]
  %s2 = inlined_call_operand.vmem [shape: f32[1,64], index: 2, kind: input, shape index: {}]
  %s3 = inlined_call_operand.vmem [shape: bf16[9,64,512], index: 3, kind: input, shape index: {}]
  %s4 = inlined_call_operand.vmem [shape: f32[1,512], index: 4, kind: input, shape index: {}]
  %s5 = inlined_call_operand.vmem [shape: bf16[6,512,16], index: 5, kind: input, shape index: {}]
  %s6 = inlined_call_operand.vmem [shape: f32[1,16], index: 6, kind: input, shape index: {}]
  %s7 = inlined_call_operand.hbm [shape: f32[2,16], index: 7, kind: output, shape index: {}]
  %s8 = sld [smem:[#allocation0]]
  $region101: #{yolov2_backbone_forward.1} parent=0
    _
  %s10 = ssub.s32 1, %s8
  %s11 = scalar_select 0, %s10, %s8
  $region1: #{yolov2_backbone_forward.1} parent=0
    #allocation9 [shape = 'u8[1024]{0}', space=vmem, size = 0x400, scoped, tag = 'output window, operand 0, single buffered']
    #allocation10 [shape = 's32[1]{0}', space=sflag, size = 0x4, scoped, tag = 'scoped memory for yolov2_backbone_forward.1']
    %12 = vsyncpa [#allocation10], 0
    // Predicated region
    $region2: #{yolov2_backbone_forward.1} parent=1 // pred_check
      _
    $region3: #{yolov2_backbone_forward.1} parent=1 // pred_check_branch
      %14 = sbr.rel (0) target = $region5
    $region4: #{yolov2_backbone_forward.1} parent=1 // pred_region
      _
    $region5: #{yolov2_backbone_forward.1} parent=1 // pred_fallthru
      _
    // Predicated region
    $region6: #{yolov2_backbone_forward.1} parent=1 // pred_check
      _
    $region7: #{yolov2_backbone_forward.1} parent=1 // pred_check_branch
      %16 = sbr.rel (0) target = $region9
    $region8: #{yolov2_backbone_forward.1} parent=1 // pred_region
      _
    $region9: #{yolov2_backbone_forward.1} parent=1 // pred_fallthru
      _
    // Predicated region
    $region10: #{yolov2_backbone_forward.1} parent=1 // pred_check
      _
    $region11: #{yolov2_backbone_forward.1} parent=1 // pred_check_branch
      %18 = sbr.rel (0) target = $region13
    $region12: #{yolov2_backbone_forward.1} parent=1 // pred_region
      _
    $region13: #{yolov2_backbone_forward.1} parent=1 // pred_fallthru
      _
    // Predicated region
    $region14: #{yolov2_backbone_forward.1} parent=1 // pred_check
      _
    $region15: #{yolov2_backbone_forward.1} parent=1 // pred_check_branch
      %20 = sbr.rel (0) target = $region17
    $region16: #{yolov2_backbone_forward.1} parent=1 // pred_region
      _
    $region17: #{yolov2_backbone_forward.1} parent=1 // pred_fallthru
      _
    // Predicated region
    $region18: #{yolov2_backbone_forward.1} parent=1 // pred_check
      _
    $region19: #{yolov2_backbone_forward.1} parent=1 // pred_check_branch
      %22 = sbr.rel (0) target = $region21
    $region20: #{yolov2_backbone_forward.1} parent=1 // pred_region
      _
    $region21: #{yolov2_backbone_forward.1} parent=1 // pred_fallthru
      _
    %p25 = scmp.lt.u32.totalorder 4, 8
    %p26 = pneg %p25
    // Predicated region
    $region22: #{yolov2_backbone_forward.1} parent=1 // pred_check
      _
    $region23: #{yolov2_backbone_forward.1} parent=1 // pred_check_branch
      %28 = sbr.rel (%p25) target = $region25
    $region24: #{yolov2_backbone_forward.1} parent=1 // pred_region
      %s617 = sand.u32 4, 7
      %p618 = scmp.eq.s32.totalorder %s617, 0
      %p619 = pneg %p618
      // Predicated region
      $region37: #{yolov2_backbone_forward.1} parent=24 // pred_check
        _
      $region38: #{yolov2_backbone_forward.1} parent=24 // pred_check_branch
        %621 = sbr.rel (%p618) target = $region40
      $region39: #{yolov2_backbone_forward.1} parent=24 // pred_region
        %s622 = sand.u32 4, 7
        %s623 = ssub.s32 4, %s622
        %s624 = scalar_lea.vmem %s3, %s623
        %s625 = ssub.s32 4, %s622
        %s626 = scalar_lea.vmem [#allocation6], %s625
        loop: start=0, step=1, limit=1
        $region41: #{yolov2_backbone_forward.1} parent=39 // loop_pre_header
          _
        $region42: #{yolov2_backbone_forward.1} parent=39 // loop_header
          %s628 = sphi 0, %s632
          %p629 = scmp.ge.s32.totalorder %s628, 1
          %s633 = sphi %s3, %s3
          %s634 = sphi [#allocation6], [#allocation6]
        $region43: #{yolov2_backbone_forward.1} parent=39 // loop_header_branch
          %631 = sbr.rel (%p629) target = $region47
        $region44: #{yolov2_backbone_forward.1} parent=39 // loop_body
          _
        $region45: #{yolov2_backbone_forward.1} parent=39 // loop_footer
          %s632 = sadd.s32 1, %s628
        $region46: #{yolov2_backbone_forward.1} parent=39 // loop_footer_branch
          %627 = sbr.rel target = $region42
        $region47: #{yolov2_backbone_forward.1} parent=39 // loop_exit
          _
        %s635 = sshllo.u32 0, %s622
        loop: start=0, step=1, limit=1
        $region48: #{yolov2_backbone_forward.1} parent=39 // loop_pre_header
          _
        $region49: #{yolov2_backbone_forward.1} parent=39 // loop_header
          %s637 = sphi 0, %s641
          %p638 = scmp.ge.s32.totalorder %s637, 1
          %s642 = sphi %s624, %s624
          %s643 = sphi %s626, %s626
        $region50: #{yolov2_backbone_forward.1} parent=39 // loop_header_branch
          %640 = sbr.rel (%p638) target = $region54
        $region51: #{yolov2_backbone_forward.1} parent=39 // loop_body
          %v644 = vld [vmem:[%s642] sm:%s635]
          %645 = vst [vmem:[%s643] sm:%s635] %v644
          %v646 = vld [vmem:[%s642 + $0x10] sm:%s635]
          %647 = vst [vmem:[%s643 + $0x4] sm:%s635] %v646
          %v648 = vld [vmem:[%s642 + $0x4] sm:%s635]
          %649 = vst [vmem:[%s643 + $0x8] sm:%s635] %v648
          %v650 = vld [vmem:[%s642 + $0x14] sm:%s635]
          %651 = vst [vmem:[%s643 + $0xc] sm:%s635] %v650
          %v652 = vld [vmem:[%s642 + $0x8] sm:%s635]
          %653 = vst [vmem:[%s643 + $0x10] sm:%s635] %v652
          %v654 = vld [vmem:[%s642 + $0x18] sm:%s635]
          %655 = vst [vmem:[%s643 + $0x14] sm:%s635] %v654
          %v656 = vld [vmem:[%s642 + $0xc] sm:%s635]
          %657 = vst [vmem:[%s643 + $0x18] sm:%s635] %v656
          %v658 = vld [vmem:[%s642 + $0x1c] sm:%s635]
          %659 = vst [vmem:[%s643 + $0x1c] sm:%s635] %v658
          %v660 = vld [vmem:[%s642 + $0x20] sm:%s635]
          %661 = vst [vmem:[%s643 + $0x20] sm:%s635] %v660
          %v662 = vld [vmem:[%s642 + $0x30] sm:%s635]
          %663 = vst [vmem:[%s643 + $0x24] sm:%s635] %v662
          %v664 = vld [vmem:[%s642 + $0x24] sm:%s635]
          %665 = vst [vmem:[%s643 + $0x28] sm:%s635] %v664
          %v666 = vld [vmem:[%s642 + $0x34] sm:%s635]
          %667 = vst [vmem:[%s643 + $0x2c] sm:%s635] %v666
          %v668 = vld [vmem:[%s642 + $0x28] sm:%s635]
          %669 = vst [vmem:[%s643 + $0x30] sm:%s635] %v668
          %v670 = vld [vmem:[%s642 + $0x38] sm:%s635]
          %671 = vst [vmem:[%s643 + $0x34] sm:%s635] %v670
          %v672 = vld [vmem:[%s642 + $0x2c] sm:%s635]
          %673 = vst [vmem:[%s643 + $0x38] sm:%s635] %v672
          %v674 = vld [vmem:[%s642 + $0x3c] sm:%s635]
          %675 = vst [vmem:[%s643 + $0x3c] sm:%s635] %v674
          %v676 = vld [vmem:[%s642 + $0x40] sm:%s635]
          %677 = vst [vmem:[%s643 + $0x40] sm:%s635] %v676
          %v678 = vld [vmem:[%s642 + $0x50] sm:%s635]
          %679 = vst [vmem:[%s643 + $0x44] sm:%s635] %v678
          %v680 = vld [vmem:[%s642 + $0x44] sm:%s635]
          %681 = vst [vmem:[%s643 + $0x48] sm:%s635] %v680
          %v682 = vld [vmem:[%s642 + $0x54] sm:%s635]
          %683 = vst [vmem:[%s643 + $0x4c] sm:%s635] %v682
          %v684 = vld [vmem:[%s642 + $0x48] sm:%s635]
          %685 = vst [vmem:[%s643 + $0x50] sm:%s635] %v684
          %v686 = vld [vmem:[%s642 + $0x58] sm:%s635]
          %687 = vst [vmem:[%s643 + $0x54] sm:%s635] %v686
          %v688 = vld [vmem:[%s642 + $0x4c] sm:%s635]
          %689 = vst [vmem:[%s643 + $0x58] sm:%s635] %v688
          %v690 = vld [vmem:[%s642 + $0x5c] sm:%s635]
          %691 = vst [vmem:[%s643 + $0x5c] sm:%s635] %v690
          %v692 = vld [vmem:[%s642 + $0x60] sm:%s635]
          %693 = vst [vmem:[%s643 + $0x60] sm:%s635] %v692
          %v694 = vld [vmem:[%s642 + $0x70] sm:%s635]
          %695 = vst [vmem:[%s643 + $0x64] sm:%s635] %v694
          %v696 = vld [vmem:[%s642 + $0x64] sm:%s635]
          %697 = vst [vmem:[%s643 + $0x68] sm:%s635] %v696
          %v698 = vld [vmem:[%s642 + $0x74] sm:%s635]
          %699 = vst [vmem:[%s643 + $0x6c] sm:%s635] %v698
          %v700 = vld [vmem:[%s642 + $0x68] sm:%s635]
          %701 = vst [vmem:[%s643 + $0x70] sm:%s635] %v700
          %v702 = vld [vmem:[%s642 + $0x78] sm:%s635]
          %703 = vst [vmem:[%s643 + $0x74] sm:%s635] %v702
          %v704 = vld [vmem:[%s642 + $0x6c] sm:%s635]
          %705 = vst [vmem:[%s643 + $0x78] sm:%s635] %v704
          %v706 = vld [vmem:[%s642 + $0x7c] sm:%s635]
          %707 = vst [vmem:[%s643 + $0x7c] sm:%s635] %v706
          %v708 = vld [vmem:[%s642 + $0x80] sm:%s635]
          %709 = vst [vmem:[%s643 + $0x80] sm:%s635] %v708
          %v710 = vld [vmem:[%s642 + $0x90] sm:%s635]
          %711 = vst [vmem:[%s643 + $0x84] sm:%s635] %v710
          %v712 = vld [vmem:[%s642 + $0x84] sm:%s635]
          %713 = vst [vmem:[%s643 + $0x88] sm:%s635] %v712
          %v714 = vld [vmem:[%s642 + $0x94] sm:%s635]
          %715 = vst [vmem:[%s643 + $0x8c] sm:%s635] %v714
          %v716 = vld [vmem:[%s642 + $0x88] sm:%s635]
          %717 = vst [vmem:[%s643 + $0x90] sm:%s635] %v716
          %v718 = vld [vmem:[%s642 + $0x98] sm:%s635]
          %719 = vst [vmem:[%s643 + $0x94] sm:%s635] %v718
          %v720 = vld [vmem:[%s642 + $0x8c] sm:%s635]
          %721 = vst [vmem:[%s643 + $0x98] sm:%s635] %v720
          %v722 = vld [vmem:[%s642 + $0x9c] sm:%s635]
          %723 = vst [vmem:[%s643 + $0x9c] sm:%s635] %v722
          %v724 = vld [vmem:[%s642 + $0xa0] sm:%s635]
          %725 = vst [vmem:[%s643 + $0xa0] sm:%s635] %v724
          %v726 = vld [vmem:[%s642 + $0xb0] sm:%s635]
          %727 = vst [vmem:[%s643 + $0xa4] sm:%s635] %v726
          %v728 = vld [vmem:[%s642 + $0xa4] sm:%s635]
          %729 = vst [vmem:[%s643 + $0xa8] sm:%s635] %v728
          %v730 = vld [vmem:[%s642 + $0xb4] sm:%s635]
          %731 = vst [vmem:[%s643 + $0xac] sm:%s635] %v730
          %v732 = vld [vmem:[%s642 + $0xa8] sm:%s635]
          %733 = vst [vmem:[%s643 + $0xb0] sm:%s635] %v732
          %v734 = vld [vmem:[%s642 + $0xb8] sm:%s635]
          %735 = vst [vmem:[%s643 + $0xb4] sm:%s635] %v734
          %v736 = vld [vmem:[%s642 + $0xac] sm:%s635]
          %737 = vst [vmem:[%s643 + $0xb8] sm:%s635] %v736
          %v738 = vld [vmem:[%s642 + $0xbc] sm:%s635]
          %739 = vst [vmem:[%s643 + $0xbc] sm:%s635] %v738
          %v740 = vld [vmem:[%s642 + $0xc0] sm:%s635]
          %741 = vst [vmem:[%s643 + $0xc0] sm:%s635] %v740
          %v742 = vld [vmem:[%s642 + $0xd0] sm:%s635]
          %743 = vst [vmem:[%s643 + $0xc4] sm:%s635] %v742
          %v744 = vld [vmem:[%s642 + $0xc4] sm:%s635]
          %745 = vst [vmem:[%s643 + $0xc8] sm:%s635] %v744
          %v746 = vld [vmem:[%s642 + $0xd4] sm:%s635]
          %747 = vst [vmem:[%s643 + $0xcc] sm:%s635] %v746
          %v748 = vld [vmem:[%s642 + $0xc8] sm:%s635]
          %749 = vst [vmem:[%s643 + $0xd0] sm:%s635] %v748
          %v750 = vld [vmem:[%s642 + $0xd8] sm:%s635]
          %751 = vst [vmem:[%s643 + $0xd4] sm:%s635] %v750
          %v752 = vld [vmem:[%s642 + $0xcc] sm:%s635]
          %753 = vst [vmem:[%s643 + $0xd8] sm:%s635] %v752
          %v754 = vld [vmem:[%s642 + $0xdc] sm:%s635]
          %755 = vst [vmem:[%s643 + $0xdc] sm:%s635] %v754
          %v756 = vld [vmem:[%s642 + $0xe0] sm:%s635]
          %757 = vst [vmem:[%s643 + $0xe0] sm:%s635] %v756
          %v758 = vld [vmem:[%s642 + $0xf0] sm:%s635]
          %759 = vst [vmem:[%s643 + $0xe4] sm:%s635] %v758
          %v760 = vld [vmem:[%s642 + $0xe4] sm:%s635]
          %761 = vst [vmem:[%s643 + $0xe8] sm:%s635] %v760
          %v762 = vld [vmem:[%s642 + $0xf4] sm:%s635]
          %763 = vst [vmem:[%s643 + $0xec] sm:%s635] %v762
          %v764 = vld [vmem:[%s642 + $0xe8] sm:%s635]
          %765 = vst [vmem:[%s643 + $0xf0] sm:%s635] %v764
          %v766 = vld [vmem:[%s642 + $0xf8] sm:%s635]
          %767 = vst [vmem:[%s643 + $0xf4] sm:%s635] %v766
          %v768 = vld [vmem:[%s642 + $0xec] sm:%s635]
          %769 = vst [vmem:[%s643 + $0xf8] sm:%s635] %v768
          %v770 = vld [vmem:[%s642 + $0xfc] sm:%s635]
          %771 = vst [vmem:[%s643 + $0xfc] sm:%s635] %v770
          %v772 = vld [vmem:[%s642 + $0x100] sm:%s635]
          %773 = vst [vmem:[%s643 + $0x100] sm:%s635] %v772
          %v774 = vld [vmem:[%s642 + $0x110] sm:%s635]
          %775 = vst [vmem:[%s643 + $0x104] sm:%s635] %v774
          %v776 = vld [vmem:[%s642 + $0x104] sm:%s635]
          %777 = vst [vmem:[%s643 + $0x108] sm:%s635] %v776
          %v778 = vld [vmem:[%s642 + $0x114] sm:%s635]
          %779 = vst [vmem:[%s643 + $0x10c] sm:%s635] %v778
          %v780 = vld [vmem:[%s642 + $0x108] sm:%s635]
          %781 = vst [vmem:[%s643 + $0x110] sm:%s635] %v780
          %v782 = vld [vmem:[%s642 + $0x118] sm:%s635]
          %783 = vst [vmem:[%s643 + $0x114] sm:%s635] %v782
          %v784 = vld [vmem:[%s642 + $0x10c] sm:%s635]
          %785 = vst [vmem:[%s643 + $0x118] sm:%s635] %v784
          %v786 = vld [vmem:[%s642 + $0x11c] sm:%s635]
          %787 = vst [vmem:[%s643 + $0x11c] sm:%s635] %v786
          %v788 = vld [vmem:[%s642 + $0x120] sm:%s635]
          %789 = vst [vmem:[%s643 + $0x120] sm:%s635] %v788
          %v790 = vld [vmem:[%s642 + $0x130] sm:%s635]
          %791 = vst [vmem:[%s643 + $0x124] sm:%s635] %v790
          %v792 = vld [vmem:[%s642 + $0x124] sm:%s635]
          %793 = vst [vmem:[%s643 + $0x128] sm:%s635] %v792
          %v794 = vld [vmem:[%s642 + $0x134] sm:%s635]
          %795 = vst [vmem:[%s643 + $0x12c] sm:%s635] %v794
          %v796 = vld [vmem:[%s642 + $0x128] sm:%s635]
          %797 = vst [vmem:[%s643 + $0x130] sm:%s635] %v796
          %v798 = vld [vmem:[%s642 + $0x138] sm:%s635]
          %799 = vst [vmem:[%s643 + $0x134] sm:%s635] %v798
          %v800 = vld [vmem:[%s642 + $0x12c] sm:%s635]
          %801 = vst [vmem:[%s643 + $0x138] sm:%s635] %v800
          %v802 = vld [vmem:[%s642 + $0x13c] sm:%s635]
          %803 = vst [vmem:[%s643 + $0x13c] sm:%s635] %v802
          %v804 = vld [vmem:[%s642 + $0x140] sm:%s635]
          %805 = vst [vmem:[%s643 + $0x140] sm:%s635] %v804
          %v806 = vld [vmem:[%s642 + $0x150] sm:%s635]
          %807 = vst [vmem:[%s643 + $0x144] sm:%s635] %v806
          %v808 = vld [vmem:[%s642 + $0x144] sm:%s635]
          %809 = vst [vmem:[%s643 + $0x148] sm:%s635] %v808
          %v810 = vld [vmem:[%s642 + $0x154] sm:%s635]
          %811 = vst [vmem:[%s643 + $0x14c] sm:%s635] %v810
          %v812 = vld [vmem:[%s642 + $0x148] sm:%s635]
          %813 = vst [vmem:[%s643 + $0x150] sm:%s635] %v812
          %v814 = vld [vmem:[%s642 + $0x158] sm:%s635]
          %815 = vst [vmem:[%s643 + $0x154] sm:%s635] %v814
          %v816 = vld [vmem:[%s642 + $0x14c] sm:%s635]
          %817 = vst [vmem:[%s643 + $0x158] sm:%s635] %v816
          %v818 = vld [vmem:[%s642 + $0x15c] sm:%s635]
          %819 = vst [vmem:[%s643 + $0x15c] sm:%s635] %v818
          %v820 = vld [vmem:[%s642 + $0x160] sm:%s635]
          %821 = vst [vmem:[%s643 + $0x160] sm:%s635] %v820
          %v822 = vld [vmem:[%s642 + $0x170] sm:%s635]
          %823 = vst [vmem:[%s643 + $0x164] sm:%s635] %v822
          %v824 = vld [vmem:[%s642 + $0x164] sm:%s635]
          %825 = vst [vmem:[%s643 + $0x168] sm:%s635] %v824
          %v826 = vld [vmem:[%s642 + $0x174] sm:%s635]
          %827 = vst [vmem:[%s643 + $0x16c] sm:%s635] %v826
          %v828 = vld [vmem:[%s642 + $0x168] sm:%s635]
          %829 = vst [vmem:[%s643 + $0x170] sm:%s635] %v828
          %v830 = vld [vmem:[%s642 + $0x178] sm:%s635]
          %831 = vst [vmem:[%s643 + $0x174] sm:%s635] %v830
          %v832 = vld [vmem:[%s642 + $0x16c] sm:%s635]
          %833 = vst [vmem:[%s643 + $0x178] sm:%s635] %v832
          %v834 = vld [vmem:[%s642 + $0x17c] sm:%s635]
          %835 = vst [vmem:[%s643 + $0x17c] sm:%s635] %v834
          %v836 = vld [vmem:[%s642 + $0x180] sm:%s635]
          %837 = vst [vmem:[%s643 + $0x180] sm:%s635] %v836
          %v838 = vld [vmem:[%s642 + $0x190] sm:%s635]
          %839 = vst [vmem:[%s643 + $0x184] sm:%s635] %v838
          %v840 = vld [vmem:[%s642 + $0x184] sm:%s635]
          %841 = vst [vmem:[%s643 + $0x188] sm:%s635] %v840
          %v842 = vld [vmem:[%s642 + $0x194] sm:%s635]
          %843 = vst [vmem:[%s643 + $0x18c] sm:%s635] %v842
          %v844 = vld [vmem:[%s642 + $0x188] sm:%s635]
          %845 = vst [vmem:[%s643 + $0x190] sm:%s635] %v844
          %v846 = vld [vmem:[%s642 + $0x198] sm:%s635]
          %847 = vst [vmem:[%s643 + $0x194] sm:%s635] %v846
          %v848 = vld [vmem:[%s642 + $0x18c] sm:%s635]
          %849 = vst [vmem:[%s643 + $0x198] sm:%s635] %v848
          %v850 = vld [vmem:[%s642 + $0x19c] sm:%s635]
          %851 = vst [vmem:[%s643 + $0x19c] sm:%s635] %v850
          %v852 = vld [vmem:[%s642 + $0x1a0] sm:%s635]
          %853 = vst [vmem:[%s643 + $0x1a0] sm:%s635] %v852
          %v854 = vld [vmem:[%s642 + $0x1b0] sm:%s635]
          %855 = vst [vmem:[%s643 + $0x1a4] sm:%s635] %v854
          %v856 = vld [vmem:[%s642 + $0x1a4] sm:%s635]
          %857 = vst [vmem:[%s643 + $0x1a8] sm:%s635] %v856
          %v858 = vld [vmem:[%s642 + $0x1b4] sm:%s635]
          %859 = vst [vmem:[%s643 + $0x1ac] sm:%s635] %v858
          %v860 = vld [vmem:[%s642 + $0x1a8] sm:%s635]
          %861 = vst [vmem:[%s643 + $0x1b0] sm:%s635] %v860
          %v862 = vld [vmem:[%s642 + $0x1b8] sm:%s635]
          %863 = vst [vmem:[%s643 + $0x1b4] sm:%s635] %v862
          %v864 = vld [vmem:[%s642 + $0x1ac] sm:%s635]
          %865 = vst [vmem:[%s643 + $0x1b8] sm:%s635] %v864
          %v866 = vld [vmem:[%s642 + $0x1bc] sm:%s635]
          %867 = vst [vmem:[%s643 + $0x1bc] sm:%s635] %v866
          %v868 = vld [vmem:[%s642 + $0x1c0] sm:%s635]
          %869 = vst [vmem:[%s643 + $0x1c0] sm:%s635] %v868
          %v870 = vld [vmem:[%s642 + $0x1d0] sm:%s635]
          %871 = vst [vmem:[%s643 + $0x1c4] sm:%s635] %v870
          %v872 = vld [vmem:[%s642 + $0x1c4] sm:%s635]
          %873 = vst [vmem:[%s643 + $0x1c8] sm:%s635] %v872
          %v874 = vld [vmem:[%s642 + $0x1d4] sm:%s635]
          %875 = vst [vmem:[%s643 + $0x1cc] sm:%s635] %v874
          %v876 = vld [vmem:[%s642 + $0x1c8] sm:%s635]
          %877 = vst [vmem:[%s643 + $0x1d0] sm:%s635] %v876
          %v878 = vld [vmem:[%s642 + $0x1d8] sm:%s635]
          %879 = vst [vmem:[%s643 + $0x1d4] sm:%s635] %v878
          %v880 = vld [vmem:[%s642 + $0x1cc] sm:%s635]
          %881 = vst [vmem:[%s643 + $0x1d8] sm:%s635] %v880
          %v882 = vld [vmem:[%s642 + $0x1dc] sm:%s635]
          %883 = vst [vmem:[%s643 + $0x1dc] sm:%s635] %v882
          %v884 = vld [vmem:[%s642 + $0x1e0] sm:%s635]
          %885 = vst [vmem:[%s643 + $0x1e0] sm:%s635] %v884
          %v886 = vld [vmem:[%s642 + $0x1f0] sm:%s635]
          %887 = vst [vmem:[%s643 + $0x1e4] sm:%s635] %v886
          %v888 = vld [vmem:[%s642 + $0x1e4] sm:%s635]
          %889 = vst [vmem:[%s643 + $0x1e8] sm:%s635] %v888
          %v890 = vld [vmem:[%s642 + $0x1f4] sm:%s635]
          %891 = vst [vmem:[%s643 + $0x1ec] sm:%s635] %v890
          %v892 = vld [vmem:[%s642 + $0x1e8] sm:%s635]
          %893 = vst [vmem:[%s643 + $0x1f0] sm:%s635] %v892
          %v894 = vld [vmem:[%s642 + $0x1f8] sm:%s635]
          %895 = vst [vmem:[%s643 + $0x1f4] sm:%s635] %v894
          %v896 = vld [vmem:[%s642 + $0x1ec] sm:%s635]
          %897 = vst [vmem:[%s643 + $0x1f8] sm:%s635] %v896
          %v898 = vld [vmem:[%s642 + $0x1fc] sm:%s635]
          %899 = vst [vmem:[%s643 + $0x1fc] sm:%s635] %v898
          %v900 = vld [vmem:[%s642 + $0x200] sm:%s635]
          %901 = vst [vmem:[%s643 + $0x200] sm:%s635] %v900
          %v902 = vld [vmem:[%s642 + $0x210] sm:%s635]
          %903 = vst [vmem:[%s643 + $0x204] sm:%s635] %v902
          %v904 = vld [vmem:[%s642 + $0x204] sm:%s635]
          %905 = vst [vmem:[%s643 + $0x208] sm:%s635] %v904
          %v906 = vld [vmem:[%s642 + $0x214] sm:%s635]
          %907 = vst [vmem:[%s643 + $0x20c] sm:%s635] %v906
          %v908 = vld [vmem:[%s642 + $0x208] sm:%s635]
          %909 = vst [vmem:[%s643 + $0x210] sm:%s635] %v908
          %v910 = vld [vmem:[%s642 + $0x218] sm:%s635]
          %911 = vst [vmem:[%s643 + $0x214] sm:%s635] %v910
          %v912 = vld [vmem:[%s642 + $0x20c] sm:%s635]
          %913 = vst [vmem:[%s643 + $0x218] sm:%s635] %v912
          %v914 = vld [vmem:[%s642 + $0x21c] sm:%s635]
          %915 = vst [vmem:[%s643 + $0x21c] sm:%s635] %v914
          %v916 = vld [vmem:[%s642 + $0x220] sm:%s635]
          %917 = vst [vmem:[%s643 + $0x220] sm:%s635] %v916
          %v918 = vld [vmem:[%s642 + $0x230] sm:%s635]
          %919 = vst [vmem:[%s643 + $0x224] sm:%s635] %v918
          %v920 = vld [vmem:[%s642 + $0x224] sm:%s635]
          %921 = vst [vmem:[%s643 + $0x228] sm:%s635] %v920
          %v922 = vld [vmem:[%s642 + $0x234] sm:%s635]
          %923 = vst [vmem:[%s643 + $0x22c] sm:%s635] %v922
          %v924 = vld [vmem:[%s642 + $0x228] sm:%s635]
          %925 = vst [vmem:[%s643 + $0x230] sm:%s635] %v924
          %v926 = vld [vmem:[%s642 + $0x238] sm:%s635]
          %927 = vst [vmem:[%s643 + $0x234] sm:%s635] %v926
          %v928 = vld [vmem:[%s642 + $0x22c] sm:%s635]
          %929 = vst [vmem:[%s643 + $0x238] sm:%s635] %v928
          %v930 = vld [vmem:[%s642 + $0x23c] sm:%s635]
          %931 = vst [vmem:[%s643 + $0x23c] sm:%s635] %v930
          %v932 = vld [vmem:[%s642 + $0x240] sm:%s635]
          %933 = vst [vmem:[%s643 + $0x240] sm:%s635] %v932
          %v934 = vld [vmem:[%s642 + $0x250] sm:%s635]
          %935 = vst [vmem:[%s643 + $0x244] sm:%s635] %v934
          %v936 = vld [vmem:[%s642 + $0x244] sm:%s635]
          %937 = vst [vmem:[%s643 + $0x248] sm:%s635] %v936
          %v938 = vld [vmem:[%s642 + $0x254] sm:%s635]
          %939 = vst [vmem:[%s643 + $0x24c] sm:%s635] %v938
          %v940 = vld [vmem:[%s642 + $0x248] sm:%s635]
          %941 = vst [vmem:[%s643 + $0x250] sm:%s635] %v940
          %v942 = vld [vmem:[%s642 + $0x258] sm:%s635]
          %943 = vst [vmem:[%s643 + $0x254] sm:%s635] %v942
          %v944 = vld [vmem:[%s642 + $0x24c] sm:%s635]
          %945 = vst [vmem:[%s643 + $0x258] sm:%s635] %v944
          %v946 = vld [vmem:[%s642 + $0x25c] sm:%s635]
          %947 = vst [vmem:[%s643 + $0x25c] sm:%s635] %v946
          %v948 = vld [vmem:[%s642 + $0x260] sm:%s635]
          %949 = vst [vmem:[%s643 + $0x260] sm:%s635] %v948
          %v950 = vld [vmem:[%s642 + $0x270] sm:%s635]
          %951 = vst [vmem:[%s643 + $0x264] sm:%s635] %v950
          %v952 = vld [vmem:[%s642 + $0x264] sm:%s635]
          %953 = vst [vmem:[%s643 + $0x268] sm:%s635] %v952
          %v954 = vld [vmem:[%s642 + $0x274] sm:%s635]
          %955 = vst [vmem:[%s643 + $0x26c] sm:%s635] %v954
          %v956 = vld [vmem:[%s642 + $0x268] sm:%s635]
          %957 = vst [vmem:[%s643 + $0x270] sm:%s635] %v956
          %v958 = vld [vmem:[%s642 + $0x278] sm:%s635]
          %959 = vst [vmem:[%s643 + $0x274] sm:%s635] %v958
          %v960 = vld [vmem:[%s642 + $0x26c] sm:%s635]
          %961 = vst [vmem:[%s643 + $0x278] sm:%s635] %v960
          %v962 = vld [vmem:[%s642 + $0x27c] sm:%s635]
          %963 = vst [vmem:[%s643 + $0x27c] sm:%s635] %v962
          %v964 = vld [vmem:[%s642 + $0x280] sm:%s635]
          %965 = vst [vmem:[%s643 + $0x280] sm:%s635] %v964
          %v966 = vld [vmem:[%s642 + $0x290] sm:%s635]
          %967 = vst [vmem:[%s643 + $0x284] sm:%s635] %v966
          %v968 = vld [vmem:[%s642 + $0x284] sm:%s635]
          %969 = vst [vmem:[%s643 + $0x288] sm:%s635] %v968
          %v970 = vld [vmem:[%s642 + $0x294] sm:%s635]
          %971 = vst [vmem:[%s643 + $0x28c] sm:%s635] %v970
          %v972 = vld [vmem:[%s642 + $0x288] sm:%s635]
          %973 = vst [vmem:[%s643 + $0x290] sm:%s635] %v972
          %v974 = vld [vmem:[%s642 + $0x298] sm:%s635]
          %975 = vst [vmem:[%s643 + $0x294] sm:%s635] %v974
          %v976 = vld [vmem:[%s642 + $0x28c] sm:%s635]
          %977 = vst [vmem:[%s643 + $0x298] sm:%s635] %v976
          %v978 = vld [vmem:[%s642 + $0x29c] sm:%s635]
          %979 = vst [vmem:[%s643 + $0x29c] sm:%s635] %v978
          %v980 = vld [vmem:[%s642 + $0x2a0] sm:%s635]
          %981 = vst [vmem:[%s643 + $0x2a0] sm:%s635] %v980
          %v982 = vld [vmem:[%s642 + $0x2b0] sm:%s635]
          %983 = vst [vmem:[%s643 + $0x2a4] sm:%s635] %v982
          %v984 = vld [vmem:[%s642 + $0x2a4] sm:%s635]
          %985 = vst [vmem:[%s643 + $0x2a8] sm:%s635] %v984
          %v986 = vld [vmem:[%s642 + $0x2b4] sm:%s635]
          %987 = vst [vmem:[%s643 + $0x2ac] sm:%s635] %v986
          %v988 = vld [vmem:[%s642 + $0x2a8] sm:%s635]
          %989 = vst [vmem:[%s643 + $0x2b0] sm:%s635] %v988
          %v990 = vld [vmem:[%s642 + $0x2b8] sm:%s635]
          %991 = vst [vmem:[%s643 + $0x2b4] sm:%s635] %v990
          %v992 = vld [vmem:[%s642 + $0x2ac] sm:%s635]
          %993 = vst [vmem:[%s643 + $0x2b8] sm:%s635] %v992
          %v994 = vld [vmem:[%s642 + $0x2bc] sm:%s635]
          %995 = vst [vmem:[%s643 + $0x2bc] sm:%s635] %v994
          %v996 = vld [vmem:[%s642 + $0x2c0] sm:%s635]
          %997 = vst [vmem:[%s643 + $0x2c0] sm:%s635] %v996
          %v998 = vld [vmem:[%s642 + $0x2d0] sm:%s635]
          %999 = vst [vmem:[%s643 + $0x2c4] sm:%s635] %v998
          %v1000 = vld [vmem:[%s642 + $0x2c4] sm:%s635]
          %1001 = vst [vmem:[%s643 + $0x2c8] sm:%s635] %v1000
          %v1002 = vld [vmem:[%s642 + $0x2d4] sm:%s635]
          %1003 = vst [vmem:[%s643 + $0x2cc] sm:%s635] %v1002
          %v1004 = vld [vmem:[%s642 + $0x2c8] sm:%s635]
          %1005 = vst [vmem:[%s643 + $0x2d0] sm:%s635] %v1004
          %v1006 = vld [vmem:[%s642 + $0x2d8] sm:%s635]
          %1007 = vst [vmem:[%s643 + $0x2d4] sm:%s635] %v1006
          %v1008 = vld [vmem:[%s642 + $0x2cc] sm:%s635]
          %1009 = vst [vmem:[%s643 + $0x2d8] sm:%s635] %v1008
          %v1010 = vld [vmem:[%s642 + $0x2dc] sm:%s635]
          %1011 = vst [vmem:[%s643 + $0x2dc] sm:%s635] %v1010
          %v1012 = vld [vmem:[%s642 + $0x2e0] sm:%s635]
          %1013 = vst [vmem:[%s643 + $0x2e0] sm:%s635] %v1012
          %v1014 = vld [vmem:[%s642 + $0x2f0] sm:%s635]
          %1015 = vst [vmem:[%s643 + $0x2e4] sm:%s635] %v1014
          %v1016 = vld [vmem:[%s642 + $0x2e4] sm:%s635]
          %1017 = vst [vmem:[%s643 + $0x2e8] sm:%s635] %v1016
          %v1018 = vld [vmem:[%s642 + $0x2f4] sm:%s635]
          %1019 = vst [vmem:[%s643 + $0x2ec] sm:%s635] %v1018
          %v1020 = vld [vmem:[%s642 + $0x2e8] sm:%s635]
          %1021 = vst [vmem:[%s643 + $0x2f0] sm:%s635] %v1020
          %v1022 = vld [vmem:[%s642 + $0x2f8] sm:%s635]
          %1023 = vst [vmem:[%s643 + $0x2f4] sm:%s635] %v1022
          %v1024 = vld [vmem:[%s642 + $0x2ec] sm:%s635]
          %1025 = vst [vmem:[%s643 + $0x2f8] sm:%s635] %v1024
          %v1026 = vld [vmem:[%s642 + $0x2fc] sm:%s635]
          %1027 = vst [vmem:[%s643 + $0x2fc] sm:%s635] %v1026
          %v1028 = vld [vmem:[%s642 + $0x300] sm:%s635]
          %1029 = vst [vmem:[%s643 + $0x300] sm:%s635] %v1028
          %v1030 = vld [vmem:[%s642 + $0x310] sm:%s635]
          %1031 = vst [vmem:[%s643 + $0x304] sm:%s635] %v1030
          %v1032 = vld [vmem:[%s642 + $0x304] sm:%s635]
          %1033 = vst [vmem:[%s643 + $0x308] sm:%s635] %v1032
          %v1034 = vld [vmem:[%s642 + $0x314] sm:%s635]
          %1035 = vst [vmem:[%s643 + $0x30c] sm:%s635] %v1034
          %v1036 = vld [vmem:[%s642 + $0x308] sm:%s635]
          %1037 = vst [vmem:[%s643 + $0x310] sm:%s635] %v1036
          %v1038 = vld [vmem:[%s642 + $0x318] sm:%s635]
          %1039 = vst [vmem:[%s643 + $0x314] sm:%s635] %v1038
          %v1040 = vld [vmem:[%s642 + $0x30c] sm:%s635]
          %1041 = vst [vmem:[%s643 + $0x318] sm:%s635] %v1040
          %v1042 = vld [vmem:[%s642 + $0x31c] sm:%s635]
          %1043 = vst [vmem:[%s643 + $0x31c] sm:%s635] %v1042
          %v1044 = vld [vmem:[%s642 + $0x320] sm:%s635]
          %1045 = vst [vmem:[%s643 + $0x320] sm:%s635] %v1044
          %v1046 = vld [vmem:[%s642 + $0x330] sm:%s635]
          %1047 = vst [vmem:[%s643 + $0x324] sm:%s635] %v1046
          %v1048 = vld [vmem:[%s642 + $0x324] sm:%s635]
          %1049 = vst [vmem:[%s643 + $0x328] sm:%s635] %v1048
          %v1050 = vld [vmem:[%s642 + $0x334] sm:%s635]
          %1051 = vst [vmem:[%s643 + $0x32c] sm:%s635] %v1050
          %v1052 = vld [vmem:[%s642 + $0x328] sm:%s635]
          %1053 = vst [vmem:[%s643 + $0x330] sm:%s635] %v1052
          %v1054 = vld [vmem:[%s642 + $0x338] sm:%s635]
          %1055 = vst [vmem:[%s643 + $0x334] sm:%s635] %v1054
          %v1056 = vld [vmem:[%s642 + $0x32c] sm:%s635]
          %1057 = vst [vmem:[%s643 + $0x338] sm:%s635] %v1056
          %v1058 = vld [vmem:[%s642 + $0x33c] sm:%s635]
          %1059 = vst [vmem:[%s643 + $0x33c] sm:%s635] %v1058
          %v1060 = vld [vmem:[%s642 + $0x340] sm:%s635]
          %1061 = vst [vmem:[%s643 + $0x340] sm:%s635] %v1060
          %v1062 = vld [vmem:[%s642 + $0x350] sm:%s635]
          %1063 = vst [vmem:[%s643 + $0x344] sm:%s635] %v1062
          %v1064 = vld [vmem:[%s642 + $0x344] sm:%s635]
          %1065 = vst [vmem:[%s643 + $0x348] sm:%s635] %v1064
          %v1066 = vld [vmem:[%s642 + $0x354] sm:%s635]
          %1067 = vst [vmem:[%s643 + $0x34c] sm:%s635] %v1066
          %v1068 = vld [vmem:[%s642 + $0x348] sm:%s635]
          %1069 = vst [vmem:[%s643 + $0x350] sm:%s635] %v1068
          %v1070 = vld [vmem:[%s642 + $0x358] sm:%s635]
          %1071 = vst [vmem:[%s643 + $0x354] sm:%s635] %v1070
          %v1072 = vld [vmem:[%s642 + $0x34c] sm:%s635]
          %1073 = vst [vmem:[%s643 + $0x358] sm:%s635] %v1072
          %v1074 = vld [vmem:[%s642 + $0x35c] sm:%s635]
          %1075 = vst [vmem:[%s643 + $0x35c] sm:%s635] %v1074
          %v1076 = vld [vmem:[%s642 + $0x360] sm:%s635]
          %1077 = vst [vmem:[%s643 + $0x360] sm:%s635] %v1076
          %v1078 = vld [vmem:[%s642 + $0x370] sm:%s635]
          %1079 = vst [vmem:[%s643 + $0x364] sm:%s635] %v1078
          %v1080 = vld [vmem:[%s642 + $0x364] sm:%s635]
          %1081 = vst [vmem:[%s643 + $0x368] sm:%s635] %v1080
          %v1082 = vld [vmem:[%s642 + $0x374] sm:%s635]
          %1083 = vst [vmem:[%s643 + $0x36c] sm:%s635] %v1082
          %v1084 = vld [vmem:[%s642 + $0x368] sm:%s635]
          %1085 = vst [vmem:[%s643 + $0x370] sm:%s635] %v1084
          %v1086 = vld [vmem:[%s642 + $0x378] sm:%s635]
          %1087 = vst [vmem:[%s643 + $0x374] sm:%s635] %v1086
          %v1088 = vld [vmem:[%s642 + $0x36c] sm:%s635]
          %1089 = vst [vmem:[%s643 + $0x378] sm:%s635] %v1088
          %v1090 = vld [vmem:[%s642 + $0x37c] sm:%s635]
          %1091 = vst [vmem:[%s643 + $0x37c] sm:%s635] %v1090
          %v1092 = vld [vmem:[%s642 + $0x380] sm:%s635]
          %1093 = vst [vmem:[%s643 + $0x380] sm:%s635] %v1092
          %v1094 = vld [vmem:[%s642 + $0x390] sm:%s635]
          %1095 = vst [vmem:[%s643 + $0x384] sm:%s635] %v1094
          %v1096 = vld [vmem:[%s642 + $0x384] sm:%s635]
          %1097 = vst [vmem:[%s643 + $0x388] sm:%s635] %v1096
          %v1098 = vld [vmem:[%s642 + $0x394] sm:%s635]
          %1099 = vst [vmem:[%s643 + $0x38c] sm:%s635] %v1098
          %v1100 = vld [vmem:[%s642 + $0x388] sm:%s635]
          %1101 = vst [vmem:[%s643 + $0x390] sm:%s635] %v1100
          %v1102 = vld [vmem:[%s642 + $0x398] sm:%s635]
          %1103 = vst [vmem:[%s643 + $0x394] sm:%s635] %v1102
          %v1104 = vld [vmem:[%s642 + $0x38c] sm:%s635]
          %1105 = vst [vmem:[%s643 + $0x398] sm:%s635] %v1104
          %v1106 = vld [vmem:[%s642 + $0x39c] sm:%s635]
          %1107 = vst [vmem:[%s643 + $0x39c] sm:%s635] %v1106
          %v1108 = vld [vmem:[%s642 + $0x3a0] sm:%s635]
          %1109 = vst [vmem:[%s643 + $0x3a0] sm:%s635] %v1108
          %v1110 = vld [vmem:[%s642 + $0x3b0] sm:%s635]
          %1111 = vst [vmem:[%s643 + $0x3a4] sm:%s635] %v1110
          %v1112 = vld [vmem:[%s642 + $0x3a4] sm:%s635]
          %1113 = vst [vmem:[%s643 + $0x3a8] sm:%s635] %v1112
          %v1114 = vld [vmem:[%s642 + $0x3b4] sm:%s635]
          %1115 = vst [vmem:[%s643 + $0x3ac] sm:%s635] %v1114
          %v1116 = vld [vmem:[%s642 + $0x3a8] sm:%s635]
          %1117 = vst [vmem:[%s643 + $0x3b0] sm:%s635] %v1116
          %v1118 = vld [vmem:[%s642 + $0x3b8] sm:%s635]
          %1119 = vst [vmem:[%s643 + $0x3b4] sm:%s635] %v1118
          %v1120 = vld [vmem:[%s642 + $0x3ac] sm:%s635]
          %1121 = vst [vmem:[%s643 + $0x3b8] sm:%s635] %v1120
          %v1122 = vld [vmem:[%s642 + $0x3bc] sm:%s635]
          %1123 = vst [vmem:[%s643 + $0x3bc] sm:%s635] %v1122
          %v1124 = vld [vmem:[%s642 + $0x3c0] sm:%s635]
          %1125 = vst [vmem:[%s643 + $0x3c0] sm:%s635] %v1124
          %v1126 = vld [vmem:[%s642 + $0x3d0] sm:%s635]
          %1127 = vst [vmem:[%s643 + $0x3c4] sm:%s635] %v1126
          %v1128 = vld [vmem:[%s642 + $0x3c4] sm:%s635]
          %1129 = vst [vmem:[%s643 + $0x3c8] sm:%s635] %v1128
          %v1130 = vld [vmem:[%s642 + $0x3d4] sm:%s635]
          %1131 = vst [vmem:[%s643 + $0x3cc] sm:%s635] %v1130
          %v1132 = vld [vmem:[%s642 + $0x3c8] sm:%s635]
          %1133 = vst [vmem:[%s643 + $0x3d0] sm:%s635] %v1132
          %v1134 = vld [vmem:[%s642 + $0x3d8] sm:%s635]
          %1135 = vst [vmem:[%s643 + $0x3d4] sm:%s635] %v1134
          %v1136 = vld [vmem:[%s642 + $0x3cc] sm:%s635]
          %1137 = vst [vmem:[%s643 + $0x3d8] sm:%s635] %v1136
          %v1138 = vld [vmem:[%s642 + $0x3dc] sm:%s635]
          %1139 = vst [vmem:[%s643 + $0x3dc] sm:%s635] %v1138
          %v1140 = vld [vmem:[%s642 + $0x3e0] sm:%s635]
          %1141 = vst [vmem:[%s643 + $0x3e0] sm:%s635] %v1140
          %v1142 = vld [vmem:[%s642 + $0x3f0] sm:%s635]
          %1143 = vst [vmem:[%s643 + $0x3e4] sm:%s635] %v1142
          %v1144 = vld [vmem:[%s642 + $0x3e4] sm:%s635]
          %1145 = vst [vmem:[%s643 + $0x3e8] sm:%s635] %v1144
          %v1146 = vld [vmem:[%s642 + $0x3f4] sm:%s635]
          %1147 = vst [vmem:[%s643 + $0x3ec] sm:%s635] %v1146
          %v1148 = vld [vmem:[%s642 + $0x3e8] sm:%s635]
          %1149 = vst [vmem:[%s643 + $0x3f0] sm:%s635] %v1148
          %v1150 = vld [vmem:[%s642 + $0x3f8] sm:%s635]
          %1151 = vst [vmem:[%s643 + $0x3f4] sm:%s635] %v1150
          %v1152 = vld [vmem:[%s642 + $0x3ec] sm:%s635]
          %1153 = vst [vmem:[%s643 + $0x3f8] sm:%s635] %v1152
          %v1154 = vld [vmem:[%s642 + $0x3fc] sm:%s635]
          %1155 = vst [vmem:[%s643 + $0x3fc] sm:%s635] %v1154
          %v1156 = vld [vmem:[%s642 + $0x400] sm:%s635]
          %1157 = vst [vmem:[%s643 + $0x400] sm:%s635] %v1156
          %v1158 = vld [vmem:[%s642 + $0x410] sm:%s635]
          %1159 = vst [vmem:[%s643 + $0x404] sm:%s635] %v1158
          %v1160 = vld [vmem:[%s642 + $0x404] sm:%s635]
          %1161 = vst [vmem:[%s643 + $0x408] sm:%s635] %v1160
          %v1162 = vld [vmem:[%s642 + $0x414] sm:%s635]
          %1163 = vst [vmem:[%s643 + $0x40c] sm:%s635] %v1162
          %v1164 = vld [vmem:[%s642 + $0x408] sm:%s635]
          %1165 = vst [vmem:[%s643 + $0x410] sm:%s635] %v1164
          %v1166 = vld [vmem:[%s642 + $0x418] sm:%s635]
          %1167 = vst [vmem:[%s643 + $0x414] sm:%s635] %v1166
          %v1168 = vld [vmem:[%s642 + $0x40c] sm:%s635]
          %1169 = vst [vmem:[%s643 + $0x418] sm:%s635] %v1168
          %v1170 = vld [vmem:[%s642 + $0x41c] sm:%s635]
          %1171 = vst [vmem:[%s643 + $0x41c] sm:%s635] %v1170
          %v1172 = vld [vmem:[%s642 + $0x420] sm:%s635]
          %1173 = vst [vmem:[%s643 + $0x420] sm:%s635] %v1172
          %v1174 = vld [vmem:[%s642 + $0x430] sm:%s635]
          %1175 = vst [vmem:[%s643 + $0x424] sm:%s635] %v1174
          %v1176 = vld [vmem:[%s642 + $0x424] sm:%s635]
          %1177 = vst [vmem:[%s643 + $0x428] sm:%s635] %v1176
          %v1178 = vld [vmem:[%s642 + $0x434] sm:%s635]
          %1179 = vst [vmem:[%s643 + $0x42c] sm:%s635] %v1178
          %v1180 = vld [vmem:[%s642 + $0x428] sm:%s635]
          %1181 = vst [vmem:[%s643 + $0x430] sm:%s635] %v1180
          %v1182 = vld [vmem:[%s642 + $0x438] sm:%s635]
          %1183 = vst [vmem:[%s643 + $0x434] sm:%s635] %v1182
          %v1184 = vld [vmem:[%s642 + $0x42c] sm:%s635]
          %1185 = vst [vmem:[%s643 + $0x438] sm:%s635] %v1184
          %v1186 = vld [vmem:[%s642 + $0x43c] sm:%s635]
          %1187 = vst [vmem:[%s643 + $0x43c] sm:%s635] %v1186
          %v1188 = vld [vmem:[%s642 + $0x440] sm:%s635]
          %1189 = vst [vmem:[%s643 + $0x440] sm:%s635] %v1188
          %v1190 = vld [vmem:[%s642 + $0x450] sm:%s635]
          %1191 = vst [vmem:[%s643 + $0x444] sm:%s635] %v1190
          %v1192 = vld [vmem:[%s642 + $0x444] sm:%s635]
          %1193 = vst [vmem:[%s643 + $0x448] sm:%s635] %v1192
          %v1194 = vld [vmem:[%s642 + $0x454] sm:%s635]
          %1195 = vst [vmem:[%s643 + $0x44c] sm:%s635] %v1194
          %v1196 = vld [vmem:[%s642 + $0x448] sm:%s635]
          %1197 = vst [vmem:[%s643 + $0x450] sm:%s635] %v1196
          %v1198 = vld [vmem:[%s642 + $0x458] sm:%s635]
          %1199 = vst [vmem:[%s643 + $0x454] sm:%s635] %v1198
          %v1200 = vld [vmem:[%s642 + $0x44c] sm:%s635]
          %1201 = vst [vmem:[%s643 + $0x458] sm:%s635] %v1200
          %v1202 = vld [vmem:[%s642 + $0x45c] sm:%s635]
          %1203 = vst [vmem:[%s643 + $0x45c] sm:%s635] %v1202
          %v1204 = vld [vmem:[%s642 + $0x460] sm:%s635]
          %1205 = vst [vmem:[%s643 + $0x460] sm:%s635] %v1204
          %v1206 = vld [vmem:[%s642 + $0x470] sm:%s635]
          %1207 = vst [vmem:[%s643 + $0x464] sm:%s635] %v1206
          %v1208 = vld [vmem:[%s642 + $0x464] sm:%s635]
          %1209 = vst [vmem:[%s643 + $0x468] sm:%s635] %v1208
          %v1210 = vld [vmem:[%s642 + $0x474] sm:%s635]
          %1211 = vst [vmem:[%s643 + $0x46c] sm:%s635] %v1210
          %v1212 = vld [vmem:[%s642 + $0x468] sm:%s635]
          %1213 = vst [vmem:[%s643 + $0x470] sm:%s635] %v1212
          %v1214 = vld [vmem:[%s642 + $0x478] sm:%s635]
          %1215 = vst [vmem:[%s643 + $0x474] sm:%s635] %v1214
          %v1216 = vld [vmem:[%s642 + $0x46c] sm:%s635]
          %1217 = vst [vmem:[%s643 + $0x478] sm:%s635] %v1216
          %v1218 = vld [vmem:[%s642 + $0x47c] sm:%s635]
          %1219 = vst [vmem:[%s643 + $0x47c] sm:%s635] %v1218
        $region52: #{yolov2_backbone_forward.1} parent=39 // loop_footer
          %s641 = sadd.s32 1, %s637
        $region53: #{yolov2_backbone_forward.1} parent=39 // loop_footer_branch
          %636 = sbr.rel target = $region49
        $region54: #{yolov2_backbone_forward.1} parent=39 // loop_exit
          _
      $region40: #{yolov2_backbone_forward.1} parent=24 // pred_fallthru
        _
    $region25: #{yolov2_backbone_forward.1} parent=1 // pred_fallthru
      _
    // Predicated region
    $region26: #{yolov2_backbone_forward.1} parent=1 // pred_check
      %p29 = pneg %p25
    $region27: #{yolov2_backbone_forward.1} parent=1 // pred_check_branch
      %31 = sbr.rel (%p29) target = $region29
    $region28: #{yolov2_backbone_forward.1} parent=1 // pred_region
      %s32 = sshllo.u32 0, 4
      loop: start=0, step=1, limit=1
      $region30: #{yolov2_backbone_forward.1} parent=28 // loop_pre_header
        _
      $region31: #{yolov2_backbone_forward.1} parent=28 // loop_header
        %s34 = sphi 0, %s38
        %p35 = scmp.ge.s32.totalorder %s34, 1
        %s39 = sphi %s3, %s3
        %s40 = sphi [#allocation6], [#allocation6]
      $region32: #{yolov2_backbone_forward.1} parent=28 // loop_header_branch
        %37 = sbr.rel (%p35) target = $region36
      $region33: #{yolov2_backbone_forward.1} parent=28 // loop_body
        %v41 = vld [vmem:[%s39] sm:%s32]
        %42 = vst [vmem:[%s40] sm:%s32] %v41
        %v43 = vld [vmem:[%s39 + $0x10] sm:%s32]
        %44 = vst [vmem:[%s40 + $0x4] sm:%s32] %v43
        %v45 = vld [vmem:[%s39 + $0x4] sm:%s32]
        %46 = vst [vmem:[%s40 + $0x8] sm:%s32] %v45
        %v47 = vld [vmem:[%s39 + $0x14] sm:%s32]
        %48 = vst [vmem:[%s40 + $0xc] sm:%s32] %v47
        %v49 = vld [vmem:[%s39 + $0x8] sm:%s32]
        %50 = vst [vmem:[%s40 + $0x10] sm:%s32] %v49
        %v51 = vld [vmem:[%s39 + $0x18] sm:%s32]
        %52 = vst [vmem:[%s40 + $0x14] sm:%s32] %v51
        %v53 = vld [vmem:[%s39 + $0xc] sm:%s32]
        %54 = vst [vmem:[%s40 + $0x18] sm:%s32] %v53
        %v55 = vld [vmem:[%s39 + $0x1c] sm:%s32]
        %56 = vst [vmem:[%s40 + $0x1c] sm:%s32] %v55
        %v57 = vld [vmem:[%s39 + $0x20] sm:%s32]
        %58 = vst [vmem:[%s40 + $0x20] sm:%s32] %v57
        %v59 = vld [vmem:[%s39 + $0x30] sm:%s32]
        %60 = vst [vmem:[%s40 + $0x24] sm:%s32] %v59
        %v61 = vld [vmem:[%s39 + $0x24] sm:%s32]
        %62 = vst [vmem:[%s40 + $0x28] sm:%s32] %v61
        %v63 = vld [vmem:[%s39 + $0x34] sm:%s32]
        %64 = vst [vmem:[%s40 + $0x2c] sm:%s32] %v63
        %v65 = vld [vmem:[%s39 + $0x28] sm:%s32]
        %66 = vst [vmem:[%s40 + $0x30] sm:%s32] %v65
        %v67 = vld [vmem:[%s39 + $0x38] sm:%s32]
        %68 = vst [vmem:[%s40 + $0x34] sm:%s32] %v67
        %v69 = vld [vmem:[%s39 + $0x2c] sm:%s32]
        %70 = vst [vmem:[%s40 + $0x38] sm:%s32] %v69
        %v71 = vld [vmem:[%s39 + $0x3c] sm:%s32]
        %72 = vst [vmem:[%s40 + $0x3c] sm:%s32] %v71
        %v73 = vld [vmem:[%s39 + $0x40] sm:%s32]
        %74 = vst [vmem:[%s40 + $0x40] sm:%s32] %v73
        %v75 = vld [vmem:[%s39 + $0x50] sm:%s32]
        %76 = vst [vmem:[%s40 + $0x44] sm:%s32] %v75
        %v77 = vld [vmem:[%s39 + $0x44] sm:%s32]
        %78 = vst [vmem:[%s40 + $0x48] sm:%s32] %v77
        %v79 = vld [vmem:[%s39 + $0x54] sm:%s32]
        %80 = vst [vmem:[%s40 + $0x4c] sm:%s32] %v79
        %v81 = vld [vmem:[%s39 + $0x48] sm:%s32]
        %82 = vst [vmem:[%s40 + $0x50] sm:%s32] %v81
        %v83 = vld [vmem:[%s39 + $0x58] sm:%s32]
        %84 = vst [vmem:[%s40 + $0x54] sm:%s32] %v83
        %v85 = vld [vmem:[%s39 + $0x4c] sm:%s32]
        %86 = vst [vmem:[%s40 + $0x58] sm:%s32] %v85
        %v87 = vld [vmem:[%s39 + $0x5c] sm:%s32]
        %88 = vst [vmem:[%s40 + $0x5c] sm:%s32] %v87
        %v89 = vld [vmem:[%s39 + $0x60] sm:%s32]
        %90 = vst [vmem:[%s40 + $0x60] sm:%s32] %v89
        %v91 = vld [vmem:[%s39 + $0x70] sm:%s32]
        %92 = vst [vmem:[%s40 + $0x64] sm:%s32] %v91
        %v93 = vld [vmem:[%s39 + $0x64] sm:%s32]
        %94 = vst [vmem:[%s40 + $0x68] sm:%s32] %v93
        %v95 = vld [vmem:[%s39 + $0x74] sm:%s32]
        %96 = vst [vmem:[%s40 + $0x6c] sm:%s32] %v95
        %v97 = vld [vmem:[%s39 + $0x68] sm:%s32]
        %98 = vst [vmem:[%s40 + $0x70] sm:%s32] %v97
        %v99 = vld [vmem:[%s39 + $0x78] sm:%s32]
        %100 = vst [vmem:[%s40 + $0x74] sm:%s32] %v99
        %v101 = vld [vmem:[%s39 + $0x6c] sm:%s32]
        %102 = vst [vmem:[%s40 + $0x78] sm:%s32] %v101
        %v103 = vld [vmem:[%s39 + $0x7c] sm:%s32]
        %104 = vst [vmem:[%s40 + $0x7c] sm:%s32] %v103
        %v105 = vld [vmem:[%s39 + $0x80] sm:%s32]
        %106 = vst [vmem:[%s40 + $0x80] sm:%s32] %v105
        %v107 = vld [vmem:[%s39 + $0x90] sm:%s32]
        %108 = vst [vmem:[%s40 + $0x84] sm:%s32] %v107
        %v109 = vld [vmem:[%s39 + $0x84] sm:%s32]
        %110 = vst [vmem:[%s40 + $0x88] sm:%s32] %v109
        %v111 = vld [vmem:[%s39 + $0x94] sm:%s32]
        %112 = vst [vmem:[%s40 + $0x8c] sm:%s32] %v111
        %v113 = vld [vmem:[%s39 + $0x88] sm:%s32]
        %114 = vst [vmem:[%s40 + $0x90] sm:%s32] %v113
        %v115 = vld [vmem:[%s39 + $0x98] sm:%s32]
        %116 = vst [vmem:[%s40 + $0x94] sm:%s32] %v115
        %v117 = vld [vmem:[%s39 + $0x8c] sm:%s32]
        %118 = vst [vmem:[%s40 + $0x98] sm:%s32] %v117
        %v119 = vld [vmem:[%s39 + $0x9c] sm:%s32]
        %120 = vst [vmem:[%s40 + $0x9c] sm:%s32] %v119
        %v121 = vld [vmem:[%s39 + $0xa0] sm:%s32]
        %122 = vst [vmem:[%s40 + $0xa0] sm:%s32] %v121
        %v123 = vld [vmem:[%s39 + $0xb0] sm:%s32]
        %124 = vst [vmem:[%s40 + $0xa4] sm:%s32] %v123
        %v125 = vld [vmem:[%s39 + $0xa4] sm:%s32]
        %126 = vst [vmem:[%s40 + $0xa8] sm:%s32] %v125
        %v127 = vld [vmem:[%s39 + $0xb4] sm:%s32]
        %128 = vst [vmem:[%s40 + $0xac] sm:%s32] %v127
        %v129 = vld [vmem:[%s39 + $0xa8] sm:%s32]
        %130 = vst [vmem:[%s40 + $0xb0] sm:%s32] %v129
        %v131 = vld [vmem:[%s39 + $0xb8] sm:%s32]
        %132 = vst [vmem:[%s40 + $0xb4] sm:%s32] %v131
        %v133 = vld [vmem:[%s39 + $0xac] sm:%s32]
        %134 = vst [vmem:[%s40 + $0xb8] sm:%s32] %v133
        %v135 = vld [vmem:[%s39 + $0xbc] sm:%s32]
        %136 = vst [vmem:[%s40 + $0xbc] sm:%s32] %v135
        %v137 = vld [vmem:[%s39 + $0xc0] sm:%s32]
        %138 = vst [vmem:[%s40 + $0xc0] sm:%s32] %v137
        %v139 = vld [vmem:[%s39 + $0xd0] sm:%s32]
        %140 = vst [vmem:[%s40 + $0xc4] sm:%s32] %v139
        %v141 = vld [vmem:[%s39 + $0xc4] sm:%s32]
        %142 = vst [vmem:[%s40 + $0xc8] sm:%s32] %v141
        %v143 = vld [vmem:[%s39 + $0xd4] sm:%s32]
        %144 = vst [vmem:[%s40 + $0xcc] sm:%s32] %v143
        %v145 = vld [vmem:[%s39 + $0xc8] sm:%s32]
        %146 = vst [vmem:[%s40 + $0xd0] sm:%s32] %v145
        %v147 = vld [vmem:[%s39 + $0xd8] sm:%s32]
        %148 = vst [vmem:[%s40 + $0xd4] sm:%s32] %v147
        %v149 = vld [vmem:[%s39 + $0xcc] sm:%s32]
        %150 = vst [vmem:[%s40 + $0xd8] sm:%s32] %v149
        %v151 = vld [vmem:[%s39 + $0xdc] sm:%s32]
        %152 = vst [vmem:[%s40 + $0xdc] sm:%s32] %v151
        %v153 = vld [vmem:[%s39 + $0xe0] sm:%s32]
        %154 = vst [vmem:[%s40 + $0xe0] sm:%s32] %v153
        %v155 = vld [vmem:[%s39 + $0xf0] sm:%s32]
        %156 = vst [vmem:[%s40 + $0xe4] sm:%s32] %v155
        %v157 = vld [vmem:[%s39 + $0xe4] sm:%s32]
        %158 = vst [vmem:[%s40 + $0xe8] sm:%s32] %v157
        %v159 = vld [vmem:[%s39 + $0xf4] sm:%s32]
        %160 = vst [vmem:[%s40 + $0xec] sm:%s32] %v159
        %v161 = vld [vmem:[%s39 + $0xe8] sm:%s32]
        %162 = vst [vmem:[%s40 + $0xf0] sm:%s32] %v161
        %v163 = vld [vmem:[%s39 + $0xf8] sm:%s32]
        %164 = vst [vmem:[%s40 + $0xf4] sm:%s32] %v163
        %v165 = vld [vmem:[%s39 + $0xec] sm:%s32]
        %166 = vst [vmem:[%s40 + $0xf8] sm:%s32] %v165
        %v167 = vld [vmem:[%s39 + $0xfc] sm:%s32]
        %168 = vst [vmem:[%s40 + $0xfc] sm:%s32] %v167
        %v169 = vld [vmem:[%s39 + $0x100] sm:%s32]
        %170 = vst [vmem:[%s40 + $0x100] sm:%s32] %v169
        %v171 = vld [vmem:[%s39 + $0x110] sm:%s32]
        %172 = vst [vmem:[%s40 + $0x104] sm:%s32] %v171
        %v173 = vld [vmem:[%s39 + $0x104] sm:%s32]
        %174 = vst [vmem:[%s40 + $0x108] sm:%s32] %v173
        %v175 = vld [vmem:[%s39 + $0x114] sm:%s32]
        %176 = vst [vmem:[%s40 + $0x10c] sm:%s32] %v175
        %v177 = vld [vmem:[%s39 + $0x108] sm:%s32]
        %178 = vst [vmem:[%s40 + $0x110] sm:%s32] %v177
        %v179 = vld [vmem:[%s39 + $0x118] sm:%s32]
        %180 = vst [vmem:[%s40 + $0x114] sm:%s32] %v179
        %v181 = vld [vmem:[%s39 + $0x10c] sm:%s32]
        %182 = vst [vmem:[%s40 + $0x118] sm:%s32] %v181
        %v183 = vld [vmem:[%s39 + $0x11c] sm:%s32]
        %184 = vst [vmem:[%s40 + $0x11c] sm:%s32] %v183
        %v185 = vld [vmem:[%s39 + $0x120] sm:%s32]
        %186 = vst [vmem:[%s40 + $0x120] sm:%s32] %v185
        %v187 = vld [vmem:[%s39 + $0x130] sm:%s32]
        %188 = vst [vmem:[%s40 + $0x124] sm:%s32] %v187
        %v189 = vld [vmem:[%s39 + $0x124] sm:%s32]
        %190 = vst [vmem:[%s40 + $0x128] sm:%s32] %v189
        %v191 = vld [vmem:[%s39 + $0x134] sm:%s32]
        %192 = vst [vmem:[%s40 + $0x12c] sm:%s32] %v191
        %v193 = vld [vmem:[%s39 + $0x128] sm:%s32]
        %194 = vst [vmem:[%s40 + $0x130] sm:%s32] %v193
        %v195 = vld [vmem:[%s39 + $0x138] sm:%s32]
        %196 = vst [vmem:[%s40 + $0x134] sm:%s32] %v195
        %v197 = vld [vmem:[%s39 + $0x12c] sm:%s32]
        %198 = vst [vmem:[%s40 + $0x138] sm:%s32] %v197
        %v199 = vld [vmem:[%s39 + $0x13c] sm:%s32]
        %200 = vst [vmem:[%s40 + $0x13c] sm:%s32] %v199
        %v201 = vld [vmem:[%s39 + $0x140] sm:%s32]
        %202 = vst [vmem:[%s40 + $0x140] sm:%s32] %v201
        %v203 = vld [vmem:[%s39 + $0x150] sm:%s32]
        %204 = vst [vmem:[%s40 + $0x144] sm:%s32] %v203
        %v205 = vld [vmem:[%s39 + $0x144] sm:%s32]
        %206 = vst [vmem:[%s40 + $0x148] sm:%s32] %v205
        %v207 = vld [vmem:[%s39 + $0x154] sm:%s32]
        %208 = vst [vmem:[%s40 + $0x14c] sm:%s32] %v207
        %v209 = vld [vmem:[%s39 + $0x148] sm:%s32]
        %210 = vst [vmem:[%s40 + $0x150] sm:%s32] %v209
        %v211 = vld [vmem:[%s39 + $0x158] sm:%s32]
        %212 = vst [vmem:[%s40 + $0x154] sm:%s32] %v211
        %v213 = vld [vmem:[%s39 + $0x14c] sm:%s32]
        %214 = vst [vmem:[%s40 + $0x158] sm:%s32] %v213
        %v215 = vld [vmem:[%s39 + $0x15c] sm:%s32]
        %216 = vst [vmem:[%s40 + $0x15c] sm:%s32] %v215
        %v217 = vld [vmem:[%s39 + $0x160] sm:%s32]
        %218 = vst [vmem:[%s40 + $0x160] sm:%s32] %v217
        %v219 = vld [vmem:[%s39 + $0x170] sm:%s32]
        %220 = vst [vmem:[%s40 + $0x164] sm:%s32] %v219
        %v221 = vld [vmem:[%s39 + $0x164] sm:%s32]
        %222 = vst [vmem:[%s40 + $0x168] sm:%s32] %v221
        %v223 = vld [vmem:[%s39 + $0x174] sm:%s32]
        %224 = vst [vmem:[%s40 + $0x16c] sm:%s32] %v223
        %v225 = vld [vmem:[%s39 + $0x168] sm:%s32]
        %226 = vst [vmem:[%s40 + $0x170] sm:%s32] %v225
        %v227 = vld [vmem:[%s39 + $0x178] sm:%s32]
        %228 = vst [vmem:[%s40 + $0x174] sm:%s32] %v227
        %v229 = vld [vmem:[%s39 + $0x16c] sm:%s32]
        %230 = vst [vmem:[%s40 + $0x178] sm:%s32] %v229
        %v231 = vld [vmem:[%s39 + $0x17c] sm:%s32]
        %232 = vst [vmem:[%s40 + $0x17c] sm:%s32] %v231
        %v233 = vld [vmem:[%s39 + $0x180] sm:%s32]
        %234 = vst [vmem:[%s40 + $0x180] sm:%s32] %v233
        %v235 = vld [vmem:[%s39 + $0x190] sm:%s32]
        %236 = vst [vmem:[%s40 + $0x184] sm:%s32] %v235
        %v237 = vld [vmem:[%s39 + $0x184] sm:%s32]
        %238 = vst [vmem:[%s40 + $0x188] sm:%s32] %v237
        %v239 = vld [vmem:[%s39 + $0x194] sm:%s32]
        %240 = vst [vmem:[%s40 + $0x18c] sm:%s32] %v239
        %v241 = vld [vmem:[%s39 + $0x188] sm:%s32]
        %242 = vst [vmem:[%s40 + $0x190] sm:%s32] %v241
        %v243 = vld [vmem:[%s39 + $0x198] sm:%s32]
        %244 = vst [vmem:[%s40 + $0x194] sm:%s32] %v243
        %v245 = vld [vmem:[%s39 + $0x18c] sm:%s32]
        %246 = vst [vmem:[%s40 + $0x198] sm:%s32] %v245
        %v247 = vld [vmem:[%s39 + $0x19c] sm:%s32]
        %248 = vst [vmem:[%s40 + $0x19c] sm:%s32] %v247
        %v249 = vld [vmem:[%s39 + $0x1a0] sm:%s32]
        %250 = vst [vmem:[%s40 + $0x1a0] sm:%s32] %v249
        %v251 = vld [vmem:[%s39 + $0x1b0] sm:%s32]
        %252 = vst [vmem:[%s40 + $0x1a4] sm:%s32] %v251
        %v253 = vld [vmem:[%s39 + $0x1a4] sm:%s32]
        %254 = vst [vmem:[%s40 + $0x1a8] sm:%s32] %v253
        %v255 = vld [vmem:[%s39 + $0x1b4] sm:%s32]
        %256 = vst [vmem:[%s40 + $0x1ac] sm:%s32] %v255
        %v257 = vld [vmem:[%s39 + $0x1a8] sm:%s32]
        %258 = vst [vmem:[%s40 + $0x1b0] sm:%s32] %v257
        %v259 = vld [vmem:[%s39 + $0x1b8] sm:%s32]
        %260 = vst [vmem:[%s40 + $0x1b4] sm:%s32] %v259
        %v261 = vld [vmem:[%s39 + $0x1ac] sm:%s32]
        %262 = vst [vmem:[%s40 + $0x1b8] sm:%s32] %v261
        %v263 = vld [vmem:[%s39 + $0x1bc] sm:%s32]
        %264 = vst [vmem:[%s40 + $0x1bc] sm:%s32] %v263
        %v265 = vld [vmem:[%s39 + $0x1c0] sm:%s32]
        %266 = vst [vmem:[%s40 + $0x1c0] sm:%s32] %v265
        %v267 = vld [vmem:[%s39 + $0x1d0] sm:%s32]
        %268 = vst [vmem:[%s40 + $0x1c4] sm:%s32] %v267
        %v269 = vld [vmem:[%s39 + $0x1c4] sm:%s32]
        %270 = vst [vmem:[%s40 + $0x1c8] sm:%s32] %v269
        %v271 = vld [vmem:[%s39 + $0x1d4] sm:%s32]
        %272 = vst [vmem:[%s40 + $0x1cc] sm:%s32] %v271
        %v273 = vld [vmem:[%s39 + $0x1c8] sm:%s32]
        %274 = vst [vmem:[%s40 + $0x1d0] sm:%s32] %v273
        %v275 = vld [vmem:[%s39 + $0x1d8] sm:%s32]
        %276 = vst [vmem:[%s40 + $0x1d4] sm:%s32] %v275
        %v277 = vld [vmem:[%s39 + $0x1cc] sm:%s32]
        %278 = vst [vmem:[%s40 + $0x1d8] sm:%s32] %v277
        %v279 = vld [vmem:[%s39 + $0x1dc] sm:%s32]
        %280 = vst [vmem:[%s40 + $0x1dc] sm:%s32] %v279
        %v281 = vld [vmem:[%s39 + $0x1e0] sm:%s32]
        %282 = vst [vmem:[%s40 + $0x1e0] sm:%s32] %v281
        %v283 = vld [vmem:[%s39 + $0x1f0] sm:%s32]
        %284 = vst [vmem:[%s40 + $0x1e4] sm:%s32] %v283
        %v285 = vld [vmem:[%s39 + $0x1e4] sm:%s32]
        %286 = vst [vmem:[%s40 + $0x1e8] sm:%s32] %v285
        %v287 = vld [vmem:[%s39 + $0x1f4] sm:%s32]
        %288 = vst [vmem:[%s40 + $0x1ec] sm:%s32] %v287
        %v289 = vld [vmem:[%s39 + $0x1e8] sm:%s32]
        %290 = vst [vmem:[%s40 + $0x1f0] sm:%s32] %v289
        %v291 = vld [vmem:[%s39 + $0x1f8] sm:%s32]
        %292 = vst [vmem:[%s40 + $0x1f4] sm:%s32] %v291
        %v293 = vld [vmem:[%s39 + $0x1ec] sm:%s32]
        %294 = vst [vmem:[%s40 + $0x1f8] sm:%s32] %v293
        %v295 = vld [vmem:[%s39 + $0x1fc] sm:%s32]
        %296 = vst [vmem:[%s40 + $0x1fc] sm:%s32] %v295
        %v297 = vld [vmem:[%s39 + $0x200] sm:%s32]
        %298 = vst [vmem:[%s40 + $0x200] sm:%s32] %v297
        %v299 = vld [vmem:[%s39 + $0x210] sm:%s32]
        %300 = vst [vmem:[%s40 + $0x204] sm:%s32] %v299
        %v301 = vld [vmem:[%s39 + $0x204] sm:%s32]
        %302 = vst [vmem:[%s40 + $0x208] sm:%s32] %v301
        %v303 = vld [vmem:[%s39 + $0x214] sm:%s32]
        %304 = vst [vmem:[%s40 + $0x20c] sm:%s32] %v303
        %v305 = vld [vmem:[%s39 + $0x208] sm:%s32]
        %306 = vst [vmem:[%s40 + $0x210] sm:%s32] %v305
        %v307 = vld [vmem:[%s39 + $0x218] sm:%s32]
        %308 = vst [vmem:[%s40 + $0x214] sm:%s32] %v307
        %v309 = vld [vmem:[%s39 + $0x20c] sm:%s32]
        %310 = vst [vmem:[%s40 + $0x218] sm:%s32] %v309
        %v311 = vld [vmem:[%s39 + $0x21c] sm:%s32]
        %312 = vst [vmem:[%s40 + $0x21c] sm:%s32] %v311
        %v313 = vld [vmem:[%s39 + $0x220] sm:%s32]
        %314 = vst [vmem:[%s40 + $0x220] sm:%s32] %v313
        %v315 = vld [vmem:[%s39 + $0x230] sm:%s32]
        %316 = vst [vmem:[%s40 + $0x224] sm:%s32] %v315
        %v317 = vld [vmem:[%s39 + $0x224] sm:%s32]
        %318 = vst [vmem:[%s40 + $0x228] sm:%s32] %v317
        %v319 = vld [vmem:[%s39 + $0x234] sm:%s32]
        %320 = vst [vmem:[%s40 + $0x22c] sm:%s32] %v319
        %v321 = vld [vmem:[%s39 + $0x228] sm:%s32]
        %322 = vst [vmem:[%s40 + $0x230] sm:%s32] %v321
        %v323 = vld [vmem:[%s39 + $0x238] sm:%s32]
        %324 = vst [vmem:[%s40 + $0x234] sm:%s32] %v323
        %v325 = vld [vmem:[%s39 + $0x22c] sm:%s32]
        %326 = vst [vmem:[%s40 + $0x238] sm:%s32] %v325
        %v327 = vld [vmem:[%s39 + $0x23c] sm:%s32]
        %328 = vst [vmem:[%s40 + $0x23c] sm:%s32] %v327
        %v329 = vld [vmem:[%s39 + $0x240] sm:%s32]
        %330 = vst [vmem:[%s40 + $0x240] sm:%s32] %v329
        %v331 = vld [vmem:[%s39 + $0x250] sm:%s32]
        %332 = vst [vmem:[%s40 + $0x244] sm:%s32] %v331
        %v333 = vld [vmem:[%s39 + $0x244] sm:%s32]
        %334 = vst [vmem:[%s40 + $0x248] sm:%s32] %v333
        %v335 = vld [vmem:[%s39 + $0x254] sm:%s32]
        %336 = vst [vmem:[%s40 + $0x24c] sm:%s32] %v335
        %v337 = vld [vmem:[%s39 + $0x248] sm:%s32]
        %338 = vst [vmem:[%s40 + $0x250] sm:%s32] %v337
        %v339 = vld [vmem:[%s39 + $0x258] sm:%s32]
        %340 = vst [vmem:[%s40 + $0x254] sm:%s32] %v339
        %v341 = vld [vmem:[%s39 + $0x24c] sm:%s32]
        %342 = vst [vmem:[%s40 + $0x258] sm:%s32] %v341
        %v343 = vld [vmem:[%s39 + $0x25c] sm:%s32]
        %344 = vst [vmem:[%s40 + $0x25c] sm:%s32] %v343
        %v345 = vld [vmem:[%s39 + $0x260] sm:%s32]
        %346 = vst [vmem:[%s40 + $0x260] sm:%s32] %v345
        %v347 = vld [vmem:[%s39 + $0x270] sm:%s32]
        %348 = vst [vmem:[%s40 + $0x264] sm:%s32] %v347
        %v349 = vld [vmem:[%s39 + $0x264] sm:%s32]
        %350 = vst [vmem:[%s40 + $0x268] sm:%s32] %v349
        %v351 = vld [vmem:[%s39 + $0x274] sm:%s32]
        %352 = vst [vmem:[%s40 + $0x26c] sm:%s32] %v351
        %v353 = vld [vmem:[%s39 + $0x268] sm:%s32]
        %354 = vst [vmem:[%s40 + $0x270] sm:%s32] %v353
        %v355 = vld [vmem:[%s39 + $0x278] sm:%s32]
        %356 = vst [vmem:[%s40 + $0x274] sm:%s32] %v355
        %v357 = vld [vmem:[%s39 + $0x26c] sm:%s32]
        %358 = vst [vmem:[%s40 + $0x278] sm:%s32] %v357
        %v359 = vld [vmem:[%s39 + $0x27c] sm:%s32]
        %360 = vst [vmem:[%s40 + $0x27c] sm:%s32] %v359
        %v361 = vld [vmem:[%s39 + $0x280] sm:%s32]
        %362 = vst [vmem:[%s40 + $0x280] sm:%s32] %v361
        %v363 = vld [vmem:[%s39 + $0x290] sm:%s32]
        %364 = vst [vmem:[%s40 + $0x284] sm:%s32] %v363
        %v365 = vld [vmem:[%s39 + $0x284] sm:%s32]
        %366 = vst [vmem:[%s40 + $0x288] sm:%s32] %v365
        %v367 = vld [vmem:[%s39 + $0x294] sm:%s32]
        %368 = vst [vmem:[%s40 + $0x28c] sm:%s32] %v367
        %v369 = vld [vmem:[%s39 + $0x288] sm:%s32]
        %370 = vst [vmem:[%s40 + $0x290] sm:%s32] %v369
        %v371 = vld [vmem:[%s39 + $0x298] sm:%s32]
        %372 = vst [vmem:[%s40 + $0x294] sm:%s32] %v371
        %v373 = vld [vmem:[%s39 + $0x28c] sm:%s32]
        %374 = vst [vmem:[%s40 + $0x298] sm:%s32] %v373
        %v375 = vld [vmem:[%s39 + $0x29c] sm:%s32]
        %376 = vst [vmem:[%s40 + $0x29c] sm:%s32] %v375
        %v377 = vld [vmem:[%s39 + $0x2a0] sm:%s32]
        %378 = vst [vmem:[%s40 + $0x2a0] sm:%s32] %v377
        %v379 = vld [vmem:[%s39 + $0x2b0] sm:%s32]
        %380 = vst [vmem:[%s40 + $0x2a4] sm:%s32] %v379
        %v381 = vld [vmem:[%s39 + $0x2a4] sm:%s32]
        %382 = vst [vmem:[%s40 + $0x2a8] sm:%s32] %v381
        %v383 = vld [vmem:[%s39 + $0x2b4] sm:%s32]
        %384 = vst [vmem:[%s40 + $0x2ac] sm:%s32] %v383
        %v385 = vld [vmem:[%s39 + $0x2a8] sm:%s32]
        %386 = vst [vmem:[%s40 + $0x2b0] sm:%s32] %v385
        %v387 = vld [vmem:[%s39 + $0x2b8] sm:%s32]
        %388 = vst [vmem:[%s40 + $0x2b4] sm:%s32] %v387
        %v389 = vld [vmem:[%s39 + $0x2ac] sm:%s32]
        %390 = vst [vmem:[%s40 + $0x2b8] sm:%s32] %v389
        %v391 = vld [vmem:[%s39 + $0x2bc] sm:%s32]
        %392 = vst [vmem:[%s40 + $0x2bc] sm:%s32] %v391
        %v393 = vld [vmem:[%s39 + $0x2c0] sm:%s32]
        %394 = vst [vmem:[%s40 + $0x2c0] sm:%s32] %v393
        %v395 = vld [vmem:[%s39 + $0x2d0] sm:%s32]
        %396 = vst [vmem:[%s40 + $0x2c4] sm:%s32] %v395
        %v397 = vld [vmem:[%s39 + $0x2c4] sm:%s32]
        %398 = vst [vmem:[%s40 + $0x2c8] sm:%s32] %v397
        %v399 = vld [vmem:[%s39 + $0x2d4] sm:%s32]
        %400 = vst [vmem:[%s40 + $0x2cc] sm:%s32] %v399
        %v401 = vld [vmem:[%s39 + $0x2c8] sm:%s32]
        %402 = vst [vmem:[%s40 + $0x2d0] sm:%s32] %v401
        %v403 = vld [vmem:[%s39 + $0x2d8] sm:%s32]
        %404 = vst [vmem:[%s40 + $0x2d4] sm:%s32] %v403
        %v405 = vld [vmem:[%s39 + $0x2cc] sm:%s32]
        %406 = vst [vmem:[%s40 + $0x2d8] sm:%s32] %v405
        %v407 = vld [vmem:[%s39 + $0x2dc] sm:%s32]
        %408 = vst [vmem:[%s40 + $0x2dc] sm:%s32] %v407
        %v409 = vld [vmem:[%s39 + $0x2e0] sm:%s32]
        %410 = vst [vmem:[%s40 + $0x2e0] sm:%s32] %v409
        %v411 = vld [vmem:[%s39 + $0x2f0] sm:%s32]
        %412 = vst [vmem:[%s40 + $0x2e4] sm:%s32] %v411
        %v413 = vld [vmem:[%s39 + $0x2e4] sm:%s32]
        %414 = vst [vmem:[%s40 + $0x2e8] sm:%s32] %v413
        %v415 = vld [vmem:[%s39 + $0x2f4] sm:%s32]
        %416 = vst [vmem:[%s40 + $0x2ec] sm:%s32] %v415
        %v417 = vld [vmem:[%s39 + $0x2e8] sm:%s32]
        %418 = vst [vmem:[%s40 + $0x2f0] sm:%s32] %v417
        %v419 = vld [vmem:[%s39 + $0x2f8] sm:%s32]
        %420 = vst [vmem:[%s40 + $0x2f4] sm:%s32] %v419
        %v421 = vld [vmem:[%s39 + $0x2ec] sm:%s32]
        %422 = vst [vmem:[%s40 + $0x2f8] sm:%s32] %v421
        %v423 = vld [vmem:[%s39 + $0x2fc] sm:%s32]
        %424 = vst [vmem:[%s40 + $0x2fc] sm:%s32] %v423
        %v425 = vld [vmem:[%s39 + $0x300] sm:%s32]
        %426 = vst [vmem:[%s40 + $0x300] sm:%s32] %v425
        %v427 = vld [vmem:[%s39 + $0x310] sm:%s32]
        %428 = vst [vmem:[%s40 + $0x304] sm:%s32] %v427
        %v429 = vld [vmem:[%s39 + $0x304] sm:%s32]
        %430 = vst [vmem:[%s40 + $0x308] sm:%s32] %v429
        %v431 = vld [vmem:[%s39 + $0x314] sm:%s32]
        %432 = vst [vmem:[%s40 + $0x30c] sm:%s32] %v431
        %v433 = vld [vmem:[%s39 + $0x308] sm:%s32]
        %434 = vst [vmem:[%s40 + $0x310] sm:%s32] %v433
        %v435 = vld [vmem:[%s39 + $0x318] sm:%s32]
        %436 = vst [vmem:[%s40 + $0x314] sm:%s32] %v435
        %v437 = vld [vmem:[%s39 + $0x30c] sm:%s32]
        %438 = vst [vmem:[%s40 + $0x318] sm:%s32] %v437
        %v439 = vld [vmem:[%s39 + $0x31c] sm:%s32]
        %440 = vst [vmem:[%s40 + $0x31c] sm:%s32] %v439
        %v441 = vld [vmem:[%s39 + $0x320] sm:%s32]
        %442 = vst [vmem:[%s40 + $0x320] sm:%s32] %v441
        %v443 = vld [vmem:[%s39 + $0x330] sm:%s32]
        %444 = vst [vmem:[%s40 + $0x324] sm:%s32] %v443
        %v445 = vld [vmem:[%s39 + $0x324] sm:%s32]
        %446 = vst [vmem:[%s40 + $0x328] sm:%s32] %v445
        %v447 = vld [vmem:[%s39 + $0x334] sm:%s32]
        %448 = vst [vmem:[%s40 + $0x32c] sm:%s32] %v447
        %v449 = vld [vmem:[%s39 + $0x328] sm:%s32]
        %450 = vst [vmem:[%s40 + $0x330] sm:%s32] %v449
        %v451 = vld [vmem:[%s39 + $0x338] sm:%s32]
        %452 = vst [vmem:[%s40 + $0x334] sm:%s32] %v451
        %v453 = vld [vmem:[%s39 + $0x32c] sm:%s32]
        %454 = vst [vmem:[%s40 + $0x338] sm:%s32] %v453
        %v455 = vld [vmem:[%s39 + $0x33c] sm:%s32]
        %456 = vst [vmem:[%s40 + $0x33c] sm:%s32] %v455
        %v457 = vld [vmem:[%s39 + $0x340] sm:%s32]
        %458 = vst [vmem:[%s40 + $0x340] sm:%s32] %v457
        %v459 = vld [vmem:[%s39 + $0x350] sm:%s32]
        %460 = vst [vmem:[%s40 + $0x344] sm:%s32] %v459
        %v461 = vld [vmem:[%s39 + $0x344] sm:%s32]
        %462 = vst [vmem:[%s40 + $0x348] sm:%s32] %v461
        %v463 = vld [vmem:[%s39 + $0x354] sm:%s32]
        %464 = vst [vmem:[%s40 + $0x34c] sm:%s32] %v463
        %v465 = vld [vmem:[%s39 + $0x348] sm:%s32]
        %466 = vst [vmem:[%s40 + $0x350] sm:%s32] %v465
        %v467 = vld [vmem:[%s39 + $0x358] sm:%s32]
        %468 = vst [vmem:[%s40 + $0x354] sm:%s32] %v467
        %v469 = vld [vmem:[%s39 + $0x34c] sm:%s32]
        %470 = vst [vmem:[%s40 + $0x358] sm:%s32] %v469
        %v471 = vld [vmem:[%s39 + $0x35c] sm:%s32]
        %472 = vst [vmem:[%s40 + $0x35c] sm:%s32] %v471
        %v473 = vld [vmem:[%s39 + $0x360] sm:%s32]
        %474 = vst [vmem:[%s40 + $0x360] sm:%s32] %v473
        %v475 = vld [vmem:[%s39 + $0x370] sm:%s32]
        %476 = vst [vmem:[%s40 + $0x364] sm:%s32] %v475
        %v477 = vld [vmem:[%s39 + $0x364] sm:%s32]
        %478 = vst [vmem:[%s40 + $0x368] sm:%s32] %v477
        %v479 = vld [vmem:[%s39 + $0x374] sm:%s32]
        %480 = vst [vmem:[%s40 + $0x36c] sm:%s32] %v479
        %v481 = vld [vmem:[%s39 + $0x368] sm:%s32]
        %482 = vst [vmem:[%s40 + $0x370] sm:%s32] %v481
        %v483 = vld [vmem:[%s39 + $0x378] sm:%s32]
        %484 = vst [vmem:[%s40 + $0x374] sm:%s32] %v483
        %v485 = vld [vmem:[%s39 + $0x36c] sm:%s32]
        %486 = vst [vmem:[%s40 + $0x378] sm:%s32] %v485
        %v487 = vld [vmem:[%s39 + $0x37c] sm:%s32]
        %488 = vst [vmem:[%s40 + $0x37c] sm:%s32] %v487
        %v489 = vld [vmem:[%s39 + $0x380] sm:%s32]
        %490 = vst [vmem:[%s40 + $0x380] sm:%s32] %v489
        %v491 = vld [vmem:[%s39 + $0x390] sm:%s32]
        %492 = vst [vmem:[%s40 + $0x384] sm:%s32] %v491
        %v493 = vld [vmem:[%s39 + $0x384] sm:%s32]
        %494 = vst [vmem:[%s40 + $0x388] sm:%s32] %v493
        %v495 = vld [vmem:[%s39 + $0x394] sm:%s32]
        %496 = vst [vmem:[%s40 + $0x38c] sm:%s32] %v495
        %v497 = vld [vmem:[%s39 + $0x388] sm:%s32]
        %498 = vst [vmem:[%s40 + $0x390] sm:%s32] %v497
        %v499 = vld [vmem:[%s39 + $0x398] sm:%s32]
        %500 = vst [vmem:[%s40 + $0x394] sm:%s32] %v499
        %v501 = vld [vmem:[%s39 + $0x38c] sm:%s32]
        %502 = vst [vmem:[%s40 + $0x398] sm:%s32] %v501
        %v503 = vld [vmem:[%s39 + $0x39c] sm:%s32]
        %504 = vst [vmem:[%s40 + $0x39c] sm:%s32] %v503
        %v505 = vld [vmem:[%s39 + $0x3a0] sm:%s32]
        %506 = vst [vmem:[%s40 + $0x3a0] sm:%s32] %v505
        %v507 = vld [vmem:[%s39 + $0x3b0] sm:%s32]
        %508 = vst [vmem:[%s40 + $0x3a4] sm:%s32] %v507
        %v509 = vld [vmem:[%s39 + $0x3a4] sm:%s32]
        %510 = vst [vmem:[%s40 + $0x3a8] sm:%s32] %v509
        %v511 = vld [vmem:[%s39 + $0x3b4] sm:%s32]
        %512 = vst [vmem:[%s40 + $0x3ac] sm:%s32] %v511
        %v513 = vld [vmem:[%s39 + $0x3a8] sm:%s32]
        %514 = vst [vmem:[%s40 + $0x3b0] sm:%s32] %v513
        %v515 = vld [vmem:[%s39 + $0x3b8] sm:%s32]
        %516 = vst [vmem:[%s40 + $0x3b4] sm:%s32] %v515
        %v517 = vld [vmem:[%s39 + $0x3ac] sm:%s32]
        %518 = vst [vmem:[%s40 + $0x3b8] sm:%s32] %v517
        %v519 = vld [vmem:[%s39 + $0x3bc] sm:%s32]
        %520 = vst [vmem:[%s40 + $0x3bc] sm:%s32] %v519
        %v521 = vld [vmem:[%s39 + $0x3c0] sm:%s32]
        %522 = vst [vmem:[%s40 + $0x3c0] sm:%s32] %v521
        %v523 = vld [vmem:[%s39 + $0x3d0] sm:%s32]
        %524 = vst [vmem:[%s40 + $0x3c4] sm:%s32] %v523
        %v525 = vld [vmem:[%s39 + $0x3c4] sm:%s32]
        %526 = vst [vmem:[%s40 + $0x3c8] sm:%s32] %v525
        %v527 = vld [vmem:[%s39 + $0x3d4] sm:%s32]
        %528 = vst [vmem:[%s40 + $0x3cc] sm:%s32] %v527
        %v529 = vld [vmem:[%s39 + $0x3c8] sm:%s32]
        %530 = vst [vmem:[%s40 + $0x3d0] sm:%s32] %v529
        %v531 = vld [vmem:[%s39 + $0x3d8] sm:%s32]
        %532 = vst [vmem:[%s40 + $0x3d4] sm:%s32] %v531
        %v533 = vld [vmem:[%s39 + $0x3cc] sm:%s32]
        %534 = vst [vmem:[%s40 + $0x3d8] sm:%s32] %v533
        %v535 = vld [vmem:[%s39 + $0x3dc] sm:%s32]
        %536 = vst [vmem:[%s40 + $0x3dc] sm:%s32] %v535
        %v537 = vld [vmem:[%s39 + $0x3e0] sm:%s32]
        %538 = vst [vmem:[%s40 + $0x3e0] sm:%s32] %v537
        %v539 = vld [vmem:[%s39 + $0x3f0] sm:%s32]
        %540 = vst [vmem:[%s40 + $0x3e4] sm:%s32] %v539
        %v541 = vld [vmem:[%s39 + $0x3e4] sm:%s32]
        %542 = vst [vmem:[%s40 + $0x3e8] sm:%s32] %v541
        %v543 = vld [vmem:[%s39 + $0x3f4] sm:%s32]
        %544 = vst [vmem:[%s40 + $0x3ec] sm:%s32] %v543
        %v545 = vld [vmem:[%s39 + $0x3e8] sm:%s32]
        %546 = vst [vmem:[%s40 + $0x3f0] sm:%s32] %v545
        %v547 = vld [vmem:[%s39 + $0x3f8] sm:%s32]
        %548 = vst [vmem:[%s40 + $0x3f4] sm:%s32] %v547
        %v549 = vld [vmem:[%s39 + $0x3ec] sm:%s32]
        %550 = vst [vmem:[%s40 + $0x3f8] sm:%s32] %v549
        %v551 = vld [vmem:[%s39 + $0x3fc] sm:%s32]
        %552 = vst [vmem:[%s40 + $0x3fc] sm:%s32] %v551
        %v553 = vld [vmem:[%s39 + $0x400] sm:%s32]
        %554 = vst [vmem:[%s40 + $0x400] sm:%s32] %v553
        %v555 = vld [vmem:[%s39 + $0x410] sm:%s32]
        %556 = vst [vmem:[%s40 + $0x404] sm:%s32] %v555
        %v557 = vld [vmem:[%s39 + $0x404] sm:%s32]
        %558 = vst [vmem:[%s40 + $0x408] sm:%s32] %v557
        %v559 = vld [vmem:[%s39 + $0x414] sm:%s32]
        %560 = vst [vmem:[%s40 + $0x40c] sm:%s32] %v559
        %v561 = vld [vmem:[%s39 + $0x408] sm:%s32]
        %562 = vst [vmem:[%s40 + $0x410] sm:%s32] %v561
        %v563 = vld [vmem:[%s39 + $0x418] sm:%s32]
        %564 = vst [vmem:[%s40 + $0x414] sm:%s32] %v563
        %v565 = vld [vmem:[%s39 + $0x40c] sm:%s32]
        %566 = vst [vmem:[%s40 + $0x418] sm:%s32] %v565
        %v567 = vld [vmem:[%s39 + $0x41c] sm:%s32]
        %568 = vst [vmem:[%s40 + $0x41c] sm:%s32] %v567
        %v569 = vld [vmem:[%s39 + $0x420] sm:%s32]
        %570 = vst [vmem:[%s40 + $0x420] sm:%s32] %v569
        %v571 = vld [vmem:[%s39 + $0x430] sm:%s32]
        %572 = vst [vmem:[%s40 + $0x424] sm:%s32] %v571
        %v573 = vld [vmem:[%s39 + $0x424] sm:%s32]
        %574 = vst [vmem:[%s40 + $0x428] sm:%s32] %v573
        %v575 = vld [vmem:[%s39 + $0x434] sm:%s32]
        %576 = vst [vmem:[%s40 + $0x42c] sm:%s32] %v575
        %v577 = vld [vmem:[%s39 + $0x428] sm:%s32]
        %578 = vst [vmem:[%s40 + $0x430] sm:%s32] %v577
        %v579 = vld [vmem:[%s39 + $0x438] sm:%s32]
        %580 = vst [vmem:[%s40 + $0x434] sm:%s32] %v579
        %v581 = vld [vmem:[%s39 + $0x42c] sm:%s32]
        %582 = vst [vmem:[%s40 + $0x438] sm:%s32] %v581
        %v583 = vld [vmem:[%s39 + $0x43c] sm:%s32]
        %584 = vst [vmem:[%s40 + $0x43c] sm:%s32] %v583
        %v585 = vld [vmem:[%s39 + $0x440] sm:%s32]
        %586 = vst [vmem:[%s40 + $0x440] sm:%s32] %v585
        %v587 = vld [vmem:[%s39 + $0x450] sm:%s32]
        %588 = vst [vmem:[%s40 + $0x444] sm:%s32] %v587
        %v589 = vld [vmem:[%s39 + $0x444] sm:%s32]
        %590 = vst [vmem:[%s40 + $0x448] sm:%s32] %v589
        %v591 = vld [vmem:[%s39 + $0x454] sm:%s32]
        %592 = vst [vmem:[%s40 + $0x44c] sm:%s32] %v591
        %v593 = vld [vmem:[%s39 + $0x448] sm:%s32]
        %594 = vst [vmem:[%s40 + $0x450] sm:%s32] %v593
        %v595 = vld [vmem:[%s39 + $0x458] sm:%s32]
        %596 = vst [vmem:[%s40 + $0x454] sm:%s32] %v595
        %v597 = vld [vmem:[%s39 + $0x44c] sm:%s32]
        %598 = vst [vmem:[%s40 + $0x458] sm:%s32] %v597
        %v599 = vld [vmem:[%s39 + $0x45c] sm:%s32]
        %600 = vst [vmem:[%s40 + $0x45c] sm:%s32] %v599
        %v601 = vld [vmem:[%s39 + $0x460] sm:%s32]
        %602 = vst [vmem:[%s40 + $0x460] sm:%s32] %v601
        %v603 = vld [vmem:[%s39 + $0x470] sm:%s32]
        %604 = vst [vmem:[%s40 + $0x464] sm:%s32] %v603
        %v605 = vld [vmem:[%s39 + $0x464] sm:%s32]
        %606 = vst [vmem:[%s40 + $0x468] sm:%s32] %v605
        %v607 = vld [vmem:[%s39 + $0x474] sm:%s32]
        %608 = vst [vmem:[%s40 + $0x46c] sm:%s32] %v607
        %v609 = vld [vmem:[%s39 + $0x468] sm:%s32]
        %610 = vst [vmem:[%s40 + $0x470] sm:%s32] %v609
        %v611 = vld [vmem:[%s39 + $0x478] sm:%s32]
        %612 = vst [vmem:[%s40 + $0x474] sm:%s32] %v611
        %v613 = vld [vmem:[%s39 + $0x46c] sm:%s32]
        %614 = vst [vmem:[%s40 + $0x478] sm:%s32] %v613
        %v615 = vld [vmem:[%s39 + $0x47c] sm:%s32]
        %616 = vst [vmem:[%s40 + $0x47c] sm:%s32] %v615
      $region34: #{yolov2_backbone_forward.1} parent=28 // loop_footer
        %s38 = sadd.s32 1, %s34
      $region35: #{yolov2_backbone_forward.1} parent=28 // loop_footer_branch
        %33 = sbr.rel target = $region31
      $region36: #{yolov2_backbone_forward.1} parent=28 // loop_exit
        _
    $region29: #{yolov2_backbone_forward.1} parent=1 // pred_fallthru
      _
    // Predicated region
    $region55: #{yolov2_backbone_forward.1} parent=1 // pred_check
      _
    $region56: #{yolov2_backbone_forward.1} parent=1 // pred_check_branch
      %1222 = sbr.rel (0) target = $region58
    $region57: #{yolov2_backbone_forward.1} parent=1 // pred_region
      %1223 = vsyncadd [#allocation8], 18432
    $region58: #{yolov2_backbone_forward.1} parent=1 // pred_fallthru
      _
    %s1224 = scalar_lea.sflag [#allocation8], 1
    %p1226 = scmp.lt.u32.totalorder 1536, 8
    %p1227 = pneg %p1226
    // Predicated region
    $region59: #{yolov2_backbone_forward.1} parent=1 // pred_check
      _
    $region60: #{yolov2_backbone_forward.1} parent=1 // pred_check_branch
      %1229 = sbr.rel (%p1226) target = $region62
    $region61: #{yolov2_backbone_forward.1} parent=1 // pred_region
      %s1244 = sand.u32 1536, 7
      %p1245 = scmp.eq.s32.totalorder %s1244, 0
      // Predicated region
      $region74: #{yolov2_backbone_forward.1} parent=61 // pred_check
        %p1246 = pneg %p1245
      $region75: #{yolov2_backbone_forward.1} parent=61 // pred_check_branch
        %1248 = sbr.rel (%p1246) target = $region77
      $region76: #{yolov2_backbone_forward.1} parent=61 // pred_region
        loop: start=0, step=1, limit=1
        $region78: #{yolov2_backbone_forward.1} parent=76 // loop_pre_header
          _
        $region79: #{yolov2_backbone_forward.1} parent=76 // loop_header
          %s1250 = sphi 0, %s1254
          %p1251 = scmp.ge.s32.totalorder %s1250, 1
          %s1255 = sphi %s5, %s5
          %s1256 = sphi [#allocation7], [#allocation7]
        $region80: #{yolov2_backbone_forward.1} parent=76 // loop_header_branch
          %1253 = sbr.rel (%p1251) target = $region84
        $region81: #{yolov2_backbone_forward.1} parent=76 // loop_body
          %v1257 = vld [vmem:[%s1255] sm:$0xff]
          %1258 = vst [vmem:[%s1256] sm:$0xff] %v1257
          %v1259 = vld [vmem:[%s1255 + $0x8] sm:$0xff]
          %1260 = vst [vmem:[%s1256 + $0x8] sm:$0xff] %v1259
          %v1261 = vld [vmem:[%s1255 + $0x10] sm:$0xff]
          %1262 = vst [vmem:[%s1256 + $0x10] sm:$0xff] %v1261
          %v1263 = vld [vmem:[%s1255 + $0x18] sm:$0xff]
          %1264 = vst [vmem:[%s1256 + $0x18] sm:$0xff] %v1263
          %v1265 = vld [vmem:[%s1255 + $0x20] sm:$0xff]
          %1266 = vst [vmem:[%s1256 + $0x20] sm:$0xff] %v1265
          %v1267 = vld [vmem:[%s1255 + $0x28] sm:$0xff]
          %1268 = vst [vmem:[%s1256 + $0x28] sm:$0xff] %v1267
          %v1269 = vld [vmem:[%s1255 + $0x30] sm:$0xff]
          %1270 = vst [vmem:[%s1256 + $0x30] sm:$0xff] %v1269
          %v1271 = vld [vmem:[%s1255 + $0x38] sm:$0xff]
          %1272 = vst [vmem:[%s1256 + $0x38] sm:$0xff] %v1271
          %v1273 = vld [vmem:[%s1255 + $0x40] sm:$0xff]
          %1274 = vst [vmem:[%s1256 + $0x40] sm:$0xff] %v1273
          %v1275 = vld [vmem:[%s1255 + $0x48] sm:$0xff]
          %1276 = vst [vmem:[%s1256 + $0x48] sm:$0xff] %v1275
          %v1277 = vld [vmem:[%s1255 + $0x50] sm:$0xff]
          %1278 = vst [vmem:[%s1256 + $0x50] sm:$0xff] %v1277
          %v1279 = vld [vmem:[%s1255 + $0x58] sm:$0xff]
          %1280 = vst [vmem:[%s1256 + $0x58] sm:$0xff] %v1279
          %v1281 = vld [vmem:[%s1255 + $0x60] sm:$0xff]
          %1282 = vst [vmem:[%s1256 + $0x60] sm:$0xff] %v1281
          %v1283 = vld [vmem:[%s1255 + $0x68] sm:$0xff]
          %1284 = vst [vmem:[%s1256 + $0x68] sm:$0xff] %v1283
          %v1285 = vld [vmem:[%s1255 + $0x70] sm:$0xff]
          %1286 = vst [vmem:[%s1256 + $0x70] sm:$0xff] %v1285
          %v1287 = vld [vmem:[%s1255 + $0x78] sm:$0xff]
          %1288 = vst [vmem:[%s1256 + $0x78] sm:$0xff] %v1287
          %v1289 = vld [vmem:[%s1255 + $0x80] sm:$0xff]
          %1290 = vst [vmem:[%s1256 + $0x80] sm:$0xff] %v1289
          %v1291 = vld [vmem:[%s1255 + $0x88] sm:$0xff]
          %1292 = vst [vmem:[%s1256 + $0x88] sm:$0xff] %v1291
          %v1293 = vld [vmem:[%s1255 + $0x90] sm:$0xff]
          %1294 = vst [vmem:[%s1256 + $0x90] sm:$0xff] %v1293
          %v1295 = vld [vmem:[%s1255 + $0x98] sm:$0xff]
          %1296 = vst [vmem:[%s1256 + $0x98] sm:$0xff] %v1295
          %v1297 = vld [vmem:[%s1255 + $0xa0] sm:$0xff]
          %1298 = vst [vmem:[%s1256 + $0xa0] sm:$0xff] %v1297
          %v1299 = vld [vmem:[%s1255 + $0xa8] sm:$0xff]
          %1300 = vst [vmem:[%s1256 + $0xa8] sm:$0xff] %v1299
          %v1301 = vld [vmem:[%s1255 + $0xb0] sm:$0xff]
          %1302 = vst [vmem:[%s1256 + $0xb0] sm:$0xff] %v1301
          %v1303 = vld [vmem:[%s1255 + $0xb8] sm:$0xff]
          %1304 = vst [vmem:[%s1256 + $0xb8] sm:$0xff] %v1303
          %v1305 = vld [vmem:[%s1255 + $0xc0] sm:$0xff]
          %1306 = vst [vmem:[%s1256 + $0xc0] sm:$0xff] %v1305
          %v1307 = vld [vmem:[%s1255 + $0xc8] sm:$0xff]
          %1308 = vst [vmem:[%s1256 + $0xc8] sm:$0xff] %v1307
          %v1309 = vld [vmem:[%s1255 + $0xd0] sm:$0xff]
          %1310 = vst [vmem:[%s1256 + $0xd0] sm:$0xff] %v1309
          %v1311 = vld [vmem:[%s1255 + $0xd8] sm:$0xff]
          %1312 = vst [vmem:[%s1256 + $0xd8] sm:$0xff] %v1311
          %v1313 = vld [vmem:[%s1255 + $0xe0] sm:$0xff]
          %1314 = vst [vmem:[%s1256 + $0xe0] sm:$0xff] %v1313
          %v1315 = vld [vmem:[%s1255 + $0xe8] sm:$0xff]
          %1316 = vst [vmem:[%s1256 + $0xe8] sm:$0xff] %v1315
          %v1317 = vld [vmem:[%s1255 + $0xf0] sm:$0xff]
          %1318 = vst [vmem:[%s1256 + $0xf0] sm:$0xff] %v1317
          %v1319 = vld [vmem:[%s1255 + $0xf8] sm:$0xff]
          %1320 = vst [vmem:[%s1256 + $0xf8] sm:$0xff] %v1319
          %v1321 = vld [vmem:[%s1255 + $0x100] sm:$0xff]
          %1322 = vst [vmem:[%s1256 + $0x100] sm:$0xff] %v1321
          %v1323 = vld [vmem:[%s1255 + $0x108] sm:$0xff]
          %1324 = vst [vmem:[%s1256 + $0x108] sm:$0xff] %v1323
          %v1325 = vld [vmem:[%s1255 + $0x110] sm:$0xff]
          %1326 = vst [vmem:[%s1256 + $0x110] sm:$0xff] %v1325
          %v1327 = vld [vmem:[%s1255 + $0x118] sm:$0xff]
          %1328 = vst [vmem:[%s1256 + $0x118] sm:$0xff] %v1327
          %v1329 = vld [vmem:[%s1255 + $0x120] sm:$0xff]
          %1330 = vst [vmem:[%s1256 + $0x120] sm:$0xff] %v1329
          %v1331 = vld [vmem:[%s1255 + $0x128] sm:$0xff]
          %1332 = vst [vmem:[%s1256 + $0x128] sm:$0xff] %v1331
          %v1333 = vld [vmem:[%s1255 + $0x130] sm:$0xff]
          %1334 = vst [vmem:[%s1256 + $0x130] sm:$0xff] %v1333
          %v1335 = vld [vmem:[%s1255 + $0x138] sm:$0xff]
          %1336 = vst [vmem:[%s1256 + $0x138] sm:$0xff] %v1335
          %v1337 = vld [vmem:[%s1255 + $0x140] sm:$0xff]
          %1338 = vst [vmem:[%s1256 + $0x140] sm:$0xff] %v1337
          %v1339 = vld [vmem:[%s1255 + $0x148] sm:$0xff]
          %1340 = vst [vmem:[%s1256 + $0x148] sm:$0xff] %v1339
          %v1341 = vld [vmem:[%s1255 + $0x150] sm:$0xff]
          %1342 = vst [vmem:[%s1256 + $0x150] sm:$0xff] %v1341
          %v1343 = vld [vmem:[%s1255 + $0x158] sm:$0xff]
          %1344 = vst [vmem:[%s1256 + $0x158] sm:$0xff] %v1343
          %v1345 = vld [vmem:[%s1255 + $0x160] sm:$0xff]
          %1346 = vst [vmem:[%s1256 + $0x160] sm:$0xff] %v1345
          %v1347 = vld [vmem:[%s1255 + $0x168] sm:$0xff]
          %1348 = vst [vmem:[%s1256 + $0x168] sm:$0xff] %v1347
          %v1349 = vld [vmem:[%s1255 + $0x170] sm:$0xff]
          %1350 = vst [vmem:[%s1256 + $0x170] sm:$0xff] %v1349
          %v1351 = vld [vmem:[%s1255 + $0x178] sm:$0xff]
          %1352 = vst [vmem:[%s1256 + $0x178] sm:$0xff] %v1351
          %v1353 = vld [vmem:[%s1255 + $0x180] sm:$0xff]
          %1354 = vst [vmem:[%s1256 + $0x180] sm:$0xff] %v1353
          %v1355 = vld [vmem:[%s1255 + $0x188] sm:$0xff]
          %1356 = vst [vmem:[%s1256 + $0x188] sm:$0xff] %v1355
          %v1357 = vld [vmem:[%s1255 + $0x190] sm:$0xff]
          %1358 = vst [vmem:[%s1256 + $0x190] sm:$0xff] %v1357
          %v1359 = vld [vmem:[%s1255 + $0x198] sm:$0xff]
          %1360 = vst [vmem:[%s1256 + $0x198] sm:$0xff] %v1359
          %v1361 = vld [vmem:[%s1255 + $0x1a0] sm:$0xff]
          %1362 = vst [vmem:[%s1256 + $0x1a0] sm:$0xff] %v1361
          %v1363 = vld [vmem:[%s1255 + $0x1a8] sm:$0xff]
          %1364 = vst [vmem:[%s1256 + $0x1a8] sm:$0xff] %v1363
          %v1365 = vld [vmem:[%s1255 + $0x1b0] sm:$0xff]
          %1366 = vst [vmem:[%s1256 + $0x1b0] sm:$0xff] %v1365
          %v1367 = vld [vmem:[%s1255 + $0x1b8] sm:$0xff]
          %1368 = vst [vmem:[%s1256 + $0x1b8] sm:$0xff] %v1367
          %v1369 = vld [vmem:[%s1255 + $0x1c0] sm:$0xff]
          %1370 = vst [vmem:[%s1256 + $0x1c0] sm:$0xff] %v1369
          %v1371 = vld [vmem:[%s1255 + $0x1c8] sm:$0xff]
          %1372 = vst [vmem:[%s1256 + $0x1c8] sm:$0xff] %v1371
          %v1373 = vld [vmem:[%s1255 + $0x1d0] sm:$0xff]
          %1374 = vst [vmem:[%s1256 + $0x1d0] sm:$0xff] %v1373
          %v1375 = vld [vmem:[%s1255 + $0x1d8] sm:$0xff]
          %1376 = vst [vmem:[%s1256 + $0x1d8] sm:$0xff] %v1375
          %v1377 = vld [vmem:[%s1255 + $0x1e0] sm:$0xff]
          %1378 = vst [vmem:[%s1256 + $0x1e0] sm:$0xff] %v1377
          %v1379 = vld [vmem:[%s1255 + $0x1e8] sm:$0xff]
          %1380 = vst [vmem:[%s1256 + $0x1e8] sm:$0xff] %v1379
          %v1381 = vld [vmem:[%s1255 + $0x1f0] sm:$0xff]
          %1382 = vst [vmem:[%s1256 + $0x1f0] sm:$0xff] %v1381
          %v1383 = vld [vmem:[%s1255 + $0x1f8] sm:$0xff]
          %1384 = vst [vmem:[%s1256 + $0x1f8] sm:$0xff] %v1383
          %v1385 = vld [vmem:[%s1255 + $0x200] sm:$0xff]
          %1386 = vst [vmem:[%s1256 + $0x200] sm:$0xff] %v1385
          %v1387 = vld [vmem:[%s1255 + $0x208] sm:$0xff]
          %1388 = vst [vmem:[%s1256 + $0x208] sm:$0xff] %v1387
          %v1389 = vld [vmem:[%s1255 + $0x210] sm:$0xff]
          %1390 = vst [vmem:[%s1256 + $0x210] sm:$0xff] %v1389
          %v1391 = vld [vmem:[%s1255 + $0x218] sm:$0xff]
          %1392 = vst [vmem:[%s1256 + $0x218] sm:$0xff] %v1391
          %v1393 = vld [vmem:[%s1255 + $0x220] sm:$0xff]
          %1394 = vst [vmem:[%s1256 + $0x220] sm:$0xff] %v1393
          %v1395 = vld [vmem:[%s1255 + $0x228] sm:$0xff]
          %1396 = vst [vmem:[%s1256 + $0x228] sm:$0xff] %v1395
          %v1397 = vld [vmem:[%s1255 + $0x230] sm:$0xff]
          %1398 = vst [vmem:[%s1256 + $0x230] sm:$0xff] %v1397
          %v1399 = vld [vmem:[%s1255 + $0x238] sm:$0xff]
          %1400 = vst [vmem:[%s1256 + $0x238] sm:$0xff] %v1399
          %v1401 = vld [vmem:[%s1255 + $0x240] sm:$0xff]
          %1402 = vst [vmem:[%s1256 + $0x240] sm:$0xff] %v1401
          %v1403 = vld [vmem:[%s1255 + $0x248] sm:$0xff]
          %1404 = vst [vmem:[%s1256 + $0x248] sm:$0xff] %v1403
          %v1405 = vld [vmem:[%s1255 + $0x250] sm:$0xff]
          %1406 = vst [vmem:[%s1256 + $0x250] sm:$0xff] %v1405
          %v1407 = vld [vmem:[%s1255 + $0x258] sm:$0xff]
          %1408 = vst [vmem:[%s1256 + $0x258] sm:$0xff] %v1407
          %v1409 = vld [vmem:[%s1255 + $0x260] sm:$0xff]
          %1410 = vst [vmem:[%s1256 + $0x260] sm:$0xff] %v1409
          %v1411 = vld [vmem:[%s1255 + $0x268] sm:$0xff]
          %1412 = vst [vmem:[%s1256 + $0x268] sm:$0xff] %v1411
          %v1413 = vld [vmem:[%s1255 + $0x270] sm:$0xff]
          %1414 = vst [vmem:[%s1256 + $0x270] sm:$0xff] %v1413
          %v1415 = vld [vmem:[%s1255 + $0x278] sm:$0xff]
          %1416 = vst [vmem:[%s1256 + $0x278] sm:$0xff] %v1415
          %v1417 = vld [vmem:[%s1255 + $0x280] sm:$0xff]
          %1418 = vst [vmem:[%s1256 + $0x280] sm:$0xff] %v1417
          %v1419 = vld [vmem:[%s1255 + $0x288] sm:$0xff]
          %1420 = vst [vmem:[%s1256 + $0x288] sm:$0xff] %v1419
          %v1421 = vld [vmem:[%s1255 + $0x290] sm:$0xff]
          %1422 = vst [vmem:[%s1256 + $0x290] sm:$0xff] %v1421
          %v1423 = vld [vmem:[%s1255 + $0x298] sm:$0xff]
          %1424 = vst [vmem:[%s1256 + $0x298] sm:$0xff] %v1423
          %v1425 = vld [vmem:[%s1255 + $0x2a0] sm:$0xff]
          %1426 = vst [vmem:[%s1256 + $0x2a0] sm:$0xff] %v1425
          %v1427 = vld [vmem:[%s1255 + $0x2a8] sm:$0xff]
          %1428 = vst [vmem:[%s1256 + $0x2a8] sm:$0xff] %v1427
          %v1429 = vld [vmem:[%s1255 + $0x2b0] sm:$0xff]
          %1430 = vst [vmem:[%s1256 + $0x2b0] sm:$0xff] %v1429
          %v1431 = vld [vmem:[%s1255 + $0x2b8] sm:$0xff]
          %1432 = vst [vmem:[%s1256 + $0x2b8] sm:$0xff] %v1431
          %v1433 = vld [vmem:[%s1255 + $0x2c0] sm:$0xff]
          %1434 = vst [vmem:[%s1256 + $0x2c0] sm:$0xff] %v1433
          %v1435 = vld [vmem:[%s1255 + $0x2c8] sm:$0xff]
          %1436 = vst [vmem:[%s1256 + $0x2c8] sm:$0xff] %v1435
          %v1437 = vld [vmem:[%s1255 + $0x2d0] sm:$0xff]
          %1438 = vst [vmem:[%s1256 + $0x2d0] sm:$0xff] %v1437
          %v1439 = vld [vmem:[%s1255 + $0x2d8] sm:$0xff]
          %1440 = vst [vmem:[%s1256 + $0x2d8] sm:$0xff] %v1439
          %v1441 = vld [vmem:[%s1255 + $0x2e0] sm:$0xff]
          %1442 = vst [vmem:[%s1256 + $0x2e0] sm:$0xff] %v1441
          %v1443 = vld [vmem:[%s1255 + $0x2e8] sm:$0xff]
          %1444 = vst [vmem:[%s1256 + $0x2e8] sm:$0xff] %v1443
          %v1445 = vld [vmem:[%s1255 + $0x2f0] sm:$0xff]
          %1446 = vst [vmem:[%s1256 + $0x2f0] sm:$0xff] %v1445
          %v1447 = vld [vmem:[%s1255 + $0x2f8] sm:$0xff]
          %1448 = vst [vmem:[%s1256 + $0x2f8] sm:$0xff] %v1447
          %v1449 = vld [vmem:[%s1255 + $0x300] sm:$0xff]
          %1450 = vst [vmem:[%s1256 + $0x300] sm:$0xff] %v1449
          %v1451 = vld [vmem:[%s1255 + $0x308] sm:$0xff]
          %1452 = vst [vmem:[%s1256 + $0x308] sm:$0xff] %v1451
          %v1453 = vld [vmem:[%s1255 + $0x310] sm:$0xff]
          %1454 = vst [vmem:[%s1256 + $0x310] sm:$0xff] %v1453
          %v1455 = vld [vmem:[%s1255 + $0x318] sm:$0xff]
          %1456 = vst [vmem:[%s1256 + $0x318] sm:$0xff] %v1455
          %v1457 = vld [vmem:[%s1255 + $0x320] sm:$0xff]
          %1458 = vst [vmem:[%s1256 + $0x320] sm:$0xff] %v1457
          %v1459 = vld [vmem:[%s1255 + $0x328] sm:$0xff]
          %1460 = vst [vmem:[%s1256 + $0x328] sm:$0xff] %v1459
          %v1461 = vld [vmem:[%s1255 + $0x330] sm:$0xff]
          %1462 = vst [vmem:[%s1256 + $0x330] sm:$0xff] %v1461
          %v1463 = vld [vmem:[%s1255 + $0x338] sm:$0xff]
          %1464 = vst [vmem:[%s1256 + $0x338] sm:$0xff] %v1463
          %v1465 = vld [vmem:[%s1255 + $0x340] sm:$0xff]
          %1466 = vst [vmem:[%s1256 + $0x340] sm:$0xff] %v1465
          %v1467 = vld [vmem:[%s1255 + $0x348] sm:$0xff]
          %1468 = vst [vmem:[%s1256 + $0x348] sm:$0xff] %v1467
          %v1469 = vld [vmem:[%s1255 + $0x350] sm:$0xff]
          %1470 = vst [vmem:[%s1256 + $0x350] sm:$0xff] %v1469
          %v1471 = vld [vmem:[%s1255 + $0x358] sm:$0xff]
          %1472 = vst [vmem:[%s1256 + $0x358] sm:$0xff] %v1471
          %v1473 = vld [vmem:[%s1255 + $0x360] sm:$0xff]
          %1474 = vst [vmem:[%s1256 + $0x360] sm:$0xff] %v1473
          %v1475 = vld [vmem:[%s1255 + $0x368] sm:$0xff]
          %1476 = vst [vmem:[%s1256 + $0x368] sm:$0xff] %v1475
          %v1477 = vld [vmem:[%s1255 + $0x370] sm:$0xff]
          %1478 = vst [vmem:[%s1256 + $0x370] sm:$0xff] %v1477
          %v1479 = vld [vmem:[%s1255 + $0x378] sm:$0xff]
          %1480 = vst [vmem:[%s1256 + $0x378] sm:$0xff] %v1479
          %v1481 = vld [vmem:[%s1255 + $0x380] sm:$0xff]
          %1482 = vst [vmem:[%s1256 + $0x380] sm:$0xff] %v1481
          %v1483 = vld [vmem:[%s1255 + $0x388] sm:$0xff]
          %1484 = vst [vmem:[%s1256 + $0x388] sm:$0xff] %v1483
          %v1485 = vld [vmem:[%s1255 + $0x390] sm:$0xff]
          %1486 = vst [vmem:[%s1256 + $0x390] sm:$0xff] %v1485
          %v1487 = vld [vmem:[%s1255 + $0x398] sm:$0xff]
          %1488 = vst [vmem:[%s1256 + $0x398] sm:$0xff] %v1487
          %v1489 = vld [vmem:[%s1255 + $0x3a0] sm:$0xff]
          %1490 = vst [vmem:[%s1256 + $0x3a0] sm:$0xff] %v1489
          %v1491 = vld [vmem:[%s1255 + $0x3a8] sm:$0xff]
          %1492 = vst [vmem:[%s1256 + $0x3a8] sm:$0xff] %v1491
          %v1493 = vld [vmem:[%s1255 + $0x3b0] sm:$0xff]
          %1494 = vst [vmem:[%s1256 + $0x3b0] sm:$0xff] %v1493
          %v1495 = vld [vmem:[%s1255 + $0x3b8] sm:$0xff]
          %1496 = vst [vmem:[%s1256 + $0x3b8] sm:$0xff] %v1495
          %v1497 = vld [vmem:[%s1255 + $0x3c0] sm:$0xff]
          %1498 = vst [vmem:[%s1256 + $0x3c0] sm:$0xff] %v1497
          %v1499 = vld [vmem:[%s1255 + $0x3c8] sm:$0xff]
          %1500 = vst [vmem:[%s1256 + $0x3c8] sm:$0xff] %v1499
          %v1501 = vld [vmem:[%s1255 + $0x3d0] sm:$0xff]
          %1502 = vst [vmem:[%s1256 + $0x3d0] sm:$0xff] %v1501
          %v1503 = vld [vmem:[%s1255 + $0x3d8] sm:$0xff]
          %1504 = vst [vmem:[%s1256 + $0x3d8] sm:$0xff] %v1503
          %v1505 = vld [vmem:[%s1255 + $0x3e0] sm:$0xff]
          %1506 = vst [vmem:[%s1256 + $0x3e0] sm:$0xff] %v1505
          %v1507 = vld [vmem:[%s1255 + $0x3e8] sm:$0xff]
          %1508 = vst [vmem:[%s1256 + $0x3e8] sm:$0xff] %v1507
          %v1509 = vld [vmem:[%s1255 + $0x3f0] sm:$0xff]
          %1510 = vst [vmem:[%s1256 + $0x3f0] sm:$0xff] %v1509
          %v1511 = vld [vmem:[%s1255 + $0x3f8] sm:$0xff]
          %1512 = vst [vmem:[%s1256 + $0x3f8] sm:$0xff] %v1511
          %v1513 = vld [vmem:[%s1255 + $0x400] sm:$0xff]
          %1514 = vst [vmem:[%s1256 + $0x400] sm:$0xff] %v1513
          %v1515 = vld [vmem:[%s1255 + $0x408] sm:$0xff]
          %1516 = vst [vmem:[%s1256 + $0x408] sm:$0xff] %v1515
          %v1517 = vld [vmem:[%s1255 + $0x410] sm:$0xff]
          %1518 = vst [vmem:[%s1256 + $0x410] sm:$0xff] %v1517
          %v1519 = vld [vmem:[%s1255 + $0x418] sm:$0xff]
          %1520 = vst [vmem:[%s1256 + $0x418] sm:$0xff] %v1519
          %v1521 = vld [vmem:[%s1255 + $0x420] sm:$0xff]
          %1522 = vst [vmem:[%s1256 + $0x420] sm:$0xff] %v1521
          %v1523 = vld [vmem:[%s1255 + $0x428] sm:$0xff]
          %1524 = vst [vmem:[%s1256 + $0x428] sm:$0xff] %v1523
          %v1525 = vld [vmem:[%s1255 + $0x430] sm:$0xff]
          %1526 = vst [vmem:[%s1256 + $0x430] sm:$0xff] %v1525
          %v1527 = vld [vmem:[%s1255 + $0x438] sm:$0xff]
          %1528 = vst [vmem:[%s1256 + $0x438] sm:$0xff] %v1527
          %v1529 = vld [vmem:[%s1255 + $0x440] sm:$0xff]
          %1530 = vst [vmem:[%s1256 + $0x440] sm:$0xff] %v1529
          %v1531 = vld [vmem:[%s1255 + $0x448] sm:$0xff]
          %1532 = vst [vmem:[%s1256 + $0x448] sm:$0xff] %v1531
          %v1533 = vld [vmem:[%s1255 + $0x450] sm:$0xff]
          %1534 = vst [vmem:[%s1256 + $0x450] sm:$0xff] %v1533
          %v1535 = vld [vmem:[%s1255 + $0x458] sm:$0xff]
          %1536 = vst [vmem:[%s1256 + $0x458] sm:$0xff] %v1535
          %v1537 = vld [vmem:[%s1255 + $0x460] sm:$0xff]
          %1538 = vst [vmem:[%s1256 + $0x460] sm:$0xff] %v1537
          %v1539 = vld [vmem:[%s1255 + $0x468] sm:$0xff]
          %1540 = vst [vmem:[%s1256 + $0x468] sm:$0xff] %v1539
          %v1541 = vld [vmem:[%s1255 + $0x470] sm:$0xff]
          %1542 = vst [vmem:[%s1256 + $0x470] sm:$0xff] %v1541
          %v1543 = vld [vmem:[%s1255 + $0x478] sm:$0xff]
          %1544 = vst [vmem:[%s1256 + $0x478] sm:$0xff] %v1543
          %v1545 = vld [vmem:[%s1255 + $0x480] sm:$0xff]
          %1546 = vst [vmem:[%s1256 + $0x480] sm:$0xff] %v1545
          %v1547 = vld [vmem:[%s1255 + $0x488] sm:$0xff]
          %1548 = vst [vmem:[%s1256 + $0x488] sm:$0xff] %v1547
          %v1549 = vld [vmem:[%s1255 + $0x490] sm:$0xff]
          %1550 = vst [vmem:[%s1256 + $0x490] sm:$0xff] %v1549
          %v1551 = vld [vmem:[%s1255 + $0x498] sm:$0xff]
          %1552 = vst [vmem:[%s1256 + $0x498] sm:$0xff] %v1551
          %v1553 = vld [vmem:[%s1255 + $0x4a0] sm:$0xff]
          %1554 = vst [vmem:[%s1256 + $0x4a0] sm:$0xff] %v1553
          %v1555 = vld [vmem:[%s1255 + $0x4a8] sm:$0xff]
          %1556 = vst [vmem:[%s1256 + $0x4a8] sm:$0xff] %v1555
          %v1557 = vld [vmem:[%s1255 + $0x4b0] sm:$0xff]
          %1558 = vst [vmem:[%s1256 + $0x4b0] sm:$0xff] %v1557
          %v1559 = vld [vmem:[%s1255 + $0x4b8] sm:$0xff]
          %1560 = vst [vmem:[%s1256 + $0x4b8] sm:$0xff] %v1559
          %v1561 = vld [vmem:[%s1255 + $0x4c0] sm:$0xff]
          %1562 = vst [vmem:[%s1256 + $0x4c0] sm:$0xff] %v1561
          %v1563 = vld [vmem:[%s1255 + $0x4c8] sm:$0xff]
          %1564 = vst [vmem:[%s1256 + $0x4c8] sm:$0xff] %v1563
          %v1565 = vld [vmem:[%s1255 + $0x4d0] sm:$0xff]
          %1566 = vst [vmem:[%s1256 + $0x4d0] sm:$0xff] %v1565
          %v1567 = vld [vmem:[%s1255 + $0x4d8] sm:$0xff]
          %1568 = vst [vmem:[%s1256 + $0x4d8] sm:$0xff] %v1567
          %v1569 = vld [vmem:[%s1255 + $0x4e0] sm:$0xff]
          %1570 = vst [vmem:[%s1256 + $0x4e0] sm:$0xff] %v1569
          %v1571 = vld [vmem:[%s1255 + $0x4e8] sm:$0xff]
          %1572 = vst [vmem:[%s1256 + $0x4e8] sm:$0xff] %v1571
          %v1573 = vld [vmem:[%s1255 + $0x4f0] sm:$0xff]
          %1574 = vst [vmem:[%s1256 + $0x4f0] sm:$0xff] %v1573
          %v1575 = vld [vmem:[%s1255 + $0x4f8] sm:$0xff]
          %1576 = vst [vmem:[%s1256 + $0x4f8] sm:$0xff] %v1575
          %v1577 = vld [vmem:[%s1255 + $0x500] sm:$0xff]
          %1578 = vst [vmem:[%s1256 + $0x500] sm:$0xff] %v1577
          %v1579 = vld [vmem:[%s1255 + $0x508] sm:$0xff]
          %1580 = vst [vmem:[%s1256 + $0x508] sm:$0xff] %v1579
          %v1581 = vld [vmem:[%s1255 + $0x510] sm:$0xff]
          %1582 = vst [vmem:[%s1256 + $0x510] sm:$0xff] %v1581
          %v1583 = vld [vmem:[%s1255 + $0x518] sm:$0xff]
          %1584 = vst [vmem:[%s1256 + $0x518] sm:$0xff] %v1583
          %v1585 = vld [vmem:[%s1255 + $0x520] sm:$0xff]
          %1586 = vst [vmem:[%s1256 + $0x520] sm:$0xff] %v1585
          %v1587 = vld [vmem:[%s1255 + $0x528] sm:$0xff]
          %1588 = vst [vmem:[%s1256 + $0x528] sm:$0xff] %v1587
          %v1589 = vld [vmem:[%s1255 + $0x530] sm:$0xff]
          %1590 = vst [vmem:[%s1256 + $0x530] sm:$0xff] %v1589
          %v1591 = vld [vmem:[%s1255 + $0x538] sm:$0xff]
          %1592 = vst [vmem:[%s1256 + $0x538] sm:$0xff] %v1591
          %v1593 = vld [vmem:[%s1255 + $0x540] sm:$0xff]
          %1594 = vst [vmem:[%s1256 + $0x540] sm:$0xff] %v1593
          %v1595 = vld [vmem:[%s1255 + $0x548] sm:$0xff]
          %1596 = vst [vmem:[%s1256 + $0x548] sm:$0xff] %v1595
          %v1597 = vld [vmem:[%s1255 + $0x550] sm:$0xff]
          %1598 = vst [vmem:[%s1256 + $0x550] sm:$0xff] %v1597
          %v1599 = vld [vmem:[%s1255 + $0x558] sm:$0xff]
          %1600 = vst [vmem:[%s1256 + $0x558] sm:$0xff] %v1599
          %v1601 = vld [vmem:[%s1255 + $0x560] sm:$0xff]
          %1602 = vst [vmem:[%s1256 + $0x560] sm:$0xff] %v1601
          %v1603 = vld [vmem:[%s1255 + $0x568] sm:$0xff]
          %1604 = vst [vmem:[%s1256 + $0x568] sm:$0xff] %v1603
          %v1605 = vld [vmem:[%s1255 + $0x570] sm:$0xff]
          %1606 = vst [vmem:[%s1256 + $0x570] sm:$0xff] %v1605
          %v1607 = vld [vmem:[%s1255 + $0x578] sm:$0xff]
          %1608 = vst [vmem:[%s1256 + $0x578] sm:$0xff] %v1607
          %v1609 = vld [vmem:[%s1255 + $0x580] sm:$0xff]
          %1610 = vst [vmem:[%s1256 + $0x580] sm:$0xff] %v1609
          %v1611 = vld [vmem:[%s1255 + $0x588] sm:$0xff]
          %1612 = vst [vmem:[%s1256 + $0x588] sm:$0xff] %v1611
          %v1613 = vld [vmem:[%s1255 + $0x590] sm:$0xff]
          %1614 = vst [vmem:[%s1256 + $0x590] sm:$0xff] %v1613
          %v1615 = vld [vmem:[%s1255 + $0x598] sm:$0xff]
          %1616 = vst [vmem:[%s1256 + $0x598] sm:$0xff] %v1615
          %v1617 = vld [vmem:[%s1255 + $0x5a0] sm:$0xff]
          %1618 = vst [vmem:[%s1256 + $0x5a0] sm:$0xff] %v1617
          %v1619 = vld [vmem:[%s1255 + $0x5a8] sm:$0xff]
          %1620 = vst [vmem:[%s1256 + $0x5a8] sm:$0xff] %v1619
          %v1621 = vld [vmem:[%s1255 + $0x5b0] sm:$0xff]
          %1622 = vst [vmem:[%s1256 + $0x5b0] sm:$0xff] %v1621
          %v1623 = vld [vmem:[%s1255 + $0x5b8] sm:$0xff]
          %1624 = vst [vmem:[%s1256 + $0x5b8] sm:$0xff] %v1623
          %v1625 = vld [vmem:[%s1255 + $0x5c0] sm:$0xff]
          %1626 = vst [vmem:[%s1256 + $0x5c0] sm:$0xff] %v1625
          %v1627 = vld [vmem:[%s1255 + $0x5c8] sm:$0xff]
          %1628 = vst [vmem:[%s1256 + $0x5c8] sm:$0xff] %v1627
          %v1629 = vld [vmem:[%s1255 + $0x5d0] sm:$0xff]
          %1630 = vst [vmem:[%s1256 + $0x5d0] sm:$0xff] %v1629
          %v1631 = vld [vmem:[%s1255 + $0x5d8] sm:$0xff]
          %1632 = vst [vmem:[%s1256 + $0x5d8] sm:$0xff] %v1631
          %v1633 = vld [vmem:[%s1255 + $0x5e0] sm:$0xff]
          %1634 = vst [vmem:[%s1256 + $0x5e0] sm:$0xff] %v1633
          %v1635 = vld [vmem:[%s1255 + $0x5e8] sm:$0xff]
          %1636 = vst [vmem:[%s1256 + $0x5e8] sm:$0xff] %v1635
          %v1637 = vld [vmem:[%s1255 + $0x5f0] sm:$0xff]
          %1638 = vst [vmem:[%s1256 + $0x5f0] sm:$0xff] %v1637
          %v1639 = vld [vmem:[%s1255 + $0x5f8] sm:$0xff]
          %1640 = vst [vmem:[%s1256 + $0x5f8] sm:$0xff] %v1639
        $region82: #{yolov2_backbone_forward.1} parent=76 // loop_footer
          %s1254 = sadd.s32 1, %s1250
        $region83: #{yolov2_backbone_forward.1} parent=76 // loop_footer_branch
          %1249 = sbr.rel target = $region79
        $region84: #{yolov2_backbone_forward.1} parent=76 // loop_exit
          _
      $region77: #{yolov2_backbone_forward.1} parent=61 // pred_fallthru
        _
      %p1641 = pneg %p1245
      // Predicated region
      $region85: #{yolov2_backbone_forward.1} parent=61 // pred_check
        _
      $region86: #{yolov2_backbone_forward.1} parent=61 // pred_check_branch
        %1643 = sbr.rel (%p1245) target = $region88
      $region87: #{yolov2_backbone_forward.1} parent=61 // pred_region
        %s1644 = sand.u32 1536, 7
      $region88: #{yolov2_backbone_forward.1} parent=61 // pred_fallthru
        _
    $region62: #{yolov2_backbone_forward.1} parent=1 // pred_fallthru
      _
    // Predicated region
    $region63: #{yolov2_backbone_forward.1} parent=1 // pred_check
      %p1230 = pneg %p1226
    $region64: #{yolov2_backbone_forward.1} parent=1 // pred_check_branch
      %1232 = sbr.rel (%p1230) target = $region66
    $region65: #{yolov2_backbone_forward.1} parent=1 // pred_region
      %s1233 = sshllo.u32 0, 1536
      loop: start=0, step=1, limit=1
      $region67: #{yolov2_backbone_forward.1} parent=65 // loop_pre_header
        _
      $region68: #{yolov2_backbone_forward.1} parent=65 // loop_header
        %s1235 = sphi 0, %s1239
        %p1236 = scmp.ge.s32.totalorder %s1235, 1
        %s1240 = sphi %s5, %s5
        %s1241 = sphi [#allocation7], [#allocation7]
      $region69: #{yolov2_backbone_forward.1} parent=65 // loop_header_branch
        %1238 = sbr.rel (%p1236) target = $region73
      $region70: #{yolov2_backbone_forward.1} parent=65 // loop_body
        %v1242 = vld [vmem:[%s1240] sm:%s1233]
        %1243 = vst [vmem:[%s1241] sm:%s1233] %v1242
      $region71: #{yolov2_backbone_forward.1} parent=65 // loop_footer
        %s1239 = sadd.s32 1, %s1235
      $region72: #{yolov2_backbone_forward.1} parent=65 // loop_footer_branch
        %1234 = sbr.rel target = $region68
      $region73: #{yolov2_backbone_forward.1} parent=65 // loop_exit
        _
    $region66: #{yolov2_backbone_forward.1} parent=1 // pred_fallthru
      _
    // Predicated region
    $region89: #{yolov2_backbone_forward.1} parent=1 // pred_check
      _
    $region90: #{yolov2_backbone_forward.1} parent=1 // pred_check_branch
      %1647 = sbr.rel (0) target = $region92
    $region91: #{yolov2_backbone_forward.1} parent=1 // pred_region
      %1648 = vsyncadd %s1224, 24576
    $region92: #{yolov2_backbone_forward.1} parent=1 // pred_fallthru
      _
    %vm1649 = vcmask 64512
    %1650 = vst.msk [vmem:[#allocation2] sm:$0xff] %vm1649, 0.0
    %vm1651 = vcmask 58368
    %1652 = vst.msk [vmem:[#allocation2 + $0x8] sm:$0x3] %vm1651, 0.0
    %1653 = vst.msk [vmem:[#allocation2 + $0x10] sm:$0xff] %vm1649, 0.0
    %1654 = vst.msk [vmem:[#allocation2 + $0x18] sm:$0x3] %vm1651, 0.0
    %1655 = vst.msk [vmem:[#allocation2 + $0x20] sm:$0xff] %vm1649, 0.0
    %1656 = vst.msk [vmem:[#allocation2 + $0x28] sm:$0x3] %vm1651, 0.0
    %1657 = vst.msk [vmem:[#allocation2 + $0x30] sm:$0xff] %vm1649, 0.0
    %1658 = vst.msk [vmem:[#allocation2 + $0x38] sm:$0x3] %vm1651, 0.0
    %1659 = vst.msk [vmem:[#allocation2 + $0x40] sm:$0xff] %vm1649, 0.0
    %1660 = vst.msk [vmem:[#allocation2 + $0x48] sm:$0x3] %vm1651, 0.0
    %1661 = vst.msk [vmem:[#allocation2 + $0x50] sm:$0xff] %vm1649, 0.0
    %1662 = vst.msk [vmem:[#allocation2 + $0x58] sm:$0x3] %vm1651, 0.0
    %1663 = vst.msk [vmem:[#allocation2 + $0x60] sm:$0xff] %vm1649, 0.0
    %1664 = vst.msk [vmem:[#allocation2 + $0x68] sm:$0x3] %vm1651, 0.0
    %1665 = vst.msk [vmem:[#allocation2 + $0x70] sm:$0xff] %vm1649, 0.0
    %1666 = vst.msk [vmem:[#allocation2 + $0x78] sm:$0x3] %vm1651, 0.0
    %1667 = vst.msk [vmem:[#allocation2 + $0x80] sm:$0xff] %vm1649, 0.0
    %1668 = vst.msk [vmem:[#allocation2 + $0x88] sm:$0x3] %vm1651, 0.0
    %1669 = vst.msk [vmem:[#allocation2 + $0x90] sm:$0xff] %vm1649, 0.0
    %1670 = vst.msk [vmem:[#allocation2 + $0x98] sm:$0x3] %vm1651, 0.0
    %1671 = vst.msk [vmem:[#allocation2 + $0xa0] sm:$0xff] %vm1649, 0.0
    %1672 = vst.msk [vmem:[#allocation2 + $0xa8] sm:$0x3] %vm1651, 0.0
    %1673 = vst.msk [vmem:[#allocation2 + $0xb0] sm:$0xff] %vm1649, 0.0
    %1674 = vst.msk [vmem:[#allocation2 + $0xb8] sm:$0x3] %vm1651, 0.0
    %1675 = vst.msk [vmem:[#allocation2 + $0xc0] sm:$0xff] %vm1649, 0.0
    %1676 = vst.msk [vmem:[#allocation2 + $0xc8] sm:$0x3] %vm1651, 0.0
    %1677 = vst.msk [vmem:[#allocation2 + $0xd0] sm:$0xff] %vm1649, 0.0
    %1678 = vst.msk [vmem:[#allocation2 + $0xd8] sm:$0x3] %vm1651, 0.0
    %1679 = vst.msk [vmem:[#allocation2 + $0xe0] sm:$0xff] %vm1649, 0.0
    %1680 = vst.msk [vmem:[#allocation2 + $0xe8] sm:$0x3] %vm1651, 0.0
    %1681 = vst.msk [vmem:[#allocation2 + $0xf0] sm:$0xff] %vm1649, 0.0
    %1682 = vst.msk [vmem:[#allocation2 + $0xf8] sm:$0x3] %vm1651, 0.0
    %1683 = vst.msk [vmem:[#allocation2 + $0x100] sm:$0xff] %vm1649, 0.0
    %1684 = vst.msk [vmem:[#allocation2 + $0x108] sm:$0x3] %vm1651, 0.0
    %1685 = vst.msk [vmem:[#allocation2 + $0x110] sm:$0xff] %vm1649, 0.0
    %1686 = vst.msk [vmem:[#allocation2 + $0x118] sm:$0x3] %vm1651, 0.0
    %1687 = vst.msk [vmem:[#allocation2 + $0x120] sm:$0xff] %vm1649, 0.0
    %1688 = vst.msk [vmem:[#allocation2 + $0x128] sm:$0x3] %vm1651, 0.0
    %1689 = vst.msk [vmem:[#allocation2 + $0x130] sm:$0xff] %vm1649, 0.0
    %1690 = vst.msk [vmem:[#allocation2 + $0x138] sm:$0x3] %vm1651, 0.0
    %1691 = vst.msk [vmem:[#allocation2 + $0x140] sm:$0xff] %vm1649, 0.0
    %1692 = vst.msk [vmem:[#allocation2 + $0x148] sm:$0x3] %vm1651, 0.0
    %1693 = vst.msk [vmem:[#allocation2 + $0x150] sm:$0xff] %vm1649, 0.0
    %1694 = vst.msk [vmem:[#allocation2 + $0x158] sm:$0x3] %vm1651, 0.0
    %1695 = vst.msk [vmem:[#allocation2 + $0x160] sm:$0xff] %vm1649, 0.0
    %1696 = vst.msk [vmem:[#allocation2 + $0x168] sm:$0x3] %vm1651, 0.0
    %1697 = vst.msk [vmem:[#allocation2 + $0x170] sm:$0xff] %vm1649, 0.0
    %1698 = vst.msk [vmem:[#allocation2 + $0x178] sm:$0x3] %vm1651, 0.0
    %1699 = vst.msk [vmem:[#allocation2 + $0x180] sm:$0xff] %vm1649, 0.0
    %1700 = vst.msk [vmem:[#allocation2 + $0x188] sm:$0x3] %vm1651, 0.0
    %1701 = vst.msk [vmem:[#allocation2 + $0x190] sm:$0xff] %vm1649, 0.0
    %1702 = vst.msk [vmem:[#allocation2 + $0x198] sm:$0x3] %vm1651, 0.0
    %1703 = vst.msk [vmem:[#allocation2 + $0x1a0] sm:$0xff] %vm1649, 0.0
    %1704 = vst.msk [vmem:[#allocation2 + $0x1a8] sm:$0x3] %vm1651, 0.0
    %1705 = vst.msk [vmem:[#allocation2 + $0x1b0] sm:$0xff] %vm1649, 0.0
    %1706 = vst.msk [vmem:[#allocation2 + $0x1b8] sm:$0x3] %vm1651, 0.0
    %v1707 = vld [vmem:[%s0] sm:$0xff]
    %v1708 = vld [vmem:[%s0 + $0x8] sm:$0xff]
    %v1709 = vld [vmem:[%s0 + $0x10] sm:$0xff]
    %v1710 = vld [vmem:[%s0 + $0x18] sm:$0xff]
    %v1711 = vld [vmem:[%s0 + $0x20] sm:$0xff]
    %v1712 = vld [vmem:[%s0 + $0x28] sm:$0xff]
    %v1713 = vld [vmem:[%s0 + $0x30] sm:$0xff]
    %v1714 = vld [vmem:[%s0 + $0x38] sm:$0xff]
    %v1715 = vld [vmem:[%s0 + $0x40] sm:$0xff]
    %v1716 = vld [vmem:[%s0 + $0x48] sm:$0xff]
    %v1717 = vld [vmem:[%s0 + $0x50] sm:$0xff]
    %v1718 = vld [vmem:[%s0 + $0x58] sm:$0xff]
    %v1719 = vld [vmem:[%s0 + $0x60] sm:$0xff]
    %v1720 = vld [vmem:[%s0 + $0x68] sm:$0xff]
    %v1721 = vld [vmem:[%s0 + $0x70] sm:$0xff]
    %v1722 = vld [vmem:[%s0 + $0x78] sm:$0xff]
    %v1723 = vld [vmem:[%s0 + $0x80] sm:$0xff]
    %v1724 = vld [vmem:[%s0 + $0x88] sm:$0xff]
    %v1725 = vld [vmem:[%s0 + $0x90] sm:$0xff]
    %v1726 = vld [vmem:[%s0 + $0x98] sm:$0xff]
    %v1727 = vld [vmem:[%s0 + $0xa0] sm:$0xff]
    %v1728 = vld [vmem:[%s0 + $0xa8] sm:$0xff]
    %v1729 = vld [vmem:[%s0 + $0xb0] sm:$0xff]
    %v1730 = vld [vmem:[%s0 + $0xb8] sm:$0xff]
    %s1731 = scalar_lea.vmem [#allocation2], 16
    %vm1732 = vcmask 23552
    %1733 = vst.msk [vmem:[%s1731 + $0x1] sm:$0xff] %vm1732, %v1707
    %1734 = vst.msk [vmem:[%s1731 + $0x11] sm:$0xff] %vm1732, %v1708
    %1735 = vst.msk [vmem:[%s1731 + $0x21] sm:$0xff] %vm1732, %v1709
    %1736 = vst.msk [vmem:[%s1731 + $0x31] sm:$0xff] %vm1732, %v1710
    %1737 = vst.msk [vmem:[%s1731 + $0x41] sm:$0xff] %vm1732, %v1711
    %1738 = vst.msk [vmem:[%s1731 + $0x51] sm:$0xff] %vm1732, %v1712
    %1739 = vst.msk [vmem:[%s1731 + $0x61] sm:$0xff] %vm1732, %v1713
    %1740 = vst.msk [vmem:[%s1731 + $0x71] sm:$0xff] %vm1732, %v1714
    %1741 = vst.msk [vmem:[%s1731 + $0x81] sm:$0xff] %vm1732, %v1715
    %1742 = vst.msk [vmem:[%s1731 + $0x91] sm:$0xff] %vm1732, %v1716
    %1743 = vst.msk [vmem:[%s1731 + $0xa1] sm:$0xff] %vm1732, %v1717
    %1744 = vst.msk [vmem:[%s1731 + $0xb1] sm:$0xff] %vm1732, %v1718
    %1745 = vst.msk [vmem:[%s1731 + $0xe1] sm:$0xff] %vm1732, %v1719
    %1746 = vst.msk [vmem:[%s1731 + $0xf1] sm:$0xff] %vm1732, %v1720
    %1747 = vst.msk [vmem:[%s1731 + $0x101] sm:$0xff] %vm1732, %v1721
    %1748 = vst.msk [vmem:[%s1731 + $0x111] sm:$0xff] %vm1732, %v1722
    %1749 = vst.msk [vmem:[%s1731 + $0x121] sm:$0xff] %vm1732, %v1723
    %1750 = vst.msk [vmem:[%s1731 + $0x131] sm:$0xff] %vm1732, %v1724
    %1751 = vst.msk [vmem:[%s1731 + $0x141] sm:$0xff] %vm1732, %v1725
    %1752 = vst.msk [vmem:[%s1731 + $0x151] sm:$0xff] %vm1732, %v1726
    %1753 = vst.msk [vmem:[%s1731 + $0x161] sm:$0xff] %vm1732, %v1727
    %1754 = vst.msk [vmem:[%s1731 + $0x171] sm:$0xff] %vm1732, %v1728
    %1755 = vst.msk [vmem:[%s1731 + $0x181] sm:$0xff] %vm1732, %v1729
    %1756 = vst.msk [vmem:[%s1731 + $0x191] sm:$0xff] %vm1732, %v1730
    %v1757 = vld [vmem:[#allocation2] sm:$0xff]
    %v1758 = vld [vmem:[#allocation2 + $0x10] sm:$0xff]
    %v1759 = vld [vmem:[#allocation2 + $0x20] sm:$0xff]
    %v1760 = vld [vmem:[#allocation2 + $0x30] sm:$0xff]
    %v1761 = vld [vmem:[#allocation2 + $0x40] sm:$0xff]
    %v1762 = vld [vmem:[#allocation2 + $0x50] sm:$0xff]
    %v1763 = vld [vmem:[#allocation2 + $0x60] sm:$0xff]
    %v1764 = vld [vmem:[#allocation2 + $0x70] sm:$0xff]
    %v1765 = vld [vmem:[#allocation2 + $0x80] sm:$0xff]
    %v1766 = vld [vmem:[#allocation2 + $0x90] sm:$0xff]
    %v1767 = vld [vmem:[#allocation2 + $0xa0] sm:$0xff]
    %v1768 = vld [vmem:[#allocation2 + $0xb0] sm:$0xff]
    %v1769 = vld [vmem:[#allocation2 + $0xe0] sm:$0xff]
    %v1770 = vld [vmem:[#allocation2 + $0xf0] sm:$0xff]
    %v1771 = vld [vmem:[#allocation2 + $0x100] sm:$0xff]
    %v1772 = vld [vmem:[#allocation2 + $0x110] sm:$0xff]
    %v1773 = vld [vmem:[#allocation2 + $0x120] sm:$0xff]
    %v1774 = vld [vmem:[#allocation2 + $0x130] sm:$0xff]
    %v1775 = vld [vmem:[#allocation2 + $0x140] sm:$0xff]
    %v1776 = vld [vmem:[#allocation2 + $0x150] sm:$0xff]
    %v1777 = vld [vmem:[#allocation2 + $0x160] sm:$0xff]
    %v1778 = vld [vmem:[#allocation2 + $0x170] sm:$0xff]
    %v1779 = vld [vmem:[#allocation2 + $0x180] sm:$0xff]
    %v1780 = vld [vmem:[#allocation2 + $0x190] sm:$0xff]
    %v1781 = vpack.c.bf16 %v1758, %v1757
    %v1782 = vpack.c.bf16 %v1760, %v1759
    %v1783 = vpack.c.bf16 %v1762, %v1761
    %v1784 = vpack.c.bf16 %v1764, %v1763
    %v1785 = vpack.c.bf16 %v1766, %v1765
    %v1786 = vpack.c.bf16 %v1768, %v1767
    %v1787 = vpack.c.bf16 %v1770, %v1769
    %v1788 = vpack.c.bf16 %v1772, %v1771
    %v1789 = vpack.c.bf16 %v1774, %v1773
    %v1790 = vpack.c.bf16 %v1776, %v1775
    %v1791 = vpack.c.bf16 %v1778, %v1777
    %v1792 = vpack.c.bf16 %v1780, %v1779
    %v1793 = vld [vmem:[%s1] sm:$0xf]
    %v1795 = vsel %vm1649, %v1781, 0
    %v1798 = vsel %vm1649, %v1782, 0
    %v1801 = vsel %vm1649, %v1783, 0
    %v1804 = vsel %vm1649, %v1784, 0
    %v1807 = vsel %vm1649, %v1785, 0
    %v1810 = vsel %vm1649, %v1786, 0
    %v1813 = vsel %vm1649, %v1787, 0
    %v1816 = vsel %vm1649, %v1788, 0
    %v1819 = vsel %vm1649, %v1789, 0
    %v1822 = vsel %vm1649, %v1790, 0
    %v1825 = vsel %vm1649, %v1791, 0
    %v1828 = vsel %vm1649, %v1792, 0
    %vm1830 = vcmask 1043456
    %v1832 = vsel %vm1830, %v1793, 0
    %1834 = vmatprep.subr.bf16.mxu0 0
    %1835 = vmatpush1.bf16.msra.mxu0 %v1832
    %1836 = vmatprep.subr.bf16.mxu0 0
    %1837 = vmatpush1.bf16.msra.mxu0 0
    %1838 = vmatprep.subr.bf16.mxu0 0
    %1839 = vmatpush1.bf16.msra.mxu0 0
    %1840 = vmatprep.subr.bf16.mxu0 0
    %1841 = vmatpush1.bf16.msra.mxu0 0
    %1842 = vmatprep.subr.bf16.mxu0 0
    %1843 = vmatpush1.bf16.msra.mxu0 0
    %1844 = vmatprep.subr.bf16.mxu0 0
    %1845 = vmatpush1.bf16.msra.mxu0 0
    %1846 = vmatprep.subr.bf16.mxu0 0
    %1847 = vmatpush1.bf16.msra.mxu0 0
    %1848 = vmatprep.subr.bf16.mxu0 0
    %1849 = vmatpush1.bf16.msra.mxu0 0
    %1850 = vmatprep.subr.bf16.mxu0 0
    %1851 = vmatpush1.bf16.msra.mxu0 0
    %1852 = vmatprep.subr.bf16.mxu0 0
    %1853 = vmatpush1.bf16.msra.mxu0 0
    %1854 = vmatprep.subr.bf16.mxu0 0
    %1855 = vmatpush1.bf16.msra.mxu0 0
    %1856 = vmatprep.subr.bf16.mxu0 0
    %1857 = vmatpush1.bf16.msra.mxu0 0
    %1858 = vmatprep.subr.bf16.mxu0 0
    %1859 = vmatpush1.bf16.msra.mxu0 0
    %1860 = vmatprep.subr.bf16.mxu0 0
    %1861 = vmatpush1.bf16.msra.mxu0 0
    %1862 = vmatprep.subr.bf16.mxu0 0
    %1863 = vmatpush1.bf16.msra.mxu0 0
    %1864 = vmatprep.subr.bf16.mxu0 0
    %1865 = vmatpush1.bf16.msra.mxu0 0
    %1866 = vmatprep.mubr.bf16.mxu0 0
    %1867 = vmatmul.mubr.bf16.gmra.mrb[0].mxu0 %v1795
    %v1868 = vpop.f32.mrb[0].mxu0
    %v1869 = vadd.f32 0.0, %v1868
    %v1870 = vpop.f32.mrb[0].mxu0
    %v1871 = vpop.f32.mrb[0].mxu0
    %v1872 = vadd.f32 0.0, %v1871
    %v1873 = vpop.f32.mrb[0].mxu0
    %1874 = vmatprep.mubr.bf16.mxu0 0
    %1875 = vmatmul.mubr.bf16.gmra.mrb[0].mxu0 %v1798
    %v1876 = vpop.f32.mrb[0].mxu0
    %v1877 = vadd.f32 0.0, %v1876
    %v1878 = vpop.f32.mrb[0].mxu0
    %v1879 = vpop.f32.mrb[0].mxu0
    %v1880 = vadd.f32 0.0, %v1879
    %v1881 = vpop.f32.mrb[0].mxu0
    %1882 = vmatprep.mubr.bf16.mxu0 0
    %1883 = vmatmul.mubr.bf16.gmra.mrb[0].mxu0 %v1801
    %v1884 = vpop.f32.mrb[0].mxu0
    %v1885 = vadd.f32 0.0, %v1884
    %v1886 = vpop.f32.mrb[0].mxu0
    %v1887 = vpop.f32.mrb[0].mxu0
    %v1888 = vadd.f32 0.0, %v1887
    %v1889 = vpop.f32.mrb[0].mxu0
    %1890 = vmatprep.mubr.bf16.mxu0 0
    %1891 = vmatmul.mubr.bf16.gmra.mrb[0].mxu0 %v1804
    %v1892 = vpop.f32.mrb[0].mxu0
    %v1893 = vadd.f32 0.0, %v1892
    %v1894 = vpop.f32.mrb[0].mxu0
    %v1895 = vpop.f32.mrb[0].mxu0
    %v1896 = vadd.f32 0.0, %v1895
    %v1897 = vpop.f32.mrb[0].mxu0
    %1898 = vmatprep.mubr.bf16.mxu0 0
    %1899 = vmatmul.mubr.bf16.gmra.mrb[0].mxu0 %v1807
    %v1900 = vpop.f32.mrb[0].mxu0
    %v1901 = vadd.f32 0.0, %v1900
    %v1902 = vpop.f32.mrb[0].mxu0
    %v1903 = vpop.f32.mrb[0].mxu0
    %v1904 = vadd.f32 0.0, %v1903
    %v1905 = vpop.f32.mrb[0].mxu0
    %1906 = vmatprep.mubr.bf16.mxu0 0
    %1907 = vmatmul.mubr.bf16.gmra.mrb[0].mxu0 %v1810
    %v1908 = vpop.f32.mrb[0].mxu0
    %v1909 = vadd.f32 0.0, %v1908
    %v1910 = vpop.f32.mrb[0].mxu0
    %v1911 = vpop.f32.mrb[0].mxu0
    %v1912 = vadd.f32 0.0, %v1911
    %v1913 = vpop.f32.mrb[0].mxu0
    %1914 = vmatprep.mubr.bf16.mxu0 0
    %1915 = vmatmul.mubr.bf16.gmra.mrb[0].mxu0 %v1813
    %v1916 = vpop.f32.mrb[0].mxu0
    %v1917 = vadd.f32 0.0, %v1916
    %v1918 = vpop.f32.mrb[0].mxu0
    %v1919 = vpop.f32.mrb[0].mxu0
    %v1920 = vadd.f32 0.0, %v1919
    %v1921 = vpop.f32.mrb[0].mxu0
    %1922 = vmatprep.mubr.bf16.mxu0 0
    %1923 = vmatmul.mubr.bf16.gmra.mrb[0].mxu0 %v1816
    %v1924 = vpop.f32.mrb[0].mxu0
    %v1925 = vadd.f32 0.0, %v1924
    %v1926 = vpop.f32.mrb[0].mxu0
    %v1927 = vpop.f32.mrb[0].mxu0
    %v1928 = vadd.f32 0.0, %v1927
    %v1929 = vpop.f32.mrb[0].mxu0
    %1930 = vmatprep.mubr.bf16.mxu0 0
    %1931 = vmatmul.mubr.bf16.gmra.mrb[0].mxu0 %v1819
    %v1932 = vpop.f32.mrb[0].mxu0
    %v1933 = vadd.f32 0.0, %v1932
    %v1934 = vpop.f32.mrb[0].mxu0
    %v1935 = vpop.f32.mrb[0].mxu0
    %v1936 = vadd.f32 0.0, %v1935
    %v1937 = vpop.f32.mrb[0].mxu0
    %1938 = vmatprep.mubr.bf16.mxu0 0
    %1939 = vmatmul.mubr.bf16.gmra.mrb[0].mxu0 %v1822
    %v1940 = vpop.f32.mrb[0].mxu0
    %v1941 = vadd.f32 0.0, %v1940
    %v1942 = vpop.f32.mrb[0].mxu0
    %v1943 = vpop.f32.mrb[0].mxu0
    %v1944 = vadd.f32 0.0, %v1943
    %v1945 = vpop.f32.mrb[0].mxu0
    %1946 = vmatprep.mubr.bf16.mxu0 0
    %1947 = vmatmul.mubr.bf16.gmra.mrb[0].mxu0 %v1825
    %v1948 = vpop.f32.mrb[0].mxu0
    %v1949 = vadd.f32 0.0, %v1948
    %v1950 = vpop.f32.mrb[0].mxu0
    %v1951 = vpop.f32.mrb[0].mxu0
    %v1952 = vadd.f32 0.0, %v1951
    %v1953 = vpop.f32.mrb[0].mxu0
    %1954 = vmatprep.mubr.bf16.mxu0 0
    %1955 = vmatmul.mubr.bf16.gmra.mrb[0].mxu0 %v1828
    %v1956 = vpop.f32.mrb[0].mxu0
    %v1957 = vadd.f32 0.0, %v1956
    %v1958 = vpop.f32.mrb[0].mxu0
    %v1959 = vpop.f32.mrb[0].mxu0
    %v1960 = vadd.f32 0.0, %v1959
    %v1961 = vpop.f32.mrb[0].mxu0
    %1962 = vdwg.mxu0
    %vm1963 = vcmask 523264
    %1964 = vst.msk [vmem:[#allocation3] sm:$0xff] %vm1963, %v1869
    %1965 = vst.msk [vmem:[#allocation3 + $0x8] sm:$0xff] %vm1963, %v1872
    %1966 = vst.msk [vmem:[#allocation3 + $0x10] sm:$0xff] %vm1963, %v1877
    %1967 = vst.msk [vmem:[#allocation3 + $0x18] sm:$0xff] %vm1963, %v1880
    %1968 = vst.msk [vmem:[#allocation3 + $0x20] sm:$0xff] %vm1963, %v1885
    %1969 = vst.msk [vmem:[#allocation3 + $0x28] sm:$0xff] %vm1963, %v1888
    %1970 = vst.msk [vmem:[#allocation3 + $0x30] sm:$0xff] %vm1963, %v1893
    %1971 = vst.msk [vmem:[#allocation3 + $0x38] sm:$0xff] %vm1963, %v1896
    %1972 = vst.msk [vmem:[#allocation3 + $0x40] sm:$0xff] %vm1963, %v1901
    %1973 = vst.msk [vmem:[#allocation3 + $0x48] sm:$0xff] %vm1963, %v1904
    %1974 = vst.msk [vmem:[#allocation3 + $0x50] sm:$0xff] %vm1963, %v1909
    %1975 = vst.msk [vmem:[#allocation3 + $0x58] sm:$0xff] %vm1963, %v1912
    %1976 = vst.msk [vmem:[#allocation3 + $0x60] sm:$0xff] %vm1963, %v1917
    %1977 = vst.msk [vmem:[#allocation3 + $0x68] sm:$0xff] %vm1963, %v1920
    %1978 = vst.msk [vmem:[#allocation3 + $0x70] sm:$0xff] %vm1963, %v1925
    %1979 = vst.msk [vmem:[#allocation3 + $0x78] sm:$0xff] %vm1963, %v1928
    %1980 = vst.msk [vmem:[#allocation3 + $0x80] sm:$0xff] %vm1963, %v1933
    %1981 = vst.msk [vmem:[#allocation3 + $0x88] sm:$0xff] %vm1963, %v1936
    %1982 = vst.msk [vmem:[#allocation3 + $0x90] sm:$0xff] %vm1963, %v1941
    %1983 = vst.msk [vmem:[#allocation3 + $0x98] sm:$0xff] %vm1963, %v1944
    %1984 = vst.msk [vmem:[#allocation3 + $0xa0] sm:$0xff] %vm1963, %v1949
    %1985 = vst.msk [vmem:[#allocation3 + $0xa8] sm:$0xff] %vm1963, %v1952
    %1986 = vst.msk [vmem:[#allocation3 + $0xb0] sm:$0xff] %vm1963, %v1957
    %1987 = vst.msk [vmem:[#allocation3 + $0xb8] sm:$0xff] %vm1963, %v1960
    %v1988 = vld [vmem:[#allocation2 + $0x1] sm:$0xff]
    %v1989 = vld [vmem:[#allocation2 + $0x11] sm:$0xff]
    %v1990 = vld [vmem:[#allocation2 + $0x21] sm:$0xff]
    %v1991 = vld [vmem:[#allocation2 + $0x31] sm:$0xff]
    %v1992 = vld [vmem:[#allocation2 + $0x41] sm:$0xff]
    %v1993 = vld [vmem:[#allocation2 + $0x51] sm:$0xff]
    %v1994 = vld [vmem:[#allocation2 + $0x61] sm:$0xff]
    %v1995 = vld [vmem:[#allocation2 + $0x71] sm:$0xff]
    %v1996 = vld [vmem:[#allocation2 + $0x81] sm:$0xff]
    %v1997 = vld [vmem:[#allocation2 + $0x91] sm:$0xff]
    %v1998 = vld [vmem:[#allocation2 + $0xa1] sm:$0xff]
    %v1999 = vld [vmem:[#allocation2 + $0xb1] sm:$0xff]
    %v2000 = vld [vmem:[#allocation2 + $0xe1] sm:$0xff]
    %v2001 = vld [vmem:[#allocation2 + $0xf1] sm:$0xff]
    %v2002 = vld [vmem:[#allocation2 + $0x101] sm:$0xff]
    %v2003 = vld [vmem:[#allocation2 + $0x111] sm:$0xff]
    %v2004 = vld [vmem:[#allocation2 + $0x121] sm:$0xff]
    %v2005 = vld [vmem:[#allocation2 + $0x131] sm:$0xff]
    %v2006 = vld [vmem:[#allocation2 + $0x141] sm:$0xff]
    %v2007 = vld [vmem:[#allocation2 + $0x151] sm:$0xff]
    %v2008 = vld [vmem:[#allocation2 + $0x161] sm:$0xff]
    %v2009 = vld [vmem:[#allocation2 + $0x171] sm:$0xff]
    %v2010 = vld [vmem:[#allocation2 + $0x181] sm:$0xff]
    %v2011 = vld [vmem:[#allocation2 + $0x191] sm:$0xff]
    %v2012 = vpack.c.bf16 %v1989, %v1988
    %v2013 = vpack.c.bf16 %v1991, %v1990
    %v2014 = vpack.c.bf16 %v1993, %v1992
    %v2015 = vpack.c.bf16 %v1995, %v1994
    %v2016 = vpack.c.bf16 %v1997, %v1996
    %v2017 = vpack.c.bf16 %v1999, %v1998
    %v2018 = vpack.c.bf16 %v2001, %v2000
    %v2019 = vpack.c.bf16 %v2003, %v2002
    %v2020 = vpack.c.bf16 %v2005, %v2004
    %v2021 = vpack.c.bf16 %v2007, %v2006
    %v2022 = vpack.c.bf16 %v2009, %v2008
    %v2023 = vpack.c.bf16 %v2011, %v2010
    %s2024 = scalar_lea.vmem %s1, 4
    %v2025 = vld [vmem:[%s2024] sm:$0xf]
    %v2027 = vsel %vm1649, %v2012, 0
    %v2030 = vsel %vm1649, %v2013, 0
    %v2033 = vsel %vm1649, %v2014, 0
    %v2036 = vsel %vm1649, %v2015, 0
    %v2039 = vsel %vm1649, %v2016, 0
    %v2042 = vsel %vm1649, %v2017, 0
    %v2045 = vsel %vm1649, %v2018, 0
    %v2048 = vsel %vm1649, %v2019, 0
    %v2051 = vsel %vm1649, %v2020, 0
    %v2054 = vsel %vm1649, %v2021, 0
    %v2057 = vsel %vm1649, %v2022, 0
    %v2060 = vsel %vm1649, %v2023, 0
    %v2063 = vsel %vm1830, %v2025, 0
    %2065 = vmatprep.subr.bf16.mxu0 0
    %2066 = vmatpush1.bf16.msra.mxu0 %v2063
    %2067 = vmatprep.subr.bf16.mxu0 0
    %2068 = vmatpush1.bf16.msra.mxu0 0
    %2069 = vmatprep.subr.bf16.mxu0 0
    %2070 = vmatpush1.bf16.msra.mxu0 0
    %2071 = vmatprep.subr.bf16.mxu0 0
    %2072 = vmatpush1.bf16.msra.mxu0 0
    %2073 = vmatprep.subr.bf16.mxu0 0
    %2074 = vmatpush1.bf16.msra.mxu0 0
    %2075 = vmatprep.subr.bf16.mxu0 0
    %2076 = vmatpush1.bf16.msra.mxu0 0
    %2077 = vmatprep.subr.bf16.mxu0 0
    %2078 = vmatpush1.bf16.msra.mxu0 0
    %2079 = vmatprep.subr.bf16.mxu0 0
    %2080 = vmatpush1.bf16.msra.mxu0 0
    %2081 = vmatprep.subr.bf16.mxu0 0
    %2082 = vmatpush1.bf16.msra.mxu0 0
    %2083 = vmatprep.subr.bf16.mxu0 0
    %2084 = vmatpush1.bf16.msra.mxu0 0
    %2085 = vmatprep.subr.bf16.mxu0 0
    %2086 = vmatpush1.bf16.msra.mxu0 0
    %2087 = vmatprep.subr.bf16.mxu0 0
    %2088 = vmatpush1.bf16.msra.mxu0 0
    %2089 = vmatprep.subr.bf16.mxu0 0
    %2090 = vmatpush1.bf16.msra.mxu0 0
    %2091 = vmatprep.subr.bf16.mxu0 0
    %2092 = vmatpush1.bf16.msra.mxu0 0
    %2093 = vmatprep.subr.bf16.mxu0 0
    %2094 = vmatpush1.bf16.msra.mxu0 0
    %2095 = vmatprep.subr.bf16.mxu0 0
    %2096 = vmatpush1.bf16.msra.mxu0 0
    %2097 = vmatprep.mubr.bf16.mxu0 0
    %2098 = vmatmul.mubr.bf16.gmra.mrb[0].mxu0 %v2027
    %v2099 = vpop.f32.mrb[0].mxu0
    %v2100 = vadd.f32 0.0, %v2099
    %v2101 = vpop.f32.mrb[0].mxu0
    %v2102 = vpop.f32.mrb[0].mxu0
    %v2103 = vadd.f32 0.0, %v2102
    %v2104 = vpop.f32.mrb[0].mxu0
    %2105 = vmatprep.mubr.bf16.mxu0 0
    %2106 = vmatmul.mubr.bf16.gmra.mrb[0].mxu0 %v2030
    %v2107 = vpop.f32.mrb[0].mxu0
    %v2108 = vadd.f32 0.0, %v2107
    %v2109 = vpop.f32.mrb[0].mxu0
    %v2110 = vpop.f32.mrb[0].mxu0
    %v2111 = vadd.f32 0.0, %v2110
    %v2112 = vpop.f32.mrb[0].mxu0
    %2113 = vmatprep.mubr.bf16.mxu0 0
    %2114 = vmatmul.mubr.bf16.gmra.mrb[0].mxu0 %v2033
    %v2115 = vpop.f32.mrb[0].mxu0
    %v2116 = vadd.f32 0.0, %v2115
    %v2117 = vpop.f32.mrb[0].mxu0
    %v2118 = vpop.f32.mrb[0].mxu0
    %v2119 = vadd.f32 0.0, %v2118
    %v2120 = vpop.f32.mrb[0].mxu0
    %2121 = vmatprep.mubr.bf16.mxu0 0
    %2122 = vmatmul.mubr.bf16.gmra.mrb[0].mxu0 %v2036
    %v2123 = vpop.f32.mrb[0].mxu0
    %v2124 = vadd.f32 0.0, %v2123
    %v2125 = vpop.f32.mrb[0].mxu0
    %v2126 = vpop.f32.mrb[0].mxu0
    %v2127 = vadd.f32 0.0, %v2126
    %v2128 = vpop.f32.mrb[0].mxu0
    %2129 = vmatprep.mubr.bf16.mxu0 0
    %2130 = vmatmul.mubr.bf16.gmra.mrb[0].mxu0 %v2039
    %v2131 = vpop.f32.mrb[0].mxu0
    %v2132 = vadd.f32 0.0, %v2131
    %v2133 = vpop.f32.mrb[0].mxu0
    %v2134 = vpop.f32.mrb[0].mxu0
    %v2135 = vadd.f32 0.0, %v2134
    %v2136 = vpop.f32.mrb[0].mxu0
    %2137 = vmatprep.mubr.bf16.mxu0 0
    %2138 = vmatmul.mubr.bf16.gmra.mrb[0].mxu0 %v2042
    %v2139 = vpop.f32.mrb[0].mxu0
    %v2140 = vadd.f32 0.0, %v2139
    %v2141 = vpop.f32.mrb[0].mxu0
    %v2142 = vpop.f32.mrb[0].mxu0
    %v2143 = vadd.f32 0.0, %v2142
    %v2144 = vpop.f32.mrb[0].mxu0
    %2145 = vmatprep.mubr.bf16.mxu0 0
    %2146 = vmatmul.mubr.bf16.gmra.mrb[0].mxu0 %v2045
    %v2147 = vpop.f32.mrb[0].mxu0
    %v2148 = vadd.f32 0.0, %v2147
    %v2149 = vpop.f32.mrb[0].mxu0
    %v2150 = vpop.f32.mrb[0].mxu0
    %v2151 = vadd.f32 0.0, %v2150
    %v2152 = vpop.f32.mrb[0].mxu0
    %2153 = vmatprep.mubr.bf16.mxu0 0
    %2154 = vmatmul.mubr.bf16.gmra.mrb[0].mxu0 %v2048
    %v2155 = vpop.f32.mrb[0].mxu0
    %v2156 = vadd.f32 0.0, %v2155
    %v2157 = vpop.f32.mrb[0].mxu0
    %v2158 = vpop.f32.mrb[0].mxu0
    %v2159 = vadd.f32 0.0, %v2158
    %v2160 = vpop.f32.mrb[0].mxu0
    %2161 = vmatprep.mubr.bf16.mxu0 0
    %2162 = vmatmul.mubr.bf16.gmra.mrb[0].mxu0 %v2051
    %v2163 = vpop.f32.mrb[0].mxu0
    %v2164 = vadd.f32 0.0, %v2163
    %v2165 = vpop.f32.mrb[0].mxu0
    %v2166 = vpop.f32.mrb[0].mxu0
    %v2167 = vadd.f32 0.0, %v2166
    %v2168 = vpop.f32.mrb[0].mxu0
    %2169 = vmatprep.mubr.bf16.mxu0 0
    %2170 = vmatmul.mubr.bf16.gmra.mrb[0].mxu0 %v2054
    %v2171 = vpop.f32.mrb[0].mxu0
    %v2172 = vadd.f32 0.0, %v2171
    %v2173 = vpop.f32.mrb[0].mxu0
    %v2174 = vpop.f32.mrb[0].mxu0
    %v2175 = vadd.f32 0.0, %v2174
    %v2176 = vpop.f32.mrb[0].mxu0
    %2177 = vmatprep.mubr.bf16.mxu0 0
    %2178 = vmatmul.mubr.bf16.gmra.mrb[0].mxu0 %v2057
    %v2179 = vpop.f32.mrb[0].mxu0
    %v2180 = vadd.f32 0.0, %v2179
    %v2181 = vpop.f32.mrb[0].mxu0
    %v2182 = vpop.f32.mrb[0].mxu0
    %v2183 = vadd.f32 0.0, %v2182
    %v2184 = vpop.f32.mrb[0].mxu0
    %2185 = vmatprep.mubr.bf16.mxu0 0
    %2186 = vmatmul.mubr.bf16.gmra.mrb[0].mxu0 %v2060
    %v2187 = vpop.f32.mrb[0].mxu0
    %v2188 = vadd.f32 0.0, %v2187
    %v2189 = vpop.f32.mrb[0].mxu0
    %v2190 = vpop.f32.mrb[0].mxu0
    %v2191 = vadd.f32 0.0, %v2190
    %v2192 = vpop.f32.mrb[0].mxu0
    %2193 = vdwg.mxu0
    %v2194 = vld [vmem:[#allocation3] sm:$0xff]
    %v2195 = vld [vmem:[#allocation3 + $0x8] sm:$0xff]
    %v2196 = vld [vmem:[#allocation3 + $0x10] sm:$0xff]
    %v2197 = vld [vmem:[#allocation3 + $0x18] sm:$0xff]
    %v2198 = vld [vmem:[#allocation3 + $0x20] sm:$0xff]
    %v2199 = vld [vmem:[#allocation3 + $0x28] sm:$0xff]
    %v2200 = vld [vmem:[#allocation3 + $0x30] sm:$0xff]
    %v2201 = vld [vmem:[#allocation3 + $0x38] sm:$0xff]
    %v2202 = vld [vmem:[#allocation3 + $0x40] sm:$0xff]
    %v2203 = vld [vmem:[#allocation3 + $0x48] sm:$0xff]
    %v2204 = vld [vmem:[#allocation3 + $0x50] sm:$0xff]
    %v2205 = vld [vmem:[#allocation3 + $0x58] sm:$0xff]
    %v2206 = vld [vmem:[#allocation3 + $0x60] sm:$0xff]
    %v2207 = vld [vmem:[#allocation3 + $0x68] sm:$0xff]
    %v2208 = vld [vmem:[#allocation3 + $0x70] sm:$0xff]
    %v2209 = vld [vmem:[#allocation3 + $0x78] sm:$0xff]
    %v2210 = vld [vmem:[#allocation3 + $0x80] sm:$0xff]
    %v2211 = vld [vmem:[#allocation3 + $0x88] sm:$0xff]
    %v2212 = vld [vmem:[#allocation3 + $0x90] sm:$0xff]
    %v2213 = vld [vmem:[#allocation3 + $0x98] sm:$0xff]
    %v2214 = vld [vmem:[#allocation3 + $0xa0] sm:$0xff]
    %v2215 = vld [vmem:[#allocation3 + $0xa8] sm:$0xff]
    %v2216 = vld [vmem:[#allocation3 + $0xb0] sm:$0xff]
    %v2217 = vld [vmem:[#allocation3 + $0xb8] sm:$0xff]
    %v2218 = vadd.f32 %v2194, %v2100
    %v2219 = vadd.f32 %v2195, %v2103
    %v2220 = vadd.f32 %v2196, %v2108
    %v2221 = vadd.f32 %v2197, %v2111
    %v2222 = vadd.f32 %v2198, %v2116
    %v2223 = vadd.f32 %v2199, %v2119
    %v2224 = vadd.f32 %v2200, %v2124
    %v2225 = vadd.f32 %v2201, %v2127
    %v2226 = vadd.f32 %v2202, %v2132
    %v2227 = vadd.f32 %v2203, %v2135
    %v2228 = vadd.f32 %v2204, %v2140
    %v2229 = vadd.f32 %v2205, %v2143
    %v2230 = vadd.f32 %v2206, %v2148
    %v2231 = vadd.f32 %v2207, %v2151
    %v2232 = vadd.f32 %v2208, %v2156
    %v2233 = vadd.f32 %v2209, %v2159
    %v2234 = vadd.f32 %v2210, %v2164
    %v2235 = vadd.f32 %v2211, %v2167
    %v2236 = vadd.f32 %v2212, %v2172
    %v2237 = vadd.f32 %v2213, %v2175
    %v2238 = vadd.f32 %v2214, %v2180
    %v2239 = vadd.f32 %v2215, %v2183
    %v2240 = vadd.f32 %v2216, %v2188
    %v2241 = vadd.f32 %v2217, %v2191
    %2242 = vst.msk [vmem:[#allocation3] sm:$0xff] %vm1963, %v2218
    %2243 = vst.msk [vmem:[#allocation3 + $0x8] sm:$0xff] %vm1963, %v2219
    %2244 = vst.msk [vmem:[#allocation3 + $0x10] sm:$0xff] %vm1963, %v2220
    %2245 = vst.msk [vmem:[#allocation3 + $0x18] sm:$0xff] %vm1963, %v2221
    %2246 = vst.msk [vmem:[#allocation3 + $0x20] sm:$0xff] %vm1963, %v2222
    %2247 = vst.msk [vmem:[#allocation3 + $0x28] sm:$0xff] %vm1963, %v2223
    %2248 = vst.msk [vmem:[#allocation3 + $0x30] sm:$0xff] %vm1963, %v2224
    %2249 = vst.msk [vmem:[#allocation3 + $0x38] sm:$0xff] %vm1963, %v2225
    %2250 = vst.msk [vmem:[#allocation3 + $0x40] sm:$0xff] %vm1963, %v2226
    %2251 = vst.msk [vmem:[#allocation3 + $0x48] sm:$0xff] %vm1963, %v2227
    %2252 = vst.msk [vmem:[#allocation3 + $0x50] sm:$0xff] %vm1963, %v2228
    %2253 = vst.msk [vmem:[#allocation3 + $0x58] sm:$0xff] %vm1963, %v2229
    %2254 = vst.msk [vmem:[#allocation3 + $0x60] sm:$0xff] %vm1963, %v2230
    %2255 = vst.msk [vmem:[#allocation3 + $0x68] sm:$0xff] %vm1963, %v2231
    %2256 = vst.msk [vmem:[#allocation3 + $0x70] sm:$0xff] %vm1963, %v2232
    %2257 = vst.msk [vmem:[#allocation3 + $0x78] sm:$0xff] %vm1963, %v2233
    %2258 = vst.msk [vmem:[#allocation3 + $0x80] sm:$0xff] %vm1963, %v2234
    %2259 = vst.msk [vmem:[#allocation3 + $0x88] sm:$0xff] %vm1963, %v2235
    %2260 = vst.msk [vmem:[#allocation3 + $0x90] sm:$0xff] %vm1963, %v2236
    %2261 = vst.msk [vmem:[#allocation3 + $0x98] sm:$0xff] %vm1963, %v2237
    %2262 = vst.msk [vmem:[#allocation3 + $0xa0] sm:$0xff] %vm1963, %v2238
    %2263 = vst.msk [vmem:[#allocation3 + $0xa8] sm:$0xff] %vm1963, %v2239
    %2264 = vst.msk [vmem:[#allocation3 + $0xb0] sm:$0xff] %vm1963, %v2240
    %2265 = vst.msk [vmem:[#allocation3 + $0xb8] sm:$0xff] %vm1963, %v2241
    %v2266 = vld [vmem:[#allocation2 + $0x2] sm:$0xff]
    %v2267 = vld [vmem:[#allocation2 + $0x12] sm:$0xff]
    %v2268 = vld [vmem:[#allocation2 + $0x22] sm:$0xff]
    %v2269 = vld [vmem:[#allocation2 + $0x32] sm:$0xff]
    %v2270 = vld [vmem:[#allocation2 + $0x42] sm:$0xff]
    %v2271 = vld [vmem:[#allocation2 + $0x52] sm:$0xff]
    %v2272 = vld [vmem:[#allocation2 + $0x62] sm:$0xff]
    %v2273 = vld [vmem:[#allocation2 + $0x72] sm:$0xff]
    %v2274 = vld [vmem:[#allocation2 + $0x82] sm:$0xff]
    %v2275 = vld [vmem:[#allocation2 + $0x92] sm:$0xff]
    %v2276 = vld [vmem:[#allocation2 + $0xa2] sm:$0xff]
    %v2277 = vld [vmem:[#allocation2 + $0xb2] sm:$0xff]
    %v2278 = vld [vmem:[#allocation2 + $0xe2] sm:$0xff]
    %v2279 = vld [vmem:[#allocation2 + $0xf2] sm:$0xff]
    %v2280 = vld [vmem:[#allocation2 + $0x102] sm:$0xff]
    %v2281 = vld [vmem:[#allocation2 + $0x112] sm:$0xff]
    %v2282 = vld [vmem:[#allocation2 + $0x122] sm:$0xff]
    %v2283 = vld [vmem:[#allocation2 + $0x132] sm:$0xff]
    %v2284 = vld [vmem:[#allocation2 + $0x142] sm:$0xff]
    %v2285 = vld [vmem:[#allocation2 + $0x152] sm:$0xff]
    %v2286 = vld [vmem:[#allocation2 + $0x162] sm:$0xff]
    %v2287 = vld [vmem:[#allocation2 + $0x172] sm:$0xff]
    %v2288 = vld [vmem:[#allocation2 + $0x182] sm:$0xff]
    %v2289 = vld [vmem:[#allocation2 + $0x192] sm:$0xff]
    %v2290 = vpack.c.bf16 %v2267, %v2266
    %v2291 = vpack.c.bf16 %v2269, %v2268
    %v2292 = vpack.c.bf16 %v2271, %v2270
    %v2293 = vpack.c.bf16 %v2273, %v2272
    %v2294 = vpack.c.bf16 %v2275, %v2274
    %v2295 = vpack.c.bf16 %v2277, %v2276
    %v2296 = vpack.c.bf16 %v2279, %v2278
    %v2297 = vpack.c.bf16 %v2281, %v2280
    %v2298 = vpack.c.bf16 %v2283, %v2282
    %v2299 = vpack.c.bf16 %v2285, %v2284
    %v2300 = vpack.c.bf16 %v2287, %v2286
    %v2301 = vpack.c.bf16 %v2289, %v2288
    %s2302 = scalar_lea.vmem %s1, 8
    %v2303 = vld [vmem:[%s2302] sm:$0xf]
    %v2305 = vsel %vm1649, %v2290, 0
    %v2308 = vsel %vm1649, %v2291, 0
    %v2311 = vsel %vm1649, %v2292, 0
    %v2314 = vsel %vm1649, %v2293, 0
    %v2317 = vsel %vm1649, %v2294, 0
    %v2320 = vsel %vm1649, %v2295, 0
    %v2323 = vsel %vm1649, %v2296, 0
    %v2326 = vsel %vm1649, %v2297, 0
    %v2329 = vsel %vm1649, %v2298, 0
    %v2332 = vsel %vm1649, %v2299, 0
    %v2335 = vsel %vm1649, %v2300, 0
    %v2338 = vsel %vm1649, %v2301, 0
    %v2341 = vsel %vm1830, %v2303, 0
    %2343 = vmatprep.subr.bf16.mxu0 0
    %2344 = vmatpush1.bf16.msra.mxu0 %v2341
    %2345 = vmatprep.subr.bf16.mxu0 0
    %2346 = vmatpush1.bf16.msra.mxu0 0
    %2347 = vmatprep.subr.bf16.mxu0 0
    %2348 = vmatpush1.bf16.msra.mxu0 0
    %2349 = vmatprep.subr.bf16.mxu0 0
    %2350 = vmatpush1.bf16.msra.mxu0 0
    %2351 = vmatprep.subr.bf16.mxu0 0
    %2352 = vmatpush1.bf16.msra.mxu0 0
    %2353 = vmatprep.subr.bf16.mxu0 0
    %2354 = vmatpush1.bf16.msra.mxu0 0
    %2355 = vmatprep.subr.bf16.mxu0 0
    %2356 = vmatpush1.bf16.msra.mxu0 0
    %2357 = vmatprep.subr.bf16.mxu0 0
    %2358 = vmatpush1.bf16.msra.mxu0 0
    %2359 = vmatprep.subr.bf16.mxu0 0
    %2360 = vmatpush1.bf16.msra.mxu0 0
    %2361 = vmatprep.subr.bf16.mxu0 0
    %2362 = vmatpush1.bf16.msra.mxu0 0
    %2363 = vmatprep.subr.bf16.mxu0 0
    %2364 = vmatpush1.bf16.msra.mxu0 0
    %2365 = vmatprep.subr.bf16.mxu0 0
    %2366 = vmatpush1.bf16.msra.mxu0 0
    %2367 = vmatprep.subr.bf16.mxu0 0
    %2368 = vmatpush1.bf16.msra.mxu0 0
    %2369 = vmatprep.subr.bf16.mxu0 0
    %2370 = vmatpush1.bf16.msra.mxu0 0
    %2371 = vmatprep.subr.bf16.mxu0 0
    %2372 = vmatpush1.bf16.msra.mxu0 0
    %2373 = vmatprep.subr.bf16.mxu0 0
    %2374 = vmatpush1.bf16.msra.mxu0 0
    %2375 = vmatprep.mubr.bf16.mxu0 0
    %2376 = vmatmul.mubr.bf16.gmra.mrb[0].mxu0 %v2305
    %v2377 = vpop.f32.mrb[0].mxu0
    %v2378 = vadd.f32 0.0, %v2377
    %v2379 = vpop.f32.mrb[0].mxu0
    %v2380 = vpop.f32.mrb[0].mxu0
    %v2381 = vadd.f32 0.0, %v2380
    %v2382 = vpop.f32.mrb[0].mxu0
    %2383 = vmatprep.mubr.bf16.mxu0 0
    %2384 = vmatmul.mubr.bf16.gmra.mrb[0].mxu0 %v2308
    %v2385 = vpop.f32.mrb[0].mxu0
    %v2386 = vadd.f32 0.0, %v2385
    %v2387 = vpop.f32.mrb[0].mxu0
    %v2388 = vpop.f32.mrb[0].mxu0
    %v2389 = vadd.f32 0.0, %v2388
    %v2390 = vpop.f32.mrb[0].mxu0
    %2391 = vmatprep.mubr.bf16.mxu0 0
    %2392 = vmatmul.mubr.bf16.gmra.mrb[0].mxu0 %v2311
    %v2393 = vpop.f32.mrb[0].mxu0
    %v2394 = vadd.f32 0.0, %v2393
    %v2395 = vpop.f32.mrb[0].mxu0
    %v2396 = vpop.f32.mrb[0].mxu0
    %v2397 = vadd.f32 0.0, %v2396
    %v2398 = vpop.f32.mrb[0].mxu0
    %2399 = vmatprep.mubr.bf16.mxu0 0
    %2400 = vmatmul.mubr.bf16.gmra.mrb[0].mxu0 %v2314
    %v2401 = vpop.f32.mrb[0].mxu0
    %v2402 = vadd.f32 0.0, %v2401
    %v2403 = vpop.f32.mrb[0].mxu0
    %v2404 = vpop.f32.mrb[0].mxu0
    %v2405 = vadd.f32 0.0, %v2404
    %v2406 = vpop.f32.mrb[0].mxu0
    %2407 = vmatprep.mubr.bf16.mxu0 0
    %2408 = vmatmul.mubr.bf16.gmra.mrb[0].mxu0 %v2317
    %v2409 = vpop.f32.mrb[0].mxu0
    %v2410 = vadd.f32 0.0, %v2409
    %v2411 = vpop.f32.mrb[0].mxu0
    %v2412 = vpop.f32.mrb[0].mxu0
    %v2413 = vadd.f32 0.0, %v2412
    %v2414 = vpop.f32.mrb[0].mxu0
    %2415 = vmatprep.mubr.bf16.mxu0 0
    %2416 = vmatmul.mubr.bf16.gmra.mrb[0].mxu0 %v2320
    %v2417 = vpop.f32.mrb[0].mxu0
    %v2418 = vadd.f32 0.0, %v2417
    %v2419 = vpop.f32.mrb[0].mxu0
    %v2420 = vpop.f32.mrb[0].mxu0
    %v2421 = vadd.f32 0.0, %v2420
    %v2422 = vpop.f32.mrb[0].mxu0
    %2423 = vmatprep.mubr.bf16.mxu0 0
    %2424 = vmatmul.mubr.bf16.gmra.mrb[0].mxu0 %v2323
    %v2425 = vpop.f32.mrb[0].mxu0
    %v2426 = vadd.f32 0.0, %v2425
    %v2427 = vpop.f32.mrb[0].mxu0
    %v2428 = vpop.f32.mrb[0].mxu0
    %v2429 = vadd.f32 0.0, %v2428
    %v2430 = vpop.f32.mrb[0].mxu0
    %2431 = vmatprep.mubr.bf16.mxu0 0
    %2432 = vmatmul.mubr.bf16.gmra.mrb[0].mxu0 %v2326
    %v2433 = vpop.f32.mrb[0].mxu0
    %v2434 = vadd.f32 0.0, %v2433
    %v2435 = vpop.f32.mrb[0].mxu0
    %v2436 = vpop.f32.mrb[0].mxu0
    %v2437 = vadd.f32 0.0, %v2436
    %v2438 = vpop.f32.mrb[0].mxu0
    %2439 = vmatprep.mubr.bf16.mxu0 0
    %2440 = vmatmul.mubr.bf16.gmra.mrb[0].mxu0 %v2329
    %v2441 = vpop.f32.mrb[0].mxu0
    %v2442 = vadd.f32 0.0, %v2441
    %v2443 = vpop.f32.mrb[0].mxu0
    %v2444 = vpop.f32.mrb[0].mxu0
    %v2445 = vadd.f32 0.0, %v2444
    %v2446 = vpop.f32.mrb[0].mxu0
    %2447 = vmatprep.mubr.bf16.mxu0 0
    %2448 = vmatmul.mubr.bf16.gmra.mrb[0].mxu0 %v2332
    %v2449 = vpop.f32.mrb[0].mxu0
    %v2450 = vadd.f32 0.0, %v2449
    %v2451 = vpop.f32.mrb[0].mxu0
    %v2452 = vpop.f32.mrb[0].mxu0
    %v2453 = vadd.f32 0.0, %v2452
    %v2454 = vpop.f32.mrb[0].mxu0
    %2455 = vmatprep.mubr.bf16.mxu0 0
    %2456 = vmatmul.mubr.bf16.gmra.mrb[0].mxu0 %v2335
    %v2457 = vpop.f32.mrb[0].mxu0
    %v2458 = vadd.f32 0.0, %v2457
    %v2459 = vpop.f32.mrb[0].mxu0
    %v2460 = vpop.f32.mrb[0].mxu0
    %v2461 = vadd.f32 0.0, %v2460
    %v2462 = vpop.f32.mrb[0].mxu0
    %2463 = vmatprep.mubr.bf16.mxu0 0
    %2464 = vmatmul.mubr.bf16.gmra.mrb[0].mxu0 %v2338
    %v2465 = vpop.f32.mrb[0].mxu0
    %v2466 = vadd.f32 0.0, %v2465
    %v2467 = vpop.f32.mrb[0].mxu0
    %v2468 = vpop.f32.mrb[0].mxu0
    %v2469 = vadd.f32 0.0, %v2468
    %v2470 = vpop.f32.mrb[0].mxu0
    %2471 = vdwg.mxu0
    %v2472 = vld [vmem:[#allocation3] sm:$0xff]
    %v2473 = vld [vmem:[#allocation3 + $0x8] sm:$0xff]
    %v2474 = vld [vmem:[#allocation3 + $0x10] sm:$0xff]
    %v2475 = vld [vmem:[#allocation3 + $0x18] sm:$0xff]
    %v2476 = vld [vmem:[#allocation3 + $0x20] sm:$0xff]
    %v2477 = vld [vmem:[#allocation3 + $0x28] sm:$0xff]
    %v2478 = vld [vmem:[#allocation3 + $0x30] sm:$0xff]
    %v2479 = vld [vmem:[#allocation3 + $0x38] sm:$0xff]
    %v2480 = vld [vmem:[#allocation3 + $0x40] sm:$0xff]
    %v2481 = vld [vmem:[#allocation3 + $0x48] sm:$0xff]
    %v2482 = vld [vmem:[#allocation3 + $0x50] sm:$0xff]
    %v2483 = vld [vmem:[#allocation3 + $0x58] sm:$0xff]
    %v2484 = vld [vmem:[#allocation3 + $0x60] sm:$0xff]
    %v2485 = vld [vmem:[#allocation3 + $0x68] sm:$0xff]
    %v2486 = vld [vmem:[#allocation3 + $0x70] sm:$0xff]
    %v2487 = vld [vmem:[#allocation3 + $0x78] sm:$0xff]
    %v2488 = vld [vmem:[#allocation3 + $0x80] sm:$0xff]
    %v2489 = vld [vmem:[#allocation3 + $0x88] sm:$0xff]
    %v2490 = vld [vmem:[#allocation3 + $0x90] sm:$0xff]
    %v2491 = vld [vmem:[#allocation3 + $0x98] sm:$0xff]
    %v2492 = vld [vmem:[#allocation3 + $0xa0] sm:$0xff]
    %v2493 = vld [vmem:[#allocation3 + $0xa8] sm:$0xff]
    %v2494 = vld [vmem:[#allocation3 + $0xb0] sm:$0xff]
    %v2495 = vld [vmem:[#allocation3 + $0xb8] sm:$0xff]
    %v2496 = vadd.f32 %v2472, %v2378
    %v2497 = vadd.f32 %v2473, %v2381
    %v2498 = vadd.f32 %v2474, %v2386
    %v2499 = vadd.f32 %v2475, %v2389
    %v2500 = vadd.f32 %v2476, %v2394
    %v2501 = vadd.f32 %v2477, %v2397
    %v2502 = vadd.f32 %v2478, %v2402
    %v2503 = vadd.f32 %v2479, %v2405
    %v2504 = vadd.f32 %v2480, %v2410
    %v2505 = vadd.f32 %v2481, %v2413
    %v2506 = vadd.f32 %v2482, %v2418
    %v2507 = vadd.f32 %v2483, %v2421
    %v2508 = vadd.f32 %v2484, %v2426
    %v2509 = vadd.f32 %v2485, %v2429
    %v2510 = vadd.f32 %v2486, %v2434
    %v2511 = vadd.f32 %v2487, %v2437
    %v2512 = vadd.f32 %v2488, %v2442
    %v2513 = vadd.f32 %v2489, %v2445
    %v2514 = vadd.f32 %v2490, %v2450
    %v2515 = vadd.f32 %v2491, %v2453
    %v2516 = vadd.f32 %v2492, %v2458
    %v2517 = vadd.f32 %v2493, %v2461
    %v2518 = vadd.f32 %v2494, %v2466
    %v2519 = vadd.f32 %v2495, %v2469
    %2520 = vst.msk [vmem:[#allocation3] sm:$0xff] %vm1963, %v2496
    %2521 = vst.msk [vmem:[#allocation3 + $0x8] sm:$0xff] %vm1963, %v2497
    %2522 = vst.msk [vmem:[#allocation3 + $0x10] sm:$0xff] %vm1963, %v2498
    %2523 = vst.msk [vmem:[#allocation3 + $0x18] sm:$0xff] %vm1963, %v2499
    %2524 = vst.msk [vmem:[#allocation3 + $0x20] sm:$0xff] %vm1963, %v2500
    %2525 = vst.msk [vmem:[#allocation3 + $0x28] sm:$0xff] %vm1963, %v2501
    %2526 = vst.msk [vmem:[#allocation3 + $0x30] sm:$0xff] %vm1963, %v2502
    %2527 = vst.msk [vmem:[#allocation3 + $0x38] sm:$0xff] %vm1963, %v2503
    %2528 = vst.msk [vmem:[#allocation3 + $0x40] sm:$0xff] %vm1963, %v2504
    %2529 = vst.msk [vmem:[#allocation3 + $0x48] sm:$0xff] %vm1963, %v2505
    %2530 = vst.msk [vmem:[#allocation3 + $0x50] sm:$0xff] %vm1963, %v2506
    %2531 = vst.msk [vmem:[#allocation3 + $0x58] sm:$0xff] %vm1963, %v2507
    %2532 = vst.msk [vmem:[#allocation3 + $0x60] sm:$0xff] %vm1963, %v2508
    %2533 = vst.msk [vmem:[#allocation3 + $0x68] sm:$0xff] %vm1963, %v2509
    %2534 = vst.msk [vmem:[#allocation3 + $0x70] sm:$0xff] %vm1963, %v2510
    %2535 = vst.msk [vmem:[#allocation3 + $0x78] sm:$0xff] %vm1963, %v2511
    %2536 = vst.msk [vmem:[#allocation3 + $0x80] sm:$0xff] %vm1963, %v2512
    %2537 = vst.msk [vmem:[#allocation3 + $0x88] sm:$0xff] %vm1963, %v2513
    %2538 = vst.msk [vmem:[#allocation3 + $0x90] sm:$0xff] %vm1963, %v2514
    %2539 = vst.msk [vmem:[#allocation3 + $0x98] sm:$0xff] %vm1963, %v2515
    %2540 = vst.msk [vmem:[#allocation3 + $0xa0] sm:$0xff] %vm1963, %v2516
    %2541 = vst.msk [vmem:[#allocation3 + $0xa8] sm:$0xff] %vm1963, %v2517
    %2542 = vst.msk [vmem:[#allocation3 + $0xb0] sm:$0xff] %vm1963, %v2518
    %2543 = vst.msk [vmem:[#allocation3 + $0xb8] sm:$0xff] %vm1963, %v2519
    %v2544 = vld [vmem:[%s1731] sm:$0xff]
    %v2545 = vld [vmem:[%s1731 + $0x10] sm:$0xff]
    %v2546 = vld [vmem:[%s1731 + $0x20] sm:$0xff]
    %v2547 = vld [vmem:[%s1731 + $0x30] sm:$0xff]
    %v2548 = vld [vmem:[%s1731 + $0x40] sm:$0xff]
    %v2549 = vld [vmem:[%s1731 + $0x50] sm:$0xff]
    %v2550 = vld [vmem:[%s1731 + $0x60] sm:$0xff]
    %v2551 = vld [vmem:[%s1731 + $0x70] sm:$0xff]
    %v2552 = vld [vmem:[%s1731 + $0x80] sm:$0xff]
    %v2553 = vld [vmem:[%s1731 + $0x90] sm:$0xff]
    %v2554 = vld [vmem:[%s1731 + $0xa0] sm:$0xff]
    %v2555 = vld [vmem:[%s1731 + $0xb0] sm:$0xff]
    %v2556 = vld [vmem:[%s1731 + $0xe0] sm:$0xff]
    %v2557 = vld [vmem:[%s1731 + $0xf0] sm:$0xff]
    %v2558 = vld [vmem:[%s1731 + $0x100] sm:$0xff]
    %v2559 = vld [vmem:[%s1731 + $0x110] sm:$0xff]
    %v2560 = vld [vmem:[%s1731 + $0x120] sm:$0xff]
    %v2561 = vld [vmem:[%s1731 + $0x130] sm:$0xff]
    %v2562 = vld [vmem:[%s1731 + $0x140] sm:$0xff]
    %v2563 = vld [vmem:[%s1731 + $0x150] sm:$0xff]
    %v2564 = vld [vmem:[%s1731 + $0x160] sm:$0xff]
    %v2565 = vld [vmem:[%s1731 + $0x170] sm:$0xff]
    %v2566 = vld [vmem:[%s1731 + $0x180] sm:$0xff]
    %v2567 = vld [vmem:[%s1731 + $0x190] sm:$0xff]
    %v2568 = vpack.c.bf16 %v2545, %v2544
    %v2569 = vpack.c.bf16 %v2547, %v2546
    %v2570 = vpack.c.bf16 %v2549, %v2548
    %v2571 = vpack.c.bf16 %v2551, %v2550
    %v2572 = vpack.c.bf16 %v2553, %v2552
    %v2573 = vpack.c.bf16 %v2555, %v2554
    %v2574 = vpack.c.bf16 %v2557, %v2556
    %v2575 = vpack.c.bf16 %v2559, %v2558
    %v2576 = vpack.c.bf16 %v2561, %v2560
    %v2577 = vpack.c.bf16 %v2563, %v2562
    %v2578 = vpack.c.bf16 %v2565, %v2564
    %v2579 = vpack.c.bf16 %v2567, %v2566
    %s2580 = scalar_lea.vmem %s1, 12
    %v2581 = vld [vmem:[%s2580] sm:$0xf]
    %v2583 = vsel %vm1649, %v2568, 0
    %v2586 = vsel %vm1649, %v2569, 0
    %v2589 = vsel %vm1649, %v2570, 0
    %v2592 = vsel %vm1649, %v2571, 0
    %v2595 = vsel %vm1649, %v2572, 0
    %v2598 = vsel %vm1649, %v2573, 0
    %v2601 = vsel %vm1649, %v2574, 0
    %v2604 = vsel %vm1649, %v2575, 0
    %v2607 = vsel %vm1649, %v2576, 0
    %v2610 = vsel %vm1649, %v2577, 0
    %v2613 = vsel %vm1649, %v2578, 0
    %v2616 = vsel %vm1649, %v2579, 0
    %v2619 = vsel %vm1830, %v2581, 0
    %2621 = vmatprep.subr.bf16.mxu0 0
    %2622 = vmatpush1.bf16.msra.mxu0 %v2619
    %2623 = vmatprep.subr.bf16.mxu0 0
    %2624 = vmatpush1.bf16.msra.mxu0 0
    %2625 = vmatprep.subr.bf16.mxu0 0
    %2626 = vmatpush1.bf16.msra.mxu0 0
    %2627 = vmatprep.subr.bf16.mxu0 0
    %2628 = vmatpush1.bf16.msra.mxu0 0
    %2629 = vmatprep.subr.bf16.mxu0 0
    %2630 = vmatpush1.bf16.msra.mxu0 0
    %2631 = vmatprep.subr.bf16.mxu0 0
    %2632 = vmatpush1.bf16.msra.mxu0 0
    %2633 = vmatprep.subr.bf16.mxu0 0
    %2634 = vmatpush1.bf16.msra.mxu0 0
    %2635 = vmatprep.subr.bf16.mxu0 0
    %2636 = vmatpush1.bf16.msra.mxu0 0
    %2637 = vmatprep.subr.bf16.mxu0 0
    %2638 = vmatpush1.bf16.msra.mxu0 0
    %2639 = vmatprep.subr.bf16.mxu0 0
    %2640 = vmatpush1.bf16.msra.mxu0 0
    %2641 = vmatprep.subr.bf16.mxu0 0
    %2642 = vmatpush1.bf16.msra.mxu0 0
    %2643 = vmatprep.subr.bf16.mxu0 0
    %2644 = vmatpush1.bf16.msra.mxu0 0
    %2645 = vmatprep.subr.bf16.mxu0 0
    %2646 = vmatpush1.bf16.msra.mxu0 0
    %2647 = vmatprep.subr.bf16.mxu0 0
    %2648 = vmatpush1.bf16.msra.mxu0 0
    %2649 = vmatprep.subr.bf16.mxu0 0
    %2650 = vmatpush1.bf16.msra.mxu0 0
    %2651 = vmatprep.subr.bf16.mxu0 0
    %2652 = vmatpush1.bf16.msra.mxu0 0
    %2653 = vmatprep.mubr.bf16.mxu0 0
    %2654 = vmatmul.mubr.bf16.gmra.mrb[0].mxu0 %v2583
    %v2655 = vpop.f32.mrb[0].mxu0
    %v2656 = vadd.f32 0.0, %v2655
    %v2657 = vpop.f32.mrb[0].mxu0
    %v2658 = vpop.f32.mrb[0].mxu0
    %v2659 = vadd.f32 0.0, %v2658
    %v2660 = vpop.f32.mrb[0].mxu0
    %2661 = vmatprep.mubr.bf16.mxu0 0
    %2662 = vmatmul.mubr.bf16.gmra.mrb[0].mxu0 %v2586
    %v2663 = vpop.f32.mrb[0].mxu0
    %v2664 = vadd.f32 0.0, %v2663
    %v2665 = vpop.f32.mrb[0].mxu0
    %v2666 = vpop.f32.mrb[0].mxu0
    %v2667 = vadd.f32 0.0, %v2666
    %v2668 = vpop.f32.mrb[0].mxu0
    %2669 = vmatprep.mubr.bf16.mxu0 0
    %2670 = vmatmul.mubr.bf16.gmra.mrb[0].mxu0 %v2589
    %v2671 = vpop.f32.mrb[0].mxu0
    %v2672 = vadd.f32 0.0, %v2671
    %v2673 = vpop.f32.mrb[0].mxu0
    %v2674 = vpop.f32.mrb[0].mxu0
    %v2675 = vadd.f32 0.0, %v2674
    %v2676 = vpop.f32.mrb[0].mxu0
    %2677 = vmatprep.mubr.bf16.mxu0 0
    %2678 = vmatmul.mubr.bf16.gmra.mrb[0].mxu0 %v2592
    %v2679 = vpop.f32.mrb[0].mxu0
    %v2680 = vadd.f32 0.0, %v2679
    %v2681 = vpop.f32.mrb[0].mxu0
    %v2682 = vpop.f32.mrb[0].mxu0
    %v2683 = vadd.f32 0.0, %v2682
    %v2684 = vpop.f32.mrb[0].mxu0
    %2685 = vmatprep.mubr.bf16.mxu0 0
    %2686 = vmatmul.mubr.bf16.gmra.mrb[0].mxu0 %v2595
    %v2687 = vpop.f32.mrb[0].mxu0
    %v2688 = vadd.f32 0.0, %v2687
    %v2689 = vpop.f32.mrb[0].mxu0
    %v2690 = vpop.f32.mrb[0].mxu0
    %v2691 = vadd.f32 0.0, %v2690
    %v2692 = vpop.f32.mrb[0].mxu0
    %2693 = vmatprep.mubr.bf16.mxu0 0
    %2694 = vmatmul.mubr.bf16.gmra.mrb[0].mxu0 %v2598
    %v2695 = vpop.f32.mrb[0].mxu0
    %v2696 = vadd.f32 0.0, %v2695
    %v2697 = vpop.f32.mrb[0].mxu0
    %v2698 = vpop.f32.mrb[0].mxu0
    %v2699 = vadd.f32 0.0, %v2698
    %v2700 = vpop.f32.mrb[0].mxu0
    %2701 = vmatprep.mubr.bf16.mxu0 0
    %2702 = vmatmul.mubr.bf16.gmra.mrb[0].mxu0 %v2601
    %v2703 = vpop.f32.mrb[0].mxu0
    %v2704 = vadd.f32 0.0, %v2703
    %v2705 = vpop.f32.mrb[0].mxu0
    %v2706 = vpop.f32.mrb[0].mxu0
    %v2707 = vadd.f32 0.0, %v2706
    %v2708 = vpop.f32.mrb[0].mxu0
    %2709 = vmatprep.mubr.bf16.mxu0 0
    %2710 = vmatmul.mubr.bf16.gmra.mrb[0].mxu0 %v2604
    %v2711 = vpop.f32.mrb[0].mxu0
    %v2712 = vadd.f32 0.0, %v2711
    %v2713 = vpop.f32.mrb[0].mxu0
    %v2714 = vpop.f32.mrb[0].mxu0
    %v2715 = vadd.f32 0.0, %v2714
    %v2716 = vpop.f32.mrb[0].mxu0
    %2717 = vmatprep.mubr.bf16.mxu0 0
    %2718 = vmatmul.mubr.bf16.gmra.mrb[0].mxu0 %v2607
    %v2719 = vpop.f32.mrb[0].mxu0
    %v2720 = vadd.f32 0.0, %v2719
    %v2721 = vpop.f32.mrb[0].mxu0
    %v2722 = vpop.f32.mrb[0].mxu0
    %v2723 = vadd.f32 0.0, %v2722
    %v2724 = vpop.f32.mrb[0].mxu0
    %2725 = vmatprep.mubr.bf16.mxu0 0
    %2726 = vmatmul.mubr.bf16.gmra.mrb[0].mxu0 %v2610
    %v2727 = vpop.f32.mrb[0].mxu0
    %v2728 = vadd.f32 0.0, %v2727
    %v2729 = vpop.f32.mrb[0].mxu0
    %v2730 = vpop.f32.mrb[0].mxu0
    %v2731 = vadd.f32 0.0, %v2730
    %v2732 = vpop.f32.mrb[0].mxu0
    %2733 = vmatprep.mubr.bf16.mxu0 0
    %2734 = vmatmul.mubr.bf16.gmra.mrb[0].mxu0 %v2613
    %v2735 = vpop.f32.mrb[0].mxu0
    %v2736 = vadd.f32 0.0, %v2735
    %v2737 = vpop.f32.mrb[0].mxu0
    %v2738 = vpop.f32.mrb[0].mxu0
    %v2739 = vadd.f32 0.0, %v2738
    %v2740 = vpop.f32.mrb[0].mxu0
    %2741 = vmatprep.mubr.bf16.mxu0 0
    %2742 = vmatmul.mubr.bf16.gmra.mrb[0].mxu0 %v2616
    %v2743 = vpop.f32.mrb[0].mxu0
    %v2744 = vadd.f32 0.0, %v2743
    %v2745 = vpop.f32.mrb[0].mxu0
    %v2746 = vpop.f32.mrb[0].mxu0
    %v2747 = vadd.f32 0.0, %v2746
    %v2748 = vpop.f32.mrb[0].mxu0
    %2749 = vdwg.mxu0
    %v2750 = vld [vmem:[#allocation3] sm:$0xff]
    %v2751 = vld [vmem:[#allocation3 + $0x8] sm:$0xff]
    %v2752 = vld [vmem:[#allocation3 + $0x10] sm:$0xff]
    %v2753 = vld [vmem:[#allocation3 + $0x18] sm:$0xff]
    %v2754 = vld [vmem:[#allocation3 + $0x20] sm:$0xff]
    %v2755 = vld [vmem:[#allocation3 + $0x28] sm:$0xff]
    %v2756 = vld [vmem:[#allocation3 + $0x30] sm:$0xff]
    %v2757 = vld [vmem:[#allocation3 + $0x38] sm:$0xff]
    %v2758 = vld [vmem:[#allocation3 + $0x40] sm:$0xff]
    %v2759 = vld [vmem:[#allocation3 + $0x48] sm:$0xff]
    %v2760 = vld [vmem:[#allocation3 + $0x50] sm:$0xff]
    %v2761 = vld [vmem:[#allocation3 + $0x58] sm:$0xff]
    %v2762 = vld [vmem:[#allocation3 + $0x60] sm:$0xff]
    %v2763 = vld [vmem:[#allocation3 + $0x68] sm:$0xff]
    %v2764 = vld [vmem:[#allocation3 + $0x70] sm:$0xff]
    %v2765 = vld [vmem:[#allocation3 + $0x78] sm:$0xff]
    %v2766 = vld [vmem:[#allocation3 + $0x80] sm:$0xff]
    %v2767 = vld [vmem:[#allocation3 + $0x88] sm:$0xff]
    %v2768 = vld [vmem:[#allocation3 + $0x90] sm:$0xff]
    %v2769 = vld [vmem:[#allocation3 + $0x98] sm:$0xff]
    %v2770 = vld [vmem:[#allocation3 + $0xa0] sm:$0xff]
    %v2771 = vld [vmem:[#allocation3 + $0xa8] sm:$0xff]
    %v2772 = vld [vmem:[#allocation3 + $0xb0] sm:$0xff]
    %v2773 = vld [vmem:[#allocation3 + $0xb8] sm:$0xff]
    %v2774 = vadd.f32 %v2750, %v2656
    %v2775 = vadd.f32 %v2751, %v2659
    %v2776 = vadd.f32 %v2752, %v2664
    %v2777 = vadd.f32 %v2753, %v2667
    %v2778 = vadd.f32 %v2754, %v2672
    %v2779 = vadd.f32 %v2755, %v2675
    %v2780 = vadd.f32 %v2756, %v2680
    %v2781 = vadd.f32 %v2757, %v2683
    %v2782 = vadd.f32 %v2758, %v2688
    %v2783 = vadd.f32 %v2759, %v2691
    %v2784 = vadd.f32 %v2760, %v2696
    %v2785 = vadd.f32 %v2761, %v2699
    %v2786 = vadd.f32 %v2762, %v2704
    %v2787 = vadd.f32 %v2763, %v2707
    %v2788 = vadd.f32 %v2764, %v2712
    %v2789 = vadd.f32 %v2765, %v2715
    %v2790 = vadd.f32 %v2766, %v2720
    %v2791 = vadd.f32 %v2767, %v2723
    %v2792 = vadd.f32 %v2768, %v2728
    %v2793 = vadd.f32 %v2769, %v2731
    %v2794 = vadd.f32 %v2770, %v2736
    %v2795 = vadd.f32 %v2771, %v2739
    %v2796 = vadd.f32 %v2772, %v2744
    %v2797 = vadd.f32 %v2773, %v2747
    %2798 = vst.msk [vmem:[#allocation3] sm:$0xff] %vm1963, %v2774
    %2799 = vst.msk [vmem:[#allocation3 + $0x8] sm:$0xff] %vm1963, %v2775
    %2800 = vst.msk [vmem:[#allocation3 + $0x10] sm:$0xff] %vm1963, %v2776
    %2801 = vst.msk [vmem:[#allocation3 + $0x18] sm:$0xff] %vm1963, %v2777
    %2802 = vst.msk [vmem:[#allocation3 + $0x20] sm:$0xff] %vm1963, %v2778
    %2803 = vst.msk [vmem:[#allocation3 + $0x28] sm:$0xff] %vm1963, %v2779
    %2804 = vst.msk [vmem:[#allocation3 + $0x30] sm:$0xff] %vm1963, %v2780
    %2805 = vst.msk [vmem:[#allocation3 + $0x38] sm:$0xff] %vm1963, %v2781
    %2806 = vst.msk [vmem:[#allocation3 + $0x40] sm:$0xff] %vm1963, %v2782
    %2807 = vst.msk [vmem:[#allocation3 + $0x48] sm:$0xff] %vm1963, %v2783
    %2808 = vst.msk [vmem:[#allocation3 + $0x50] sm:$0xff] %vm1963, %v2784
    %2809 = vst.msk [vmem:[#allocation3 + $0x58] sm:$0xff] %vm1963, %v2785
    %2810 = vst.msk [vmem:[#allocation3 + $0x60] sm:$0xff] %vm1963, %v2786
    %2811 = vst.msk [vmem:[#allocation3 + $0x68] sm:$0xff] %vm1963, %v2787
    %2812 = vst.msk [vmem:[#allocation3 + $0x70] sm:$0xff] %vm1963, %v2788
    %2813 = vst.msk [vmem:[#allocation3 + $0x78] sm:$0xff] %vm1963, %v2789
    %2814 = vst.msk [vmem:[#allocation3 + $0x80] sm:$0xff] %vm1963, %v2790
    %2815 = vst.msk [vmem:[#allocation3 + $0x88] sm:$0xff] %vm1963, %v2791
    %2816 = vst.msk [vmem:[#allocation3 + $0x90] sm:$0xff] %vm1963, %v2792
    %2817 = vst.msk [vmem:[#allocation3 + $0x98] sm:$0xff] %vm1963, %v2793
    %2818 = vst.msk [vmem:[#allocation3 + $0xa0] sm:$0xff] %vm1963, %v2794
    %2819 = vst.msk [vmem:[#allocation3 + $0xa8] sm:$0xff] %vm1963, %v2795
    %2820 = vst.msk [vmem:[#allocation3 + $0xb0] sm:$0xff] %vm1963, %v2796
    %2821 = vst.msk [vmem:[#allocation3 + $0xb8] sm:$0xff] %vm1963, %v2797
    %v2822 = vld [vmem:[%s1731 + $0x1] sm:$0xff]
    %v2823 = vld [vmem:[%s1731 + $0x11] sm:$0xff]
    %v2824 = vld [vmem:[%s1731 + $0x21] sm:$0xff]
    %v2825 = vld [vmem:[%s1731 + $0x31] sm:$0xff]
    %v2826 = vld [vmem:[%s1731 + $0x41] sm:$0xff]
    %v2827 = vld [vmem:[%s1731 + $0x51] sm:$0xff]
    %v2828 = vld [vmem:[%s1731 + $0x61] sm:$0xff]
    %v2829 = vld [vmem:[%s1731 + $0x71] sm:$0xff]
    %v2830 = vld [vmem:[%s1731 + $0x81] sm:$0xff]
    %v2831 = vld [vmem:[%s1731 + $0x91] sm:$0xff]
    %v2832 = vld [vmem:[%s1731 + $0xa1] sm:$0xff]
    %v2833 = vld [vmem:[%s1731 + $0xb1] sm:$0xff]
    %v2834 = vld [vmem:[%s1731 + $0xe1] sm:$0xff]
    %v2835 = vld [vmem:[%s1731 + $0xf1] sm:$0xff]
    %v2836 = vld [vmem:[%s1731 + $0x101] sm:$0xff]
    %v2837 = vld [vmem:[%s1731 + $0x111] sm:$0xff]
    %v2838 = vld [vmem:[%s1731 + $0x121] sm:$0xff]
    %v2839 = vld [vmem:[%s1731 + $0x131] sm:$0xff]
    %v2840 = vld [vmem:[%s1731 + $0x141] sm:$0xff]
    %v2841 = vld [vmem:[%s1731 + $0x151] sm:$0xff]
    %v2842 = vld [vmem:[%s1731 + $0x161] sm:$0xff]
    %v2843 = vld [vmem:[%s1731 + $0x171] sm:$0xff]
    %v2844 = vld [vmem:[%s1731 + $0x181] sm:$0xff]
    %v2845 = vld [vmem:[%s1731 + $0x191] sm:$0xff]
    %v2846 = vpack.c.bf16 %v2823, %v2822
    %v2847 = vpack.c.bf16 %v2825, %v2824
    %v2848 = vpack.c.bf16 %v2827, %v2826
    %v2849 = vpack.c.bf16 %v2829, %v2828
    %v2850 = vpack.c.bf16 %v2831, %v2830
    %v2851 = vpack.c.bf16 %v2833, %v2832
    %v2852 = vpack.c.bf16 %v2835, %v2834
    %v2853 = vpack.c.bf16 %v2837, %v2836
    %v2854 = vpack.c.bf16 %v2839, %v2838
    %v2855 = vpack.c.bf16 %v2841, %v2840
    %v2856 = vpack.c.bf16 %v2843, %v2842
    %v2857 = vpack.c.bf16 %v2845, %v2844
    %s2858 = scalar_lea.vmem %s1, 16
    %v2859 = vld [vmem:[%s2858] sm:$0xf]
    %v2861 = vsel %vm1649, %v2846, 0
    %v2864 = vsel %vm1649, %v2847, 0
    %v2867 = vsel %vm1649, %v2848, 0
    %v2870 = vsel %vm1649, %v2849, 0
    %v2873 = vsel %vm1649, %v2850, 0
    %v2876 = vsel %vm1649, %v2851, 0
    %v2879 = vsel %vm1649, %v2852, 0
    %v2882 = vsel %vm1649, %v2853, 0
    %v2885 = vsel %vm1649, %v2854, 0
    %v2888 = vsel %vm1649, %v2855, 0
    %v2891 = vsel %vm1649, %v2856, 0
    %v2894 = vsel %vm1649, %v2857, 0
    %v2897 = vsel %vm1830, %v2859, 0
    %2899 = vmatprep.subr.bf16.mxu0 0
    %2900 = vmatpush1.bf16.msra.mxu0 %v2897
    %2901 = vmatprep.subr.bf16.mxu0 0
    %2902 = vmatpush1.bf16.msra.mxu0 0
    %2903 = vmatprep.subr.bf16.mxu0 0
    %2904 = vmatpush1.bf16.msra.mxu0 0
    %2905 = vmatprep.subr.bf16.mxu0 0
    %2906 = vmatpush1.bf16.msra.mxu0 0
    %2907 = vmatprep.subr.bf16.mxu0 0
    %2908 = vmatpush1.bf16.msra.mxu0 0
    %2909 = vmatprep.subr.bf16.mxu0 0
    %2910 = vmatpush1.bf16.msra.mxu0 0
    %2911 = vmatprep.subr.bf16.mxu0 0
    %2912 = vmatpush1.bf16.msra.mxu0 0
    %2913 = vmatprep.subr.bf16.mxu0 0
    %2914 = vmatpush1.bf16.msra.mxu0 0
    %2915 = vmatprep.subr.bf16.mxu0 0
    %2916 = vmatpush1.bf16.msra.mxu0 0
    %2917 = vmatprep.subr.bf16.mxu0 0
    %2918 = vmatpush1.bf16.msra.mxu0 0
    %2919 = vmatprep.subr.bf16.mxu0 0
    %2920 = vmatpush1.bf16.msra.mxu0 0
    %2921 = vmatprep.subr.bf16.mxu0 0
    %2922 = vmatpush1.bf16.msra.mxu0 0
    %2923 = vmatprep.subr.bf16.mxu0 0
    %2924 = vmatpush1.bf16.msra.mxu0 0
    %2925 = vmatprep.subr.bf16.mxu0 0
    %2926 = vmatpush1.bf16.msra.mxu0 0
    %2927 = vmatprep.subr.bf16.mxu0 0
    %2928 = vmatpush1.bf16.msra.mxu0 0
    %2929 = vmatprep.subr.bf16.mxu0 0
    %2930 = vmatpush1.bf16.msra.mxu0 0
    %2931 = vmatprep.mubr.bf16.mxu0 0
    %2932 = vmatmul.mubr.bf16.gmra.mrb[0].mxu0 %v2861
    %v2933 = vpop.f32.mrb[0].mxu0
    %v2934 = vadd.f32 0.0, %v2933
    %v2935 = vpop.f32.mrb[0].mxu0
    %v2936 = vpop.f32.mrb[0].mxu0
    %v2937 = vadd.f32 0.0, %v2936
    %v2938 = vpop.f32.mrb[0].mxu0
    %2939 = vmatprep.mubr.bf16.mxu0 0
    %2940 = vmatmul.mubr.bf16.gmra.mrb[0].mxu0 %v2864
    %v2941 = vpop.f32.mrb[0].mxu0
    %v2942 = vadd.f32 0.0, %v2941
    %v2943 = vpop.f32.mrb[0].mxu0
    %v2944 = vpop.f32.mrb[0].mxu0
    %v2945 = vadd.f32 0.0, %v2944
    %v2946 = vpop.f32.mrb[0].mxu0
    %2947 = vmatprep.mubr.bf16.mxu0 0
    %2948 = vmatmul.mubr.bf16.gmra.mrb[0].mxu0 %v2867
    %v2949 = vpop.f32.mrb[0].mxu0
    %v2950 = vadd.f32 0.0, %v2949
    %v2951 = vpop.f32.mrb[0].mxu0
    %v2952 = vpop.f32.mrb[0].mxu0
    %v2953 = vadd.f32 0.0, %v2952
    %v2954 = vpop.f32.mrb[0].mxu0
    %2955 = vmatprep.mubr.bf16.mxu0 0
    %2956 = vmatmul.mubr.bf16.gmra.mrb[0].mxu0 %v2870
    %v2957 = vpop.f32.mrb[0].mxu0
    %v2958 = vadd.f32 0.0, %v2957
    %v2959 = vpop.f32.mrb[0].mxu0
    %v2960 = vpop.f32.mrb[0].mxu0
    %v2961 = vadd.f32 0.0, %v2960
    %v2962 = vpop.f32.mrb[0].mxu0
    %2963 = vmatprep.mubr.bf16.mxu0 0
    %2964 = vmatmul.mubr.bf16.gmra.mrb[0].mxu0 %v2873
    %v2965 = vpop.f32.mrb[0].mxu0
    %v2966 = vadd.f32 0.0, %v2965
    %v2967 = vpop.f32.mrb[0].mxu0
    %v2968 = vpop.f32.mrb[0].mxu0
    %v2969 = vadd.f32 0.0, %v2968
    %v2970 = vpop.f32.mrb[0].mxu0
    %2971 = vmatprep.mubr.bf16.mxu0 0
    %2972 = vmatmul.mubr.bf16.gmra.mrb[0].mxu0 %v2876
    %v2973 = vpop.f32.mrb[0].mxu0
    %v2974 = vadd.f32 0.0, %v2973
    %v2975 = vpop.f32.mrb[0].mxu0
    %v2976 = vpop.f32.mrb[0].mxu0
    %v2977 = vadd.f32 0.0, %v2976
    %v2978 = vpop.f32.mrb[0].mxu0
    %2979 = vmatprep.mubr.bf16.mxu0 0
    %2980 = vmatmul.mubr.bf16.gmra.mrb[0].mxu0 %v2879
    %v2981 = vpop.f32.mrb[0].mxu0
    %v2982 = vadd.f32 0.0, %v2981
    %v2983 = vpop.f32.mrb[0].mxu0
    %v2984 = vpop.f32.mrb[0].mxu0
    %v2985 = vadd.f32 0.0, %v2984
    %v2986 = vpop.f32.mrb[0].mxu0
    %2987 = vmatprep.mubr.bf16.mxu0 0
    %2988 = vmatmul.mubr.bf16.gmra.mrb[0].mxu0 %v2882
    %v2989 = vpop.f32.mrb[0].mxu0
    %v2990 = vadd.f32 0.0, %v2989
    %v2991 = vpop.f32.mrb[0].mxu0
    %v2992 = vpop.f32.mrb[0].mxu0
    %v2993 = vadd.f32 0.0, %v2992
    %v2994 = vpop.f32.mrb[0].mxu0
    %2995 = vmatprep.mubr.bf16.mxu0 0
    %2996 = vmatmul.mubr.bf16.gmra.mrb[0].mxu0 %v2885
    %v2997 = vpop.f32.mrb[0].mxu0
    %v2998 = vadd.f32 0.0, %v2997
    %v2999 = vpop.f32.mrb[0].mxu0
    %v3000 = vpop.f32.mrb[0].mxu0
    %v3001 = vadd.f32 0.0, %v3000
    %v3002 = vpop.f32.mrb[0].mxu0
    %3003 = vmatprep.mubr.bf16.mxu0 0
    %3004 = vmatmul.mubr.bf16.gmra.mrb[0].mxu0 %v2888
    %v3005 = vpop.f32.mrb[0].mxu0
    %v3006 = vadd.f32 0.0, %v3005
    %v3007 = vpop.f32.mrb[0].mxu0
    %v3008 = vpop.f32.mrb[0].mxu0
    %v3009 = vadd.f32 0.0, %v3008
    %v3010 = vpop.f32.mrb[0].mxu0
    %3011 = vmatprep.mubr.bf16.mxu0 0
    %3012 = vmatmul.mubr.bf16.gmra.mrb[0].mxu0 %v2891
    %v3013 = vpop.f32.mrb[0].mxu0
    %v3014 = vadd.f32 0.0, %v3013
    %v3015 = vpop.f32.mrb[0].mxu0
    %v3016 = vpop.f32.mrb[0].mxu0
    %v3017 = vadd.f32 0.0, %v3016
    %v3018 = vpop.f32.mrb[0].mxu0
    %3019 = vmatprep.mubr.bf16.mxu0 0
    %3020 = vmatmul.mubr.bf16.gmra.mrb[0].mxu0 %v2894
    %v3021 = vpop.f32.mrb[0].mxu0
    %v3022 = vadd.f32 0.0, %v3021
    %v3023 = vpop.f32.mrb[0].mxu0
    %v3024 = vpop.f32.mrb[0].mxu0
    %v3025 = vadd.f32 0.0, %v3024
    %v3026 = vpop.f32.mrb[0].mxu0
    %3027 = vdwg.mxu0
    %v3028 = vld [vmem:[#allocation3] sm:$0xff]
    %v3029 = vld [vmem:[#allocation3 + $0x8] sm:$0xff]
    %v3030 = vld [vmem:[#allocation3 + $0x10] sm:$0xff]
    %v3031 = vld [vmem:[#allocation3 + $0x18] sm:$0xff]
    %v3032 = vld [vmem:[#allocation3 + $0x20] sm:$0xff]
    %v3033 = vld [vmem:[#allocation3 + $0x28] sm:$0xff]
    %v3034 = vld [vmem:[#allocation3 + $0x30] sm:$0xff]
    %v3035 = vld [vmem:[#allocation3 + $0x38] sm:$0xff]
    %v3036 = vld [vmem:[#allocation3 + $0x40] sm:$0xff]
    %v3037 = vld [vmem:[#allocation3 + $0x48] sm:$0xff]
    %v3038 = vld [vmem:[#allocation3 + $0x50] sm:$0xff]
    %v3039 = vld [vmem:[#allocation3 + $0x58] sm:$0xff]
    %v3040 = vld [vmem:[#allocation3 + $0x60] sm:$0xff]
    %v3041 = vld [vmem:[#allocation3 + $0x68] sm:$0xff]
    %v3042 = vld [vmem:[#allocation3 + $0x70] sm:$0xff]
    %v3043 = vld [vmem:[#allocation3 + $0x78] sm:$0xff]
    %v3044 = vld [vmem:[#allocation3 + $0x80] sm:$0xff]
    %v3045 = vld [vmem:[#allocation3 + $0x88] sm:$0xff]
    %v3046 = vld [vmem:[#allocation3 + $0x90] sm:$0xff]
    %v3047 = vld [vmem:[#allocation3 + $0x98] sm:$0xff]
    %v3048 = vld [vmem:[#allocation3 + $0xa0] sm:$0xff]
    %v3049 = vld [vmem:[#allocation3 + $0xa8] sm:$0xff]
    %v3050 = vld [vmem:[#allocation3 + $0xb0] sm:$0xff]
    %v3051 = vld [vmem:[#allocation3 + $0xb8] sm:$0xff]
    %v3052 = vadd.f32 %v3028, %v2934
    %v3053 = vadd.f32 %v3029, %v2937
    %v3054 = vadd.f32 %v3030, %v2942
    %v3055 = vadd.f32 %v3031, %v2945
    %v3056 = vadd.f32 %v3032, %v2950
    %v3057 = vadd.f32 %v3033, %v2953
    %v3058 = vadd.f32 %v3034, %v2958
    %v3059 = vadd.f32 %v3035, %v2961
    %v3060 = vadd.f32 %v3036, %v2966
    %v3061 = vadd.f32 %v3037, %v2969
    %v3062 = vadd.f32 %v3038, %v2974
    %v3063 = vadd.f32 %v3039, %v2977
    %v3064 = vadd.f32 %v3040, %v2982
    %v3065 = vadd.f32 %v3041, %v2985
    %v3066 = vadd.f32 %v3042, %v2990
    %v3067 = vadd.f32 %v3043, %v2993
    %v3068 = vadd.f32 %v3044, %v2998
    %v3069 = vadd.f32 %v3045, %v3001
    %v3070 = vadd.f32 %v3046, %v3006
    %v3071 = vadd.f32 %v3047, %v3009
    %v3072 = vadd.f32 %v3048, %v3014
    %v3073 = vadd.f32 %v3049, %v3017
    %v3074 = vadd.f32 %v3050, %v3022
    %v3075 = vadd.f32 %v3051, %v3025
    %3076 = vst.msk [vmem:[#allocation3] sm:$0xff] %vm1963, %v3052
    %3077 = vst.msk [vmem:[#allocation3 + $0x8] sm:$0xff] %vm1963, %v3053
    %3078 = vst.msk [vmem:[#allocation3 + $0x10] sm:$0xff] %vm1963, %v3054
    %3079 = vst.msk [vmem:[#allocation3 + $0x18] sm:$0xff] %vm1963, %v3055
    %3080 = vst.msk [vmem:[#allocation3 + $0x20] sm:$0xff] %vm1963, %v3056
    %3081 = vst.msk [vmem:[#allocation3 + $0x28] sm:$0xff] %vm1963, %v3057
    %3082 = vst.msk [vmem:[#allocation3 + $0x30] sm:$0xff] %vm1963, %v3058
    %3083 = vst.msk [vmem:[#allocation3 + $0x38] sm:$0xff] %vm1963, %v3059
    %3084 = vst.msk [vmem:[#allocation3 + $0x40] sm:$0xff] %vm1963, %v3060
    %3085 = vst.msk [vmem:[#allocation3 + $0x48] sm:$0xff] %vm1963, %v3061
    %3086 = vst.msk [vmem:[#allocation3 + $0x50] sm:$0xff] %vm1963, %v3062
    %3087 = vst.msk [vmem:[#allocation3 + $0x58] sm:$0xff] %vm1963, %v3063
    %3088 = vst.msk [vmem:[#allocation3 + $0x60] sm:$0xff] %vm1963, %v3064
    %3089 = vst.msk [vmem:[#allocation3 + $0x68] sm:$0xff] %vm1963, %v3065
    %3090 = vst.msk [vmem:[#allocation3 + $0x70] sm:$0xff] %vm1963, %v3066
    %3091 = vst.msk [vmem:[#allocation3 + $0x78] sm:$0xff] %vm1963, %v3067
    %3092 = vst.msk [vmem:[#allocation3 + $0x80] sm:$0xff] %vm1963, %v3068
    %3093 = vst.msk [vmem:[#allocation3 + $0x88] sm:$0xff] %vm1963, %v3069
    %3094 = vst.msk [vmem:[#allocation3 + $0x90] sm:$0xff] %vm1963, %v3070
    %3095 = vst.msk [vmem:[#allocation3 + $0x98] sm:$0xff] %vm1963, %v3071
    %3096 = vst.msk [vmem:[#allocation3 + $0xa0] sm:$0xff] %vm1963, %v3072
    %3097 = vst.msk [vmem:[#allocation3 + $0xa8] sm:$0xff] %vm1963, %v3073
    %3098 = vst.msk [vmem:[#allocation3 + $0xb0] sm:$0xff] %vm1963, %v3074
    %3099 = vst.msk [vmem:[#allocation3 + $0xb8] sm:$0xff] %vm1963, %v3075
    %v3100 = vld [vmem:[%s1731 + $0x2] sm:$0xff]
    %v3101 = vld [vmem:[%s1731 + $0x12] sm:$0xff]
    %v3102 = vld [vmem:[%s1731 + $0x22] sm:$0xff]
    %v3103 = vld [vmem:[%s1731 + $0x32] sm:$0xff]
    %v3104 = vld [vmem:[%s1731 + $0x42] sm:$0xff]
    %v3105 = vld [vmem:[%s1731 + $0x52] sm:$0xff]
    %v3106 = vld [vmem:[%s1731 + $0x62] sm:$0xff]
    %v3107 = vld [vmem:[%s1731 + $0x72] sm:$0xff]
    %v3108 = vld [vmem:[%s1731 + $0x82] sm:$0xff]
    %v3109 = vld [vmem:[%s1731 + $0x92] sm:$0xff]
    %v3110 = vld [vmem:[%s1731 + $0xa2] sm:$0xff]
    %v3111 = vld [vmem:[%s1731 + $0xb2] sm:$0xff]
    %v3112 = vld [vmem:[%s1731 + $0xe2] sm:$0xff]
    %v3113 = vld [vmem:[%s1731 + $0xf2] sm:$0xff]
    %v3114 = vld [vmem:[%s1731 + $0x102] sm:$0xff]
    %v3115 = vld [vmem:[%s1731 + $0x112] sm:$0xff]
    %v3116 = vld [vmem:[%s1731 + $0x122] sm:$0xff]
    %v3117 = vld [vmem:[%s1731 + $0x132] sm:$0xff]
    %v3118 = vld [vmem:[%s1731 + $0x142] sm:$0xff]
    %v3119 = vld [vmem:[%s1731 + $0x152] sm:$0xff]
    %v3120 = vld [vmem:[%s1731 + $0x162] sm:$0xff]
    %v3121 = vld [vmem:[%s1731 + $0x172] sm:$0xff]
    %v3122 = vld [vmem:[%s1731 + $0x182] sm:$0xff]
    %v3123 = vld [vmem:[%s1731 + $0x192] sm:$0xff]
    %v3124 = vpack.c.bf16 %v3101, %v3100
    %v3125 = vpack.c.bf16 %v3103, %v3102
    %v3126 = vpack.c.bf16 %v3105, %v3104
    %v3127 = vpack.c.bf16 %v3107, %v3106
    %v3128 = vpack.c.bf16 %v3109, %v3108
    %v3129 = vpack.c.bf16 %v3111, %v3110
    %v3130 = vpack.c.bf16 %v3113, %v3112
    %v3131 = vpack.c.bf16 %v3115, %v3114
    %v3132 = vpack.c.bf16 %v3117, %v3116
    %v3133 = vpack.c.bf16 %v3119, %v3118
    %v3134 = vpack.c.bf16 %v3121, %v3120
    %v3135 = vpack.c.bf16 %v3123, %v3122
    %s3136 = scalar_lea.vmem %s1, 20
    %v3137 = vld [vmem:[%s3136] sm:$0xf]
    %v3139 = vsel %vm1649, %v3124, 0
    %v3142 = vsel %vm1649, %v3125, 0
    %v3145 = vsel %vm1649, %v3126, 0
    %v3148 = vsel %vm1649, %v3127, 0
    %v3151 = vsel %vm1649, %v3128, 0
    %v3154 = vsel %vm1649, %v3129, 0
    %v3157 = vsel %vm1649, %v3130, 0
    %v3160 = vsel %vm1649, %v3131, 0
    %v3163 = vsel %vm1649, %v3132, 0
    %v3166 = vsel %vm1649, %v3133, 0
    %v3169 = vsel %vm1649, %v3134, 0
    %v3172 = vsel %vm1649, %v3135, 0
    %v3175 = vsel %vm1830, %v3137, 0
    %3177 = vmatprep.subr.bf16.mxu0 0
    %3178 = vmatpush1.bf16.msra.mxu0 %v3175
    %3179 = vmatprep.subr.bf16.mxu0 0
    %3180 = vmatpush1.bf16.msra.mxu0 0
    %3181 = vmatprep.subr.bf16.mxu0 0
    %3182 = vmatpush1.bf16.msra.mxu0 0
    %3183 = vmatprep.subr.bf16.mxu0 0
    %3184 = vmatpush1.bf16.msra.mxu0 0
    %3185 = vmatprep.subr.bf16.mxu0 0
    %3186 = vmatpush1.bf16.msra.mxu0 0
    %3187 = vmatprep.subr.bf16.mxu0 0
    %3188 = vmatpush1.bf16.msra.mxu0 0
    %3189 = vmatprep.subr.bf16.mxu0 0
    %3190 = vmatpush1.bf16.msra.mxu0 0
    %3191 = vmatprep.subr.bf16.mxu0 0
    %3192 = vmatpush1.bf16.msra.mxu0 0
    %3193 = vmatprep.subr.bf16.mxu0 0
    %3194 = vmatpush1.bf16.msra.mxu0 0
    %3195 = vmatprep.subr.bf16.mxu0 0
    %3196 = vmatpush1.bf16.msra.mxu0 0
    %3197 = vmatprep.subr.bf16.mxu0 0
    %3198 = vmatpush1.bf16.msra.mxu0 0
    %3199 = vmatprep.subr.bf16.mxu0 0
    %3200 = vmatpush1.bf16.msra.mxu0 0
    %3201 = vmatprep.subr.bf16.mxu0 0
    %3202 = vmatpush1.bf16.msra.mxu0 0
    %3203 = vmatprep.subr.bf16.mxu0 0
    %3204 = vmatpush1.bf16.msra.mxu0 0
    %3205 = vmatprep.subr.bf16.mxu0 0
    %3206 = vmatpush1.bf16.msra.mxu0 0
    %3207 = vmatprep.subr.bf16.mxu0 0
    %3208 = vmatpush1.bf16.msra.mxu0 0
    %3209 = vmatprep.mubr.bf16.mxu0 0
    %3210 = vmatmul.mubr.bf16.gmra.mrb[0].mxu0 %v3139
    %v3211 = vpop.f32.mrb[0].mxu0
    %v3212 = vadd.f32 0.0, %v3211
    %v3213 = vpop.f32.mrb[0].mxu0
    %v3214 = vpop.f32.mrb[0].mxu0
    %v3215 = vadd.f32 0.0, %v3214
    %v3216 = vpop.f32.mrb[0].mxu0
    %3217 = vmatprep.mubr.bf16.mxu0 0
    %3218 = vmatmul.mubr.bf16.gmra.mrb[0].mxu0 %v3142
    %v3219 = vpop.f32.mrb[0].mxu0
    %v3220 = vadd.f32 0.0, %v3219
    %v3221 = vpop.f32.mrb[0].mxu0
    %v3222 = vpop.f32.mrb[0].mxu0
    %v3223 = vadd.f32 0.0, %v3222
    %v3224 = vpop.f32.mrb[0].mxu0
    %3225 = vmatprep.mubr.bf16.mxu0 0
    %3226 = vmatmul.mubr.bf16.gmra.mrb[0].mxu0 %v3145
    %v3227 = vpop.f32.mrb[0].mxu0
    %v3228 = vadd.f32 0.0, %v3227
    %v3229 = vpop.f32.mrb[0].mxu0
    %v3230 = vpop.f32.mrb[0].mxu0
    %v3231 = vadd.f32 0.0, %v3230
    %v3232 = vpop.f32.mrb[0].mxu0
    %3233 = vmatprep.mubr.bf16.mxu0 0
    %3234 = vmatmul.mubr.bf16.gmra.mrb[0].mxu0 %v3148
    %v3235 = vpop.f32.mrb[0].mxu0
    %v3236 = vadd.f32 0.0, %v3235
    %v3237 = vpop.f32.mrb[0].mxu0
    %v3238 = vpop.f32.mrb[0].mxu0
    %v3239 = vadd.f32 0.0, %v3238
    %v3240 = vpop.f32.mrb[0].mxu0
    %3241 = vmatprep.mubr.bf16.mxu0 0
    %3242 = vmatmul.mubr.bf16.gmra.mrb[0].mxu0 %v3151
    %v3243 = vpop.f32.mrb[0].mxu0
    %v3244 = vadd.f32 0.0, %v3243
    %v3245 = vpop.f32.mrb[0].mxu0
    %v3246 = vpop.f32.mrb[0].mxu0
    %v3247 = vadd.f32 0.0, %v3246
    %v3248 = vpop.f32.mrb[0].mxu0
    %3249 = vmatprep.mubr.bf16.mxu0 0
    %3250 = vmatmul.mubr.bf16.gmra.mrb[0].mxu0 %v3154
    %v3251 = vpop.f32.mrb[0].mxu0
    %v3252 = vadd.f32 0.0, %v3251
    %v3253 = vpop.f32.mrb[0].mxu0
    %v3254 = vpop.f32.mrb[0].mxu0
    %v3255 = vadd.f32 0.0, %v3254
    %v3256 = vpop.f32.mrb[0].mxu0
    %3257 = vmatprep.mubr.bf16.mxu0 0
    %3258 = vmatmul.mubr.bf16.gmra.mrb[0].mxu0 %v3157
    %v3259 = vpop.f32.mrb[0].mxu0
    %v3260 = vadd.f32 0.0, %v3259
    %v3261 = vpop.f32.mrb[0].mxu0
    %v3262 = vpop.f32.mrb[0].mxu0
    %v3263 = vadd.f32 0.0, %v3262
    %v3264 = vpop.f32.mrb[0].mxu0
    %3265 = vmatprep.mubr.bf16.mxu0 0
    %3266 = vmatmul.mubr.bf16.gmra.mrb[0].mxu0 %v3160
    %v3267 = vpop.f32.mrb[0].mxu0
    %v3268 = vadd.f32 0.0, %v3267
    %v3269 = vpop.f32.mrb[0].mxu0
    %v3270 = vpop.f32.mrb[0].mxu0
    %v3271 = vadd.f32 0.0, %v3270
    %v3272 = vpop.f32.mrb[0].mxu0
    %3273 = vmatprep.mubr.bf16.mxu0 0
    %3274 = vmatmul.mubr.bf16.gmra.mrb[0].mxu0 %v3163
    %v3275 = vpop.f32.mrb[0].mxu0
    %v3276 = vadd.f32 0.0, %v3275
    %v3277 = vpop.f32.mrb[0].mxu0
    %v3278 = vpop.f32.mrb[0].mxu0
    %v3279 = vadd.f32 0.0, %v3278
    %v3280 = vpop.f32.mrb[0].mxu0
    %3281 = vmatprep.mubr.bf16.mxu0 0
    %3282 = vmatmul.mubr.bf16.gmra.mrb[0].mxu0 %v3166
    %v3283 = vpop.f32.mrb[0].mxu0
    %v3284 = vadd.f32 0.0, %v3283
    %v3285 = vpop.f32.mrb[0].mxu0
    %v3286 = vpop.f32.mrb[0].mxu0
    %v3287 = vadd.f32 0.0, %v3286
    %v3288 = vpop.f32.mrb[0].mxu0
    %3289 = vmatprep.mubr.bf16.mxu0 0
    %3290 = vmatmul.mubr.bf16.gmra.mrb[0].mxu0 %v3169
    %v3291 = vpop.f32.mrb[0].mxu0
    %v3292 = vadd.f32 0.0, %v3291
    %v3293 = vpop.f32.mrb[0].mxu0
    %v3294 = vpop.f32.mrb[0].mxu0
    %v3295 = vadd.f32 0.0, %v3294
    %v3296 = vpop.f32.mrb[0].mxu0
    %3297 = vmatprep.mubr.bf16.mxu0 0
    %3298 = vmatmul.mubr.bf16.gmra.mrb[0].mxu0 %v3172
    %v3299 = vpop.f32.mrb[0].mxu0
    %v3300 = vadd.f32 0.0, %v3299
    %v3301 = vpop.f32.mrb[0].mxu0
    %v3302 = vpop.f32.mrb[0].mxu0
    %v3303 = vadd.f32 0.0, %v3302
    %v3304 = vpop.f32.mrb[0].mxu0
    %3305 = vdwg.mxu0
    %v3306 = vld [vmem:[#allocation3] sm:$0xff]
    %v3307 = vld [vmem:[#allocation3 + $0x8] sm:$0xff]
    %v3308 = vld [vmem:[#allocation3 + $0x10] sm:$0xff]
    %v3309 = vld [vmem:[#allocation3 + $0x18] sm:$0xff]
    %v3310 = vld [vmem:[#allocation3 + $0x20] sm:$0xff]
    %v3311 = vld [vmem:[#allocation3 + $0x28] sm:$0xff]
    %v3312 = vld [vmem:[#allocation3 + $0x30] sm:$0xff]
    %v3313 = vld [vmem:[#allocation3 + $0x38] sm:$0xff]
    %v3314 = vld [vmem:[#allocation3 + $0x40] sm:$0xff]
    %v3315 = vld [vmem:[#allocation3 + $0x48] sm:$0xff]
    %v3316 = vld [vmem:[#allocation3 + $0x50] sm:$0xff]
    %v3317 = vld [vmem:[#allocation3 + $0x58] sm:$0xff]
    %v3318 = vld [vmem:[#allocation3 + $0x60] sm:$0xff]
    %v3319 = vld [vmem:[#allocation3 + $0x68] sm:$0xff]
    %v3320 = vld [vmem:[#allocation3 + $0x70] sm:$0xff]
    %v3321 = vld [vmem:[#allocation3 + $0x78] sm:$0xff]
    %v3322 = vld [vmem:[#allocation3 + $0x80] sm:$0xff]
    %v3323 = vld [vmem:[#allocation3 + $0x88] sm:$0xff]
    %v3324 = vld [vmem:[#allocation3 + $0x90] sm:$0xff]
    %v3325 = vld [vmem:[#allocation3 + $0x98] sm:$0xff]
    %v3326 = vld [vmem:[#allocation3 + $0xa0] sm:$0xff]
    %v3327 = vld [vmem:[#allocation3 + $0xa8] sm:$0xff]
    %v3328 = vld [vmem:[#allocation3 + $0xb0] sm:$0xff]
    %v3329 = vld [vmem:[#allocation3 + $0xb8] sm:$0xff]
    %v3330 = vadd.f32 %v3306, %v3212
    %v3331 = vadd.f32 %v3307, %v3215
    %v3332 = vadd.f32 %v3308, %v3220
    %v3333 = vadd.f32 %v3309, %v3223
    %v3334 = vadd.f32 %v3310, %v3228
    %v3335 = vadd.f32 %v3311, %v3231
    %v3336 = vadd.f32 %v3312, %v3236
    %v3337 = vadd.f32 %v3313, %v3239
    %v3338 = vadd.f32 %v3314, %v3244
    %v3339 = vadd.f32 %v3315, %v3247
    %v3340 = vadd.f32 %v3316, %v3252
    %v3341 = vadd.f32 %v3317, %v3255
    %v3342 = vadd.f32 %v3318, %v3260
    %v3343 = vadd.f32 %v3319, %v3263
    %v3344 = vadd.f32 %v3320, %v3268
    %v3345 = vadd.f32 %v3321, %v3271
    %v3346 = vadd.f32 %v3322, %v3276
    %v3347 = vadd.f32 %v3323, %v3279
    %v3348 = vadd.f32 %v3324, %v3284
    %v3349 = vadd.f32 %v3325, %v3287
    %v3350 = vadd.f32 %v3326, %v3292
    %v3351 = vadd.f32 %v3327, %v3295
    %v3352 = vadd.f32 %v3328, %v3300
    %v3353 = vadd.f32 %v3329, %v3303
    %3354 = vst.msk [vmem:[#allocation3] sm:$0xff] %vm1963, %v3330
    %3355 = vst.msk [vmem:[#allocation3 + $0x8] sm:$0xff] %vm1963, %v3331
    %3356 = vst.msk [vmem:[#allocation3 + $0x10] sm:$0xff] %vm1963, %v3332
    %3357 = vst.msk [vmem:[#allocation3 + $0x18] sm:$0xff] %vm1963, %v3333
    %3358 = vst.msk [vmem:[#allocation3 + $0x20] sm:$0xff] %vm1963, %v3334
    %3359 = vst.msk [vmem:[#allocation3 + $0x28] sm:$0xff] %vm1963, %v3335
    %3360 = vst.msk [vmem:[#allocation3 + $0x30] sm:$0xff] %vm1963, %v3336
    %3361 = vst.msk [vmem:[#allocation3 + $0x38] sm:$0xff] %vm1963, %v3337
    %3362 = vst.msk [vmem:[#allocation3 + $0x40] sm:$0xff] %vm1963, %v3338
    %3363 = vst.msk [vmem:[#allocation3 + $0x48] sm:$0xff] %vm1963, %v3339
    %3364 = vst.msk [vmem:[#allocation3 + $0x50] sm:$0xff] %vm1963, %v3340
    %3365 = vst.msk [vmem:[#allocation3 + $0x58] sm:$0xff] %vm1963, %v3341
    %3366 = vst.msk [vmem:[#allocation3 + $0x60] sm:$0xff] %vm1963, %v3342
    %3367 = vst.msk [vmem:[#allocation3 + $0x68] sm:$0xff] %vm1963, %v3343
    %3368 = vst.msk [vmem:[#allocation3 + $0x70] sm:$0xff] %vm1963, %v3344
    %3369 = vst.msk [vmem:[#allocation3 + $0x78] sm:$0xff] %vm1963, %v3345
    %3370 = vst.msk [vmem:[#allocation3 + $0x80] sm:$0xff] %vm1963, %v3346
    %3371 = vst.msk [vmem:[#allocation3 + $0x88] sm:$0xff] %vm1963, %v3347
    %3372 = vst.msk [vmem:[#allocation3 + $0x90] sm:$0xff] %vm1963, %v3348
    %3373 = vst.msk [vmem:[#allocation3 + $0x98] sm:$0xff] %vm1963, %v3349
    %3374 = vst.msk [vmem:[#allocation3 + $0xa0] sm:$0xff] %vm1963, %v3350
    %3375 = vst.msk [vmem:[#allocation3 + $0xa8] sm:$0xff] %vm1963, %v3351
    %3376 = vst.msk [vmem:[#allocation3 + $0xb0] sm:$0xff] %vm1963, %v3352
    %3377 = vst.msk [vmem:[#allocation3 + $0xb8] sm:$0xff] %vm1963, %v3353
    %s3378 = scalar_lea.vmem [#allocation2], 32
    %v3379 = vld [vmem:[%s3378] sm:$0xff]
    %v3380 = vld [vmem:[%s3378 + $0x10] sm:$0xff]
    %v3381 = vld [vmem:[%s3378 + $0x20] sm:$0xff]
    %v3382 = vld [vmem:[%s3378 + $0x30] sm:$0xff]
    %v3383 = vld [vmem:[%s3378 + $0x40] sm:$0xff]
    %v3384 = vld [vmem:[%s3378 + $0x50] sm:$0xff]
    %v3385 = vld [vmem:[%s3378 + $0x60] sm:$0xff]
    %v3386 = vld [vmem:[%s3378 + $0x70] sm:$0xff]
    %v3387 = vld [vmem:[%s3378 + $0x80] sm:$0xff]
    %v3388 = vld [vmem:[%s3378 + $0x90] sm:$0xff]
    %v3389 = vld [vmem:[%s3378 + $0xa0] sm:$0xff]
    %v3390 = vld [vmem:[%s3378 + $0xb0] sm:$0xff]
    %v3391 = vld [vmem:[%s3378 + $0xe0] sm:$0xff]
    %v3392 = vld [vmem:[%s3378 + $0xf0] sm:$0xff]
    %v3393 = vld [vmem:[%s3378 + $0x100] sm:$0xff]
    %v3394 = vld [vmem:[%s3378 + $0x110] sm:$0xff]
    %v3395 = vld [vmem:[%s3378 + $0x120] sm:$0xff]
    %v3396 = vld [vmem:[%s3378 + $0x130] sm:$0xff]
    %v3397 = vld [vmem:[%s3378 + $0x140] sm:$0xff]
    %v3398 = vld [vmem:[%s3378 + $0x150] sm:$0xff]
    %v3399 = vld [vmem:[%s3378 + $0x160] sm:$0xff]
    %v3400 = vld [vmem:[%s3378 + $0x170] sm:$0xff]
    %v3401 = vld [vmem:[%s3378 + $0x180] sm:$0xff]
    %v3402 = vld [vmem:[%s3378 + $0x190] sm:$0xff]
    %v3403 = vpack.c.bf16 %v3380, %v3379
    %v3404 = vpack.c.bf16 %v3382, %v3381
    %v3405 = vpack.c.bf16 %v3384, %v3383
    %v3406 = vpack.c.bf16 %v3386, %v3385
    %v3407 = vpack.c.bf16 %v3388, %v3387
    %v3408 = vpack.c.bf16 %v3390, %v3389
    %v3409 = vpack.c.bf16 %v3392, %v3391
    %v3410 = vpack.c.bf16 %v3394, %v3393
    %v3411 = vpack.c.bf16 %v3396, %v3395
    %v3412 = vpack.c.bf16 %v3398, %v3397
    %v3413 = vpack.c.bf16 %v3400, %v3399
    %v3414 = vpack.c.bf16 %v3402, %v3401
    %s3415 = scalar_lea.vmem %s1, 24
    %v3416 = vld [vmem:[%s3415] sm:$0xf]
    %v3418 = vsel %vm1649, %v3403, 0
    %v3421 = vsel %vm1649, %v3404, 0
    %v3424 = vsel %vm1649, %v3405, 0
    %v3427 = vsel %vm1649, %v3406, 0
    %v3430 = vsel %vm1649, %v3407, 0
    %v3433 = vsel %vm1649, %v3408, 0
    %v3436 = vsel %vm1649, %v3409, 0
    %v3439 = vsel %vm1649, %v3410, 0
    %v3442 = vsel %vm1649, %v3411, 0
    %v3445 = vsel %vm1649, %v3412, 0
    %v3448 = vsel %vm1649, %v3413, 0
    %v3451 = vsel %vm1649, %v3414, 0
    %v3454 = vsel %vm1830, %v3416, 0
    %3456 = vmatprep.subr.bf16.mxu0 0
    %3457 = vmatpush1.bf16.msra.mxu0 %v3454
    %3458 = vmatprep.subr.bf16.mxu0 0
    %3459 = vmatpush1.bf16.msra.mxu0 0
    %3460 = vmatprep.subr.bf16.mxu0 0
    %3461 = vmatpush1.bf16.msra.mxu0 0
    %3462 = vmatprep.subr.bf16.mxu0 0
    %3463 = vmatpush1.bf16.msra.mxu0 0
    %3464 = vmatprep.subr.bf16.mxu0 0
    %3465 = vmatpush1.bf16.msra.mxu0 0
    %3466 = vmatprep.subr.bf16.mxu0 0
    %3467 = vmatpush1.bf16.msra.mxu0 0
    %3468 = vmatprep.subr.bf16.mxu0 0
    %3469 = vmatpush1.bf16.msra.mxu0 0
    %3470 = vmatprep.subr.bf16.mxu0 0
    %3471 = vmatpush1.bf16.msra.mxu0 0
    %3472 = vmatprep.subr.bf16.mxu0 0
    %3473 = vmatpush1.bf16.msra.mxu0 0
    %3474 = vmatprep.subr.bf16.mxu0 0
    %3475 = vmatpush1.bf16.msra.mxu0 0
    %3476 = vmatprep.subr.bf16.mxu0 0
    %3477 = vmatpush1.bf16.msra.mxu0 0
    %3478 = vmatprep.subr.bf16.mxu0 0
    %3479 = vmatpush1.bf16.msra.mxu0 0
    %3480 = vmatprep.subr.bf16.mxu0 0
    %3481 = vmatpush1.bf16.msra.mxu0 0
    %3482 = vmatprep.subr.bf16.mxu0 0
    %3483 = vmatpush1.bf16.msra.mxu0 0
    %3484 = vmatprep.subr.bf16.mxu0 0
    %3485 = vmatpush1.bf16.msra.mxu0 0
    %3486 = vmatprep.subr.bf16.mxu0 0
    %3487 = vmatpush1.bf16.msra.mxu0 0
    %3488 = vmatprep.mubr.bf16.mxu0 0
    %3489 = vmatmul.mubr.bf16.gmra.mrb[0].mxu0 %v3418
    %v3490 = vpop.f32.mrb[0].mxu0
    %v3491 = vadd.f32 0.0, %v3490
    %v3492 = vpop.f32.mrb[0].mxu0
    %v3493 = vpop.f32.mrb[0].mxu0
    %v3494 = vadd.f32 0.0, %v3493
    %v3495 = vpop.f32.mrb[0].mxu0
    %3496 = vmatprep.mubr.bf16.mxu0 0
    %3497 = vmatmul.mubr.bf16.gmra.mrb[0].mxu0 %v3421
    %v3498 = vpop.f32.mrb[0].mxu0
    %v3499 = vadd.f32 0.0, %v3498
    %v3500 = vpop.f32.mrb[0].mxu0
    %v3501 = vpop.f32.mrb[0].mxu0
    %v3502 = vadd.f32 0.0, %v3501
    %v3503 = vpop.f32.mrb[0].mxu0
    %3504 = vmatprep.mubr.bf16.mxu0 0
    %3505 = vmatmul.mubr.bf16.gmra.mrb[0].mxu0 %v3424
    %v3506 = vpop.f32.mrb[0].mxu0
    %v3507 = vadd.f32 0.0, %v3506
    %v3508 = vpop.f32.mrb[0].mxu0
    %v3509 = vpop.f32.mrb[0].mxu0
    %v3510 = vadd.f32 0.0, %v3509
    %v3511 = vpop.f32.mrb[0].mxu0
    %3512 = vmatprep.mubr.bf16.mxu0 0
    %3513 = vmatmul.mubr.bf16.gmra.mrb[0].mxu0 %v3427
    %v3514 = vpop.f32.mrb[0].mxu0
    %v3515 = vadd.f32 0.0, %v3514
    %v3516 = vpop.f32.mrb[0].mxu0
    %v3517 = vpop.f32.mrb[0].mxu0
    %v3518 = vadd.f32 0.0, %v3517
    %v3519 = vpop.f32.mrb[0].mxu0
    %3520 = vmatprep.mubr.bf16.mxu0 0
    %3521 = vmatmul.mubr.bf16.gmra.mrb[0].mxu0 %v3430
    %v3522 = vpop.f32.mrb[0].mxu0
    %v3523 = vadd.f32 0.0, %v3522
    %v3524 = vpop.f32.mrb[0].mxu0
    %v3525 = vpop.f32.mrb[0].mxu0
    %v3526 = vadd.f32 0.0, %v3525
    %v3527 = vpop.f32.mrb[0].mxu0
    %3528 = vmatprep.mubr.bf16.mxu0 0
    %3529 = vmatmul.mubr.bf16.gmra.mrb[0].mxu0 %v3433
    %v3530 = vpop.f32.mrb[0].mxu0
    %v3531 = vadd.f32 0.0, %v3530
    %v3532 = vpop.f32.mrb[0].mxu0
    %v3533 = vpop.f32.mrb[0].mxu0
    %v3534 = vadd.f32 0.0, %v3533
    %v3535 = vpop.f32.mrb[0].mxu0
    %3536 = vmatprep.mubr.bf16.mxu0 0
    %3537 = vmatmul.mubr.bf16.gmra.mrb[0].mxu0 %v3436
    %v3538 = vpop.f32.mrb[0].mxu0
    %v3539 = vadd.f32 0.0, %v3538
    %v3540 = vpop.f32.mrb[0].mxu0
    %v3541 = vpop.f32.mrb[0].mxu0
    %v3542 = vadd.f32 0.0, %v3541
    %v3543 = vpop.f32.mrb[0].mxu0
    %3544 = vmatprep.mubr.bf16.mxu0 0
    %3545 = vmatmul.mubr.bf16.gmra.mrb[0].mxu0 %v3439
    %v3546 = vpop.f32.mrb[0].mxu0
    %v3547 = vadd.f32 0.0, %v3546
    %v3548 = vpop.f32.mrb[0].mxu0
    %v3549 = vpop.f32.mrb[0].mxu0
    %v3550 = vadd.f32 0.0, %v3549
    %v3551 = vpop.f32.mrb[0].mxu0
    %3552 = vmatprep.mubr.bf16.mxu0 0
    %3553 = vmatmul.mubr.bf16.gmra.mrb[0].mxu0 %v3442
    %v3554 = vpop.f32.mrb[0].mxu0
    %v3555 = vadd.f32 0.0, %v3554
    %v3556 = vpop.f32.mrb[0].mxu0
    %v3557 = vpop.f32.mrb[0].mxu0
    %v3558 = vadd.f32 0.0, %v3557
    %v3559 = vpop.f32.mrb[0].mxu0
    %3560 = vmatprep.mubr.bf16.mxu0 0
    %3561 = vmatmul.mubr.bf16.gmra.mrb[0].mxu0 %v3445
    %v3562 = vpop.f32.mrb[0].mxu0
    %v3563 = vadd.f32 0.0, %v3562
    %v3564 = vpop.f32.mrb[0].mxu0
    %v3565 = vpop.f32.mrb[0].mxu0
    %v3566 = vadd.f32 0.0, %v3565
    %v3567 = vpop.f32.mrb[0].mxu0
    %3568 = vmatprep.mubr.bf16.mxu0 0
    %3569 = vmatmul.mubr.bf16.gmra.mrb[0].mxu0 %v3448
    %v3570 = vpop.f32.mrb[0].mxu0
    %v3571 = vadd.f32 0.0, %v3570
    %v3572 = vpop.f32.mrb[0].mxu0
    %v3573 = vpop.f32.mrb[0].mxu0
    %v3574 = vadd.f32 0.0, %v3573
    %v3575 = vpop.f32.mrb[0].mxu0
    %3576 = vmatprep.mubr.bf16.mxu0 0
    %3577 = vmatmul.mubr.bf16.gmra.mrb[0].mxu0 %v3451
    %v3578 = vpop.f32.mrb[0].mxu0
    %v3579 = vadd.f32 0.0, %v3578
    %v3580 = vpop.f32.mrb[0].mxu0
    %v3581 = vpop.f32.mrb[0].mxu0
    %v3582 = vadd.f32 0.0, %v3581
    %v3583 = vpop.f32.mrb[0].mxu0
    %3584 = vdwg.mxu0
    %v3585 = vld [vmem:[#allocation3] sm:$0xff]
    %v3586 = vld [vmem:[#allocation3 + $0x8] sm:$0xff]
    %v3587 = vld [vmem:[#allocation3 + $0x10] sm:$0xff]
    %v3588 = vld [vmem:[#allocation3 + $0x18] sm:$0xff]
    %v3589 = vld [vmem:[#allocation3 + $0x20] sm:$0xff]
    %v3590 = vld [vmem:[#allocation3 + $0x28] sm:$0xff]
    %v3591 = vld [vmem:[#allocation3 + $0x30] sm:$0xff]
    %v3592 = vld [vmem:[#allocation3 + $0x38] sm:$0xff]
    %v3593 = vld [vmem:[#allocation3 + $0x40] sm:$0xff]
    %v3594 = vld [vmem:[#allocation3 + $0x48] sm:$0xff]
    %v3595 = vld [vmem:[#allocation3 + $0x50] sm:$0xff]
    %v3596 = vld [vmem:[#allocation3 + $0x58] sm:$0xff]
    %v3597 = vld [vmem:[#allocation3 + $0x60] sm:$0xff]
    %v3598 = vld [vmem:[#allocation3 + $0x68] sm:$0xff]
    %v3599 = vld [vmem:[#allocation3 + $0x70] sm:$0xff]
    %v3600 = vld [vmem:[#allocation3 + $0x78] sm:$0xff]
    %v3601 = vld [vmem:[#allocation3 + $0x80] sm:$0xff]
    %v3602 = vld [vmem:[#allocation3 + $0x88] sm:$0xff]
    %v3603 = vld [vmem:[#allocation3 + $0x90] sm:$0xff]
    %v3604 = vld [vmem:[#allocation3 + $0x98] sm:$0xff]
    %v3605 = vld [vmem:[#allocation3 + $0xa0] sm:$0xff]
    %v3606 = vld [vmem:[#allocation3 + $0xa8] sm:$0xff]
    %v3607 = vld [vmem:[#allocation3 + $0xb0] sm:$0xff]
    %v3608 = vld [vmem:[#allocation3 + $0xb8] sm:$0xff]
    %v3609 = vadd.f32 %v3585, %v3491
    %v3610 = vadd.f32 %v3586, %v3494
    %v3611 = vadd.f32 %v3587, %v3499
    %v3612 = vadd.f32 %v3588, %v3502
    %v3613 = vadd.f32 %v3589, %v3507
    %v3614 = vadd.f32 %v3590, %v3510
    %v3615 = vadd.f32 %v3591, %v3515
    %v3616 = vadd.f32 %v3592, %v3518
    %v3617 = vadd.f32 %v3593, %v3523
    %v3618 = vadd.f32 %v3594, %v3526
    %v3619 = vadd.f32 %v3595, %v3531
    %v3620 = vadd.f32 %v3596, %v3534
    %v3621 = vadd.f32 %v3597, %v3539
    %v3622 = vadd.f32 %v3598, %v3542
    %v3623 = vadd.f32 %v3599, %v3547
    %v3624 = vadd.f32 %v3600, %v3550
    %v3625 = vadd.f32 %v3601, %v3555
    %v3626 = vadd.f32 %v3602, %v3558
    %v3627 = vadd.f32 %v3603, %v3563
    %v3628 = vadd.f32 %v3604, %v3566
    %v3629 = vadd.f32 %v3605, %v3571
    %v3630 = vadd.f32 %v3606, %v3574
    %v3631 = vadd.f32 %v3607, %v3579
    %v3632 = vadd.f32 %v3608, %v3582
    %3633 = vst.msk [vmem:[#allocation3] sm:$0xff] %vm1963, %v3609
    %3634 = vst.msk [vmem:[#allocation3 + $0x8] sm:$0xff] %vm1963, %v3610
    %3635 = vst.msk [vmem:[#allocation3 + $0x10] sm:$0xff] %vm1963, %v3611
    %3636 = vst.msk [vmem:[#allocation3 + $0x18] sm:$0xff] %vm1963, %v3612
    %3637 = vst.msk [vmem:[#allocation3 + $0x20] sm:$0xff] %vm1963, %v3613
    %3638 = vst.msk [vmem:[#allocation3 + $0x28] sm:$0xff] %vm1963, %v3614
    %3639 = vst.msk [vmem:[#allocation3 + $0x30] sm:$0xff] %vm1963, %v3615
    %3640 = vst.msk [vmem:[#allocation3 + $0x38] sm:$0xff] %vm1963, %v3616
    %3641 = vst.msk [vmem:[#allocation3 + $0x40] sm:$0xff] %vm1963, %v3617
    %3642 = vst.msk [vmem:[#allocation3 + $0x48] sm:$0xff] %vm1963, %v3618
    %3643 = vst.msk [vmem:[#allocation3 + $0x50] sm:$0xff] %vm1963, %v3619
    %3644 = vst.msk [vmem:[#allocation3 + $0x58] sm:$0xff] %vm1963, %v3620
    %3645 = vst.msk [vmem:[#allocation3 + $0x60] sm:$0xff] %vm1963, %v3621
    %3646 = vst.msk [vmem:[#allocation3 + $0x68] sm:$0xff] %vm1963, %v3622
    %3647 = vst.msk [vmem:[#allocation3 + $0x70] sm:$0xff] %vm1963, %v3623
    %3648 = vst.msk [vmem:[#allocation3 + $0x78] sm:$0xff] %vm1963, %v3624
    %3649 = vst.msk [vmem:[#allocation3 + $0x80] sm:$0xff] %vm1963, %v3625
    %3650 = vst.msk [vmem:[#allocation3 + $0x88] sm:$0xff] %vm1963, %v3626
    %3651 = vst.msk [vmem:[#allocation3 + $0x90] sm:$0xff] %vm1963, %v3627
    %3652 = vst.msk [vmem:[#allocation3 + $0x98] sm:$0xff] %vm1963, %v3628
    %3653 = vst.msk [vmem:[#allocation3 + $0xa0] sm:$0xff] %vm1963, %v3629
    %3654 = vst.msk [vmem:[#allocation3 + $0xa8] sm:$0xff] %vm1963, %v3630
    %3655 = vst.msk [vmem:[#allocation3 + $0xb0] sm:$0xff] %vm1963, %v3631
    %3656 = vst.msk [vmem:[#allocation3 + $0xb8] sm:$0xff] %vm1963, %v3632
    %v3657 = vld [vmem:[%s3378 + $0x1] sm:$0xff]
    %v3658 = vld [vmem:[%s3378 + $0x11] sm:$0xff]
    %v3659 = vld [vmem:[%s3378 + $0x21] sm:$0xff]
    %v3660 = vld [vmem:[%s3378 + $0x31] sm:$0xff]
    %v3661 = vld [vmem:[%s3378 + $0x41] sm:$0xff]
    %v3662 = vld [vmem:[%s3378 + $0x51] sm:$0xff]
    %v3663 = vld [vmem:[%s3378 + $0x61] sm:$0xff]
    %v3664 = vld [vmem:[%s3378 + $0x71] sm:$0xff]
    %v3665 = vld [vmem:[%s3378 + $0x81] sm:$0xff]
    %v3666 = vld [vmem:[%s3378 + $0x91] sm:$0xff]
    %v3667 = vld [vmem:[%s3378 + $0xa1] sm:$0xff]
    %v3668 = vld [vmem:[%s3378 + $0xb1] sm:$0xff]
    %v3669 = vld [vmem:[%s3378 + $0xe1] sm:$0xff]
    %v3670 = vld [vmem:[%s3378 + $0xf1] sm:$0xff]
    %v3671 = vld [vmem:[%s3378 + $0x101] sm:$0xff]
    %v3672 = vld [vmem:[%s3378 + $0x111] sm:$0xff]
    %v3673 = vld [vmem:[%s3378 + $0x121] sm:$0xff]
    %v3674 = vld [vmem:[%s3378 + $0x131] sm:$0xff]
    %v3675 = vld [vmem:[%s3378 + $0x141] sm:$0xff]
    %v3676 = vld [vmem:[%s3378 + $0x151] sm:$0xff]
    %v3677 = vld [vmem:[%s3378 + $0x161] sm:$0xff]
    %v3678 = vld [vmem:[%s3378 + $0x171] sm:$0xff]
    %v3679 = vld [vmem:[%s3378 + $0x181] sm:$0xff]
    %v3680 = vld [vmem:[%s3378 + $0x191] sm:$0xff]
    %v3681 = vpack.c.bf16 %v3658, %v3657
    %v3682 = vpack.c.bf16 %v3660, %v3659
    %v3683 = vpack.c.bf16 %v3662, %v3661
    %v3684 = vpack.c.bf16 %v3664, %v3663
    %v3685 = vpack.c.bf16 %v3666, %v3665
    %v3686 = vpack.c.bf16 %v3668, %v3667
    %v3687 = vpack.c.bf16 %v3670, %v3669
    %v3688 = vpack.c.bf16 %v3672, %v3671
    %v3689 = vpack.c.bf16 %v3674, %v3673
    %v3690 = vpack.c.bf16 %v3676, %v3675
    %v3691 = vpack.c.bf16 %v3678, %v3677
    %v3692 = vpack.c.bf16 %v3680, %v3679
    %s3693 = scalar_lea.vmem %s1, 28
    %v3694 = vld [vmem:[%s3693] sm:$0xf]
    %v3696 = vsel %vm1649, %v3681, 0
    %v3699 = vsel %vm1649, %v3682, 0
    %v3702 = vsel %vm1649, %v3683, 0
    %v3705 = vsel %vm1649, %v3684, 0
    %v3708 = vsel %vm1649, %v3685, 0
    %v3711 = vsel %vm1649, %v3686, 0
    %v3714 = vsel %vm1649, %v3687, 0
    %v3717 = vsel %vm1649, %v3688, 0
    %v3720 = vsel %vm1649, %v3689, 0
    %v3723 = vsel %vm1649, %v3690, 0
    %v3726 = vsel %vm1649, %v3691, 0
    %v3729 = vsel %vm1649, %v3692, 0
    %v3732 = vsel %vm1830, %v3694, 0
    %3734 = vmatprep.subr.bf16.mxu0 0
    %3735 = vmatpush1.bf16.msra.mxu0 %v3732
    %3736 = vmatprep.subr.bf16.mxu0 0
    %3737 = vmatpush1.bf16.msra.mxu0 0
    %3738 = vmatprep.subr.bf16.mxu0 0
    %3739 = vmatpush1.bf16.msra.mxu0 0
    %3740 = vmatprep.subr.bf16.mxu0 0
    %3741 = vmatpush1.bf16.msra.mxu0 0
    %3742 = vmatprep.subr.bf16.mxu0 0
    %3743 = vmatpush1.bf16.msra.mxu0 0
    %3744 = vmatprep.subr.bf16.mxu0 0
    %3745 = vmatpush1.bf16.msra.mxu0 0
    %3746 = vmatprep.subr.bf16.mxu0 0
    %3747 = vmatpush1.bf16.msra.mxu0 0
    %3748 = vmatprep.subr.bf16.mxu0 0
    %3749 = vmatpush1.bf16.msra.mxu0 0
    %3750 = vmatprep.subr.bf16.mxu0 0
    %3751 = vmatpush1.bf16.msra.mxu0 0
    %3752 = vmatprep.subr.bf16.mxu0 0
    %3753 = vmatpush1.bf16.msra.mxu0 0
    %3754 = vmatprep.subr.bf16.mxu0 0
    %3755 = vmatpush1.bf16.msra.mxu0 0
    %3756 = vmatprep.subr.bf16.mxu0 0
    %3757 = vmatpush1.bf16.msra.mxu0 0
    %3758 = vmatprep.subr.bf16.mxu0 0
    %3759 = vmatpush1.bf16.msra.mxu0 0
    %3760 = vmatprep.subr.bf16.mxu0 0
    %3761 = vmatpush1.bf16.msra.mxu0 0
    %3762 = vmatprep.subr.bf16.mxu0 0
    %3763 = vmatpush1.bf16.msra.mxu0 0
    %3764 = vmatprep.subr.bf16.mxu0 0
    %3765 = vmatpush1.bf16.msra.mxu0 0
    %3766 = vmatprep.mubr.bf16.mxu0 0
    %3767 = vmatmul.mubr.bf16.gmra.mrb[0].mxu0 %v3696
    %v3768 = vpop.f32.mrb[0].mxu0
    %v3769 = vadd.f32 0.0, %v3768
    %v3770 = vpop.f32.mrb[0].mxu0
    %v3771 = vpop.f32.mrb[0].mxu0
    %v3772 = vadd.f32 0.0, %v3771
    %v3773 = vpop.f32.mrb[0].mxu0
    %3774 = vmatprep.mubr.bf16.mxu0 0
    %3775 = vmatmul.mubr.bf16.gmra.mrb[0].mxu0 %v3699
    %v3776 = vpop.f32.mrb[0].mxu0
    %v3777 = vadd.f32 0.0, %v3776
    %v3778 = vpop.f32.mrb[0].mxu0
    %v3779 = vpop.f32.mrb[0].mxu0
    %v3780 = vadd.f32 0.0, %v3779
    %v3781 = vpop.f32.mrb[0].mxu0
    %3782 = vmatprep.mubr.bf16.mxu0 0
    %3783 = vmatmul.mubr.bf16.gmra.mrb[0].mxu0 %v3702
    %v3784 = vpop.f32.mrb[0].mxu0
    %v3785 = vadd.f32 0.0, %v3784
    %v3786 = vpop.f32.mrb[0].mxu0
    %v3787 = vpop.f32.mrb[0].mxu0
    %v3788 = vadd.f32 0.0, %v3787
    %v3789 = vpop.f32.mrb[0].mxu0
    %3790 = vmatprep.mubr.bf16.mxu0 0
    %3791 = vmatmul.mubr.bf16.gmra.mrb[0].mxu0 %v3705
    %v3792 = vpop.f32.mrb[0].mxu0
    %v3793 = vadd.f32 0.0, %v3792
    %v3794 = vpop.f32.mrb[0].mxu0
    %v3795 = vpop.f32.mrb[0].mxu0
    %v3796 = vadd.f32 0.0, %v3795
    %v3797 = vpop.f32.mrb[0].mxu0
    %3798 = vmatprep.mubr.bf16.mxu0 0
    %3799 = vmatmul.mubr.bf16.gmra.mrb[0].mxu0 %v3708
    %v3800 = vpop.f32.mrb[0].mxu0
    %v3801 = vadd.f32 0.0, %v3800
    %v3802 = vpop.f32.mrb[0].mxu0
    %v3803 = vpop.f32.mrb[0].mxu0
    %v3804 = vadd.f32 0.0, %v3803
    %v3805 = vpop.f32.mrb[0].mxu0
    %3806 = vmatprep.mubr.bf16.mxu0 0
    %3807 = vmatmul.mubr.bf16.gmra.mrb[0].mxu0 %v3711
    %v3808 = vpop.f32.mrb[0].mxu0
    %v3809 = vadd.f32 0.0, %v3808
    %v3810 = vpop.f32.mrb[0].mxu0
    %v3811 = vpop.f32.mrb[0].mxu0
    %v3812 = vadd.f32 0.0, %v3811
    %v3813 = vpop.f32.mrb[0].mxu0
    %3814 = vmatprep.mubr.bf16.mxu0 0
    %3815 = vmatmul.mubr.bf16.gmra.mrb[0].mxu0 %v3714
    %v3816 = vpop.f32.mrb[0].mxu0
    %v3817 = vadd.f32 0.0, %v3816
    %v3818 = vpop.f32.mrb[0].mxu0
    %v3819 = vpop.f32.mrb[0].mxu0
    %v3820 = vadd.f32 0.0, %v3819
    %v3821 = vpop.f32.mrb[0].mxu0
    %3822 = vmatprep.mubr.bf16.mxu0 0
    %3823 = vmatmul.mubr.bf16.gmra.mrb[0].mxu0 %v3717
    %v3824 = vpop.f32.mrb[0].mxu0
    %v3825 = vadd.f32 0.0, %v3824
    %v3826 = vpop.f32.mrb[0].mxu0
    %v3827 = vpop.f32.mrb[0].mxu0
    %v3828 = vadd.f32 0.0, %v3827
    %v3829 = vpop.f32.mrb[0].mxu0
    %3830 = vmatprep.mubr.bf16.mxu0 0
    %3831 = vmatmul.mubr.bf16.gmra.mrb[0].mxu0 %v3720
    %v3832 = vpop.f32.mrb[0].mxu0
    %v3833 = vadd.f32 0.0, %v3832
    %v3834 = vpop.f32.mrb[0].mxu0
    %v3835 = vpop.f32.mrb[0].mxu0
    %v3836 = vadd.f32 0.0, %v3835
    %v3837 = vpop.f32.mrb[0].mxu0
    %3838 = vmatprep.mubr.bf16.mxu0 0
    %3839 = vmatmul.mubr.bf16.gmra.mrb[0].mxu0 %v3723
    %v3840 = vpop.f32.mrb[0].mxu0
    %v3841 = vadd.f32 0.0, %v3840
    %v3842 = vpop.f32.mrb[0].mxu0
    %v3843 = vpop.f32.mrb[0].mxu0
    %v3844 = vadd.f32 0.0, %v3843
    %v3845 = vpop.f32.mrb[0].mxu0
    %3846 = vmatprep.mubr.bf16.mxu0 0
    %3847 = vmatmul.mubr.bf16.gmra.mrb[0].mxu0 %v3726
    %v3848 = vpop.f32.mrb[0].mxu0
    %v3849 = vadd.f32 0.0, %v3848
    %v3850 = vpop.f32.mrb[0].mxu0
    %v3851 = vpop.f32.mrb[0].mxu0
    %v3852 = vadd.f32 0.0, %v3851
    %v3853 = vpop.f32.mrb[0].mxu0
    %3854 = vmatprep.mubr.bf16.mxu0 0
    %3855 = vmatmul.mubr.bf16.gmra.mrb[0].mxu0 %v3729
    %v3856 = vpop.f32.mrb[0].mxu0
    %v3857 = vadd.f32 0.0, %v3856
    %v3858 = vpop.f32.mrb[0].mxu0
    %v3859 = vpop.f32.mrb[0].mxu0
    %v3860 = vadd.f32 0.0, %v3859
    %v3861 = vpop.f32.mrb[0].mxu0
    %3862 = vdwg.mxu0
    %v3863 = vld [vmem:[#allocation3] sm:$0xff]
    %v3864 = vld [vmem:[#allocation3 + $0x8] sm:$0xff]
    %v3865 = vld [vmem:[#allocation3 + $0x10] sm:$0xff]
    %v3866 = vld [vmem:[#allocation3 + $0x18] sm:$0xff]
    %v3867 = vld [vmem:[#allocation3 + $0x20] sm:$0xff]
    %v3868 = vld [vmem:[#allocation3 + $0x28] sm:$0xff]
    %v3869 = vld [vmem:[#allocation3 + $0x30] sm:$0xff]
    %v3870 = vld [vmem:[#allocation3 + $0x38] sm:$0xff]
    %v3871 = vld [vmem:[#allocation3 + $0x40] sm:$0xff]
    %v3872 = vld [vmem:[#allocation3 + $0x48] sm:$0xff]
    %v3873 = vld [vmem:[#allocation3 + $0x50] sm:$0xff]
    %v3874 = vld [vmem:[#allocation3 + $0x58] sm:$0xff]
    %v3875 = vld [vmem:[#allocation3 + $0x60] sm:$0xff]
    %v3876 = vld [vmem:[#allocation3 + $0x68] sm:$0xff]
    %v3877 = vld [vmem:[#allocation3 + $0x70] sm:$0xff]
    %v3878 = vld [vmem:[#allocation3 + $0x78] sm:$0xff]
    %v3879 = vld [vmem:[#allocation3 + $0x80] sm:$0xff]
    %v3880 = vld [vmem:[#allocation3 + $0x88] sm:$0xff]
    %v3881 = vld [vmem:[#allocation3 + $0x90] sm:$0xff]
    %v3882 = vld [vmem:[#allocation3 + $0x98] sm:$0xff]
    %v3883 = vld [vmem:[#allocation3 + $0xa0] sm:$0xff]
    %v3884 = vld [vmem:[#allocation3 + $0xa8] sm:$0xff]
    %v3885 = vld [vmem:[#allocation3 + $0xb0] sm:$0xff]
    %v3886 = vld [vmem:[#allocation3 + $0xb8] sm:$0xff]
    %v3887 = vadd.f32 %v3863, %v3769
    %v3888 = vadd.f32 %v3864, %v3772
    %v3889 = vadd.f32 %v3865, %v3777
    %v3890 = vadd.f32 %v3866, %v3780
    %v3891 = vadd.f32 %v3867, %v3785
    %v3892 = vadd.f32 %v3868, %v3788
    %v3893 = vadd.f32 %v3869, %v3793
    %v3894 = vadd.f32 %v3870, %v3796
    %v3895 = vadd.f32 %v3871, %v3801
    %v3896 = vadd.f32 %v3872, %v3804
    %v3897 = vadd.f32 %v3873, %v3809
    %v3898 = vadd.f32 %v3874, %v3812
    %v3899 = vadd.f32 %v3875, %v3817
    %v3900 = vadd.f32 %v3876, %v3820
    %v3901 = vadd.f32 %v3877, %v3825
    %v3902 = vadd.f32 %v3878, %v3828
    %v3903 = vadd.f32 %v3879, %v3833
    %v3904 = vadd.f32 %v3880, %v3836
    %v3905 = vadd.f32 %v3881, %v3841
    %v3906 = vadd.f32 %v3882, %v3844
    %v3907 = vadd.f32 %v3883, %v3849
    %v3908 = vadd.f32 %v3884, %v3852
    %v3909 = vadd.f32 %v3885, %v3857
    %v3910 = vadd.f32 %v3886, %v3860
    %3911 = vst.msk [vmem:[#allocation3] sm:$0xff] %vm1963, %v3887
    %3912 = vst.msk [vmem:[#allocation3 + $0x8] sm:$0xff] %vm1963, %v3888
    %3913 = vst.msk [vmem:[#allocation3 + $0x10] sm:$0xff] %vm1963, %v3889
    %3914 = vst.msk [vmem:[#allocation3 + $0x18] sm:$0xff] %vm1963, %v3890
    %3915 = vst.msk [vmem:[#allocation3 + $0x20] sm:$0xff] %vm1963, %v3891
    %3916 = vst.msk [vmem:[#allocation3 + $0x28] sm:$0xff] %vm1963, %v3892
    %3917 = vst.msk [vmem:[#allocation3 + $0x30] sm:$0xff] %vm1963, %v3893
    %3918 = vst.msk [vmem:[#allocation3 + $0x38] sm:$0xff] %vm1963, %v3894
    %3919 = vst.msk [vmem:[#allocation3 + $0x40] sm:$0xff] %vm1963, %v3895
    %3920 = vst.msk [vmem:[#allocation3 + $0x48] sm:$0xff] %vm1963, %v3896
    %3921 = vst.msk [vmem:[#allocation3 + $0x50] sm:$0xff] %vm1963, %v3897
    %3922 = vst.msk [vmem:[#allocation3 + $0x58] sm:$0xff] %vm1963, %v3898
    %3923 = vst.msk [vmem:[#allocation3 + $0x60] sm:$0xff] %vm1963, %v3899
    %3924 = vst.msk [vmem:[#allocation3 + $0x68] sm:$0xff] %vm1963, %v3900
    %3925 = vst.msk [vmem:[#allocation3 + $0x70] sm:$0xff] %vm1963, %v3901
    %3926 = vst.msk [vmem:[#allocation3 + $0x78] sm:$0xff] %vm1963, %v3902
    %3927 = vst.msk [vmem:[#allocation3 + $0x80] sm:$0xff] %vm1963, %v3903
    %3928 = vst.msk [vmem:[#allocation3 + $0x88] sm:$0xff] %vm1963, %v3904
    %3929 = vst.msk [vmem:[#allocation3 + $0x90] sm:$0xff] %vm1963, %v3905
    %3930 = vst.msk [vmem:[#allocation3 + $0x98] sm:$0xff] %vm1963, %v3906
    %3931 = vst.msk [vmem:[#allocation3 + $0xa0] sm:$0xff] %vm1963, %v3907
    %3932 = vst.msk [vmem:[#allocation3 + $0xa8] sm:$0xff] %vm1963, %v3908
    %3933 = vst.msk [vmem:[#allocation3 + $0xb0] sm:$0xff] %vm1963, %v3909
    %3934 = vst.msk [vmem:[#allocation3 + $0xb8] sm:$0xff] %vm1963, %v3910
    %v3935 = vld [vmem:[%s3378 + $0x2] sm:$0xff]
    %v3936 = vld [vmem:[%s3378 + $0x12] sm:$0xff]
    %v3937 = vld [vmem:[%s3378 + $0x22] sm:$0xff]
    %v3938 = vld [vmem:[%s3378 + $0x32] sm:$0xff]
    %v3939 = vld [vmem:[%s3378 + $0x42] sm:$0xff]
    %v3940 = vld [vmem:[%s3378 + $0x52] sm:$0xff]
    %v3941 = vld [vmem:[%s3378 + $0x62] sm:$0xff]
    %v3942 = vld [vmem:[%s3378 + $0x72] sm:$0xff]
    %v3943 = vld [vmem:[%s3378 + $0x82] sm:$0xff]
    %v3944 = vld [vmem:[%s3378 + $0x92] sm:$0xff]
    %v3945 = vld [vmem:[%s3378 + $0xa2] sm:$0xff]
    %v3946 = vld [vmem:[%s3378 + $0xb2] sm:$0xff]
    %v3947 = vld [vmem:[%s3378 + $0xe2] sm:$0xff]
    %v3948 = vld [vmem:[%s3378 + $0xf2] sm:$0xff]
    %v3949 = vld [vmem:[%s3378 + $0x102] sm:$0xff]
    %v3950 = vld [vmem:[%s3378 + $0x112] sm:$0xff]
    %v3951 = vld [vmem:[%s3378 + $0x122] sm:$0xff]
    %v3952 = vld [vmem:[%s3378 + $0x132] sm:$0xff]
    %v3953 = vld [vmem:[%s3378 + $0x142] sm:$0xff]
    %v3954 = vld [vmem:[%s3378 + $0x152] sm:$0xff]
    %v3955 = vld [vmem:[%s3378 + $0x162] sm:$0xff]
    %v3956 = vld [vmem:[%s3378 + $0x172] sm:$0xff]
    %v3957 = vld [vmem:[%s3378 + $0x182] sm:$0xff]
    %v3958 = vld [vmem:[%s3378 + $0x192] sm:$0xff]
    %v3959 = vpack.c.bf16 %v3936, %v3935
    %v3960 = vpack.c.bf16 %v3938, %v3937
    %v3961 = vpack.c.bf16 %v3940, %v3939
    %v3962 = vpack.c.bf16 %v3942, %v3941
    %v3963 = vpack.c.bf16 %v3944, %v3943
    %v3964 = vpack.c.bf16 %v3946, %v3945
    %v3965 = vpack.c.bf16 %v3948, %v3947
    %v3966 = vpack.c.bf16 %v3950, %v3949
    %v3967 = vpack.c.bf16 %v3952, %v3951
    %v3968 = vpack.c.bf16 %v3954, %v3953
    %v3969 = vpack.c.bf16 %v3956, %v3955
    %v3970 = vpack.c.bf16 %v3958, %v3957
    %s3971 = scalar_lea.vmem %s1, 32
    %v3972 = vld [vmem:[%s3971] sm:$0xf]
    %v3974 = vsel %vm1649, %v3959, 0
    %v3977 = vsel %vm1649, %v3960, 0
    %v3980 = vsel %vm1649, %v3961, 0
    %v3983 = vsel %vm1649, %v3962, 0
    %v3986 = vsel %vm1649, %v3963, 0
    %v3989 = vsel %vm1649, %v3964, 0
    %v3992 = vsel %vm1649, %v3965, 0
    %v3995 = vsel %vm1649, %v3966, 0
    %v3998 = vsel %vm1649, %v3967, 0
    %v4001 = vsel %vm1649, %v3968, 0
    %v4004 = vsel %vm1649, %v3969, 0
    %v4007 = vsel %vm1649, %v3970, 0
    %v4010 = vsel %vm1830, %v3972, 0
    %4012 = vmatprep.subr.bf16.mxu0 0
    %4013 = vmatpush1.bf16.msra.mxu0 %v4010
    %4014 = vmatprep.subr.bf16.mxu0 0
    %4015 = vmatpush1.bf16.msra.mxu0 0
    %4016 = vmatprep.subr.bf16.mxu0 0
    %4017 = vmatpush1.bf16.msra.mxu0 0
    %4018 = vmatprep.subr.bf16.mxu0 0
    %4019 = vmatpush1.bf16.msra.mxu0 0
    %4020 = vmatprep.subr.bf16.mxu0 0
    %4021 = vmatpush1.bf16.msra.mxu0 0
    %4022 = vmatprep.subr.bf16.mxu0 0
    %4023 = vmatpush1.bf16.msra.mxu0 0
    %4024 = vmatprep.subr.bf16.mxu0 0
    %4025 = vmatpush1.bf16.msra.mxu0 0
    %4026 = vmatprep.subr.bf16.mxu0 0
    %4027 = vmatpush1.bf16.msra.mxu0 0
    %4028 = vmatprep.subr.bf16.mxu0 0
    %4029 = vmatpush1.bf16.msra.mxu0 0
    %4030 = vmatprep.subr.bf16.mxu0 0
    %4031 = vmatpush1.bf16.msra.mxu0 0
    %4032 = vmatprep.subr.bf16.mxu0 0
    %4033 = vmatpush1.bf16.msra.mxu0 0
    %4034 = vmatprep.subr.bf16.mxu0 0
    %4035 = vmatpush1.bf16.msra.mxu0 0
    %4036 = vmatprep.subr.bf16.mxu0 0
    %4037 = vmatpush1.bf16.msra.mxu0 0
    %4038 = vmatprep.subr.bf16.mxu0 0
    %4039 = vmatpush1.bf16.msra.mxu0 0
    %4040 = vmatprep.subr.bf16.mxu0 0
    %4041 = vmatpush1.bf16.msra.mxu0 0
    %4042 = vmatprep.subr.bf16.mxu0 0
    %4043 = vmatpush1.bf16.msra.mxu0 0
    %4044 = vmatprep.mubr.bf16.mxu0 0
    %4045 = vmatmul.mubr.bf16.gmra.mrb[0].mxu0 %v3974
    %v4046 = vpop.f32.mrb[0].mxu0
    %v4047 = vadd.f32 0.0, %v4046
    %v4048 = vpop.f32.mrb[0].mxu0
    %v4049 = vpop.f32.mrb[0].mxu0
    %v4050 = vadd.f32 0.0, %v4049
    %v4051 = vpop.f32.mrb[0].mxu0
    %4052 = vmatprep.mubr.bf16.mxu0 0
    %4053 = vmatmul.mubr.bf16.gmra.mrb[0].mxu0 %v3977
    %v4054 = vpop.f32.mrb[0].mxu0
    %v4055 = vadd.f32 0.0, %v4054
    %v4056 = vpop.f32.mrb[0].mxu0
    %v4057 = vpop.f32.mrb[0].mxu0
    %v4058 = vadd.f32 0.0, %v4057
    %v4059 = vpop.f32.mrb[0].mxu0
    %4060 = vmatprep.mubr.bf16.mxu0 0
    %4061 = vmatmul.mubr.bf16.gmra.mrb[0].mxu0 %v3980
    %v4062 = vpop.f32.mrb[0].mxu0
    %v4063 = vadd.f32 0.0, %v4062
    %v4064 = vpop.f32.mrb[0].mxu0
    %v4065 = vpop.f32.mrb[0].mxu0
    %v4066 = vadd.f32 0.0, %v4065
    %v4067 = vpop.f32.mrb[0].mxu0
    %4068 = vmatprep.mubr.bf16.mxu0 0
    %4069 = vmatmul.mubr.bf16.gmra.mrb[0].mxu0 %v3983
    %v4070 = vpop.f32.mrb[0].mxu0
    %v4071 = vadd.f32 0.0, %v4070
    %v4072 = vpop.f32.mrb[0].mxu0
    %v4073 = vpop.f32.mrb[0].mxu0
    %v4074 = vadd.f32 0.0, %v4073
    %v4075 = vpop.f32.mrb[0].mxu0
    %4076 = vmatprep.mubr.bf16.mxu0 0
    %4077 = vmatmul.mubr.bf16.gmra.mrb[0].mxu0 %v3986
    %v4078 = vpop.f32.mrb[0].mxu0
    %v4079 = vadd.f32 0.0, %v4078
    %v4080 = vpop.f32.mrb[0].mxu0
    %v4081 = vpop.f32.mrb[0].mxu0
    %v4082 = vadd.f32 0.0, %v4081
    %v4083 = vpop.f32.mrb[0].mxu0
    %4084 = vmatprep.mubr.bf16.mxu0 0
    %4085 = vmatmul.mubr.bf16.gmra.mrb[0].mxu0 %v3989
    %v4086 = vpop.f32.mrb[0].mxu0
    %v4087 = vadd.f32 0.0, %v4086
    %v4088 = vpop.f32.mrb[0].mxu0
    %v4089 = vpop.f32.mrb[0].mxu0
    %v4090 = vadd.f32 0.0, %v4089
    %v4091 = vpop.f32.mrb[0].mxu0
    %4092 = vmatprep.mubr.bf16.mxu0 0
    %4093 = vmatmul.mubr.bf16.gmra.mrb[0].mxu0 %v3992
    %v4094 = vpop.f32.mrb[0].mxu0
    %v4095 = vadd.f32 0.0, %v4094
    %v4096 = vpop.f32.mrb[0].mxu0
    %v4097 = vpop.f32.mrb[0].mxu0
    %v4098 = vadd.f32 0.0, %v4097
    %v4099 = vpop.f32.mrb[0].mxu0
    %4100 = vmatprep.mubr.bf16.mxu0 0
    %4101 = vmatmul.mubr.bf16.gmra.mrb[0].mxu0 %v3995
    %v4102 = vpop.f32.mrb[0].mxu0
    %v4103 = vadd.f32 0.0, %v4102
    %v4104 = vpop.f32.mrb[0].mxu0
    %v4105 = vpop.f32.mrb[0].mxu0
    %v4106 = vadd.f32 0.0, %v4105
    %v4107 = vpop.f32.mrb[0].mxu0
    %4108 = vmatprep.mubr.bf16.mxu0 0
    %4109 = vmatmul.mubr.bf16.gmra.mrb[0].mxu0 %v3998
    %v4110 = vpop.f32.mrb[0].mxu0
    %v4111 = vadd.f32 0.0, %v4110
    %v4112 = vpop.f32.mrb[0].mxu0
    %v4113 = vpop.f32.mrb[0].mxu0
    %v4114 = vadd.f32 0.0, %v4113
    %v4115 = vpop.f32.mrb[0].mxu0
    %4116 = vmatprep.mubr.bf16.mxu0 0
    %4117 = vmatmul.mubr.bf16.gmra.mrb[0].mxu0 %v4001
    %v4118 = vpop.f32.mrb[0].mxu0
    %v4119 = vadd.f32 0.0, %v4118
    %v4120 = vpop.f32.mrb[0].mxu0
    %v4121 = vpop.f32.mrb[0].mxu0
    %v4122 = vadd.f32 0.0, %v4121
    %v4123 = vpop.f32.mrb[0].mxu0
    %4124 = vmatprep.mubr.bf16.mxu0 0
    %4125 = vmatmul.mubr.bf16.gmra.mrb[0].mxu0 %v4004
    %v4126 = vpop.f32.mrb[0].mxu0
    %v4127 = vadd.f32 0.0, %v4126
    %v4128 = vpop.f32.mrb[0].mxu0
    %v4129 = vpop.f32.mrb[0].mxu0
    %v4130 = vadd.f32 0.0, %v4129
    %v4131 = vpop.f32.mrb[0].mxu0
    %4132 = vmatprep.mubr.bf16.mxu0 0
    %4133 = vmatmul.mubr.bf16.gmra.mrb[0].mxu0 %v4007
    %v4134 = vpop.f32.mrb[0].mxu0
    %v4135 = vadd.f32 0.0, %v4134
    %v4136 = vpop.f32.mrb[0].mxu0
    %v4137 = vpop.f32.mrb[0].mxu0
    %v4138 = vadd.f32 0.0, %v4137
    %v4139 = vpop.f32.mrb[0].mxu0
    %4140 = vdwg.mxu0
    %v4141 = vld [vmem:[#allocation3] sm:$0xff]
    %v4142 = vld [vmem:[#allocation3 + $0x8] sm:$0xff]
    %v4143 = vld [vmem:[#allocation3 + $0x10] sm:$0xff]
    %v4144 = vld [vmem:[#allocation3 + $0x18] sm:$0xff]
    %v4145 = vld [vmem:[#allocation3 + $0x20] sm:$0xff]
    %v4146 = vld [vmem:[#allocation3 + $0x28] sm:$0xff]
    %v4147 = vld [vmem:[#allocation3 + $0x30] sm:$0xff]
    %v4148 = vld [vmem:[#allocation3 + $0x38] sm:$0xff]
    %v4149 = vld [vmem:[#allocation3 + $0x40] sm:$0xff]
    %v4150 = vld [vmem:[#allocation3 + $0x48] sm:$0xff]
    %v4151 = vld [vmem:[#allocation3 + $0x50] sm:$0xff]
    %v4152 = vld [vmem:[#allocation3 + $0x58] sm:$0xff]
    %v4153 = vld [vmem:[#allocation3 + $0x60] sm:$0xff]
    %v4154 = vld [vmem:[#allocation3 + $0x68] sm:$0xff]
    %v4155 = vld [vmem:[#allocation3 + $0x70] sm:$0xff]
    %v4156 = vld [vmem:[#allocation3 + $0x78] sm:$0xff]
    %v4157 = vld [vmem:[#allocation3 + $0x80] sm:$0xff]
    %v4158 = vld [vmem:[#allocation3 + $0x88] sm:$0xff]
    %v4159 = vld [vmem:[#allocation3 + $0x90] sm:$0xff]
    %v4160 = vld [vmem:[#allocation3 + $0x98] sm:$0xff]
    %v4161 = vld [vmem:[#allocation3 + $0xa0] sm:$0xff]
    %v4162 = vld [vmem:[#allocation3 + $0xa8] sm:$0xff]
    %v4163 = vld [vmem:[#allocation3 + $0xb0] sm:$0xff]
    %v4164 = vld [vmem:[#allocation3 + $0xb8] sm:$0xff]
    %v4165 = vadd.f32 %v4141, %v4047
    %v4166 = vadd.f32 %v4142, %v4050
    %v4167 = vadd.f32 %v4143, %v4055
    %v4168 = vadd.f32 %v4144, %v4058
    %v4169 = vadd.f32 %v4145, %v4063
    %v4170 = vadd.f32 %v4146, %v4066
    %v4171 = vadd.f32 %v4147, %v4071
    %v4172 = vadd.f32 %v4148, %v4074
    %v4173 = vadd.f32 %v4149, %v4079
    %v4174 = vadd.f32 %v4150, %v4082
    %v4175 = vadd.f32 %v4151, %v4087
    %v4176 = vadd.f32 %v4152, %v4090
    %v4177 = vadd.f32 %v4153, %v4095
    %v4178 = vadd.f32 %v4154, %v4098
    %v4179 = vadd.f32 %v4155, %v4103
    %v4180 = vadd.f32 %v4156, %v4106
    %v4181 = vadd.f32 %v4157, %v4111
    %v4182 = vadd.f32 %v4158, %v4114
    %v4183 = vadd.f32 %v4159, %v4119
    %v4184 = vadd.f32 %v4160, %v4122
    %v4185 = vadd.f32 %v4161, %v4127
    %v4186 = vadd.f32 %v4162, %v4130
    %v4187 = vadd.f32 %v4163, %v4135
    %v4188 = vadd.f32 %v4164, %v4138
    %4189 = vst.msk [vmem:[#allocation3] sm:$0xff] %vm1963, %v4165
    %4190 = vst.msk [vmem:[#allocation3 + $0x8] sm:$0xff] %vm1963, %v4166
    %4191 = vst.msk [vmem:[#allocation3 + $0x10] sm:$0xff] %vm1963, %v4167
    %4192 = vst.msk [vmem:[#allocation3 + $0x18] sm:$0xff] %vm1963, %v4168
    %4193 = vst.msk [vmem:[#allocation3 + $0x20] sm:$0xff] %vm1963, %v4169
    %4194 = vst.msk [vmem:[#allocation3 + $0x28] sm:$0xff] %vm1963, %v4170
    %4195 = vst.msk [vmem:[#allocation3 + $0x30] sm:$0xff] %vm1963, %v4171
    %4196 = vst.msk [vmem:[#allocation3 + $0x38] sm:$0xff] %vm1963, %v4172
    %4197 = vst.msk [vmem:[#allocation3 + $0x40] sm:$0xff] %vm1963, %v4173
    %4198 = vst.msk [vmem:[#allocation3 + $0x48] sm:$0xff] %vm1963, %v4174
    %4199 = vst.msk [vmem:[#allocation3 + $0x50] sm:$0xff] %vm1963, %v4175
    %4200 = vst.msk [vmem:[#allocation3 + $0x58] sm:$0xff] %vm1963, %v4176
    %4201 = vst.msk [vmem:[#allocation3 + $0x60] sm:$0xff] %vm1963, %v4177
    %4202 = vst.msk [vmem:[#allocation3 + $0x68] sm:$0xff] %vm1963, %v4178
    %4203 = vst.msk [vmem:[#allocation3 + $0x70] sm:$0xff] %vm1963, %v4179
    %4204 = vst.msk [vmem:[#allocation3 + $0x78] sm:$0xff] %vm1963, %v4180
    %4205 = vst.msk [vmem:[#allocation3 + $0x80] sm:$0xff] %vm1963, %v4181
    %4206 = vst.msk [vmem:[#allocation3 + $0x88] sm:$0xff] %vm1963, %v4182
    %4207 = vst.msk [vmem:[#allocation3 + $0x90] sm:$0xff] %vm1963, %v4183
    %4208 = vst.msk [vmem:[#allocation3 + $0x98] sm:$0xff] %vm1963, %v4184
    %4209 = vst.msk [vmem:[#allocation3 + $0xa0] sm:$0xff] %vm1963, %v4185
    %4210 = vst.msk [vmem:[#allocation3 + $0xa8] sm:$0xff] %vm1963, %v4186
    %4211 = vst.msk [vmem:[#allocation3 + $0xb0] sm:$0xff] %vm1963, %v4187
    %4212 = vst.msk [vmem:[#allocation3 + $0xb8] sm:$0xff] %vm1963, %v4188
    %v4213 = vld [vmem:[#allocation3] sm:$0xff]
    %v4214 = vld [vmem:[#allocation3 + $0x8] sm:$0xff]
    %v4215 = vld [vmem:[#allocation3 + $0x10] sm:$0xff]
    %v4216 = vld [vmem:[#allocation3 + $0x18] sm:$0xff]
    %v4217 = vld [vmem:[#allocation3 + $0x20] sm:$0xff]
    %v4218 = vld [vmem:[#allocation3 + $0x28] sm:$0xff]
    %v4219 = vld [vmem:[#allocation3 + $0x30] sm:$0xff]
    %v4220 = vld [vmem:[#allocation3 + $0x38] sm:$0xff]
    %v4221 = vld [vmem:[#allocation3 + $0x40] sm:$0xff]
    %v4222 = vld [vmem:[#allocation3 + $0x48] sm:$0xff]
    %v4223 = vld [vmem:[#allocation3 + $0x50] sm:$0xff]
    %v4224 = vld [vmem:[#allocation3 + $0x58] sm:$0xff]
    %v4225 = vld [vmem:[#allocation3 + $0x60] sm:$0xff]
    %v4226 = vld [vmem:[#allocation3 + $0x68] sm:$0xff]
    %v4227 = vld [vmem:[#allocation3 + $0x70] sm:$0xff]
    %v4228 = vld [vmem:[#allocation3 + $0x78] sm:$0xff]
    %v4229 = vld [vmem:[#allocation3 + $0x80] sm:$0xff]
    %v4230 = vld [vmem:[#allocation3 + $0x88] sm:$0xff]
    %v4231 = vld [vmem:[#allocation3 + $0x90] sm:$0xff]
    %v4232 = vld [vmem:[#allocation3 + $0x98] sm:$0xff]
    %v4233 = vld [vmem:[#allocation3 + $0xa0] sm:$0xff]
    %v4234 = vld [vmem:[#allocation3 + $0xa8] sm:$0xff]
    %v4235 = vld [vmem:[#allocation3 + $0xb0] sm:$0xff]
    %v4236 = vld [vmem:[#allocation3 + $0xb8] sm:$0xff]
    %v4237 = vmax.f32 %v4213, %v4214
    %v4238 = vmax.f32 %v4215, %v4216
    %v4239 = vmax.f32 %v4217, %v4218
    %v4240 = vmax.f32 %v4219, %v4220
    %v4241 = vmax.f32 %v4221, %v4222
    %v4242 = vmax.f32 %v4223, %v4224
    %v4243 = vmax.f32 %v4225, %v4226
    %v4244 = vmax.f32 %v4227, %v4228
    %v4245 = vmax.f32 %v4229, %v4230
    %v4246 = vmax.f32 %v4231, %v4232
    %v4247 = vmax.f32 %v4233, %v4234
    %v4248 = vmax.f32 %v4235, %v4236
    %v4261 = vrot.slane %v4237, 1
    %v4262 = vrot.slane %v4238, 1
    %v4263 = vrot.slane %v4239, 1
    %v4264 = vrot.slane %v4240, 1
    %v4265 = vrot.slane %v4241, 1
    %v4266 = vrot.slane %v4242, 1
    %v4267 = vrot.slane %v4243, 1
    %v4268 = vrot.slane %v4244, 1
    %v4269 = vrot.slane %v4245, 1
    %v4270 = vrot.slane %v4246, 1
    %v4271 = vrot.slane %v4247, 1
    %v4272 = vrot.slane %v4248, 1
    %v4285 = vmax.f32 %v4237, %v4261
    %v4286 = vmax.f32 %v4238, %v4262
    %v4287 = vmax.f32 %v4239, %v4263
    %v4288 = vmax.f32 %v4240, %v4264
    %v4289 = vmax.f32 %v4241, %v4265
    %v4290 = vmax.f32 %v4242, %v4266
    %v4291 = vmax.f32 %v4243, %v4267
    %v4292 = vmax.f32 %v4244, %v4268
    %v4293 = vmax.f32 %v4245, %v4269
    %v4294 = vmax.f32 %v4246, %v4270
    %v4295 = vmax.f32 %v4247, %v4271
    %v4296 = vmax.f32 %v4248, %v4272
    %v4309 = vrot.slane %v4285, 1
    %v4310 = vrot.slane %v4286, 1
    %v4311 = vrot.slane %v4287, 1
    %v4312 = vrot.slane %v4288, 1
    %v4313 = vrot.slane %v4289, 1
    %v4314 = vrot.slane %v4290, 1
    %v4315 = vrot.slane %v4291, 1
    %v4316 = vrot.slane %v4292, 1
    %v4317 = vrot.slane %v4293, 1
    %v4318 = vrot.slane %v4294, 1
    %v4319 = vrot.slane %v4295, 1
    %v4320 = vrot.slane %v4296, 1
    %v4333 = vrot.slane %v4285, 2
    %v4334 = vrot.slane %v4286, 2
    %v4335 = vrot.slane %v4287, 2
    %v4336 = vrot.slane %v4288, 2
    %v4337 = vrot.slane %v4289, 2
    %v4338 = vrot.slane %v4290, 2
    %v4339 = vrot.slane %v4291, 2
    %v4340 = vrot.slane %v4292, 2
    %v4341 = vrot.slane %v4293, 2
    %v4342 = vrot.slane %v4294, 2
    %v4343 = vrot.slane %v4295, 2
    %v4344 = vrot.slane %v4296, 2
    %v4357 = vrot.slane %v4285, 3
    %v4358 = vrot.slane %v4286, 3
    %v4359 = vrot.slane %v4287, 3
    %v4360 = vrot.slane %v4288, 3
    %v4361 = vrot.slane %v4289, 3
    %v4362 = vrot.slane %v4290, 3
    %v4363 = vrot.slane %v4291, 3
    %v4364 = vrot.slane %v4292, 3
    %v4365 = vrot.slane %v4293, 3
    %v4366 = vrot.slane %v4294, 3
    %v4367 = vrot.slane %v4295, 3
    %v4368 = vrot.slane %v4296, 3
    %vm4381 = vcmask 1040384
    %v4382 = vsel %vm4381, %v4285, %v4309
    %v4383 = vsel %vm4381, %v4286, %v4310
    %v4384 = vsel %vm4381, %v4287, %v4311
    %v4385 = vsel %vm4381, %v4288, %v4312
    %v4386 = vsel %vm4381, %v4289, %v4313
    %v4387 = vsel %vm4381, %v4290, %v4314
    %v4388 = vsel %vm4381, %v4291, %v4315
    %v4389 = vsel %vm4381, %v4292, %v4316
    %v4390 = vsel %vm4381, %v4293, %v4317
    %v4391 = vsel %vm4381, %v4294, %v4318
    %v4392 = vsel %vm4381, %v4295, %v4319
    %v4393 = vsel %vm4381, %v4296, %v4320
    %vm4394 = vcmask 1041408
    %v4395 = vsel %vm4394, %v4382, %v4333
    %v4396 = vsel %vm4394, %v4383, %v4334
    %v4397 = vsel %vm4394, %v4384, %v4335
    %v4398 = vsel %vm4394, %v4385, %v4336
    %v4399 = vsel %vm4394, %v4386, %v4337
    %v4400 = vsel %vm4394, %v4387, %v4338
    %v4401 = vsel %vm4394, %v4388, %v4339
    %v4402 = vsel %vm4394, %v4389, %v4340
    %v4403 = vsel %vm4394, %v4390, %v4341
    %v4404 = vsel %vm4394, %v4391, %v4342
    %v4405 = vsel %vm4394, %v4392, %v4343
    %v4406 = vsel %vm4394, %v4393, %v4344
    %vm4407 = vcmask 1042432
    %v4408 = vsel %vm4407, %v4395, %v4357
    %v4409 = vsel %vm4407, %v4396, %v4358
    %v4410 = vsel %vm4407, %v4397, %v4359
    %v4411 = vsel %vm4407, %v4398, %v4360
    %v4412 = vsel %vm4407, %v4399, %v4361
    %v4413 = vsel %vm4407, %v4400, %v4362
    %v4414 = vsel %vm4407, %v4401, %v4363
    %v4415 = vsel %vm4407, %v4402, %v4364
    %v4416 = vsel %vm4407, %v4403, %v4365
    %v4417 = vsel %vm4407, %v4404, %v4366
    %v4418 = vsel %vm4407, %v4405, %v4367
    %v4419 = vsel %vm4407, %v4406, %v4368
    %v4420 = vld [vmem:[%s2] sm:$0x1]
    %v4422 = vlaneseq
    %v4423 = vshrl.u32 %v4422, 7
    %v4424 = vsub.s32 0, %v4423
    %v4425 = vrot.slane %v4420, %v4424
    %v4427 = vadd.f32 %v4408, %v4425
    %v4428 = vadd.f32 %v4409, %v4425
    %v4429 = vadd.f32 %v4410, %v4425
    %v4430 = vadd.f32 %v4411, %v4425
    %v4431 = vadd.f32 %v4412, %v4425
    %v4432 = vadd.f32 %v4413, %v4425
    %v4433 = vadd.f32 %v4414, %v4425
    %v4434 = vadd.f32 %v4415, %v4425
    %v4435 = vadd.f32 %v4416, %v4425
    %v4436 = vadd.f32 %v4417, %v4425
    %v4437 = vadd.f32 %v4418, %v4425
    %v4438 = vadd.f32 %v4419, %v4425
    %v4439 = vmax.f32 %v4427, 0.0
    %v4440 = vmax.f32 %v4428, 0.0
    %v4441 = vmax.f32 %v4429, 0.0
    %v4442 = vmax.f32 %v4430, 0.0
    %v4443 = vmax.f32 %v4431, 0.0
    %v4444 = vmax.f32 %v4432, 0.0
    %v4445 = vmax.f32 %v4433, 0.0
    %v4446 = vmax.f32 %v4434, 0.0
    %v4447 = vmax.f32 %v4435, 0.0
    %v4448 = vmax.f32 %v4436, 0.0
    %v4449 = vmax.f32 %v4437, 0.0
    %v4450 = vmax.f32 %v4438, 0.0
    %4451 = vst.msk [vmem:[#allocation4] sm:$0xff] %vm1963, 0.0
    %vm4452 = vcmask 517120
    %4453 = vst.msk [vmem:[#allocation4 + $0x8] sm:$0x3] %vm4452, 0.0
    %4454 = vst.msk [vmem:[#allocation4 + $0x10] sm:$0xff] %vm1963, 0.0
    %4455 = vst.msk [vmem:[#allocation4 + $0x18] sm:$0x3] %vm4452, 0.0
    %4456 = vst.msk [vmem:[#allocation4 + $0x20] sm:$0xff] %vm1963, 0.0
    %4457 = vst.msk [vmem:[#allocation4 + $0x28] sm:$0x3] %vm4452, 0.0
    %4458 = vst.msk [vmem:[#allocation4 + $0x30] sm:$0xff] %vm1963, 0.0
    %4459 = vst.msk [vmem:[#allocation4 + $0x38] sm:$0x3] %vm4452, 0.0
    %4460 = vst.msk [vmem:[#allocation4 + $0x40] sm:$0xff] %vm1963, 0.0
    %4461 = vst.msk [vmem:[#allocation4 + $0x48] sm:$0x3] %vm4452, 0.0
    %4462 = vst.msk [vmem:[#allocation4 + $0x50] sm:$0xff] %vm1963, 0.0
    %4463 = vst.msk [vmem:[#allocation4 + $0x58] sm:$0x3] %vm4452, 0.0
    %4464 = vst.msk [vmem:[#allocation4 + $0x60] sm:$0xff] %vm1963, 0.0
    %4465 = vst.msk [vmem:[#allocation4 + $0x68] sm:$0x3] %vm4452, 0.0
    %4466 = vst.msk [vmem:[#allocation4 + $0x70] sm:$0xff] %vm1963, 0.0
    %4467 = vst.msk [vmem:[#allocation4 + $0x78] sm:$0x3] %vm4452, 0.0
    %4468 = vst.msk [vmem:[#allocation4 + $0x80] sm:$0xff] %vm1963, 0.0
    %4469 = vst.msk [vmem:[#allocation4 + $0x88] sm:$0x3] %vm4452, 0.0
    %4470 = vst.msk [vmem:[#allocation4 + $0x90] sm:$0xff] %vm1963, 0.0
    %4471 = vst.msk [vmem:[#allocation4 + $0x98] sm:$0x3] %vm4452, 0.0
    %4472 = vst.msk [vmem:[#allocation4 + $0xa0] sm:$0xff] %vm1963, 0.0
    %4473 = vst.msk [vmem:[#allocation4 + $0xa8] sm:$0x3] %vm4452, 0.0
    %4474 = vst.msk [vmem:[#allocation4 + $0xb0] sm:$0xff] %vm1963, 0.0
    %4475 = vst.msk [vmem:[#allocation4 + $0xb8] sm:$0x3] %vm4452, 0.0
    %4476 = vst.msk [vmem:[#allocation4 + $0xc0] sm:$0xff] %vm1963, 0.0
    %4477 = vst.msk [vmem:[#allocation4 + $0xc8] sm:$0x3] %vm4452, 0.0
    %4478 = vst.msk [vmem:[#allocation4 + $0xd0] sm:$0xff] %vm1963, 0.0
    %4479 = vst.msk [vmem:[#allocation4 + $0xd8] sm:$0x3] %vm4452, 0.0
    %4480 = vst.msk [vmem:[#allocation4 + $0xe0] sm:$0xff] %vm1963, 0.0
    %4481 = vst.msk [vmem:[#allocation4 + $0xe8] sm:$0x3] %vm4452, 0.0
    %4482 = vst.msk [vmem:[#allocation4 + $0xf0] sm:$0xff] %vm1963, 0.0
    %4483 = vst.msk [vmem:[#allocation4 + $0xf8] sm:$0x3] %vm4452, 0.0
    %s4484 = scalar_lea.vmem [#allocation4], 16
    %vm4485 = vcmask 519168
    %4486 = vst.msk [vmem:[%s4484 + $0x1] sm:$0xf] %vm4485, %v4439
    %4487 = vst.msk [vmem:[%s4484 + $0x11] sm:$0xf] %vm4485, %v4440
    %4488 = vst.msk [vmem:[%s4484 + $0x21] sm:$0xf] %vm4485, %v4441
    %4489 = vst.msk [vmem:[%s4484 + $0x31] sm:$0xf] %vm4485, %v4442
    %4490 = vst.msk [vmem:[%s4484 + $0x41] sm:$0xf] %vm4485, %v4443
    %4491 = vst.msk [vmem:[%s4484 + $0x51] sm:$0xf] %vm4485, %v4444
    %4492 = vst.msk [vmem:[%s4484 + $0x81] sm:$0xf] %vm4485, %v4445
    %4493 = vst.msk [vmem:[%s4484 + $0x91] sm:$0xf] %vm4485, %v4446
    %4494 = vst.msk [vmem:[%s4484 + $0xa1] sm:$0xf] %vm4485, %v4447
    %4495 = vst.msk [vmem:[%s4484 + $0xb1] sm:$0xf] %vm4485, %v4448
    %4496 = vst.msk [vmem:[%s4484 + $0xc1] sm:$0xf] %vm4485, %v4449
    %4497 = vst.msk [vmem:[%s4484 + $0xd1] sm:$0xf] %vm4485, %v4450
    %s4498 = smul.u32 4, 9
    %s4499 = smul.u32 %s4498, 8
    %s4500 = smul.u32 %s4499, 4
    %s4501 = sshll.u32 %s4500, 4
    %4502 = dma.done [#allocation8], %s4501
    %v4503 = vld [vmem:[#allocation4] sm:$0xff]
    %v4504 = vld [vmem:[#allocation4 + $0x10] sm:$0xff]
    %v4505 = vld [vmem:[#allocation4 + $0x20] sm:$0xff]
    %v4506 = vld [vmem:[#allocation4 + $0x30] sm:$0xff]
    %v4507 = vld [vmem:[#allocation4 + $0x40] sm:$0xff]
    %v4508 = vld [vmem:[#allocation4 + $0x50] sm:$0xff]
    %v4509 = vld [vmem:[#allocation4 + $0x80] sm:$0xff]
    %v4510 = vld [vmem:[#allocation4 + $0x90] sm:$0xff]
    %v4511 = vld [vmem:[#allocation4 + $0xa0] sm:$0xff]
    %v4512 = vld [vmem:[#allocation4 + $0xb0] sm:$0xff]
    %v4513 = vld [vmem:[#allocation4 + $0xc0] sm:$0xff]
    %v4514 = vld [vmem:[#allocation4 + $0xd0] sm:$0xff]
    %v4515 = vpack.c.bf16 %v4504, %v4503
    %v4516 = vpack.c.bf16 %v4506, %v4505
    %v4517 = vpack.c.bf16 %v4508, %v4507
    %v4518 = vpack.c.bf16 %v4510, %v4509
    %v4519 = vpack.c.bf16 %v4512, %v4511
    %v4520 = vpack.c.bf16 %v4514, %v4513
    %v4521 = vld [vmem:[#allocation6] sm:$0xff]
    %v4522 = vld [vmem:[#allocation6 + $0x8] sm:$0xff]
    %v4523 = vld [vmem:[#allocation6 + $0x10] sm:$0xff]
    %v4524 = vld [vmem:[#allocation6 + $0x18] sm:$0xff]
    %v4525 = vld [vmem:[#allocation6 + $0x20] sm:$0xff]
    %v4526 = vld [vmem:[#allocation6 + $0x28] sm:$0xff]
    %v4527 = vld [vmem:[#allocation6 + $0x30] sm:$0xff]
    %v4528 = vld [vmem:[#allocation6 + $0x38] sm:$0xff]
    %v4529 = vld [vmem:[#allocation6 + $0x40] sm:$0xff]
    %v4530 = vld [vmem:[#allocation6 + $0x48] sm:$0xff]
    %v4531 = vld [vmem:[#allocation6 + $0x50] sm:$0xff]
    %v4532 = vld [vmem:[#allocation6 + $0x58] sm:$0xff]
    %v4533 = vld [vmem:[#allocation6 + $0x60] sm:$0xff]
    %v4534 = vld [vmem:[#allocation6 + $0x68] sm:$0xff]
    %v4535 = vld [vmem:[#allocation6 + $0x70] sm:$0xff]
    %v4536 = vld [vmem:[#allocation6 + $0x78] sm:$0xff]
    %v4538 = vsel %vm1963, %v4515, 0
    %v4541 = vsel %vm1963, %v4516, 0
    %v4544 = vsel %vm1963, %v4517, 0
    %v4547 = vsel %vm1963, %v4518, 0
    %v4550 = vsel %vm1963, %v4519, 0
    %v4553 = vsel %vm1963, %v4520, 0
    %4555 = vmatprep.subr.bf16.mxu0 %v4522
    %4556 = vmatpush1.bf16.msra.mxu0 %v4521
    %4557 = vmatprep.subr.bf16.mxu0 %v4526
    %4558 = vmatpush1.bf16.msra.mxu0 %v4525
    %4559 = vmatprep.subr.bf16.mxu0 %v4530
    %4560 = vmatpush1.bf16.msra.mxu0 %v4529
    %4561 = vmatprep.subr.bf16.mxu0 %v4534
    %4562 = vmatpush1.bf16.msra.mxu0 %v4533
    %4563 = vmatprep.subr.bf16.mxu0 0
    %4564 = vmatpush1.bf16.msra.mxu0 0
    %4565 = vmatprep.subr.bf16.mxu0 0
    %4566 = vmatpush1.bf16.msra.mxu0 0
    %4567 = vmatprep.subr.bf16.mxu0 0
    %4568 = vmatpush1.bf16.msra.mxu0 0
    %4569 = vmatprep.subr.bf16.mxu0 0
    %4570 = vmatpush1.bf16.msra.mxu0 0
    %4571 = vmatprep.subr.bf16.mxu0 0
    %4572 = vmatpush1.bf16.msra.mxu0 0
    %4573 = vmatprep.subr.bf16.mxu0 0
    %4574 = vmatpush1.bf16.msra.mxu0 0
    %4575 = vmatprep.subr.bf16.mxu0 0
    %4576 = vmatpush1.bf16.msra.mxu0 0
    %4577 = vmatprep.subr.bf16.mxu0 0
    %4578 = vmatpush1.bf16.msra.mxu0 0
    %4579 = vmatprep.subr.bf16.mxu0 0
    %4580 = vmatpush1.bf16.msra.mxu0 0
    %4581 = vmatprep.subr.bf16.mxu0 0
    %4582 = vmatpush1.bf16.msra.mxu0 0
    %4583 = vmatprep.subr.bf16.mxu0 0
    %4584 = vmatpush1.bf16.msra.mxu0 0
    %4585 = vmatprep.subr.bf16.mxu0 0
    %4586 = vmatpush1.bf16.msra.mxu0 0
    %4587 = vmatprep.mubr.bf16.mxu0 0
    %4588 = vmatmul.mubr.bf16.gmra.mrb[0].mxu0 %v4538
    %v4589 = vpop.f32.mrb[0].mxu0
    %v4590 = vadd.f32 0.0, %v4589
    %v4591 = vpop.f32.mrb[0].mxu0
    %v4592 = vadd.f32 0.0, %v4591
    %v4593 = vpop.f32.mrb[0].mxu0
    %v4594 = vadd.f32 0.0, %v4593
    %v4595 = vpop.f32.mrb[0].mxu0
    %v4596 = vadd.f32 0.0, %v4595
    %4597 = vmatprep.mubr.bf16.mxu0 0
    %4598 = vmatmul.mubr.bf16.gmra.mrb[0].mxu0 %v4541
    %v4599 = vpop.f32.mrb[0].mxu0
    %v4600 = vadd.f32 0.0, %v4599
    %v4601 = vpop.f32.mrb[0].mxu0
    %v4602 = vadd.f32 0.0, %v4601
    %v4603 = vpop.f32.mrb[0].mxu0
    %v4604 = vadd.f32 0.0, %v4603
    %v4605 = vpop.f32.mrb[0].mxu0
    %v4606 = vadd.f32 0.0, %v4605
    %4607 = vmatprep.mubr.bf16.mxu0 0
    %4608 = vmatmul.mubr.bf16.gmra.mrb[0].mxu0 %v4544
    %v4609 = vpop.f32.mrb[0].mxu0
    %v4610 = vadd.f32 0.0, %v4609
    %v4611 = vpop.f32.mrb[0].mxu0
    %v4612 = vadd.f32 0.0, %v4611
    %v4613 = vpop.f32.mrb[0].mxu0
    %v4614 = vadd.f32 0.0, %v4613
    %v4615 = vpop.f32.mrb[0].mxu0
    %v4616 = vadd.f32 0.0, %v4615
    %4617 = vmatprep.mubr.bf16.mxu0 0
    %4618 = vmatmul.mubr.bf16.gmra.mrb[0].mxu0 %v4547
    %v4619 = vpop.f32.mrb[0].mxu0
    %v4620 = vadd.f32 0.0, %v4619
    %v4621 = vpop.f32.mrb[0].mxu0
    %v4622 = vadd.f32 0.0, %v4621
    %v4623 = vpop.f32.mrb[0].mxu0
    %v4624 = vadd.f32 0.0, %v4623
    %v4625 = vpop.f32.mrb[0].mxu0
    %v4626 = vadd.f32 0.0, %v4625
    %4627 = vmatprep.mubr.bf16.mxu0 0
    %4628 = vmatmul.mubr.bf16.gmra.mrb[0].mxu0 %v4550
    %v4629 = vpop.f32.mrb[0].mxu0
    %v4630 = vadd.f32 0.0, %v4629
    %v4631 = vpop.f32.mrb[0].mxu0
    %v4632 = vadd.f32 0.0, %v4631
    %v4633 = vpop.f32.mrb[0].mxu0
    %v4634 = vadd.f32 0.0, %v4633
    %v4635 = vpop.f32.mrb[0].mxu0
    %v4636 = vadd.f32 0.0, %v4635
    %4637 = vmatprep.mubr.bf16.mxu0 0
    %4638 = vmatmul.mubr.bf16.gmra.mrb[0].mxu0 %v4553
    %v4639 = vpop.f32.mrb[0].mxu0
    %v4640 = vadd.f32 0.0, %v4639
    %v4641 = vpop.f32.mrb[0].mxu0
    %v4642 = vadd.f32 0.0, %v4641
    %v4643 = vpop.f32.mrb[0].mxu0
    %v4644 = vadd.f32 0.0, %v4643
    %v4645 = vpop.f32.mrb[0].mxu0
    %v4646 = vadd.f32 0.0, %v4645
    %4647 = vdwg.mxu0
    %4648 = vmatprep.subr.bf16.mxu0 %v4524
    %4649 = vmatpush1.bf16.msra.mxu0 %v4523
    %4650 = vmatprep.subr.bf16.mxu0 %v4528
    %4651 = vmatpush1.bf16.msra.mxu0 %v4527
    %4652 = vmatprep.subr.bf16.mxu0 %v4532
    %4653 = vmatpush1.bf16.msra.mxu0 %v4531
    %4654 = vmatprep.subr.bf16.mxu0 %v4536
    %4655 = vmatpush1.bf16.msra.mxu0 %v4535
    %4656 = vmatprep.subr.bf16.mxu0 0
    %4657 = vmatpush1.bf16.msra.mxu0 0
    %4658 = vmatprep.subr.bf16.mxu0 0
    %4659 = vmatpush1.bf16.msra.mxu0 0
    %4660 = vmatprep.subr.bf16.mxu0 0
    %4661 = vmatpush1.bf16.msra.mxu0 0
    %4662 = vmatprep.subr.bf16.mxu0 0
    %4663 = vmatpush1.bf16.msra.mxu0 0
    %4664 = vmatprep.subr.bf16.mxu0 0
    %4665 = vmatpush1.bf16.msra.mxu0 0
    %4666 = vmatprep.subr.bf16.mxu0 0
    %4667 = vmatpush1.bf16.msra.mxu0 0
    %4668 = vmatprep.subr.bf16.mxu0 0
    %4669 = vmatpush1.bf16.msra.mxu0 0
    %4670 = vmatprep.subr.bf16.mxu0 0
    %4671 = vmatpush1.bf16.msra.mxu0 0
    %4672 = vmatprep.subr.bf16.mxu0 0
    %4673 = vmatpush1.bf16.msra.mxu0 0
    %4674 = vmatprep.subr.bf16.mxu0 0
    %4675 = vmatpush1.bf16.msra.mxu0 0
    %4676 = vmatprep.subr.bf16.mxu0 0
    %4677 = vmatpush1.bf16.msra.mxu0 0
    %4678 = vmatprep.subr.bf16.mxu0 0
    %4679 = vmatpush1.bf16.msra.mxu0 0
    %4680 = vmatprep.mubr.bf16.mxu0 0
    %4681 = vmatmul.mubr.bf16.gmra.mrb[0].mxu0 %v4538
    %v4682 = vpop.f32.mrb[0].mxu0
    %v4683 = vadd.f32 0.0, %v4682
    %v4684 = vpop.f32.mrb[0].mxu0
    %v4685 = vadd.f32 0.0, %v4684
    %v4686 = vpop.f32.mrb[0].mxu0
    %v4687 = vadd.f32 0.0, %v4686
    %v4688 = vpop.f32.mrb[0].mxu0
    %v4689 = vadd.f32 0.0, %v4688
    %4690 = vmatprep.mubr.bf16.mxu0 0
    %4691 = vmatmul.mubr.bf16.gmra.mrb[0].mxu0 %v4541
    %v4692 = vpop.f32.mrb[0].mxu0
    %v4693 = vadd.f32 0.0, %v4692
    %v4694 = vpop.f32.mrb[0].mxu0
    %v4695 = vadd.f32 0.0, %v4694
    %v4696 = vpop.f32.mrb[0].mxu0
    %v4697 = vadd.f32 0.0, %v4696
    %v4698 = vpop.f32.mrb[0].mxu0
    %v4699 = vadd.f32 0.0, %v4698
    %4700 = vmatprep.mubr.bf16.mxu0 0
    %4701 = vmatmul.mubr.bf16.gmra.mrb[0].mxu0 %v4544
    %v4702 = vpop.f32.mrb[0].mxu0
    %v4703 = vadd.f32 0.0, %v4702
    %v4704 = vpop.f32.mrb[0].mxu0
    %v4705 = vadd.f32 0.0, %v4704
    %v4706 = vpop.f32.mrb[0].mxu0
    %v4707 = vadd.f32 0.0, %v4706
    %v4708 = vpop.f32.mrb[0].mxu0
    %v4709 = vadd.f32 0.0, %v4708
    %4710 = vmatprep.mubr.bf16.mxu0 0
    %4711 = vmatmul.mubr.bf16.gmra.mrb[0].mxu0 %v4547
    %v4712 = vpop.f32.mrb[0].mxu0
    %v4713 = vadd.f32 0.0, %v4712
    %v4714 = vpop.f32.mrb[0].mxu0
    %v4715 = vadd.f32 0.0, %v4714
    %v4716 = vpop.f32.mrb[0].mxu0
    %v4717 = vadd.f32 0.0, %v4716
    %v4718 = vpop.f32.mrb[0].mxu0
    %v4719 = vadd.f32 0.0, %v4718
    %4720 = vmatprep.mubr.bf16.mxu0 0
    %4721 = vmatmul.mubr.bf16.gmra.mrb[0].mxu0 %v4550
    %v4722 = vpop.f32.mrb[0].mxu0
    %v4723 = vadd.f32 0.0, %v4722
    %v4724 = vpop.f32.mrb[0].mxu0
    %v4725 = vadd.f32 0.0, %v4724
    %v4726 = vpop.f32.mrb[0].mxu0
    %v4727 = vadd.f32 0.0, %v4726
    %v4728 = vpop.f32.mrb[0].mxu0
    %v4729 = vadd.f32 0.0, %v4728
    %4730 = vmatprep.mubr.bf16.mxu0 0
    %4731 = vmatmul.mubr.bf16.gmra.mrb[0].mxu0 %v4553
    %v4732 = vpop.f32.mrb[0].mxu0
    %v4733 = vadd.f32 0.0, %v4732
    %v4734 = vpop.f32.mrb[0].mxu0
    %v4735 = vadd.f32 0.0, %v4734
    %v4736 = vpop.f32.mrb[0].mxu0
    %v4737 = vadd.f32 0.0, %v4736
    %v4738 = vpop.f32.mrb[0].mxu0
    %v4739 = vadd.f32 0.0, %v4738
    %4740 = vdwg.mxu0
    %4741 = vst [vmem:[#allocation5] sm:$0xff] %v4590
    %4742 = vst [vmem:[#allocation5 + $0x8] sm:$0xff] %v4592
    %4743 = vst [vmem:[#allocation5 + $0x10] sm:$0xff] %v4683
    %4744 = vst [vmem:[#allocation5 + $0x18] sm:$0xff] %v4685
    %4745 = vst [vmem:[#allocation5 + $0x20] sm:$0xff] %v4594
    %4746 = vst [vmem:[#allocation5 + $0x28] sm:$0xff] %v4596
    %4747 = vst [vmem:[#allocation5 + $0x30] sm:$0xff] %v4687
    %4748 = vst [vmem:[#allocation5 + $0x38] sm:$0xff] %v4689
    %4749 = vst [vmem:[#allocation5 + $0x40] sm:$0xff] %v4600
    %4750 = vst [vmem:[#allocation5 + $0x48] sm:$0xff] %v4602
    %4751 = vst [vmem:[#allocation5 + $0x50] sm:$0xff] %v4693
    %4752 = vst [vmem:[#allocation5 + $0x58] sm:$0xff] %v4695
    %4753 = vst [vmem:[#allocation5 + $0x60] sm:$0xff] %v4604
    %4754 = vst [vmem:[#allocation5 + $0x68] sm:$0xff] %v4606
    %4755 = vst [vmem:[#allocation5 + $0x70] sm:$0xff] %v4697
    %4756 = vst [vmem:[#allocation5 + $0x78] sm:$0xff] %v4699
    %4757 = vst [vmem:[#allocation5 + $0x80] sm:$0xff] %v4610
    %4758 = vst [vmem:[#allocation5 + $0x88] sm:$0xff] %v4612
    %4759 = vst [vmem:[#allocation5 + $0x90] sm:$0xff] %v4703
    %4760 = vst [vmem:[#allocation5 + $0x98] sm:$0xff] %v4705
    %4761 = vst [vmem:[#allocation5 + $0xa0] sm:$0xff] %v4614
    %4762 = vst [vmem:[#allocation5 + $0xa8] sm:$0xff] %v4616
    %4763 = vst [vmem:[#allocation5 + $0xb0] sm:$0xff] %v4707
    %4764 = vst [vmem:[#allocation5 + $0xb8] sm:$0xff] %v4709
    %4765 = vst [vmem:[#allocation5 + $0xc0] sm:$0xff] %v4620
    %4766 = vst [vmem:[#allocation5 + $0xc8] sm:$0xff] %v4622
    %4767 = vst [vmem:[#allocation5 + $0xd0] sm:$0xff] %v4713
    %4768 = vst [vmem:[#allocation5 + $0xd8] sm:$0xff] %v4715
    %4769 = vst [vmem:[#allocation5 + $0xe0] sm:$0xff] %v4624
    %4770 = vst [vmem:[#allocation5 + $0xe8] sm:$0xff] %v4626
    %4771 = vst [vmem:[#allocation5 + $0xf0] sm:$0xff] %v4717
    %4772 = vst [vmem:[#allocation5 + $0xf8] sm:$0xff] %v4719
    %4773 = vst [vmem:[#allocation5 + $0x100] sm:$0xff] %v4630
    %4774 = vst [vmem:[#allocation5 + $0x108] sm:$0xff] %v4632
    %4775 = vst [vmem:[#allocation5 + $0x110] sm:$0xff] %v4723
    %4776 = vst [vmem:[#allocation5 + $0x118] sm:$0xff] %v4725
    %4777 = vst [vmem:[#allocation5 + $0x120] sm:$0xff] %v4634
    %4778 = vst [vmem:[#allocation5 + $0x128] sm:$0xff] %v4636
    %4779 = vst [vmem:[#allocation5 + $0x130] sm:$0xff] %v4727
    %4780 = vst [vmem:[#allocation5 + $0x138] sm:$0xff] %v4729
    %4781 = vst [vmem:[#allocation5 + $0x140] sm:$0xff] %v4640
    %4782 = vst [vmem:[#allocation5 + $0x148] sm:$0xff] %v4642
    %4783 = vst [vmem:[#allocation5 + $0x150] sm:$0xff] %v4733
    %4784 = vst [vmem:[#allocation5 + $0x158] sm:$0xff] %v4735
    %4785 = vst [vmem:[#allocation5 + $0x160] sm:$0xff] %v4644
    %4786 = vst [vmem:[#allocation5 + $0x168] sm:$0xff] %v4646
    %4787 = vst [vmem:[#allocation5 + $0x170] sm:$0xff] %v4737
    %4788 = vst [vmem:[#allocation5 + $0x178] sm:$0xff] %v4739
    %v4789 = vld [vmem:[#allocation4 + $0x1] sm:$0xff]
    %v4790 = vld [vmem:[#allocation4 + $0x11] sm:$0xff]
    %v4791 = vld [vmem:[#allocation4 + $0x21] sm:$0xff]
    %v4792 = vld [vmem:[#allocation4 + $0x31] sm:$0xff]
    %v4793 = vld [vmem:[#allocation4 + $0x41] sm:$0xff]
    %v4794 = vld [vmem:[#allocation4 + $0x51] sm:$0xff]
    %v4795 = vld [vmem:[#allocation4 + $0x81] sm:$0xff]
    %v4796 = vld [vmem:[#allocation4 + $0x91] sm:$0xff]
    %v4797 = vld [vmem:[#allocation4 + $0xa1] sm:$0xff]
    %v4798 = vld [vmem:[#allocation4 + $0xb1] sm:$0xff]
    %v4799 = vld [vmem:[#allocation4 + $0xc1] sm:$0xff]
    %v4800 = vld [vmem:[#allocation4 + $0xd1] sm:$0xff]
    %v4801 = vpack.c.bf16 %v4790, %v4789
    %v4802 = vpack.c.bf16 %v4792, %v4791
    %v4803 = vpack.c.bf16 %v4794, %v4793
    %v4804 = vpack.c.bf16 %v4796, %v4795
    %v4805 = vpack.c.bf16 %v4798, %v4797
    %v4806 = vpack.c.bf16 %v4800, %v4799
    %s4807 = scalar_lea.vmem [#allocation6], 128
    %v4808 = vld [vmem:[%s4807] sm:$0xff]
    %v4809 = vld [vmem:[%s4807 + $0x8] sm:$0xff]
    %v4810 = vld [vmem:[%s4807 + $0x10] sm:$0xff]
    %v4811 = vld [vmem:[%s4807 + $0x18] sm:$0xff]
    %v4812 = vld [vmem:[%s4807 + $0x20] sm:$0xff]
    %v4813 = vld [vmem:[%s4807 + $0x28] sm:$0xff]
    %v4814 = vld [vmem:[%s4807 + $0x30] sm:$0xff]
    %v4815 = vld [vmem:[%s4807 + $0x38] sm:$0xff]
    %v4816 = vld [vmem:[%s4807 + $0x40] sm:$0xff]
    %v4817 = vld [vmem:[%s4807 + $0x48] sm:$0xff]
    %v4818 = vld [vmem:[%s4807 + $0x50] sm:$0xff]
    %v4819 = vld [vmem:[%s4807 + $0x58] sm:$0xff]
    %v4820 = vld [vmem:[%s4807 + $0x60] sm:$0xff]
    %v4821 = vld [vmem:[%s4807 + $0x68] sm:$0xff]
    %v4822 = vld [vmem:[%s4807 + $0x70] sm:$0xff]
    %v4823 = vld [vmem:[%s4807 + $0x78] sm:$0xff]
    %v4825 = vsel %vm1963, %v4801, 0
    %v4828 = vsel %vm1963, %v4802, 0
    %v4831 = vsel %vm1963, %v4803, 0
    %v4834 = vsel %vm1963, %v4804, 0
    %v4837 = vsel %vm1963, %v4805, 0
    %v4840 = vsel %vm1963, %v4806, 0
    %4842 = vmatprep.subr.bf16.mxu0 %v4809
    %4843 = vmatpush1.bf16.msra.mxu0 %v4808
    %4844 = vmatprep.subr.bf16.mxu0 %v4813
    %4845 = vmatpush1.bf16.msra.mxu0 %v4812
    %4846 = vmatprep.subr.bf16.mxu0 %v4817
    %4847 = vmatpush1.bf16.msra.mxu0 %v4816
    %4848 = vmatprep.subr.bf16.mxu0 %v4821
    %4849 = vmatpush1.bf16.msra.mxu0 %v4820
    %4850 = vmatprep.subr.bf16.mxu0 0
    %4851 = vmatpush1.bf16.msra.mxu0 0
    %4852 = vmatprep.subr.bf16.mxu0 0
    %4853 = vmatpush1.bf16.msra.mxu0 0
    %4854 = vmatprep.subr.bf16.mxu0 0
    %4855 = vmatpush1.bf16.msra.mxu0 0
    %4856 = vmatprep.subr.bf16.mxu0 0
    %4857 = vmatpush1.bf16.msra.mxu0 0
    %4858 = vmatprep.subr.bf16.mxu0 0
    %4859 = vmatpush1.bf16.msra.mxu0 0
    %4860 = vmatprep.subr.bf16.mxu0 0
    %4861 = vmatpush1.bf16.msra.mxu0 0
    %4862 = vmatprep.subr.bf16.mxu0 0
    %4863 = vmatpush1.bf16.msra.mxu0 0
    %4864 = vmatprep.subr.bf16.mxu0 0
    %4865 = vmatpush1.bf16.msra.mxu0 0
    %4866 = vmatprep.subr.bf16.mxu0 0
    %4867 = vmatpush1.bf16.msra.mxu0 0
    %4868 = vmatprep.subr.bf16.mxu0 0
    %4869 = vmatpush1.bf16.msra.mxu0 0
    %4870 = vmatprep.subr.bf16.mxu0 0
    %4871 = vmatpush1.bf16.msra.mxu0 0
    %4872 = vmatprep.subr.bf16.mxu0 0
    %4873 = vmatpush1.bf16.msra.mxu0 0
    %4874 = vmatprep.mubr.bf16.mxu0 0
    %4875 = vmatmul.mubr.bf16.gmra.mrb[0].mxu0 %v4825
    %v4876 = vpop.f32.mrb[0].mxu0
    %v4877 = vadd.f32 0.0, %v4876
    %v4878 = vpop.f32.mrb[0].mxu0
    %v4879 = vadd.f32 0.0, %v4878
    %v4880 = vpop.f32.mrb[0].mxu0
    %v4881 = vadd.f32 0.0, %v4880
    %v4882 = vpop.f32.mrb[0].mxu0
    %v4883 = vadd.f32 0.0, %v4882
    %4884 = vmatprep.mubr.bf16.mxu0 0
    %4885 = vmatmul.mubr.bf16.gmra.mrb[0].mxu0 %v4828
    %v4886 = vpop.f32.mrb[0].mxu0
    %v4887 = vadd.f32 0.0, %v4886
    %v4888 = vpop.f32.mrb[0].mxu0
    %v4889 = vadd.f32 0.0, %v4888
    %v4890 = vpop.f32.mrb[0].mxu0
    %v4891 = vadd.f32 0.0, %v4890
    %v4892 = vpop.f32.mrb[0].mxu0
    %v4893 = vadd.f32 0.0, %v4892
    %4894 = vmatprep.mubr.bf16.mxu0 0
    %4895 = vmatmul.mubr.bf16.gmra.mrb[0].mxu0 %v4831
    %v4896 = vpop.f32.mrb[0].mxu0
    %v4897 = vadd.f32 0.0, %v4896
    %v4898 = vpop.f32.mrb[0].mxu0
    %v4899 = vadd.f32 0.0, %v4898
    %v4900 = vpop.f32.mrb[0].mxu0
    %v4901 = vadd.f32 0.0, %v4900
    %v4902 = vpop.f32.mrb[0].mxu0
    %v4903 = vadd.f32 0.0, %v4902
    %4904 = vmatprep.mubr.bf16.mxu0 0
    %4905 = vmatmul.mubr.bf16.gmra.mrb[0].mxu0 %v4834
    %v4906 = vpop.f32.mrb[0].mxu0
    %v4907 = vadd.f32 0.0, %v4906
    %v4908 = vpop.f32.mrb[0].mxu0
    %v4909 = vadd.f32 0.0, %v4908
    %v4910 = vpop.f32.mrb[0].mxu0
    %v4911 = vadd.f32 0.0, %v4910
    %v4912 = vpop.f32.mrb[0].mxu0
    %v4913 = vadd.f32 0.0, %v4912
    %4914 = vmatprep.mubr.bf16.mxu0 0
    %4915 = vmatmul.mubr.bf16.gmra.mrb[0].mxu0 %v4837
    %v4916 = vpop.f32.mrb[0].mxu0
    %v4917 = vadd.f32 0.0, %v4916
    %v4918 = vpop.f32.mrb[0].mxu0
    %v4919 = vadd.f32 0.0, %v4918
    %v4920 = vpop.f32.mrb[0].mxu0
    %v4921 = vadd.f32 0.0, %v4920
    %v4922 = vpop.f32.mrb[0].mxu0
    %v4923 = vadd.f32 0.0, %v4922
    %4924 = vmatprep.mubr.bf16.mxu0 0
    %4925 = vmatmul.mubr.bf16.gmra.mrb[0].mxu0 %v4840
    %v4926 = vpop.f32.mrb[0].mxu0
    %v4927 = vadd.f32 0.0, %v4926
    %v4928 = vpop.f32.mrb[0].mxu0
    %v4929 = vadd.f32 0.0, %v4928
    %v4930 = vpop.f32.mrb[0].mxu0
    %v4931 = vadd.f32 0.0, %v4930
    %v4932 = vpop.f32.mrb[0].mxu0
    %v4933 = vadd.f32 0.0, %v4932
    %4934 = vdwg.mxu0
    %4935 = vmatprep.subr.bf16.mxu0 %v4811
    %4936 = vmatpush1.bf16.msra.mxu0 %v4810
    %4937 = vmatprep.subr.bf16.mxu0 %v4815
    %4938 = vmatpush1.bf16.msra.mxu0 %v4814
    %4939 = vmatprep.subr.bf16.mxu0 %v4819
    %4940 = vmatpush1.bf16.msra.mxu0 %v4818
    %4941 = vmatprep.subr.bf16.mxu0 %v4823
    %4942 = vmatpush1.bf16.msra.mxu0 %v4822
    %4943 = vmatprep.subr.bf16.mxu0 0
    %4944 = vmatpush1.bf16.msra.mxu0 0
    %4945 = vmatprep.subr.bf16.mxu0 0
    %4946 = vmatpush1.bf16.msra.mxu0 0
    %4947 = vmatprep.subr.bf16.mxu0 0
    %4948 = vmatpush1.bf16.msra.mxu0 0
    %4949 = vmatprep.subr.bf16.mxu0 0
    %4950 = vmatpush1.bf16.msra.mxu0 0
    %4951 = vmatprep.subr.bf16.mxu0 0
    %4952 = vmatpush1.bf16.msra.mxu0 0
    %4953 = vmatprep.subr.bf16.mxu0 0
    %4954 = vmatpush1.bf16.msra.mxu0 0
    %4955 = vmatprep.subr.bf16.mxu0 0
    %4956 = vmatpush1.bf16.msra.mxu0 0
    %4957 = vmatprep.subr.bf16.mxu0 0
    %4958 = vmatpush1.bf16.msra.mxu0 0
    %4959 = vmatprep.subr.bf16.mxu0 0
    %4960 = vmatpush1.bf16.msra.mxu0 0
    %4961 = vmatprep.subr.bf16.mxu0 0
    %4962 = vmatpush1.bf16.msra.mxu0 0
    %4963 = vmatprep.subr.bf16.mxu0 0
    %4964 = vmatpush1.bf16.msra.mxu0 0
    %4965 = vmatprep.subr.bf16.mxu0 0
    %4966 = vmatpush1.bf16.msra.mxu0 0
    %4967 = vmatprep.mubr.bf16.mxu0 0
    %4968 = vmatmul.mubr.bf16.gmra.mrb[0].mxu0 %v4825
    %v4969 = vpop.f32.mrb[0].mxu0
    %v4970 = vadd.f32 0.0, %v4969
    %v4971 = vpop.f32.mrb[0].mxu0
    %v4972 = vadd.f32 0.0, %v4971
    %v4973 = vpop.f32.mrb[0].mxu0
    %v4974 = vadd.f32 0.0, %v4973
    %v4975 = vpop.f32.mrb[0].mxu0
    %v4976 = vadd.f32 0.0, %v4975
    %4977 = vmatprep.mubr.bf16.mxu0 0
    %4978 = vmatmul.mubr.bf16.gmra.mrb[0].mxu0 %v4828
    %v4979 = vpop.f32.mrb[0].mxu0
    %v4980 = vadd.f32 0.0, %v4979
    %v4981 = vpop.f32.mrb[0].mxu0
    %v4982 = vadd.f32 0.0, %v4981
    %v4983 = vpop.f32.mrb[0].mxu0
    %v4984 = vadd.f32 0.0, %v4983
    %v4985 = vpop.f32.mrb[0].mxu0
    %v4986 = vadd.f32 0.0, %v4985
    %4987 = vmatprep.mubr.bf16.mxu0 0
    %4988 = vmatmul.mubr.bf16.gmra.mrb[0].mxu0 %v4831
    %v4989 = vpop.f32.mrb[0].mxu0
    %v4990 = vadd.f32 0.0, %v4989
    %v4991 = vpop.f32.mrb[0].mxu0
    %v4992 = vadd.f32 0.0, %v4991
    %v4993 = vpop.f32.mrb[0].mxu0
    %v4994 = vadd.f32 0.0, %v4993
    %v4995 = vpop.f32.mrb[0].mxu0
    %v4996 = vadd.f32 0.0, %v4995
    %4997 = vmatprep.mubr.bf16.mxu0 0
    %4998 = vmatmul.mubr.bf16.gmra.mrb[0].mxu0 %v4834
    %v4999 = vpop.f32.mrb[0].mxu0
    %v5000 = vadd.f32 0.0, %v4999
    %v5001 = vpop.f32.mrb[0].mxu0
    %v5002 = vadd.f32 0.0, %v5001
    %v5003 = vpop.f32.mrb[0].mxu0
    %v5004 = vadd.f32 0.0, %v5003
    %v5005 = vpop.f32.mrb[0].mxu0
    %v5006 = vadd.f32 0.0, %v5005
    %5007 = vmatprep.mubr.bf16.mxu0 0
    %5008 = vmatmul.mubr.bf16.gmra.mrb[0].mxu0 %v4837
    %v5009 = vpop.f32.mrb[0].mxu0
    %v5010 = vadd.f32 0.0, %v5009
    %v5011 = vpop.f32.mrb[0].mxu0
    %v5012 = vadd.f32 0.0, %v5011
    %v5013 = vpop.f32.mrb[0].mxu0
    %v5014 = vadd.f32 0.0, %v5013
    %v5015 = vpop.f32.mrb[0].mxu0
    %v5016 = vadd.f32 0.0, %v5015
    %5017 = vmatprep.mubr.bf16.mxu0 0
    %5018 = vmatmul.mubr.bf16.gmra.mrb[0].mxu0 %v4840
    %v5019 = vpop.f32.mrb[0].mxu0
    %v5020 = vadd.f32 0.0, %v5019
    %v5021 = vpop.f32.mrb[0].mxu0
    %v5022 = vadd.f32 0.0, %v5021
    %v5023 = vpop.f32.mrb[0].mxu0
    %v5024 = vadd.f32 0.0, %v5023
    %v5025 = vpop.f32.mrb[0].mxu0
    %v5026 = vadd.f32 0.0, %v5025
    %5027 = vdwg.mxu0
    %v5028 = vld [vmem:[#allocation5] sm:$0xff]
    %v5029 = vld [vmem:[#allocation5 + $0x8] sm:$0xff]
    %v5030 = vld [vmem:[#allocation5 + $0x10] sm:$0xff]
    %v5031 = vld [vmem:[#allocation5 + $0x18] sm:$0xff]
    %v5032 = vld [vmem:[#allocation5 + $0x20] sm:$0xff]
    %v5033 = vld [vmem:[#allocation5 + $0x28] sm:$0xff]
    %v5034 = vld [vmem:[#allocation5 + $0x30] sm:$0xff]
    %v5035 = vld [vmem:[#allocation5 + $0x38] sm:$0xff]
    %v5036 = vld [vmem:[#allocation5 + $0x40] sm:$0xff]
    %v5037 = vld [vmem:[#allocation5 + $0x48] sm:$0xff]
    %v5038 = vld [vmem:[#allocation5 + $0x50] sm:$0xff]
    %v5039 = vld [vmem:[#allocation5 + $0x58] sm:$0xff]
    %v5040 = vld [vmem:[#allocation5 + $0x60] sm:$0xff]
    %v5041 = vld [vmem:[#allocation5 + $0x68] sm:$0xff]
    %v5042 = vld [vmem:[#allocation5 + $0x70] sm:$0xff]
    %v5043 = vld [vmem:[#allocation5 + $0x78] sm:$0xff]
    %v5044 = vld [vmem:[#allocation5 + $0x80] sm:$0xff]
    %v5045 = vld [vmem:[#allocation5 + $0x88] sm:$0xff]
    %v5046 = vld [vmem:[#allocation5 + $0x90] sm:$0xff]
    %v5047 = vld [vmem:[#allocation5 + $0x98] sm:$0xff]
    %v5048 = vld [vmem:[#allocation5 + $0xa0] sm:$0xff]
    %v5049 = vld [vmem:[#allocation5 + $0xa8] sm:$0xff]
    %v5050 = vld [vmem:[#allocation5 + $0xb0] sm:$0xff]
    %v5051 = vld [vmem:[#allocation5 + $0xb8] sm:$0xff]
    %v5052 = vld [vmem:[#allocation5 + $0xc0] sm:$0xff]
    %v5053 = vld [vmem:[#allocation5 + $0xc8] sm:$0xff]
    %v5054 = vld [vmem:[#allocation5 + $0xd0] sm:$0xff]
    %v5055 = vld [vmem:[#allocation5 + $0xd8] sm:$0xff]
    %v5056 = vld [vmem:[#allocation5 + $0xe0] sm:$0xff]
    %v5057 = vld [vmem:[#allocation5 + $0xe8] sm:$0xff]
    %v5058 = vld [vmem:[#allocation5 + $0xf0] sm:$0xff]
    %v5059 = vld [vmem:[#allocation5 + $0xf8] sm:$0xff]
    %v5060 = vld [vmem:[#allocation5 + $0x100] sm:$0xff]
    %v5061 = vld [vmem:[#allocation5 + $0x108] sm:$0xff]
    %v5062 = vld [vmem:[#allocation5 + $0x110] sm:$0xff]
    %v5063 = vld [vmem:[#allocation5 + $0x118] sm:$0xff]
    %v5064 = vld [vmem:[#allocation5 + $0x120] sm:$0xff]
    %v5065 = vld [vmem:[#allocation5 + $0x128] sm:$0xff]
    %v5066 = vld [vmem:[#allocation5 + $0x130] sm:$0xff]
    %v5067 = vld [vmem:[#allocation5 + $0x138] sm:$0xff]
    %v5068 = vld [vmem:[#allocation5 + $0x140] sm:$0xff]
    %v5069 = vld [vmem:[#allocation5 + $0x148] sm:$0xff]
    %v5070 = vld [vmem:[#allocation5 + $0x150] sm:$0xff]
    %v5071 = vld [vmem:[#allocation5 + $0x158] sm:$0xff]
    %v5072 = vld [vmem:[#allocation5 + $0x160] sm:$0xff]
    %v5073 = vld [vmem:[#allocation5 + $0x168] sm:$0xff]
    %v5074 = vld [vmem:[#allocation5 + $0x170] sm:$0xff]
    %v5075 = vld [vmem:[#allocation5 + $0x178] sm:$0xff]
    %v5076 = vadd.f32 %v5028, %v4877
    %v5077 = vadd.f32 %v5029, %v4879
    %v5078 = vadd.f32 %v5030, %v4970
    %v5079 = vadd.f32 %v5031, %v4972
    %v5080 = vadd.f32 %v5032, %v4881
    %v5081 = vadd.f32 %v5033, %v4883
    %v5082 = vadd.f32 %v5034, %v4974
    %v5083 = vadd.f32 %v5035, %v4976
    %v5084 = vadd.f32 %v5036, %v4887
    %v5085 = vadd.f32 %v5037, %v4889
    %v5086 = vadd.f32 %v5038, %v4980
    %v5087 = vadd.f32 %v5039, %v4982
    %v5088 = vadd.f32 %v5040, %v4891
    %v5089 = vadd.f32 %v5041, %v4893
    %v5090 = vadd.f32 %v5042, %v4984
    %v5091 = vadd.f32 %v5043, %v4986
    %v5092 = vadd.f32 %v5044, %v4897
    %v5093 = vadd.f32 %v5045, %v4899
    %v5094 = vadd.f32 %v5046, %v4990
    %v5095 = vadd.f32 %v5047, %v4992
    %v5096 = vadd.f32 %v5048, %v4901
    %v5097 = vadd.f32 %v5049, %v4903
    %v5098 = vadd.f32 %v5050, %v4994
    %v5099 = vadd.f32 %v5051, %v4996
    %v5100 = vadd.f32 %v5052, %v4907
    %v5101 = vadd.f32 %v5053, %v4909
    %v5102 = vadd.f32 %v5054, %v5000
    %v5103 = vadd.f32 %v5055, %v5002
    %v5104 = vadd.f32 %v5056, %v4911
    %v5105 = vadd.f32 %v5057, %v4913
    %v5106 = vadd.f32 %v5058, %v5004
    %v5107 = vadd.f32 %v5059, %v5006
    %v5108 = vadd.f32 %v5060, %v4917
    %v5109 = vadd.f32 %v5061, %v4919
    %v5110 = vadd.f32 %v5062, %v5010
    %v5111 = vadd.f32 %v5063, %v5012
    %v5112 = vadd.f32 %v5064, %v4921
    %v5113 = vadd.f32 %v5065, %v4923
    %v5114 = vadd.f32 %v5066, %v5014
    %v5115 = vadd.f32 %v5067, %v5016
    %v5116 = vadd.f32 %v5068, %v4927
    %v5117 = vadd.f32 %v5069, %v4929
    %v5118 = vadd.f32 %v5070, %v5020
    %v5119 = vadd.f32 %v5071, %v5022
    %v5120 = vadd.f32 %v5072, %v4931
    %v5121 = vadd.f32 %v5073, %v4933
    %v5122 = vadd.f32 %v5074, %v5024
    %v5123 = vadd.f32 %v5075, %v5026
    %5124 = vst [vmem:[#allocation5] sm:$0xff] %v5076
    %5125 = vst [vmem:[#allocation5 + $0x8] sm:$0xff] %v5077
    %5126 = vst [vmem:[#allocation5 + $0x10] sm:$0xff] %v5078
    %5127 = vst [vmem:[#allocation5 + $0x18] sm:$0xff] %v5079
    %5128 = vst [vmem:[#allocation5 + $0x20] sm:$0xff] %v5080
    %5129 = vst [vmem:[#allocation5 + $0x28] sm:$0xff] %v5081
    %5130 = vst [vmem:[#allocation5 + $0x30] sm:$0xff] %v5082
    %5131 = vst [vmem:[#allocation5 + $0x38] sm:$0xff] %v5083
    %5132 = vst [vmem:[#allocation5 + $0x40] sm:$0xff] %v5084
    %5133 = vst [vmem:[#allocation5 + $0x48] sm:$0xff] %v5085
    %5134 = vst [vmem:[#allocation5 + $0x50] sm:$0xff] %v5086
    %5135 = vst [vmem:[#allocation5 + $0x58] sm:$0xff] %v5087
    %5136 = vst [vmem:[#allocation5 + $0x60] sm:$0xff] %v5088
    %5137 = vst [vmem:[#allocation5 + $0x68] sm:$0xff] %v5089
    %5138 = vst [vmem:[#allocation5 + $0x70] sm:$0xff] %v5090
    %5139 = vst [vmem:[#allocation5 + $0x78] sm:$0xff] %v5091
    %5140 = vst [vmem:[#allocation5 + $0x80] sm:$0xff] %v5092
    %5141 = vst [vmem:[#allocation5 + $0x88] sm:$0xff] %v5093
    %5142 = vst [vmem:[#allocation5 + $0x90] sm:$0xff] %v5094
    %5143 = vst [vmem:[#allocation5 + $0x98] sm:$0xff] %v5095
    %5144 = vst [vmem:[#allocation5 + $0xa0] sm:$0xff] %v5096
    %5145 = vst [vmem:[#allocation5 + $0xa8] sm:$0xff] %v5097
    %5146 = vst [vmem:[#allocation5 + $0xb0] sm:$0xff] %v5098
    %5147 = vst [vmem:[#allocation5 + $0xb8] sm:$0xff] %v5099
    %5148 = vst [vmem:[#allocation5 + $0xc0] sm:$0xff] %v5100
    %5149 = vst [vmem:[#allocation5 + $0xc8] sm:$0xff] %v5101
    %5150 = vst [vmem:[#allocation5 + $0xd0] sm:$0xff] %v5102
    %5151 = vst [vmem:[#allocation5 + $0xd8] sm:$0xff] %v5103
    %5152 = vst [vmem:[#allocation5 + $0xe0] sm:$0xff] %v5104
    %5153 = vst [vmem:[#allocation5 + $0xe8] sm:$0xff] %v5105
    %5154 = vst [vmem:[#allocation5 + $0xf0] sm:$0xff] %v5106
    %5155 = vst [vmem:[#allocation5 + $0xf8] sm:$0xff] %v5107
    %5156 = vst [vmem:[#allocation5 + $0x100] sm:$0xff] %v5108
    %5157 = vst [vmem:[#allocation5 + $0x108] sm:$0xff] %v5109
    %5158 = vst [vmem:[#allocation5 + $0x110] sm:$0xff] %v5110
    %5159 = vst [vmem:[#allocation5 + $0x118] sm:$0xff] %v5111
    %5160 = vst [vmem:[#allocation5 + $0x120] sm:$0xff] %v5112
    %5161 = vst [vmem:[#allocation5 + $0x128] sm:$0xff] %v5113
    %5162 = vst [vmem:[#allocation5 + $0x130] sm:$0xff] %v5114
    %5163 = vst [vmem:[#allocation5 + $0x138] sm:$0xff] %v5115
    %5164 = vst [vmem:[#allocation5 + $0x140] sm:$0xff] %v5116
    %5165 = vst [vmem:[#allocation5 + $0x148] sm:$0xff] %v5117
    %5166 = vst [vmem:[#allocation5 + $0x150] sm:$0xff] %v5118
    %5167 = vst [vmem:[#allocation5 + $0x158] sm:$0xff] %v5119
    %5168 = vst [vmem:[#allocation5 + $0x160] sm:$0xff] %v5120
    %5169 = vst [vmem:[#allocation5 + $0x168] sm:$0xff] %v5121
    %5170 = vst [vmem:[#allocation5 + $0x170] sm:$0xff] %v5122
    %5171 = vst [vmem:[#allocation5 + $0x178] sm:$0xff] %v5123
    %v5172 = vld [vmem:[#allocation4 + $0x2] sm:$0xff]
    %v5173 = vld [vmem:[#allocation4 + $0x12] sm:$0xff]
    %v5174 = vld [vmem:[#allocation4 + $0x22] sm:$0xff]
    %v5175 = vld [vmem:[#allocation4 + $0x32] sm:$0xff]
    %v5176 = vld [vmem:[#allocation4 + $0x42] sm:$0xff]
    %v5177 = vld [vmem:[#allocation4 + $0x52] sm:$0xff]
    %v5178 = vld [vmem:[#allocation4 + $0x82] sm:$0xff]
    %v5179 = vld [vmem:[#allocation4 + $0x92] sm:$0xff]
    %v5180 = vld [vmem:[#allocation4 + $0xa2] sm:$0xff]
    %v5181 = vld [vmem:[#allocation4 + $0xb2] sm:$0xff]
    %v5182 = vld [vmem:[#allocation4 + $0xc2] sm:$0xff]
    %v5183 = vld [vmem:[#allocation4 + $0xd2] sm:$0xff]
    %v5184 = vpack.c.bf16 %v5173, %v5172
    %v5185 = vpack.c.bf16 %v5175, %v5174
    %v5186 = vpack.c.bf16 %v5177, %v5176
    %v5187 = vpack.c.bf16 %v5179, %v5178
    %v5188 = vpack.c.bf16 %v5181, %v5180
    %v5189 = vpack.c.bf16 %v5183, %v5182
    %s5190 = scalar_lea.vmem [#allocation6], 256
    %v5191 = vld [vmem:[%s5190] sm:$0xff]
    %v5192 = vld [vmem:[%s5190 + $0x8] sm:$0xff]
    %v5193 = vld [vmem:[%s5190 + $0x10] sm:$0xff]
    %v5194 = vld [vmem:[%s5190 + $0x18] sm:$0xff]
    %v5195 = vld [vmem:[%s5190 + $0x20] sm:$0xff]
    %v5196 = vld [vmem:[%s5190 + $0x28] sm:$0xff]
    %v5197 = vld [vmem:[%s5190 + $0x30] sm:$0xff]
    %v5198 = vld [vmem:[%s5190 + $0x38] sm:$0xff]
    %v5199 = vld [vmem:[%s5190 + $0x40] sm:$0xff]
    %v5200 = vld [vmem:[%s5190 + $0x48] sm:$0xff]
    %v5201 = vld [vmem:[%s5190 + $0x50] sm:$0xff]
    %v5202 = vld [vmem:[%s5190 + $0x58] sm:$0xff]
    %v5203 = vld [vmem:[%s5190 + $0x60] sm:$0xff]
    %v5204 = vld [vmem:[%s5190 + $0x68] sm:$0xff]
    %v5205 = vld [vmem:[%s5190 + $0x70] sm:$0xff]
    %v5206 = vld [vmem:[%s5190 + $0x78] sm:$0xff]
    %v5208 = vsel %vm1963, %v5184, 0
    %v5211 = vsel %vm1963, %v5185, 0
    %v5214 = vsel %vm1963, %v5186, 0
    %v5217 = vsel %vm1963, %v5187, 0
    %v5220 = vsel %vm1963, %v5188, 0
    %v5223 = vsel %vm1963, %v5189, 0
    %5225 = vmatprep.subr.bf16.mxu0 %v5192
    %5226 = vmatpush1.bf16.msra.mxu0 %v5191
    %5227 = vmatprep.subr.bf16.mxu0 %v5196
    %5228 = vmatpush1.bf16.msra.mxu0 %v5195
    %5229 = vmatprep.subr.bf16.mxu0 %v5200
    %5230 = vmatpush1.bf16.msra.mxu0 %v5199
    %5231 = vmatprep.subr.bf16.mxu0 %v5204
    %5232 = vmatpush1.bf16.msra.mxu0 %v5203
    %5233 = vmatprep.subr.bf16.mxu0 0
    %5234 = vmatpush1.bf16.msra.mxu0 0
    %5235 = vmatprep.subr.bf16.mxu0 0
    %5236 = vmatpush1.bf16.msra.mxu0 0
    %5237 = vmatprep.subr.bf16.mxu0 0
    %5238 = vmatpush1.bf16.msra.mxu0 0
    %5239 = vmatprep.subr.bf16.mxu0 0
    %5240 = vmatpush1.bf16.msra.mxu0 0
    %5241 = vmatprep.subr.bf16.mxu0 0
    %5242 = vmatpush1.bf16.msra.mxu0 0
    %5243 = vmatprep.subr.bf16.mxu0 0
    %5244 = vmatpush1.bf16.msra.mxu0 0
    %5245 = vmatprep.subr.bf16.mxu0 0
    %5246 = vmatpush1.bf16.msra.mxu0 0
    %5247 = vmatprep.subr.bf16.mxu0 0
    %5248 = vmatpush1.bf16.msra.mxu0 0
    %5249 = vmatprep.subr.bf16.mxu0 0
    %5250 = vmatpush1.bf16.msra.mxu0 0
    %5251 = vmatprep.subr.bf16.mxu0 0
    %5252 = vmatpush1.bf16.msra.mxu0 0
    %5253 = vmatprep.subr.bf16.mxu0 0
    %5254 = vmatpush1.bf16.msra.mxu0 0
    %5255 = vmatprep.subr.bf16.mxu0 0
    %5256 = vmatpush1.bf16.msra.mxu0 0
    %5257 = vmatprep.mubr.bf16.mxu0 0
    %5258 = vmatmul.mubr.bf16.gmra.mrb[0].mxu0 %v5208
    %v5259 = vpop.f32.mrb[0].mxu0
    %v5260 = vadd.f32 0.0, %v5259
    %v5261 = vpop.f32.mrb[0].mxu0
    %v5262 = vadd.f32 0.0, %v5261
    %v5263 = vpop.f32.mrb[0].mxu0
    %v5264 = vadd.f32 0.0, %v5263
    %v5265 = vpop.f32.mrb[0].mxu0
    %v5266 = vadd.f32 0.0, %v5265
    %5267 = vmatprep.mubr.bf16.mxu0 0
    %5268 = vmatmul.mubr.bf16.gmra.mrb[0].mxu0 %v5211
    %v5269 = vpop.f32.mrb[0].mxu0
    %v5270 = vadd.f32 0.0, %v5269
    %v5271 = vpop.f32.mrb[0].mxu0
    %v5272 = vadd.f32 0.0, %v5271
    %v5273 = vpop.f32.mrb[0].mxu0
    %v5274 = vadd.f32 0.0, %v5273
    %v5275 = vpop.f32.mrb[0].mxu0
    %v5276 = vadd.f32 0.0, %v5275
    %5277 = vmatprep.mubr.bf16.mxu0 0
    %5278 = vmatmul.mubr.bf16.gmra.mrb[0].mxu0 %v5214
    %v5279 = vpop.f32.mrb[0].mxu0
    %v5280 = vadd.f32 0.0, %v5279
    %v5281 = vpop.f32.mrb[0].mxu0
    %v5282 = vadd.f32 0.0, %v5281
    %v5283 = vpop.f32.mrb[0].mxu0
    %v5284 = vadd.f32 0.0, %v5283
    %v5285 = vpop.f32.mrb[0].mxu0
    %v5286 = vadd.f32 0.0, %v5285
    %5287 = vmatprep.mubr.bf16.mxu0 0
    %5288 = vmatmul.mubr.bf16.gmra.mrb[0].mxu0 %v5217
    %v5289 = vpop.f32.mrb[0].mxu0
    %v5290 = vadd.f32 0.0, %v5289
    %v5291 = vpop.f32.mrb[0].mxu0
    %v5292 = vadd.f32 0.0, %v5291
    %v5293 = vpop.f32.mrb[0].mxu0
    %v5294 = vadd.f32 0.0, %v5293
    %v5295 = vpop.f32.mrb[0].mxu0
    %v5296 = vadd.f32 0.0, %v5295
    %5297 = vmatprep.mubr.bf16.mxu0 0
    %5298 = vmatmul.mubr.bf16.gmra.mrb[0].mxu0 %v5220
    %v5299 = vpop.f32.mrb[0].mxu0
    %v5300 = vadd.f32 0.0, %v5299
    %v5301 = vpop.f32.mrb[0].mxu0
    %v5302 = vadd.f32 0.0, %v5301
    %v5303 = vpop.f32.mrb[0].mxu0
    %v5304 = vadd.f32 0.0, %v5303
    %v5305 = vpop.f32.mrb[0].mxu0
    %v5306 = vadd.f32 0.0, %v5305
    %5307 = vmatprep.mubr.bf16.mxu0 0
    %5308 = vmatmul.mubr.bf16.gmra.mrb[0].mxu0 %v5223
    %v5309 = vpop.f32.mrb[0].mxu0
    %v5310 = vadd.f32 0.0, %v5309
    %v5311 = vpop.f32.mrb[0].mxu0
    %v5312 = vadd.f32 0.0, %v5311
    %v5313 = vpop.f32.mrb[0].mxu0
    %v5314 = vadd.f32 0.0, %v5313
    %v5315 = vpop.f32.mrb[0].mxu0
    %v5316 = vadd.f32 0.0, %v5315
    %5317 = vdwg.mxu0
    %5318 = vmatprep.subr.bf16.mxu0 %v5194
    %5319 = vmatpush1.bf16.msra.mxu0 %v5193
    %5320 = vmatprep.subr.bf16.mxu0 %v5198
    %5321 = vmatpush1.bf16.msra.mxu0 %v5197
    %5322 = vmatprep.subr.bf16.mxu0 %v5202
    %5323 = vmatpush1.bf16.msra.mxu0 %v5201
    %5324 = vmatprep.subr.bf16.mxu0 %v5206
    %5325 = vmatpush1.bf16.msra.mxu0 %v5205
    %5326 = vmatprep.subr.bf16.mxu0 0
    %5327 = vmatpush1.bf16.msra.mxu0 0
    %5328 = vmatprep.subr.bf16.mxu0 0
    %5329 = vmatpush1.bf16.msra.mxu0 0
    %5330 = vmatprep.subr.bf16.mxu0 0
    %5331 = vmatpush1.bf16.msra.mxu0 0
    %5332 = vmatprep.subr.bf16.mxu0 0
    %5333 = vmatpush1.bf16.msra.mxu0 0
    %5334 = vmatprep.subr.bf16.mxu0 0
    %5335 = vmatpush1.bf16.msra.mxu0 0
    %5336 = vmatprep.subr.bf16.mxu0 0
    %5337 = vmatpush1.bf16.msra.mxu0 0
    %5338 = vmatprep.subr.bf16.mxu0 0
    %5339 = vmatpush1.bf16.msra.mxu0 0
    %5340 = vmatprep.subr.bf16.mxu0 0
    %5341 = vmatpush1.bf16.msra.mxu0 0
    %5342 = vmatprep.subr.bf16.mxu0 0
    %5343 = vmatpush1.bf16.msra.mxu0 0
    %5344 = vmatprep.subr.bf16.mxu0 0
    %5345 = vmatpush1.bf16.msra.mxu0 0
    %5346 = vmatprep.subr.bf16.mxu0 0
    %5347 = vmatpush1.bf16.msra.mxu0 0
    %5348 = vmatprep.subr.bf16.mxu0 0
    %5349 = vmatpush1.bf16.msra.mxu0 0
    %5350 = vmatprep.mubr.bf16.mxu0 0
    %5351 = vmatmul.mubr.bf16.gmra.mrb[0].mxu0 %v5208
    %v5352 = vpop.f32.mrb[0].mxu0
    %v5353 = vadd.f32 0.0, %v5352
    %v5354 = vpop.f32.mrb[0].mxu0
    %v5355 = vadd.f32 0.0, %v5354
    %v5356 = vpop.f32.mrb[0].mxu0
    %v5357 = vadd.f32 0.0, %v5356
    %v5358 = vpop.f32.mrb[0].mxu0
    %v5359 = vadd.f32 0.0, %v5358
    %5360 = vmatprep.mubr.bf16.mxu0 0
    %5361 = vmatmul.mubr.bf16.gmra.mrb[0].mxu0 %v5211
    %v5362 = vpop.f32.mrb[0].mxu0
    %v5363 = vadd.f32 0.0, %v5362
    %v5364 = vpop.f32.mrb[0].mxu0
    %v5365 = vadd.f32 0.0, %v5364
    %v5366 = vpop.f32.mrb[0].mxu0
    %v5367 = vadd.f32 0.0, %v5366
    %v5368 = vpop.f32.mrb[0].mxu0
    %v5369 = vadd.f32 0.0, %v5368
    %5370 = vmatprep.mubr.bf16.mxu0 0
    %5371 = vmatmul.mubr.bf16.gmra.mrb[0].mxu0 %v5214
    %v5372 = vpop.f32.mrb[0].mxu0
    %v5373 = vadd.f32 0.0, %v5372
    %v5374 = vpop.f32.mrb[0].mxu0
    %v5375 = vadd.f32 0.0, %v5374
    %v5376 = vpop.f32.mrb[0].mxu0
    %v5377 = vadd.f32 0.0, %v5376
    %v5378 = vpop.f32.mrb[0].mxu0
    %v5379 = vadd.f32 0.0, %v5378
    %5380 = vmatprep.mubr.bf16.mxu0 0
    %5381 = vmatmul.mubr.bf16.gmra.mrb[0].mxu0 %v5217
    %v5382 = vpop.f32.mrb[0].mxu0
    %v5383 = vadd.f32 0.0, %v5382
    %v5384 = vpop.f32.mrb[0].mxu0
    %v5385 = vadd.f32 0.0, %v5384
    %v5386 = vpop.f32.mrb[0].mxu0
    %v5387 = vadd.f32 0.0, %v5386
    %v5388 = vpop.f32.mrb[0].mxu0
    %v5389 = vadd.f32 0.0, %v5388
    %5390 = vmatprep.mubr.bf16.mxu0 0
    %5391 = vmatmul.mubr.bf16.gmra.mrb[0].mxu0 %v5220
    %v5392 = vpop.f32.mrb[0].mxu0
    %v5393 = vadd.f32 0.0, %v5392
    %v5394 = vpop.f32.mrb[0].mxu0
    %v5395 = vadd.f32 0.0, %v5394
    %v5396 = vpop.f32.mrb[0].mxu0
    %v5397 = vadd.f32 0.0, %v5396
    %v5398 = vpop.f32.mrb[0].mxu0
    %v5399 = vadd.f32 0.0, %v5398
    %5400 = vmatprep.mubr.bf16.mxu0 0
    %5401 = vmatmul.mubr.bf16.gmra.mrb[0].mxu0 %v5223
    %v5402 = vpop.f32.mrb[0].mxu0
    %v5403 = vadd.f32 0.0, %v5402
    %v5404 = vpop.f32.mrb[0].mxu0
    %v5405 = vadd.f32 0.0, %v5404
    %v5406 = vpop.f32.mrb[0].mxu0
    %v5407 = vadd.f32 0.0, %v5406
    %v5408 = vpop.f32.mrb[0].mxu0
    %v5409 = vadd.f32 0.0, %v5408
    %5410 = vdwg.mxu0
    %v5411 = vld [vmem:[#allocation5] sm:$0xff]
    %v5412 = vld [vmem:[#allocation5 + $0x8] sm:$0xff]
    %v5413 = vld [vmem:[#allocation5 + $0x10] sm:$0xff]
    %v5414 = vld [vmem:[#allocation5 + $0x18] sm:$0xff]
    %v5415 = vld [vmem:[#allocation5 + $0x20] sm:$0xff]
    %v5416 = vld [vmem:[#allocation5 + $0x28] sm:$0xff]
    %v5417 = vld [vmem:[#allocation5 + $0x30] sm:$0xff]
    %v5418 = vld [vmem:[#allocation5 + $0x38] sm:$0xff]
    %v5419 = vld [vmem:[#allocation5 + $0x40] sm:$0xff]
    %v5420 = vld [vmem:[#allocation5 + $0x48] sm:$0xff]
    %v5421 = vld [vmem:[#allocation5 + $0x50] sm:$0xff]
    %v5422 = vld [vmem:[#allocation5 + $0x58] sm:$0xff]
    %v5423 = vld [vmem:[#allocation5 + $0x60] sm:$0xff]
    %v5424 = vld [vmem:[#allocation5 + $0x68] sm:$0xff]
    %v5425 = vld [vmem:[#allocation5 + $0x70] sm:$0xff]
    %v5426 = vld [vmem:[#allocation5 + $0x78] sm:$0xff]
    %v5427 = vld [vmem:[#allocation5 + $0x80] sm:$0xff]
    %v5428 = vld [vmem:[#allocation5 + $0x88] sm:$0xff]
    %v5429 = vld [vmem:[#allocation5 + $0x90] sm:$0xff]
    %v5430 = vld [vmem:[#allocation5 + $0x98] sm:$0xff]
    %v5431 = vld [vmem:[#allocation5 + $0xa0] sm:$0xff]
    %v5432 = vld [vmem:[#allocation5 + $0xa8] sm:$0xff]
    %v5433 = vld [vmem:[#allocation5 + $0xb0] sm:$0xff]
    %v5434 = vld [vmem:[#allocation5 + $0xb8] sm:$0xff]
    %v5435 = vld [vmem:[#allocation5 + $0xc0] sm:$0xff]
    %v5436 = vld [vmem:[#allocation5 + $0xc8] sm:$0xff]
    %v5437 = vld [vmem:[#allocation5 + $0xd0] sm:$0xff]
    %v5438 = vld [vmem:[#allocation5 + $0xd8] sm:$0xff]
    %v5439 = vld [vmem:[#allocation5 + $0xe0] sm:$0xff]
    %v5440 = vld [vmem:[#allocation5 + $0xe8] sm:$0xff]
    %v5441 = vld [vmem:[#allocation5 + $0xf0] sm:$0xff]
    %v5442 = vld [vmem:[#allocation5 + $0xf8] sm:$0xff]
    %v5443 = vld [vmem:[#allocation5 + $0x100] sm:$0xff]
    %v5444 = vld [vmem:[#allocation5 + $0x108] sm:$0xff]
    %v5445 = vld [vmem:[#allocation5 + $0x110] sm:$0xff]
    %v5446 = vld [vmem:[#allocation5 + $0x118] sm:$0xff]
    %v5447 = vld [vmem:[#allocation5 + $0x120] sm:$0xff]
    %v5448 = vld [vmem:[#allocation5 + $0x128] sm:$0xff]
    %v5449 = vld [vmem:[#allocation5 + $0x130] sm:$0xff]
    %v5450 = vld [vmem:[#allocation5 + $0x138] sm:$0xff]
    %v5451 = vld [vmem:[#allocation5 + $0x140] sm:$0xff]
    %v5452 = vld [vmem:[#allocation5 + $0x148] sm:$0xff]
    %v5453 = vld [vmem:[#allocation5 + $0x150] sm:$0xff]
    %v5454 = vld [vmem:[#allocation5 + $0x158] sm:$0xff]
    %v5455 = vld [vmem:[#allocation5 + $0x160] sm:$0xff]
    %v5456 = vld [vmem:[#allocation5 + $0x168] sm:$0xff]
    %v5457 = vld [vmem:[#allocation5 + $0x170] sm:$0xff]
    %v5458 = vld [vmem:[#allocation5 + $0x178] sm:$0xff]
    %v5459 = vadd.f32 %v5411, %v5260
    %v5460 = vadd.f32 %v5412, %v5262
    %v5461 = vadd.f32 %v5413, %v5353
    %v5462 = vadd.f32 %v5414, %v5355
    %v5463 = vadd.f32 %v5415, %v5264
    %v5464 = vadd.f32 %v5416, %v5266
    %v5465 = vadd.f32 %v5417, %v5357
    %v5466 = vadd.f32 %v5418, %v5359
    %v5467 = vadd.f32 %v5419, %v5270
    %v5468 = vadd.f32 %v5420, %v5272
    %v5469 = vadd.f32 %v5421, %v5363
    %v5470 = vadd.f32 %v5422, %v5365
    %v5471 = vadd.f32 %v5423, %v5274
    %v5472 = vadd.f32 %v5424, %v5276
    %v5473 = vadd.f32 %v5425, %v5367
    %v5474 = vadd.f32 %v5426, %v5369
    %v5475 = vadd.f32 %v5427, %v5280
    %v5476 = vadd.f32 %v5428, %v5282
    %v5477 = vadd.f32 %v5429, %v5373
    %v5478 = vadd.f32 %v5430, %v5375
    %v5479 = vadd.f32 %v5431, %v5284
    %v5480 = vadd.f32 %v5432, %v5286
    %v5481 = vadd.f32 %v5433, %v5377
    %v5482 = vadd.f32 %v5434, %v5379
    %v5483 = vadd.f32 %v5435, %v5290
    %v5484 = vadd.f32 %v5436, %v5292
    %v5485 = vadd.f32 %v5437, %v5383
    %v5486 = vadd.f32 %v5438, %v5385
    %v5487 = vadd.f32 %v5439, %v5294
    %v5488 = vadd.f32 %v5440, %v5296
    %v5489 = vadd.f32 %v5441, %v5387
    %v5490 = vadd.f32 %v5442, %v5389
    %v5491 = vadd.f32 %v5443, %v5300
    %v5492 = vadd.f32 %v5444, %v5302
    %v5493 = vadd.f32 %v5445, %v5393
    %v5494 = vadd.f32 %v5446, %v5395
    %v5495 = vadd.f32 %v5447, %v5304
    %v5496 = vadd.f32 %v5448, %v5306
    %v5497 = vadd.f32 %v5449, %v5397
    %v5498 = vadd.f32 %v5450, %v5399
    %v5499 = vadd.f32 %v5451, %v5310
    %v5500 = vadd.f32 %v5452, %v5312
    %v5501 = vadd.f32 %v5453, %v5403
    %v5502 = vadd.f32 %v5454, %v5405
    %v5503 = vadd.f32 %v5455, %v5314
    %v5504 = vadd.f32 %v5456, %v5316
    %v5505 = vadd.f32 %v5457, %v5407
    %v5506 = vadd.f32 %v5458, %v5409
    %5507 = vst [vmem:[#allocation5] sm:$0xff] %v5459
    %5508 = vst [vmem:[#allocation5 + $0x8] sm:$0xff] %v5460
    %5509 = vst [vmem:[#allocation5 + $0x10] sm:$0xff] %v5461
    %5510 = vst [vmem:[#allocation5 + $0x18] sm:$0xff] %v5462
    %5511 = vst [vmem:[#allocation5 + $0x20] sm:$0xff] %v5463
    %5512 = vst [vmem:[#allocation5 + $0x28] sm:$0xff] %v5464
    %5513 = vst [vmem:[#allocation5 + $0x30] sm:$0xff] %v5465
    %5514 = vst [vmem:[#allocation5 + $0x38] sm:$0xff] %v5466
    %5515 = vst [vmem:[#allocation5 + $0x40] sm:$0xff] %v5467
    %5516 = vst [vmem:[#allocation5 + $0x48] sm:$0xff] %v5468
    %5517 = vst [vmem:[#allocation5 + $0x50] sm:$0xff] %v5469
    %5518 = vst [vmem:[#allocation5 + $0x58] sm:$0xff] %v5470
    %5519 = vst [vmem:[#allocation5 + $0x60] sm:$0xff] %v5471
    %5520 = vst [vmem:[#allocation5 + $0x68] sm:$0xff] %v5472
    %5521 = vst [vmem:[#allocation5 + $0x70] sm:$0xff] %v5473
    %5522 = vst [vmem:[#allocation5 + $0x78] sm:$0xff] %v5474
    %5523 = vst [vmem:[#allocation5 + $0x80] sm:$0xff] %v5475
    %5524 = vst [vmem:[#allocation5 + $0x88] sm:$0xff] %v5476
    %5525 = vst [vmem:[#allocation5 + $0x90] sm:$0xff] %v5477
    %5526 = vst [vmem:[#allocation5 + $0x98] sm:$0xff] %v5478
    %5527 = vst [vmem:[#allocation5 + $0xa0] sm:$0xff] %v5479
    %5528 = vst [vmem:[#allocation5 + $0xa8] sm:$0xff] %v5480
    %5529 = vst [vmem:[#allocation5 + $0xb0] sm:$0xff] %v5481
    %5530 = vst [vmem:[#allocation5 + $0xb8] sm:$0xff] %v5482
    %5531 = vst [vmem:[#allocation5 + $0xc0] sm:$0xff] %v5483
    %5532 = vst [vmem:[#allocation5 + $0xc8] sm:$0xff] %v5484
    %5533 = vst [vmem:[#allocation5 + $0xd0] sm:$0xff] %v5485
    %5534 = vst [vmem:[#allocation5 + $0xd8] sm:$0xff] %v5486
    %5535 = vst [vmem:[#allocation5 + $0xe0] sm:$0xff] %v5487
    %5536 = vst [vmem:[#allocation5 + $0xe8] sm:$0xff] %v5488
    %5537 = vst [vmem:[#allocation5 + $0xf0] sm:$0xff] %v5489
    %5538 = vst [vmem:[#allocation5 + $0xf8] sm:$0xff] %v5490
    %5539 = vst [vmem:[#allocation5 + $0x100] sm:$0xff] %v5491
    %5540 = vst [vmem:[#allocation5 + $0x108] sm:$0xff] %v5492
    %5541 = vst [vmem:[#allocation5 + $0x110] sm:$0xff] %v5493
    %5542 = vst [vmem:[#allocation5 + $0x118] sm:$0xff] %v5494
    %5543 = vst [vmem:[#allocation5 + $0x120] sm:$0xff] %v5495
    %5544 = vst [vmem:[#allocation5 + $0x128] sm:$0xff] %v5496
    %5545 = vst [vmem:[#allocation5 + $0x130] sm:$0xff] %v5497
    %5546 = vst [vmem:[#allocation5 + $0x138] sm:$0xff] %v5498
    %5547 = vst [vmem:[#allocation5 + $0x140] sm:$0xff] %v5499
    %5548 = vst [vmem:[#allocation5 + $0x148] sm:$0xff] %v5500
    %5549 = vst [vmem:[#allocation5 + $0x150] sm:$0xff] %v5501
    %5550 = vst [vmem:[#allocation5 + $0x158] sm:$0xff] %v5502
    %5551 = vst [vmem:[#allocation5 + $0x160] sm:$0xff] %v5503
    %5552 = vst [vmem:[#allocation5 + $0x168] sm:$0xff] %v5504
    %5553 = vst [vmem:[#allocation5 + $0x170] sm:$0xff] %v5505
    %5554 = vst [vmem:[#allocation5 + $0x178] sm:$0xff] %v5506
    %v5555 = vld [vmem:[%s4484] sm:$0xff]
    %v5556 = vld [vmem:[%s4484 + $0x10] sm:$0xff]
    %v5557 = vld [vmem:[%s4484 + $0x20] sm:$0xff]
    %v5558 = vld [vmem:[%s4484 + $0x30] sm:$0xff]
    %v5559 = vld [vmem:[%s4484 + $0x40] sm:$0xff]
    %v5560 = vld [vmem:[%s4484 + $0x50] sm:$0xff]
    %v5561 = vld [vmem:[%s4484 + $0x80] sm:$0xff]
    %v5562 = vld [vmem:[%s4484 + $0x90] sm:$0xff]
    %v5563 = vld [vmem:[%s4484 + $0xa0] sm:$0xff]
    %v5564 = vld [vmem:[%s4484 + $0xb0] sm:$0xff]
    %v5565 = vld [vmem:[%s4484 + $0xc0] sm:$0xff]
    %v5566 = vld [vmem:[%s4484 + $0xd0] sm:$0xff]
    %v5567 = vpack.c.bf16 %v5556, %v5555
    %v5568 = vpack.c.bf16 %v5558, %v5557
    %v5569 = vpack.c.bf16 %v5560, %v5559
    %v5570 = vpack.c.bf16 %v5562, %v5561
    %v5571 = vpack.c.bf16 %v5564, %v5563
    %v5572 = vpack.c.bf16 %v5566, %v5565
    %s5573 = scalar_lea.vmem [#allocation6], 384
    %v5574 = vld [vmem:[%s5573] sm:$0xff]
    %v5575 = vld [vmem:[%s5573 + $0x8] sm:$0xff]
    %v5576 = vld [vmem:[%s5573 + $0x10] sm:$0xff]
    %v5577 = vld [vmem:[%s5573 + $0x18] sm:$0xff]
    %v5578 = vld [vmem:[%s5573 + $0x20] sm:$0xff]
    %v5579 = vld [vmem:[%s5573 + $0x28] sm:$0xff]
    %v5580 = vld [vmem:[%s5573 + $0x30] sm:$0xff]
    %v5581 = vld [vmem:[%s5573 + $0x38] sm:$0xff]
    %v5582 = vld [vmem:[%s5573 + $0x40] sm:$0xff]
    %v5583 = vld [vmem:[%s5573 + $0x48] sm:$0xff]
    %v5584 = vld [vmem:[%s5573 + $0x50] sm:$0xff]
    %v5585 = vld [vmem:[%s5573 + $0x58] sm:$0xff]
    %v5586 = vld [vmem:[%s5573 + $0x60] sm:$0xff]
    %v5587 = vld [vmem:[%s5573 + $0x68] sm:$0xff]
    %v5588 = vld [vmem:[%s5573 + $0x70] sm:$0xff]
    %v5589 = vld [vmem:[%s5573 + $0x78] sm:$0xff]
    %v5591 = vsel %vm1963, %v5567, 0
    %v5594 = vsel %vm1963, %v5568, 0
    %v5597 = vsel %vm1963, %v5569, 0
    %v5600 = vsel %vm1963, %v5570, 0
    %v5603 = vsel %vm1963, %v5571, 0
    %v5606 = vsel %vm1963, %v5572, 0
    %5608 = vmatprep.subr.bf16.mxu0 %v5575
    %5609 = vmatpush1.bf16.msra.mxu0 %v5574
    %5610 = vmatprep.subr.bf16.mxu0 %v5579
    %5611 = vmatpush1.bf16.msra.mxu0 %v5578
    %5612 = vmatprep.subr.bf16.mxu0 %v5583
    %5613 = vmatpush1.bf16.msra.mxu0 %v5582
    %5614 = vmatprep.subr.bf16.mxu0 %v5587
    %5615 = vmatpush1.bf16.msra.mxu0 %v5586
    %5616 = vmatprep.subr.bf16.mxu0 0
    %5617 = vmatpush1.bf16.msra.mxu0 0
    %5618 = vmatprep.subr.bf16.mxu0 0
    %5619 = vmatpush1.bf16.msra.mxu0 0
    %5620 = vmatprep.subr.bf16.mxu0 0
    %5621 = vmatpush1.bf16.msra.mxu0 0
    %5622 = vmatprep.subr.bf16.mxu0 0
    %5623 = vmatpush1.bf16.msra.mxu0 0
    %5624 = vmatprep.subr.bf16.mxu0 0
    %5625 = vmatpush1.bf16.msra.mxu0 0
    %5626 = vmatprep.subr.bf16.mxu0 0
    %5627 = vmatpush1.bf16.msra.mxu0 0
    %5628 = vmatprep.subr.bf16.mxu0 0
    %5629 = vmatpush1.bf16.msra.mxu0 0
    %5630 = vmatprep.subr.bf16.mxu0 0
    %5631 = vmatpush1.bf16.msra.mxu0 0
    %5632 = vmatprep.subr.bf16.mxu0 0
    %5633 = vmatpush1.bf16.msra.mxu0 0
    %5634 = vmatprep.subr.bf16.mxu0 0
    %5635 = vmatpush1.bf16.msra.mxu0 0
    %5636 = vmatprep.subr.bf16.mxu0 0
    %5637 = vmatpush1.bf16.msra.mxu0 0
    %5638 = vmatprep.subr.bf16.mxu0 0
    %5639 = vmatpush1.bf16.msra.mxu0 0
    %5640 = vmatprep.mubr.bf16.mxu0 0
    %5641 = vmatmul.mubr.bf16.gmra.mrb[0].mxu0 %v5591
    %v5642 = vpop.f32.mrb[0].mxu0
    %v5643 = vadd.f32 0.0, %v5642
    %v5644 = vpop.f32.mrb[0].mxu0
    %v5645 = vadd.f32 0.0, %v5644
    %v5646 = vpop.f32.mrb[0].mxu0
    %v5647 = vadd.f32 0.0, %v5646
    %v5648 = vpop.f32.mrb[0].mxu0
    %v5649 = vadd.f32 0.0, %v5648
    %5650 = vmatprep.mubr.bf16.mxu0 0
    %5651 = vmatmul.mubr.bf16.gmra.mrb[0].mxu0 %v5594
    %v5652 = vpop.f32.mrb[0].mxu0
    %v5653 = vadd.f32 0.0, %v5652
    %v5654 = vpop.f32.mrb[0].mxu0
    %v5655 = vadd.f32 0.0, %v5654
    %v5656 = vpop.f32.mrb[0].mxu0
    %v5657 = vadd.f32 0.0, %v5656
    %v5658 = vpop.f32.mrb[0].mxu0
    %v5659 = vadd.f32 0.0, %v5658
    %5660 = vmatprep.mubr.bf16.mxu0 0
    %5661 = vmatmul.mubr.bf16.gmra.mrb[0].mxu0 %v5597
    %v5662 = vpop.f32.mrb[0].mxu0
    %v5663 = vadd.f32 0.0, %v5662
    %v5664 = vpop.f32.mrb[0].mxu0
    %v5665 = vadd.f32 0.0, %v5664
    %v5666 = vpop.f32.mrb[0].mxu0
    %v5667 = vadd.f32 0.0, %v5666
    %v5668 = vpop.f32.mrb[0].mxu0
    %v5669 = vadd.f32 0.0, %v5668
    %5670 = vmatprep.mubr.bf16.mxu0 0
    %5671 = vmatmul.mubr.bf16.gmra.mrb[0].mxu0 %v5600
    %v5672 = vpop.f32.mrb[0].mxu0
    %v5673 = vadd.f32 0.0, %v5672
    %v5674 = vpop.f32.mrb[0].mxu0
    %v5675 = vadd.f32 0.0, %v5674
    %v5676 = vpop.f32.mrb[0].mxu0
    %v5677 = vadd.f32 0.0, %v5676
    %v5678 = vpop.f32.mrb[0].mxu0
    %v5679 = vadd.f32 0.0, %v5678
    %5680 = vmatprep.mubr.bf16.mxu0 0
    %5681 = vmatmul.mubr.bf16.gmra.mrb[0].mxu0 %v5603
    %v5682 = vpop.f32.mrb[0].mxu0
    %v5683 = vadd.f32 0.0, %v5682
    %v5684 = vpop.f32.mrb[0].mxu0
    %v5685 = vadd.f32 0.0, %v5684
    %v5686 = vpop.f32.mrb[0].mxu0
    %v5687 = vadd.f32 0.0, %v5686
    %v5688 = vpop.f32.mrb[0].mxu0
    %v5689 = vadd.f32 0.0, %v5688
    %5690 = vmatprep.mubr.bf16.mxu0 0
    %5691 = vmatmul.mubr.bf16.gmra.mrb[0].mxu0 %v5606
    %v5692 = vpop.f32.mrb[0].mxu0
    %v5693 = vadd.f32 0.0, %v5692
    %v5694 = vpop.f32.mrb[0].mxu0
    %v5695 = vadd.f32 0.0, %v5694
    %v5696 = vpop.f32.mrb[0].mxu0
    %v5697 = vadd.f32 0.0, %v5696
    %v5698 = vpop.f32.mrb[0].mxu0
    %v5699 = vadd.f32 0.0, %v5698
    %5700 = vdwg.mxu0
    %5701 = vmatprep.subr.bf16.mxu0 %v5577
    %5702 = vmatpush1.bf16.msra.mxu0 %v5576
    %5703 = vmatprep.subr.bf16.mxu0 %v5581
    %5704 = vmatpush1.bf16.msra.mxu0 %v5580
    %5705 = vmatprep.subr.bf16.mxu0 %v5585
    %5706 = vmatpush1.bf16.msra.mxu0 %v5584
    %5707 = vmatprep.subr.bf16.mxu0 %v5589
    %5708 = vmatpush1.bf16.msra.mxu0 %v5588
    %5709 = vmatprep.subr.bf16.mxu0 0
    %5710 = vmatpush1.bf16.msra.mxu0 0
    %5711 = vmatprep.subr.bf16.mxu0 0
    %5712 = vmatpush1.bf16.msra.mxu0 0
    %5713 = vmatprep.subr.bf16.mxu0 0
    %5714 = vmatpush1.bf16.msra.mxu0 0
    %5715 = vmatprep.subr.bf16.mxu0 0
    %5716 = vmatpush1.bf16.msra.mxu0 0
    %5717 = vmatprep.subr.bf16.mxu0 0
    %5718 = vmatpush1.bf16.msra.mxu0 0
    %5719 = vmatprep.subr.bf16.mxu0 0
    %5720 = vmatpush1.bf16.msra.mxu0 0
    %5721 = vmatprep.subr.bf16.mxu0 0
    %5722 = vmatpush1.bf16.msra.mxu0 0
    %5723 = vmatprep.subr.bf16.mxu0 0
    %5724 = vmatpush1.bf16.msra.mxu0 0
    %5725 = vmatprep.subr.bf16.mxu0 0
    %5726 = vmatpush1.bf16.msra.mxu0 0
    %5727 = vmatprep.subr.bf16.mxu0 0
    %5728 = vmatpush1.bf16.msra.mxu0 0
    %5729 = vmatprep.subr.bf16.mxu0 0
    %5730 = vmatpush1.bf16.msra.mxu0 0
    %5731 = vmatprep.subr.bf16.mxu0 0
    %5732 = vmatpush1.bf16.msra.mxu0 0
    %5733 = vmatprep.mubr.bf16.mxu0 0
    %5734 = vmatmul.mubr.bf16.gmra.mrb[0].mxu0 %v5591
    %v5735 = vpop.f32.mrb[0].mxu0
    %v5736 = vadd.f32 0.0, %v5735
    %v5737 = vpop.f32.mrb[0].mxu0
    %v5738 = vadd.f32 0.0, %v5737
    %v5739 = vpop.f32.mrb[0].mxu0
    %v5740 = vadd.f32 0.0, %v5739
    %v5741 = vpop.f32.mrb[0].mxu0
    %v5742 = vadd.f32 0.0, %v5741
    %5743 = vmatprep.mubr.bf16.mxu0 0
    %5744 = vmatmul.mubr.bf16.gmra.mrb[0].mxu0 %v5594
    %v5745 = vpop.f32.mrb[0].mxu0
    %v5746 = vadd.f32 0.0, %v5745
    %v5747 = vpop.f32.mrb[0].mxu0
    %v5748 = vadd.f32 0.0, %v5747
    %v5749 = vpop.f32.mrb[0].mxu0
    %v5750 = vadd.f32 0.0, %v5749
    %v5751 = vpop.f32.mrb[0].mxu0
    %v5752 = vadd.f32 0.0, %v5751
    %5753 = vmatprep.mubr.bf16.mxu0 0
    %5754 = vmatmul.mubr.bf16.gmra.mrb[0].mxu0 %v5597
    %v5755 = vpop.f32.mrb[0].mxu0
    %v5756 = vadd.f32 0.0, %v5755
    %v5757 = vpop.f32.mrb[0].mxu0
    %v5758 = vadd.f32 0.0, %v5757
    %v5759 = vpop.f32.mrb[0].mxu0
    %v5760 = vadd.f32 0.0, %v5759
    %v5761 = vpop.f32.mrb[0].mxu0
    %v5762 = vadd.f32 0.0, %v5761
    %5763 = vmatprep.mubr.bf16.mxu0 0
    %5764 = vmatmul.mubr.bf16.gmra.mrb[0].mxu0 %v5600
    %v5765 = vpop.f32.mrb[0].mxu0
    %v5766 = vadd.f32 0.0, %v5765
    %v5767 = vpop.f32.mrb[0].mxu0
    %v5768 = vadd.f32 0.0, %v5767
    %v5769 = vpop.f32.mrb[0].mxu0
    %v5770 = vadd.f32 0.0, %v5769
    %v5771 = vpop.f32.mrb[0].mxu0
    %v5772 = vadd.f32 0.0, %v5771
    %5773 = vmatprep.mubr.bf16.mxu0 0
    %5774 = vmatmul.mubr.bf16.gmra.mrb[0].mxu0 %v5603
    %v5775 = vpop.f32.mrb[0].mxu0
    %v5776 = vadd.f32 0.0, %v5775
    %v5777 = vpop.f32.mrb[0].mxu0
    %v5778 = vadd.f32 0.0, %v5777
    %v5779 = vpop.f32.mrb[0].mxu0
    %v5780 = vadd.f32 0.0, %v5779
    %v5781 = vpop.f32.mrb[0].mxu0
    %v5782 = vadd.f32 0.0, %v5781
    %5783 = vmatprep.mubr.bf16.mxu0 0
    %5784 = vmatmul.mubr.bf16.gmra.mrb[0].mxu0 %v5606
    %v5785 = vpop.f32.mrb[0].mxu0
    %v5786 = vadd.f32 0.0, %v5785
    %v5787 = vpop.f32.mrb[0].mxu0
    %v5788 = vadd.f32 0.0, %v5787
    %v5789 = vpop.f32.mrb[0].mxu0
    %v5790 = vadd.f32 0.0, %v5789
    %v5791 = vpop.f32.mrb[0].mxu0
    %v5792 = vadd.f32 0.0, %v5791
    %5793 = vdwg.mxu0
    %v5794 = vld [vmem:[#allocation5] sm:$0xff]
    %v5795 = vld [vmem:[#allocation5 + $0x8] sm:$0xff]
    %v5796 = vld [vmem:[#allocation5 + $0x10] sm:$0xff]
    %v5797 = vld [vmem:[#allocation5 + $0x18] sm:$0xff]
    %v5798 = vld [vmem:[#allocation5 + $0x20] sm:$0xff]
    %v5799 = vld [vmem:[#allocation5 + $0x28] sm:$0xff]
    %v5800 = vld [vmem:[#allocation5 + $0x30] sm:$0xff]
    %v5801 = vld [vmem:[#allocation5 + $0x38] sm:$0xff]
    %v5802 = vld [vmem:[#allocation5 + $0x40] sm:$0xff]
    %v5803 = vld [vmem:[#allocation5 + $0x48] sm:$0xff]
    %v5804 = vld [vmem:[#allocation5 + $0x50] sm:$0xff]
    %v5805 = vld [vmem:[#allocation5 + $0x58] sm:$0xff]
    %v5806 = vld [vmem:[#allocation5 + $0x60] sm:$0xff]
    %v5807 = vld [vmem:[#allocation5 + $0x68] sm:$0xff]
    %v5808 = vld [vmem:[#allocation5 + $0x70] sm:$0xff]
    %v5809 = vld [vmem:[#allocation5 + $0x78] sm:$0xff]
    %v5810 = vld [vmem:[#allocation5 + $0x80] sm:$0xff]
    %v5811 = vld [vmem:[#allocation5 + $0x88] sm:$0xff]
    %v5812 = vld [vmem:[#allocation5 + $0x90] sm:$0xff]
    %v5813 = vld [vmem:[#allocation5 + $0x98] sm:$0xff]
    %v5814 = vld [vmem:[#allocation5 + $0xa0] sm:$0xff]
    %v5815 = vld [vmem:[#allocation5 + $0xa8] sm:$0xff]
    %v5816 = vld [vmem:[#allocation5 + $0xb0] sm:$0xff]
    %v5817 = vld [vmem:[#allocation5 + $0xb8] sm:$0xff]
    %v5818 = vld [vmem:[#allocation5 + $0xc0] sm:$0xff]
    %v5819 = vld [vmem:[#allocation5 + $0xc8] sm:$0xff]
    %v5820 = vld [vmem:[#allocation5 + $0xd0] sm:$0xff]
    %v5821 = vld [vmem:[#allocation5 + $0xd8] sm:$0xff]
    %v5822 = vld [vmem:[#allocation5 + $0xe0] sm:$0xff]
    %v5823 = vld [vmem:[#allocation5 + $0xe8] sm:$0xff]
    %v5824 = vld [vmem:[#allocation5 + $0xf0] sm:$0xff]
    %v5825 = vld [vmem:[#allocation5 + $0xf8] sm:$0xff]
    %v5826 = vld [vmem:[#allocation5 + $0x100] sm:$0xff]
    %v5827 = vld [vmem:[#allocation5 + $0x108] sm:$0xff]
    %v5828 = vld [vmem:[#allocation5 + $0x110] sm:$0xff]
    %v5829 = vld [vmem:[#allocation5 + $0x118] sm:$0xff]
    %v5830 = vld [vmem:[#allocation5 + $0x120] sm:$0xff]
    %v5831 = vld [vmem:[#allocation5 + $0x128] sm:$0xff]
    %v5832 = vld [vmem:[#allocation5 + $0x130] sm:$0xff]
    %v5833 = vld [vmem:[#allocation5 + $0x138] sm:$0xff]
    %v5834 = vld [vmem:[#allocation5 + $0x140] sm:$0xff]
    %v5835 = vld [vmem:[#allocation5 + $0x148] sm:$0xff]
    %v5836 = vld [vmem:[#allocation5 + $0x150] sm:$0xff]
    %v5837 = vld [vmem:[#allocation5 + $0x158] sm:$0xff]
    %v5838 = vld [vmem:[#allocation5 + $0x160] sm:$0xff]
    %v5839 = vld [vmem:[#allocation5 + $0x168] sm:$0xff]
    %v5840 = vld [vmem:[#allocation5 + $0x170] sm:$0xff]
    %v5841 = vld [vmem:[#allocation5 + $0x178] sm:$0xff]
    %v5842 = vadd.f32 %v5794, %v5643
    %v5843 = vadd.f32 %v5795, %v5645
    %v5844 = vadd.f32 %v5796, %v5736
    %v5845 = vadd.f32 %v5797, %v5738
    %v5846 = vadd.f32 %v5798, %v5647
    %v5847 = vadd.f32 %v5799, %v5649
    %v5848 = vadd.f32 %v5800, %v5740
    %v5849 = vadd.f32 %v5801, %v5742
    %v5850 = vadd.f32 %v5802, %v5653
    %v5851 = vadd.f32 %v5803, %v5655
    %v5852 = vadd.f32 %v5804, %v5746
    %v5853 = vadd.f32 %v5805, %v5748
    %v5854 = vadd.f32 %v5806, %v5657
    %v5855 = vadd.f32 %v5807, %v5659
    %v5856 = vadd.f32 %v5808, %v5750
    %v5857 = vadd.f32 %v5809, %v5752
    %v5858 = vadd.f32 %v5810, %v5663
    %v5859 = vadd.f32 %v5811, %v5665
    %v5860 = vadd.f32 %v5812, %v5756
    %v5861 = vadd.f32 %v5813, %v5758
    %v5862 = vadd.f32 %v5814, %v5667
    %v5863 = vadd.f32 %v5815, %v5669
    %v5864 = vadd.f32 %v5816, %v5760
    %v5865 = vadd.f32 %v5817, %v5762
    %v5866 = vadd.f32 %v5818, %v5673
    %v5867 = vadd.f32 %v5819, %v5675
    %v5868 = vadd.f32 %v5820, %v5766
    %v5869 = vadd.f32 %v5821, %v5768
    %v5870 = vadd.f32 %v5822, %v5677
    %v5871 = vadd.f32 %v5823, %v5679
    %v5872 = vadd.f32 %v5824, %v5770
    %v5873 = vadd.f32 %v5825, %v5772
    %v5874 = vadd.f32 %v5826, %v5683
    %v5875 = vadd.f32 %v5827, %v5685
    %v5876 = vadd.f32 %v5828, %v5776
    %v5877 = vadd.f32 %v5829, %v5778
    %v5878 = vadd.f32 %v5830, %v5687
    %v5879 = vadd.f32 %v5831, %v5689
    %v5880 = vadd.f32 %v5832, %v5780
    %v5881 = vadd.f32 %v5833, %v5782
    %v5882 = vadd.f32 %v5834, %v5693
    %v5883 = vadd.f32 %v5835, %v5695
    %v5884 = vadd.f32 %v5836, %v5786
    %v5885 = vadd.f32 %v5837, %v5788
    %v5886 = vadd.f32 %v5838, %v5697
    %v5887 = vadd.f32 %v5839, %v5699
    %v5888 = vadd.f32 %v5840, %v5790
    %v5889 = vadd.f32 %v5841, %v5792
    %5890 = vst [vmem:[#allocation5] sm:$0xff] %v5842
    %5891 = vst [vmem:[#allocation5 + $0x8] sm:$0xff] %v5843
    %5892 = vst [vmem:[#allocation5 + $0x10] sm:$0xff] %v5844
    %5893 = vst [vmem:[#allocation5 + $0x18] sm:$0xff] %v5845
    %5894 = vst [vmem:[#allocation5 + $0x20] sm:$0xff] %v5846
    %5895 = vst [vmem:[#allocation5 + $0x28] sm:$0xff] %v5847
    %5896 = vst [vmem:[#allocation5 + $0x30] sm:$0xff] %v5848
    %5897 = vst [vmem:[#allocation5 + $0x38] sm:$0xff] %v5849
    %5898 = vst [vmem:[#allocation5 + $0x40] sm:$0xff] %v5850
    %5899 = vst [vmem:[#allocation5 + $0x48] sm:$0xff] %v5851
    %5900 = vst [vmem:[#allocation5 + $0x50] sm:$0xff] %v5852
    %5901 = vst [vmem:[#allocation5 + $0x58] sm:$0xff] %v5853
    %5902 = vst [vmem:[#allocation5 + $0x60] sm:$0xff] %v5854
    %5903 = vst [vmem:[#allocation5 + $0x68] sm:$0xff] %v5855
    %5904 = vst [vmem:[#allocation5 + $0x70] sm:$0xff] %v5856
    %5905 = vst [vmem:[#allocation5 + $0x78] sm:$0xff] %v5857
    %5906 = vst [vmem:[#allocation5 + $0x80] sm:$0xff] %v5858
    %5907 = vst [vmem:[#allocation5 + $0x88] sm:$0xff] %v5859
    %5908 = vst [vmem:[#allocation5 + $0x90] sm:$0xff] %v5860
    %5909 = vst [vmem:[#allocation5 + $0x98] sm:$0xff] %v5861
    %5910 = vst [vmem:[#allocation5 + $0xa0] sm:$0xff] %v5862
    %5911 = vst [vmem:[#allocation5 + $0xa8] sm:$0xff] %v5863
    %5912 = vst [vmem:[#allocation5 + $0xb0] sm:$0xff] %v5864
    %5913 = vst [vmem:[#allocation5 + $0xb8] sm:$0xff] %v5865
    %5914 = vst [vmem:[#allocation5 + $0xc0] sm:$0xff] %v5866
    %5915 = vst [vmem:[#allocation5 + $0xc8] sm:$0xff] %v5867
    %5916 = vst [vmem:[#allocation5 + $0xd0] sm:$0xff] %v5868
    %5917 = vst [vmem:[#allocation5 + $0xd8] sm:$0xff] %v5869
    %5918 = vst [vmem:[#allocation5 + $0xe0] sm:$0xff] %v5870
    %5919 = vst [vmem:[#allocation5 + $0xe8] sm:$0xff] %v5871
    %5920 = vst [vmem:[#allocation5 + $0xf0] sm:$0xff] %v5872
    %5921 = vst [vmem:[#allocation5 + $0xf8] sm:$0xff] %v5873
    %5922 = vst [vmem:[#allocation5 + $0x100] sm:$0xff] %v5874
    %5923 = vst [vmem:[#allocation5 + $0x108] sm:$0xff] %v5875
    %5924 = vst [vmem:[#allocation5 + $0x110] sm:$0xff] %v5876
    %5925 = vst [vmem:[#allocation5 + $0x118] sm:$0xff] %v5877
    %5926 = vst [vmem:[#allocation5 + $0x120] sm:$0xff] %v5878
    %5927 = vst [vmem:[#allocation5 + $0x128] sm:$0xff] %v5879
    %5928 = vst [vmem:[#allocation5 + $0x130] sm:$0xff] %v5880
    %5929 = vst [vmem:[#allocation5 + $0x138] sm:$0xff] %v5881
    %5930 = vst [vmem:[#allocation5 + $0x140] sm:$0xff] %v5882
    %5931 = vst [vmem:[#allocation5 + $0x148] sm:$0xff] %v5883
    %5932 = vst [vmem:[#allocation5 + $0x150] sm:$0xff] %v5884
    %5933 = vst [vmem:[#allocation5 + $0x158] sm:$0xff] %v5885
    %5934 = vst [vmem:[#allocation5 + $0x160] sm:$0xff] %v5886
    %5935 = vst [vmem:[#allocation5 + $0x168] sm:$0xff] %v5887
    %5936 = vst [vmem:[#allocation5 + $0x170] sm:$0xff] %v5888
    %5937 = vst [vmem:[#allocation5 + $0x178] sm:$0xff] %v5889
    %v5938 = vld [vmem:[%s4484 + $0x1] sm:$0xff]
    %v5939 = vld [vmem:[%s4484 + $0x11] sm:$0xff]
    %v5940 = vld [vmem:[%s4484 + $0x21] sm:$0xff]
    %v5941 = vld [vmem:[%s4484 + $0x31] sm:$0xff]
    %v5942 = vld [vmem:[%s4484 + $0x41] sm:$0xff]
    %v5943 = vld [vmem:[%s4484 + $0x51] sm:$0xff]
    %v5944 = vld [vmem:[%s4484 + $0x81] sm:$0xff]
    %v5945 = vld [vmem:[%s4484 + $0x91] sm:$0xff]
    %v5946 = vld [vmem:[%s4484 + $0xa1] sm:$0xff]
    %v5947 = vld [vmem:[%s4484 + $0xb1] sm:$0xff]
    %v5948 = vld [vmem:[%s4484 + $0xc1] sm:$0xff]
    %v5949 = vld [vmem:[%s4484 + $0xd1] sm:$0xff]
    %v5950 = vpack.c.bf16 %v5939, %v5938
    %v5951 = vpack.c.bf16 %v5941, %v5940
    %v5952 = vpack.c.bf16 %v5943, %v5942
    %v5953 = vpack.c.bf16 %v5945, %v5944
    %v5954 = vpack.c.bf16 %v5947, %v5946
    %v5955 = vpack.c.bf16 %v5949, %v5948
    %s5956 = scalar_lea.vmem [#allocation6], 512
    %v5957 = vld [vmem:[%s5956] sm:$0xff]
    %v5958 = vld [vmem:[%s5956 + $0x8] sm:$0xff]
    %v5959 = vld [vmem:[%s5956 + $0x10] sm:$0xff]
    %v5960 = vld [vmem:[%s5956 + $0x18] sm:$0xff]
    %v5961 = vld [vmem:[%s5956 + $0x20] sm:$0xff]
    %v5962 = vld [vmem:[%s5956 + $0x28] sm:$0xff]
    %v5963 = vld [vmem:[%s5956 + $0x30] sm:$0xff]
    %v5964 = vld [vmem:[%s5956 + $0x38] sm:$0xff]
    %v5965 = vld [vmem:[%s5956 + $0x40] sm:$0xff]
    %v5966 = vld [vmem:[%s5956 + $0x48] sm:$0xff]
    %v5967 = vld [vmem:[%s5956 + $0x50] sm:$0xff]
    %v5968 = vld [vmem:[%s5956 + $0x58] sm:$0xff]
    %v5969 = vld [vmem:[%s5956 + $0x60] sm:$0xff]
    %v5970 = vld [vmem:[%s5956 + $0x68] sm:$0xff]
    %v5971 = vld [vmem:[%s5956 + $0x70] sm:$0xff]
    %v5972 = vld [vmem:[%s5956 + $0x78] sm:$0xff]
    %v5974 = vsel %vm1963, %v5950, 0
    %v5977 = vsel %vm1963, %v5951, 0
    %v5980 = vsel %vm1963, %v5952, 0
    %v5983 = vsel %vm1963, %v5953, 0
    %v5986 = vsel %vm1963, %v5954, 0
    %v5989 = vsel %vm1963, %v5955, 0
    %5991 = vmatprep.subr.bf16.mxu0 %v5958
    %5992 = vmatpush1.bf16.msra.mxu0 %v5957
    %5993 = vmatprep.subr.bf16.mxu0 %v5962
    %5994 = vmatpush1.bf16.msra.mxu0 %v5961
    %5995 = vmatprep.subr.bf16.mxu0 %v5966
    %5996 = vmatpush1.bf16.msra.mxu0 %v5965
    %5997 = vmatprep.subr.bf16.mxu0 %v5970
    %5998 = vmatpush1.bf16.msra.mxu0 %v5969
    %5999 = vmatprep.subr.bf16.mxu0 0
    %6000 = vmatpush1.bf16.msra.mxu0 0
    %6001 = vmatprep.subr.bf16.mxu0 0
    %6002 = vmatpush1.bf16.msra.mxu0 0
    %6003 = vmatprep.subr.bf16.mxu0 0
    %6004 = vmatpush1.bf16.msra.mxu0 0
    %6005 = vmatprep.subr.bf16.mxu0 0
    %6006 = vmatpush1.bf16.msra.mxu0 0
    %6007 = vmatprep.subr.bf16.mxu0 0
    %6008 = vmatpush1.bf16.msra.mxu0 0
    %6009 = vmatprep.subr.bf16.mxu0 0
    %6010 = vmatpush1.bf16.msra.mxu0 0
    %6011 = vmatprep.subr.bf16.mxu0 0
    %6012 = vmatpush1.bf16.msra.mxu0 0
    %6013 = vmatprep.subr.bf16.mxu0 0
    %6014 = vmatpush1.bf16.msra.mxu0 0
    %6015 = vmatprep.subr.bf16.mxu0 0
    %6016 = vmatpush1.bf16.msra.mxu0 0
    %6017 = vmatprep.subr.bf16.mxu0 0
    %6018 = vmatpush1.bf16.msra.mxu0 0
    %6019 = vmatprep.subr.bf16.mxu0 0
    %6020 = vmatpush1.bf16.msra.mxu0 0
    %6021 = vmatprep.subr.bf16.mxu0 0
    %6022 = vmatpush1.bf16.msra.mxu0 0
    %6023 = vmatprep.mubr.bf16.mxu0 0
    %6024 = vmatmul.mubr.bf16.gmra.mrb[0].mxu0 %v5974
    %v6025 = vpop.f32.mrb[0].mxu0
    %v6026 = vadd.f32 0.0, %v6025
    %v6027 = vpop.f32.mrb[0].mxu0
    %v6028 = vadd.f32 0.0, %v6027
    %v6029 = vpop.f32.mrb[0].mxu0
    %v6030 = vadd.f32 0.0, %v6029
    %v6031 = vpop.f32.mrb[0].mxu0
    %v6032 = vadd.f32 0.0, %v6031
    %6033 = vmatprep.mubr.bf16.mxu0 0
    %6034 = vmatmul.mubr.bf16.gmra.mrb[0].mxu0 %v5977
    %v6035 = vpop.f32.mrb[0].mxu0
    %v6036 = vadd.f32 0.0, %v6035
    %v6037 = vpop.f32.mrb[0].mxu0
    %v6038 = vadd.f32 0.0, %v6037
    %v6039 = vpop.f32.mrb[0].mxu0
    %v6040 = vadd.f32 0.0, %v6039
    %v6041 = vpop.f32.mrb[0].mxu0
    %v6042 = vadd.f32 0.0, %v6041
    %6043 = vmatprep.mubr.bf16.mxu0 0
    %6044 = vmatmul.mubr.bf16.gmra.mrb[0].mxu0 %v5980
    %v6045 = vpop.f32.mrb[0].mxu0
    %v6046 = vadd.f32 0.0, %v6045
    %v6047 = vpop.f32.mrb[0].mxu0
    %v6048 = vadd.f32 0.0, %v6047
    %v6049 = vpop.f32.mrb[0].mxu0
    %v6050 = vadd.f32 0.0, %v6049
    %v6051 = vpop.f32.mrb[0].mxu0
    %v6052 = vadd.f32 0.0, %v6051
    %6053 = vmatprep.mubr.bf16.mxu0 0
    %6054 = vmatmul.mubr.bf16.gmra.mrb[0].mxu0 %v5983
    %v6055 = vpop.f32.mrb[0].mxu0
    %v6056 = vadd.f32 0.0, %v6055
    %v6057 = vpop.f32.mrb[0].mxu0
    %v6058 = vadd.f32 0.0, %v6057
    %v6059 = vpop.f32.mrb[0].mxu0
    %v6060 = vadd.f32 0.0, %v6059
    %v6061 = vpop.f32.mrb[0].mxu0
    %v6062 = vadd.f32 0.0, %v6061
    %6063 = vmatprep.mubr.bf16.mxu0 0
    %6064 = vmatmul.mubr.bf16.gmra.mrb[0].mxu0 %v5986
    %v6065 = vpop.f32.mrb[0].mxu0
    %v6066 = vadd.f32 0.0, %v6065
    %v6067 = vpop.f32.mrb[0].mxu0
    %v6068 = vadd.f32 0.0, %v6067
    %v6069 = vpop.f32.mrb[0].mxu0
    %v6070 = vadd.f32 0.0, %v6069
    %v6071 = vpop.f32.mrb[0].mxu0
    %v6072 = vadd.f32 0.0, %v6071
    %6073 = vmatprep.mubr.bf16.mxu0 0
    %6074 = vmatmul.mubr.bf16.gmra.mrb[0].mxu0 %v5989
    %v6075 = vpop.f32.mrb[0].mxu0
    %v6076 = vadd.f32 0.0, %v6075
    %v6077 = vpop.f32.mrb[0].mxu0
    %v6078 = vadd.f32 0.0, %v6077
    %v6079 = vpop.f32.mrb[0].mxu0
    %v6080 = vadd.f32 0.0, %v6079
    %v6081 = vpop.f32.mrb[0].mxu0
    %v6082 = vadd.f32 0.0, %v6081
    %6083 = vdwg.mxu0
    %6084 = vmatprep.subr.bf16.mxu0 %v5960
    %6085 = vmatpush1.bf16.msra.mxu0 %v5959
    %6086 = vmatprep.subr.bf16.mxu0 %v5964
    %6087 = vmatpush1.bf16.msra.mxu0 %v5963
    %6088 = vmatprep.subr.bf16.mxu0 %v5968
    %6089 = vmatpush1.bf16.msra.mxu0 %v5967
    %6090 = vmatprep.subr.bf16.mxu0 %v5972
    %6091 = vmatpush1.bf16.msra.mxu0 %v5971
    %6092 = vmatprep.subr.bf16.mxu0 0
    %6093 = vmatpush1.bf16.msra.mxu0 0
    %6094 = vmatprep.subr.bf16.mxu0 0
    %6095 = vmatpush1.bf16.msra.mxu0 0
    %6096 = vmatprep.subr.bf16.mxu0 0
    %6097 = vmatpush1.bf16.msra.mxu0 0
    %6098 = vmatprep.subr.bf16.mxu0 0
    %6099 = vmatpush1.bf16.msra.mxu0 0
    %6100 = vmatprep.subr.bf16.mxu0 0
    %6101 = vmatpush1.bf16.msra.mxu0 0
    %6102 = vmatprep.subr.bf16.mxu0 0
    %6103 = vmatpush1.bf16.msra.mxu0 0
    %6104 = vmatprep.subr.bf16.mxu0 0
    %6105 = vmatpush1.bf16.msra.mxu0 0
    %6106 = vmatprep.subr.bf16.mxu0 0
    %6107 = vmatpush1.bf16.msra.mxu0 0
    %6108 = vmatprep.subr.bf16.mxu0 0
    %6109 = vmatpush1.bf16.msra.mxu0 0
    %6110 = vmatprep.subr.bf16.mxu0 0
    %6111 = vmatpush1.bf16.msra.mxu0 0
    %6112 = vmatprep.subr.bf16.mxu0 0
    %6113 = vmatpush1.bf16.msra.mxu0 0
    %6114 = vmatprep.subr.bf16.mxu0 0
    %6115 = vmatpush1.bf16.msra.mxu0 0
    %6116 = vmatprep.mubr.bf16.mxu0 0
    %6117 = vmatmul.mubr.bf16.gmra.mrb[0].mxu0 %v5974
    %v6118 = vpop.f32.mrb[0].mxu0
    %v6119 = vadd.f32 0.0, %v6118
    %v6120 = vpop.f32.mrb[0].mxu0
    %v6121 = vadd.f32 0.0, %v6120
    %v6122 = vpop.f32.mrb[0].mxu0
    %v6123 = vadd.f32 0.0, %v6122
    %v6124 = vpop.f32.mrb[0].mxu0
    %v6125 = vadd.f32 0.0, %v6124
    %6126 = vmatprep.mubr.bf16.mxu0 0
    %6127 = vmatmul.mubr.bf16.gmra.mrb[0].mxu0 %v5977
    %v6128 = vpop.f32.mrb[0].mxu0
    %v6129 = vadd.f32 0.0, %v6128
    %v6130 = vpop.f32.mrb[0].mxu0
    %v6131 = vadd.f32 0.0, %v6130
    %v6132 = vpop.f32.mrb[0].mxu0
    %v6133 = vadd.f32 0.0, %v6132
    %v6134 = vpop.f32.mrb[0].mxu0
    %v6135 = vadd.f32 0.0, %v6134
    %6136 = vmatprep.mubr.bf16.mxu0 0
    %6137 = vmatmul.mubr.bf16.gmra.mrb[0].mxu0 %v5980
    %v6138 = vpop.f32.mrb[0].mxu0
    %v6139 = vadd.f32 0.0, %v6138
    %v6140 = vpop.f32.mrb[0].mxu0
    %v6141 = vadd.f32 0.0, %v6140
    %v6142 = vpop.f32.mrb[0].mxu0
    %v6143 = vadd.f32 0.0, %v6142
    %v6144 = vpop.f32.mrb[0].mxu0
    %v6145 = vadd.f32 0.0, %v6144
    %6146 = vmatprep.mubr.bf16.mxu0 0
    %6147 = vmatmul.mubr.bf16.gmra.mrb[0].mxu0 %v5983
    %v6148 = vpop.f32.mrb[0].mxu0
    %v6149 = vadd.f32 0.0, %v6148
    %v6150 = vpop.f32.mrb[0].mxu0
    %v6151 = vadd.f32 0.0, %v6150
    %v6152 = vpop.f32.mrb[0].mxu0
    %v6153 = vadd.f32 0.0, %v6152
    %v6154 = vpop.f32.mrb[0].mxu0
    %v6155 = vadd.f32 0.0, %v6154
    %6156 = vmatprep.mubr.bf16.mxu0 0
    %6157 = vmatmul.mubr.bf16.gmra.mrb[0].mxu0 %v5986
    %v6158 = vpop.f32.mrb[0].mxu0
    %v6159 = vadd.f32 0.0, %v6158
    %v6160 = vpop.f32.mrb[0].mxu0
    %v6161 = vadd.f32 0.0, %v6160
    %v6162 = vpop.f32.mrb[0].mxu0
    %v6163 = vadd.f32 0.0, %v6162
    %v6164 = vpop.f32.mrb[0].mxu0
    %v6165 = vadd.f32 0.0, %v6164
    %6166 = vmatprep.mubr.bf16.mxu0 0
    %6167 = vmatmul.mubr.bf16.gmra.mrb[0].mxu0 %v5989
    %v6168 = vpop.f32.mrb[0].mxu0
    %v6169 = vadd.f32 0.0, %v6168
    %v6170 = vpop.f32.mrb[0].mxu0
    %v6171 = vadd.f32 0.0, %v6170
    %v6172 = vpop.f32.mrb[0].mxu0
    %v6173 = vadd.f32 0.0, %v6172
    %v6174 = vpop.f32.mrb[0].mxu0
    %v6175 = vadd.f32 0.0, %v6174
    %6176 = vdwg.mxu0
    %v6177 = vld [vmem:[#allocation5] sm:$0xff]
    %v6178 = vld [vmem:[#allocation5 + $0x8] sm:$0xff]
    %v6179 = vld [vmem:[#allocation5 + $0x10] sm:$0xff]
    %v6180 = vld [vmem:[#allocation5 + $0x18] sm:$0xff]
    %v6181 = vld [vmem:[#allocation5 + $0x20] sm:$0xff]
    %v6182 = vld [vmem:[#allocation5 + $0x28] sm:$0xff]
    %v6183 = vld [vmem:[#allocation5 + $0x30] sm:$0xff]
    %v6184 = vld [vmem:[#allocation5 + $0x38] sm:$0xff]
    %v6185 = vld [vmem:[#allocation5 + $0x40] sm:$0xff]
    %v6186 = vld [vmem:[#allocation5 + $0x48] sm:$0xff]
    %v6187 = vld [vmem:[#allocation5 + $0x50] sm:$0xff]
    %v6188 = vld [vmem:[#allocation5 + $0x58] sm:$0xff]
    %v6189 = vld [vmem:[#allocation5 + $0x60] sm:$0xff]
    %v6190 = vld [vmem:[#allocation5 + $0x68] sm:$0xff]
    %v6191 = vld [vmem:[#allocation5 + $0x70] sm:$0xff]
    %v6192 = vld [vmem:[#allocation5 + $0x78] sm:$0xff]
    %v6193 = vld [vmem:[#allocation5 + $0x80] sm:$0xff]
    %v6194 = vld [vmem:[#allocation5 + $0x88] sm:$0xff]
    %v6195 = vld [vmem:[#allocation5 + $0x90] sm:$0xff]
    %v6196 = vld [vmem:[#allocation5 + $0x98] sm:$0xff]
    %v6197 = vld [vmem:[#allocation5 + $0xa0] sm:$0xff]
    %v6198 = vld [vmem:[#allocation5 + $0xa8] sm:$0xff]
    %v6199 = vld [vmem:[#allocation5 + $0xb0] sm:$0xff]
    %v6200 = vld [vmem:[#allocation5 + $0xb8] sm:$0xff]
    %v6201 = vld [vmem:[#allocation5 + $0xc0] sm:$0xff]
    %v6202 = vld [vmem:[#allocation5 + $0xc8] sm:$0xff]
    %v6203 = vld [vmem:[#allocation5 + $0xd0] sm:$0xff]
    %v6204 = vld [vmem:[#allocation5 + $0xd8] sm:$0xff]
    %v6205 = vld [vmem:[#allocation5 + $0xe0] sm:$0xff]
    %v6206 = vld [vmem:[#allocation5 + $0xe8] sm:$0xff]
    %v6207 = vld [vmem:[#allocation5 + $0xf0] sm:$0xff]
    %v6208 = vld [vmem:[#allocation5 + $0xf8] sm:$0xff]
    %v6209 = vld [vmem:[#allocation5 + $0x100] sm:$0xff]
    %v6210 = vld [vmem:[#allocation5 + $0x108] sm:$0xff]
    %v6211 = vld [vmem:[#allocation5 + $0x110] sm:$0xff]
    %v6212 = vld [vmem:[#allocation5 + $0x118] sm:$0xff]
    %v6213 = vld [vmem:[#allocation5 + $0x120] sm:$0xff]
    %v6214 = vld [vmem:[#allocation5 + $0x128] sm:$0xff]
    %v6215 = vld [vmem:[#allocation5 + $0x130] sm:$0xff]
    %v6216 = vld [vmem:[#allocation5 + $0x138] sm:$0xff]
    %v6217 = vld [vmem:[#allocation5 + $0x140] sm:$0xff]
    %v6218 = vld [vmem:[#allocation5 + $0x148] sm:$0xff]
    %v6219 = vld [vmem:[#allocation5 + $0x150] sm:$0xff]
    %v6220 = vld [vmem:[#allocation5 + $0x158] sm:$0xff]
    %v6221 = vld [vmem:[#allocation5 + $0x160] sm:$0xff]
    %v6222 = vld [vmem:[#allocation5 + $0x168] sm:$0xff]
    %v6223 = vld [vmem:[#allocation5 + $0x170] sm:$0xff]
    %v6224 = vld [vmem:[#allocation5 + $0x178] sm:$0xff]
    %v6225 = vadd.f32 %v6177, %v6026
    %v6226 = vadd.f32 %v6178, %v6028
    %v6227 = vadd.f32 %v6179, %v6119
    %v6228 = vadd.f32 %v6180, %v6121
    %v6229 = vadd.f32 %v6181, %v6030
    %v6230 = vadd.f32 %v6182, %v6032
    %v6231 = vadd.f32 %v6183, %v6123
    %v6232 = vadd.f32 %v6184, %v6125
    %v6233 = vadd.f32 %v6185, %v6036
    %v6234 = vadd.f32 %v6186, %v6038
    %v6235 = vadd.f32 %v6187, %v6129
    %v6236 = vadd.f32 %v6188, %v6131
    %v6237 = vadd.f32 %v6189, %v6040
    %v6238 = vadd.f32 %v6190, %v6042
    %v6239 = vadd.f32 %v6191, %v6133
    %v6240 = vadd.f32 %v6192, %v6135
    %v6241 = vadd.f32 %v6193, %v6046
    %v6242 = vadd.f32 %v6194, %v6048
    %v6243 = vadd.f32 %v6195, %v6139
    %v6244 = vadd.f32 %v6196, %v6141
    %v6245 = vadd.f32 %v6197, %v6050
    %v6246 = vadd.f32 %v6198, %v6052
    %v6247 = vadd.f32 %v6199, %v6143
    %v6248 = vadd.f32 %v6200, %v6145
    %v6249 = vadd.f32 %v6201, %v6056
    %v6250 = vadd.f32 %v6202, %v6058
    %v6251 = vadd.f32 %v6203, %v6149
    %v6252 = vadd.f32 %v6204, %v6151
    %v6253 = vadd.f32 %v6205, %v6060
    %v6254 = vadd.f32 %v6206, %v6062
    %v6255 = vadd.f32 %v6207, %v6153
    %v6256 = vadd.f32 %v6208, %v6155
    %v6257 = vadd.f32 %v6209, %v6066
    %v6258 = vadd.f32 %v6210, %v6068
    %v6259 = vadd.f32 %v6211, %v6159
    %v6260 = vadd.f32 %v6212, %v6161
    %v6261 = vadd.f32 %v6213, %v6070
    %v6262 = vadd.f32 %v6214, %v6072
    %v6263 = vadd.f32 %v6215, %v6163
    %v6264 = vadd.f32 %v6216, %v6165
    %v6265 = vadd.f32 %v6217, %v6076
    %v6266 = vadd.f32 %v6218, %v6078
    %v6267 = vadd.f32 %v6219, %v6169
    %v6268 = vadd.f32 %v6220, %v6171
    %v6269 = vadd.f32 %v6221, %v6080
    %v6270 = vadd.f32 %v6222, %v6082
    %v6271 = vadd.f32 %v6223, %v6173
    %v6272 = vadd.f32 %v6224, %v6175
    %6273 = vst [vmem:[#allocation5] sm:$0xff] %v6225
    %6274 = vst [vmem:[#allocation5 + $0x8] sm:$0xff] %v6226
    %6275 = vst [vmem:[#allocation5 + $0x10] sm:$0xff] %v6227
    %6276 = vst [vmem:[#allocation5 + $0x18] sm:$0xff] %v6228
    %6277 = vst [vmem:[#allocation5 + $0x20] sm:$0xff] %v6229
    %6278 = vst [vmem:[#allocation5 + $0x28] sm:$0xff] %v6230
    %6279 = vst [vmem:[#allocation5 + $0x30] sm:$0xff] %v6231
    %6280 = vst [vmem:[#allocation5 + $0x38] sm:$0xff] %v6232
    %6281 = vst [vmem:[#allocation5 + $0x40] sm:$0xff] %v6233
    %6282 = vst [vmem:[#allocation5 + $0x48] sm:$0xff] %v6234
    %6283 = vst [vmem:[#allocation5 + $0x50] sm:$0xff] %v6235
    %6284 = vst [vmem:[#allocation5 + $0x58] sm:$0xff] %v6236
    %6285 = vst [vmem:[#allocation5 + $0x60] sm:$0xff] %v6237
    %6286 = vst [vmem:[#allocation5 + $0x68] sm:$0xff] %v6238
    %6287 = vst [vmem:[#allocation5 + $0x70] sm:$0xff] %v6239
    %6288 = vst [vmem:[#allocation5 + $0x78] sm:$0xff] %v6240
    %6289 = vst [vmem:[#allocation5 + $0x80] sm:$0xff] %v6241
    %6290 = vst [vmem:[#allocation5 + $0x88] sm:$0xff] %v6242
    %6291 = vst [vmem:[#allocation5 + $0x90] sm:$0xff] %v6243
    %6292 = vst [vmem:[#allocation5 + $0x98] sm:$0xff] %v6244
    %6293 = vst [vmem:[#allocation5 + $0xa0] sm:$0xff] %v6245
    %6294 = vst [vmem:[#allocation5 + $0xa8] sm:$0xff] %v6246
    %6295 = vst [vmem:[#allocation5 + $0xb0] sm:$0xff] %v6247
    %6296 = vst [vmem:[#allocation5 + $0xb8] sm:$0xff] %v6248
    %6297 = vst [vmem:[#allocation5 + $0xc0] sm:$0xff] %v6249
    %6298 = vst [vmem:[#allocation5 + $0xc8] sm:$0xff] %v6250
    %6299 = vst [vmem:[#allocation5 + $0xd0] sm:$0xff] %v6251
    %6300 = vst [vmem:[#allocation5 + $0xd8] sm:$0xff] %v6252
    %6301 = vst [vmem:[#allocation5 + $0xe0] sm:$0xff] %v6253
    %6302 = vst [vmem:[#allocation5 + $0xe8] sm:$0xff] %v6254
    %6303 = vst [vmem:[#allocation5 + $0xf0] sm:$0xff] %v6255
    %6304 = vst [vmem:[#allocation5 + $0xf8] sm:$0xff] %v6256
    %6305 = vst [vmem:[#allocation5 + $0x100] sm:$0xff] %v6257
    %6306 = vst [vmem:[#allocation5 + $0x108] sm:$0xff] %v6258
    %6307 = vst [vmem:[#allocation5 + $0x110] sm:$0xff] %v6259
    %6308 = vst [vmem:[#allocation5 + $0x118] sm:$0xff] %v6260
    %6309 = vst [vmem:[#allocation5 + $0x120] sm:$0xff] %v6261
    %6310 = vst [vmem:[#allocation5 + $0x128] sm:$0xff] %v6262
    %6311 = vst [vmem:[#allocation5 + $0x130] sm:$0xff] %v6263
    %6312 = vst [vmem:[#allocation5 + $0x138] sm:$0xff] %v6264
    %6313 = vst [vmem:[#allocation5 + $0x140] sm:$0xff] %v6265
    %6314 = vst [vmem:[#allocation5 + $0x148] sm:$0xff] %v6266
    %6315 = vst [vmem:[#allocation5 + $0x150] sm:$0xff] %v6267
    %6316 = vst [vmem:[#allocation5 + $0x158] sm:$0xff] %v6268
    %6317 = vst [vmem:[#allocation5 + $0x160] sm:$0xff] %v6269
    %6318 = vst [vmem:[#allocation5 + $0x168] sm:$0xff] %v6270
    %6319 = vst [vmem:[#allocation5 + $0x170] sm:$0xff] %v6271
    %6320 = vst [vmem:[#allocation5 + $0x178] sm:$0xff] %v6272
    %v6321 = vld [vmem:[%s4484 + $0x2] sm:$0xff]
    %v6322 = vld [vmem:[%s4484 + $0x12] sm:$0xff]
    %v6323 = vld [vmem:[%s4484 + $0x22] sm:$0xff]
    %v6324 = vld [vmem:[%s4484 + $0x32] sm:$0xff]
    %v6325 = vld [vmem:[%s4484 + $0x42] sm:$0xff]
    %v6326 = vld [vmem:[%s4484 + $0x52] sm:$0xff]
    %v6327 = vld [vmem:[%s4484 + $0x82] sm:$0xff]
    %v6328 = vld [vmem:[%s4484 + $0x92] sm:$0xff]
    %v6329 = vld [vmem:[%s4484 + $0xa2] sm:$0xff]
    %v6330 = vld [vmem:[%s4484 + $0xb2] sm:$0xff]
    %v6331 = vld [vmem:[%s4484 + $0xc2] sm:$0xff]
    %v6332 = vld [vmem:[%s4484 + $0xd2] sm:$0xff]
    %v6333 = vpack.c.bf16 %v6322, %v6321
    %v6334 = vpack.c.bf16 %v6324, %v6323
    %v6335 = vpack.c.bf16 %v6326, %v6325
    %v6336 = vpack.c.bf16 %v6328, %v6327
    %v6337 = vpack.c.bf16 %v6330, %v6329
    %v6338 = vpack.c.bf16 %v6332, %v6331
    %s6339 = scalar_lea.vmem [#allocation6], 640
    %v6340 = vld [vmem:[%s6339] sm:$0xff]
    %v6341 = vld [vmem:[%s6339 + $0x8] sm:$0xff]
    %v6342 = vld [vmem:[%s6339 + $0x10] sm:$0xff]
    %v6343 = vld [vmem:[%s6339 + $0x18] sm:$0xff]
    %v6344 = vld [vmem:[%s6339 + $0x20] sm:$0xff]
    %v6345 = vld [vmem:[%s6339 + $0x28] sm:$0xff]
    %v6346 = vld [vmem:[%s6339 + $0x30] sm:$0xff]
    %v6347 = vld [vmem:[%s6339 + $0x38] sm:$0xff]
    %v6348 = vld [vmem:[%s6339 + $0x40] sm:$0xff]
    %v6349 = vld [vmem:[%s6339 + $0x48] sm:$0xff]
    %v6350 = vld [vmem:[%s6339 + $0x50] sm:$0xff]
    %v6351 = vld [vmem:[%s6339 + $0x58] sm:$0xff]
    %v6352 = vld [vmem:[%s6339 + $0x60] sm:$0xff]
    %v6353 = vld [vmem:[%s6339 + $0x68] sm:$0xff]
    %v6354 = vld [vmem:[%s6339 + $0x70] sm:$0xff]
    %v6355 = vld [vmem:[%s6339 + $0x78] sm:$0xff]
    %v6357 = vsel %vm1963, %v6333, 0
    %v6360 = vsel %vm1963, %v6334, 0
    %v6363 = vsel %vm1963, %v6335, 0
    %v6366 = vsel %vm1963, %v6336, 0
    %v6369 = vsel %vm1963, %v6337, 0
    %v6372 = vsel %vm1963, %v6338, 0
    %6374 = vmatprep.subr.bf16.mxu0 %v6341
    %6375 = vmatpush1.bf16.msra.mxu0 %v6340
    %6376 = vmatprep.subr.bf16.mxu0 %v6345
    %6377 = vmatpush1.bf16.msra.mxu0 %v6344
    %6378 = vmatprep.subr.bf16.mxu0 %v6349
    %6379 = vmatpush1.bf16.msra.mxu0 %v6348
    %6380 = vmatprep.subr.bf16.mxu0 %v6353
    %6381 = vmatpush1.bf16.msra.mxu0 %v6352
    %6382 = vmatprep.subr.bf16.mxu0 0
    %6383 = vmatpush1.bf16.msra.mxu0 0
    %6384 = vmatprep.subr.bf16.mxu0 0
    %6385 = vmatpush1.bf16.msra.mxu0 0
    %6386 = vmatprep.subr.bf16.mxu0 0
    %6387 = vmatpush1.bf16.msra.mxu0 0
    %6388 = vmatprep.subr.bf16.mxu0 0
    %6389 = vmatpush1.bf16.msra.mxu0 0
    %6390 = vmatprep.subr.bf16.mxu0 0
    %6391 = vmatpush1.bf16.msra.mxu0 0
    %6392 = vmatprep.subr.bf16.mxu0 0
    %6393 = vmatpush1.bf16.msra.mxu0 0
    %6394 = vmatprep.subr.bf16.mxu0 0
    %6395 = vmatpush1.bf16.msra.mxu0 0
    %6396 = vmatprep.subr.bf16.mxu0 0
    %6397 = vmatpush1.bf16.msra.mxu0 0
    %6398 = vmatprep.subr.bf16.mxu0 0
    %6399 = vmatpush1.bf16.msra.mxu0 0
    %6400 = vmatprep.subr.bf16.mxu0 0
    %6401 = vmatpush1.bf16.msra.mxu0 0
    %6402 = vmatprep.subr.bf16.mxu0 0
    %6403 = vmatpush1.bf16.msra.mxu0 0
    %6404 = vmatprep.subr.bf16.mxu0 0
    %6405 = vmatpush1.bf16.msra.mxu0 0
    %6406 = vmatprep.mubr.bf16.mxu0 0
    %6407 = vmatmul.mubr.bf16.gmra.mrb[0].mxu0 %v6357
    %v6408 = vpop.f32.mrb[0].mxu0
    %v6409 = vadd.f32 0.0, %v6408
    %v6410 = vpop.f32.mrb[0].mxu0
    %v6411 = vadd.f32 0.0, %v6410
    %v6412 = vpop.f32.mrb[0].mxu0
    %v6413 = vadd.f32 0.0, %v6412
    %v6414 = vpop.f32.mrb[0].mxu0
    %v6415 = vadd.f32 0.0, %v6414
    %6416 = vmatprep.mubr.bf16.mxu0 0
    %6417 = vmatmul.mubr.bf16.gmra.mrb[0].mxu0 %v6360
    %v6418 = vpop.f32.mrb[0].mxu0
    %v6419 = vadd.f32 0.0, %v6418
    %v6420 = vpop.f32.mrb[0].mxu0
    %v6421 = vadd.f32 0.0, %v6420
    %v6422 = vpop.f32.mrb[0].mxu0
    %v6423 = vadd.f32 0.0, %v6422
    %v6424 = vpop.f32.mrb[0].mxu0
    %v6425 = vadd.f32 0.0, %v6424
    %6426 = vmatprep.mubr.bf16.mxu0 0
    %6427 = vmatmul.mubr.bf16.gmra.mrb[0].mxu0 %v6363
    %v6428 = vpop.f32.mrb[0].mxu0
    %v6429 = vadd.f32 0.0, %v6428
    %v6430 = vpop.f32.mrb[0].mxu0
    %v6431 = vadd.f32 0.0, %v6430
    %v6432 = vpop.f32.mrb[0].mxu0
    %v6433 = vadd.f32 0.0, %v6432
    %v6434 = vpop.f32.mrb[0].mxu0
    %v6435 = vadd.f32 0.0, %v6434
    %6436 = vmatprep.mubr.bf16.mxu0 0
    %6437 = vmatmul.mubr.bf16.gmra.mrb[0].mxu0 %v6366
    %v6438 = vpop.f32.mrb[0].mxu0
    %v6439 = vadd.f32 0.0, %v6438
    %v6440 = vpop.f32.mrb[0].mxu0
    %v6441 = vadd.f32 0.0, %v6440
    %v6442 = vpop.f32.mrb[0].mxu0
    %v6443 = vadd.f32 0.0, %v6442
    %v6444 = vpop.f32.mrb[0].mxu0
    %v6445 = vadd.f32 0.0, %v6444
    %6446 = vmatprep.mubr.bf16.mxu0 0
    %6447 = vmatmul.mubr.bf16.gmra.mrb[0].mxu0 %v6369
    %v6448 = vpop.f32.mrb[0].mxu0
    %v6449 = vadd.f32 0.0, %v6448
    %v6450 = vpop.f32.mrb[0].mxu0
    %v6451 = vadd.f32 0.0, %v6450
    %v6452 = vpop.f32.mrb[0].mxu0
    %v6453 = vadd.f32 0.0, %v6452
    %v6454 = vpop.f32.mrb[0].mxu0
    %v6455 = vadd.f32 0.0, %v6454
    %6456 = vmatprep.mubr.bf16.mxu0 0
    %6457 = vmatmul.mubr.bf16.gmra.mrb[0].mxu0 %v6372
    %v6458 = vpop.f32.mrb[0].mxu0
    %v6459 = vadd.f32 0.0, %v6458
    %v6460 = vpop.f32.mrb[0].mxu0
    %v6461 = vadd.f32 0.0, %v6460
    %v6462 = vpop.f32.mrb[0].mxu0
    %v6463 = vadd.f32 0.0, %v6462
    %v6464 = vpop.f32.mrb[0].mxu0
    %v6465 = vadd.f32 0.0, %v6464
    %6466 = vdwg.mxu0
    %6467 = vmatprep.subr.bf16.mxu0 %v6343
    %6468 = vmatpush1.bf16.msra.mxu0 %v6342
    %6469 = vmatprep.subr.bf16.mxu0 %v6347
    %6470 = vmatpush1.bf16.msra.mxu0 %v6346
    %6471 = vmatprep.subr.bf16.mxu0 %v6351
    %6472 = vmatpush1.bf16.msra.mxu0 %v6350
    %6473 = vmatprep.subr.bf16.mxu0 %v6355
    %6474 = vmatpush1.bf16.msra.mxu0 %v6354
    %6475 = vmatprep.subr.bf16.mxu0 0
    %6476 = vmatpush1.bf16.msra.mxu0 0
    %6477 = vmatprep.subr.bf16.mxu0 0
    %6478 = vmatpush1.bf16.msra.mxu0 0
    %6479 = vmatprep.subr.bf16.mxu0 0
    %6480 = vmatpush1.bf16.msra.mxu0 0
    %6481 = vmatprep.subr.bf16.mxu0 0
    %6482 = vmatpush1.bf16.msra.mxu0 0
    %6483 = vmatprep.subr.bf16.mxu0 0
    %6484 = vmatpush1.bf16.msra.mxu0 0
    %6485 = vmatprep.subr.bf16.mxu0 0
    %6486 = vmatpush1.bf16.msra.mxu0 0
    %6487 = vmatprep.subr.bf16.mxu0 0
    %6488 = vmatpush1.bf16.msra.mxu0 0
    %6489 = vmatprep.subr.bf16.mxu0 0
    %6490 = vmatpush1.bf16.msra.mxu0 0
    %6491 = vmatprep.subr.bf16.mxu0 0
    %6492 = vmatpush1.bf16.msra.mxu0 0
    %6493 = vmatprep.subr.bf16.mxu0 0
    %6494 = vmatpush1.bf16.msra.mxu0 0
    %6495 = vmatprep.subr.bf16.mxu0 0
    %6496 = vmatpush1.bf16.msra.mxu0 0
    %6497 = vmatprep.subr.bf16.mxu0 0
    %6498 = vmatpush1.bf16.msra.mxu0 0
    %6499 = vmatprep.mubr.bf16.mxu0 0
    %6500 = vmatmul.mubr.bf16.gmra.mrb[0].mxu0 %v6357
    %v6501 = vpop.f32.mrb[0].mxu0
    %v6502 = vadd.f32 0.0, %v6501
    %v6503 = vpop.f32.mrb[0].mxu0
    %v6504 = vadd.f32 0.0, %v6503
    %v6505 = vpop.f32.mrb[0].mxu0
    %v6506 = vadd.f32 0.0, %v6505
    %v6507 = vpop.f32.mrb[0].mxu0
    %v6508 = vadd.f32 0.0, %v6507
    %6509 = vmatprep.mubr.bf16.mxu0 0
    %6510 = vmatmul.mubr.bf16.gmra.mrb[0].mxu0 %v6360
    %v6511 = vpop.f32.mrb[0].mxu0
    %v6512 = vadd.f32 0.0, %v6511
    %v6513 = vpop.f32.mrb[0].mxu0
    %v6514 = vadd.f32 0.0, %v6513
    %v6515 = vpop.f32.mrb[0].mxu0
    %v6516 = vadd.f32 0.0, %v6515
    %v6517 = vpop.f32.mrb[0].mxu0
    %v6518 = vadd.f32 0.0, %v6517
    %6519 = vmatprep.mubr.bf16.mxu0 0
    %6520 = vmatmul.mubr.bf16.gmra.mrb[0].mxu0 %v6363
    %v6521 = vpop.f32.mrb[0].mxu0
    %v6522 = vadd.f32 0.0, %v6521
    %v6523 = vpop.f32.mrb[0].mxu0
    %v6524 = vadd.f32 0.0, %v6523
    %v6525 = vpop.f32.mrb[0].mxu0
    %v6526 = vadd.f32 0.0, %v6525
    %v6527 = vpop.f32.mrb[0].mxu0
    %v6528 = vadd.f32 0.0, %v6527
    %6529 = vmatprep.mubr.bf16.mxu0 0
    %6530 = vmatmul.mubr.bf16.gmra.mrb[0].mxu0 %v6366
    %v6531 = vpop.f32.mrb[0].mxu0
    %v6532 = vadd.f32 0.0, %v6531
    %v6533 = vpop.f32.mrb[0].mxu0
    %v6534 = vadd.f32 0.0, %v6533
    %v6535 = vpop.f32.mrb[0].mxu0
    %v6536 = vadd.f32 0.0, %v6535
    %v6537 = vpop.f32.mrb[0].mxu0
    %v6538 = vadd.f32 0.0, %v6537
    %6539 = vmatprep.mubr.bf16.mxu0 0
    %6540 = vmatmul.mubr.bf16.gmra.mrb[0].mxu0 %v6369
    %v6541 = vpop.f32.mrb[0].mxu0
    %v6542 = vadd.f32 0.0, %v6541
    %v6543 = vpop.f32.mrb[0].mxu0
    %v6544 = vadd.f32 0.0, %v6543
    %v6545 = vpop.f32.mrb[0].mxu0
    %v6546 = vadd.f32 0.0, %v6545
    %v6547 = vpop.f32.mrb[0].mxu0
    %v6548 = vadd.f32 0.0, %v6547
    %6549 = vmatprep.mubr.bf16.mxu0 0
    %6550 = vmatmul.mubr.bf16.gmra.mrb[0].mxu0 %v6372
    %v6551 = vpop.f32.mrb[0].mxu0
    %v6552 = vadd.f32 0.0, %v6551
    %v6553 = vpop.f32.mrb[0].mxu0
    %v6554 = vadd.f32 0.0, %v6553
    %v6555 = vpop.f32.mrb[0].mxu0
    %v6556 = vadd.f32 0.0, %v6555
    %v6557 = vpop.f32.mrb[0].mxu0
    %v6558 = vadd.f32 0.0, %v6557
    %6559 = vdwg.mxu0
    %v6560 = vld [vmem:[#allocation5] sm:$0xff]
    %v6561 = vld [vmem:[#allocation5 + $0x8] sm:$0xff]
    %v6562 = vld [vmem:[#allocation5 + $0x10] sm:$0xff]
    %v6563 = vld [vmem:[#allocation5 + $0x18] sm:$0xff]
    %v6564 = vld [vmem:[#allocation5 + $0x20] sm:$0xff]
    %v6565 = vld [vmem:[#allocation5 + $0x28] sm:$0xff]
    %v6566 = vld [vmem:[#allocation5 + $0x30] sm:$0xff]
    %v6567 = vld [vmem:[#allocation5 + $0x38] sm:$0xff]
    %v6568 = vld [vmem:[#allocation5 + $0x40] sm:$0xff]
    %v6569 = vld [vmem:[#allocation5 + $0x48] sm:$0xff]
    %v6570 = vld [vmem:[#allocation5 + $0x50] sm:$0xff]
    %v6571 = vld [vmem:[#allocation5 + $0x58] sm:$0xff]
    %v6572 = vld [vmem:[#allocation5 + $0x60] sm:$0xff]
    %v6573 = vld [vmem:[#allocation5 + $0x68] sm:$0xff]
    %v6574 = vld [vmem:[#allocation5 + $0x70] sm:$0xff]
    %v6575 = vld [vmem:[#allocation5 + $0x78] sm:$0xff]
    %v6576 = vld [vmem:[#allocation5 + $0x80] sm:$0xff]
    %v6577 = vld [vmem:[#allocation5 + $0x88] sm:$0xff]
    %v6578 = vld [vmem:[#allocation5 + $0x90] sm:$0xff]
    %v6579 = vld [vmem:[#allocation5 + $0x98] sm:$0xff]
    %v6580 = vld [vmem:[#allocation5 + $0xa0] sm:$0xff]
    %v6581 = vld [vmem:[#allocation5 + $0xa8] sm:$0xff]
    %v6582 = vld [vmem:[#allocation5 + $0xb0] sm:$0xff]
    %v6583 = vld [vmem:[#allocation5 + $0xb8] sm:$0xff]
    %v6584 = vld [vmem:[#allocation5 + $0xc0] sm:$0xff]
    %v6585 = vld [vmem:[#allocation5 + $0xc8] sm:$0xff]
    %v6586 = vld [vmem:[#allocation5 + $0xd0] sm:$0xff]
    %v6587 = vld [vmem:[#allocation5 + $0xd8] sm:$0xff]
    %v6588 = vld [vmem:[#allocation5 + $0xe0] sm:$0xff]
    %v6589 = vld [vmem:[#allocation5 + $0xe8] sm:$0xff]
    %v6590 = vld [vmem:[#allocation5 + $0xf0] sm:$0xff]
    %v6591 = vld [vmem:[#allocation5 + $0xf8] sm:$0xff]
    %v6592 = vld [vmem:[#allocation5 + $0x100] sm:$0xff]
    %v6593 = vld [vmem:[#allocation5 + $0x108] sm:$0xff]
    %v6594 = vld [vmem:[#allocation5 + $0x110] sm:$0xff]
    %v6595 = vld [vmem:[#allocation5 + $0x118] sm:$0xff]
    %v6596 = vld [vmem:[#allocation5 + $0x120] sm:$0xff]
    %v6597 = vld [vmem:[#allocation5 + $0x128] sm:$0xff]
    %v6598 = vld [vmem:[#allocation5 + $0x130] sm:$0xff]
    %v6599 = vld [vmem:[#allocation5 + $0x138] sm:$0xff]
    %v6600 = vld [vmem:[#allocation5 + $0x140] sm:$0xff]
    %v6601 = vld [vmem:[#allocation5 + $0x148] sm:$0xff]
    %v6602 = vld [vmem:[#allocation5 + $0x150] sm:$0xff]
    %v6603 = vld [vmem:[#allocation5 + $0x158] sm:$0xff]
    %v6604 = vld [vmem:[#allocation5 + $0x160] sm:$0xff]
    %v6605 = vld [vmem:[#allocation5 + $0x168] sm:$0xff]
    %v6606 = vld [vmem:[#allocation5 + $0x170] sm:$0xff]
    %v6607 = vld [vmem:[#allocation5 + $0x178] sm:$0xff]
    %v6608 = vadd.f32 %v6560, %v6409
    %v6609 = vadd.f32 %v6561, %v6411
    %v6610 = vadd.f32 %v6562, %v6502
    %v6611 = vadd.f32 %v6563, %v6504
    %v6612 = vadd.f32 %v6564, %v6413
    %v6613 = vadd.f32 %v6565, %v6415
    %v6614 = vadd.f32 %v6566, %v6506
    %v6615 = vadd.f32 %v6567, %v6508
    %v6616 = vadd.f32 %v6568, %v6419
    %v6617 = vadd.f32 %v6569, %v6421
    %v6618 = vadd.f32 %v6570, %v6512
    %v6619 = vadd.f32 %v6571, %v6514
    %v6620 = vadd.f32 %v6572, %v6423
    %v6621 = vadd.f32 %v6573, %v6425
    %v6622 = vadd.f32 %v6574, %v6516
    %v6623 = vadd.f32 %v6575, %v6518
    %v6624 = vadd.f32 %v6576, %v6429
    %v6625 = vadd.f32 %v6577, %v6431
    %v6626 = vadd.f32 %v6578, %v6522
    %v6627 = vadd.f32 %v6579, %v6524
    %v6628 = vadd.f32 %v6580, %v6433
    %v6629 = vadd.f32 %v6581, %v6435
    %v6630 = vadd.f32 %v6582, %v6526
    %v6631 = vadd.f32 %v6583, %v6528
    %v6632 = vadd.f32 %v6584, %v6439
    %v6633 = vadd.f32 %v6585, %v6441
    %v6634 = vadd.f32 %v6586, %v6532
    %v6635 = vadd.f32 %v6587, %v6534
    %v6636 = vadd.f32 %v6588, %v6443
    %v6637 = vadd.f32 %v6589, %v6445
    %v6638 = vadd.f32 %v6590, %v6536
    %v6639 = vadd.f32 %v6591, %v6538
    %v6640 = vadd.f32 %v6592, %v6449
    %v6641 = vadd.f32 %v6593, %v6451
    %v6642 = vadd.f32 %v6594, %v6542
    %v6643 = vadd.f32 %v6595, %v6544
    %v6644 = vadd.f32 %v6596, %v6453
    %v6645 = vadd.f32 %v6597, %v6455
    %v6646 = vadd.f32 %v6598, %v6546
    %v6647 = vadd.f32 %v6599, %v6548
    %v6648 = vadd.f32 %v6600, %v6459
    %v6649 = vadd.f32 %v6601, %v6461
    %v6650 = vadd.f32 %v6602, %v6552
    %v6651 = vadd.f32 %v6603, %v6554
    %v6652 = vadd.f32 %v6604, %v6463
    %v6653 = vadd.f32 %v6605, %v6465
    %v6654 = vadd.f32 %v6606, %v6556
    %v6655 = vadd.f32 %v6607, %v6558
    %6656 = vst [vmem:[#allocation5] sm:$0xff] %v6608
    %6657 = vst [vmem:[#allocation5 + $0x8] sm:$0xff] %v6609
    %6658 = vst [vmem:[#allocation5 + $0x10] sm:$0xff] %v6610
    %6659 = vst [vmem:[#allocation5 + $0x18] sm:$0xff] %v6611
    %6660 = vst [vmem:[#allocation5 + $0x20] sm:$0xff] %v6612
    %6661 = vst [vmem:[#allocation5 + $0x28] sm:$0xff] %v6613
    %6662 = vst [vmem:[#allocation5 + $0x30] sm:$0xff] %v6614
    %6663 = vst [vmem:[#allocation5 + $0x38] sm:$0xff] %v6615
    %6664 = vst [vmem:[#allocation5 + $0x40] sm:$0xff] %v6616
    %6665 = vst [vmem:[#allocation5 + $0x48] sm:$0xff] %v6617
    %6666 = vst [vmem:[#allocation5 + $0x50] sm:$0xff] %v6618
    %6667 = vst [vmem:[#allocation5 + $0x58] sm:$0xff] %v6619
    %6668 = vst [vmem:[#allocation5 + $0x60] sm:$0xff] %v6620
    %6669 = vst [vmem:[#allocation5 + $0x68] sm:$0xff] %v6621
    %6670 = vst [vmem:[#allocation5 + $0x70] sm:$0xff] %v6622
    %6671 = vst [vmem:[#allocation5 + $0x78] sm:$0xff] %v6623
    %6672 = vst [vmem:[#allocation5 + $0x80] sm:$0xff] %v6624
    %6673 = vst [vmem:[#allocation5 + $0x88] sm:$0xff] %v6625
    %6674 = vst [vmem:[#allocation5 + $0x90] sm:$0xff] %v6626
    %6675 = vst [vmem:[#allocation5 + $0x98] sm:$0xff] %v6627
    %6676 = vst [vmem:[#allocation5 + $0xa0] sm:$0xff] %v6628
    %6677 = vst [vmem:[#allocation5 + $0xa8] sm:$0xff] %v6629
    %6678 = vst [vmem:[#allocation5 + $0xb0] sm:$0xff] %v6630
    %6679 = vst [vmem:[#allocation5 + $0xb8] sm:$0xff] %v6631
    %6680 = vst [vmem:[#allocation5 + $0xc0] sm:$0xff] %v6632
    %6681 = vst [vmem:[#allocation5 + $0xc8] sm:$0xff] %v6633
    %6682 = vst [vmem:[#allocation5 + $0xd0] sm:$0xff] %v6634
    %6683 = vst [vmem:[#allocation5 + $0xd8] sm:$0xff] %v6635
    %6684 = vst [vmem:[#allocation5 + $0xe0] sm:$0xff] %v6636
    %6685 = vst [vmem:[#allocation5 + $0xe8] sm:$0xff] %v6637
    %6686 = vst [vmem:[#allocation5 + $0xf0] sm:$0xff] %v6638
    %6687 = vst [vmem:[#allocation5 + $0xf8] sm:$0xff] %v6639
    %6688 = vst [vmem:[#allocation5 + $0x100] sm:$0xff] %v6640
    %6689 = vst [vmem:[#allocation5 + $0x108] sm:$0xff] %v6641
    %6690 = vst [vmem:[#allocation5 + $0x110] sm:$0xff] %v6642
    %6691 = vst [vmem:[#allocation5 + $0x118] sm:$0xff] %v6643
    %6692 = vst [vmem:[#allocation5 + $0x120] sm:$0xff] %v6644
    %6693 = vst [vmem:[#allocation5 + $0x128] sm:$0xff] %v6645
    %6694 = vst [vmem:[#allocation5 + $0x130] sm:$0xff] %v6646
    %6695 = vst [vmem:[#allocation5 + $0x138] sm:$0xff] %v6647
    %6696 = vst [vmem:[#allocation5 + $0x140] sm:$0xff] %v6648
    %6697 = vst [vmem:[#allocation5 + $0x148] sm:$0xff] %v6649
    %6698 = vst [vmem:[#allocation5 + $0x150] sm:$0xff] %v6650
    %6699 = vst [vmem:[#allocation5 + $0x158] sm:$0xff] %v6651
    %6700 = vst [vmem:[#allocation5 + $0x160] sm:$0xff] %v6652
    %6701 = vst [vmem:[#allocation5 + $0x168] sm:$0xff] %v6653
    %6702 = vst [vmem:[#allocation5 + $0x170] sm:$0xff] %v6654
    %6703 = vst [vmem:[#allocation5 + $0x178] sm:$0xff] %v6655
    %s6704 = scalar_lea.vmem [#allocation4], 32
    %v6705 = vld [vmem:[%s6704] sm:$0xff]
    %v6706 = vld [vmem:[%s6704 + $0x10] sm:$0xff]
    %v6707 = vld [vmem:[%s6704 + $0x20] sm:$0xff]
    %v6708 = vld [vmem:[%s6704 + $0x30] sm:$0xff]
    %v6709 = vld [vmem:[%s6704 + $0x40] sm:$0xff]
    %v6710 = vld [vmem:[%s6704 + $0x50] sm:$0xff]
    %v6711 = vld [vmem:[%s6704 + $0x80] sm:$0xff]
    %v6712 = vld [vmem:[%s6704 + $0x90] sm:$0xff]
    %v6713 = vld [vmem:[%s6704 + $0xa0] sm:$0xff]
    %v6714 = vld [vmem:[%s6704 + $0xb0] sm:$0xff]
    %v6715 = vld [vmem:[%s6704 + $0xc0] sm:$0xff]
    %v6716 = vld [vmem:[%s6704 + $0xd0] sm:$0xff]
    %v6717 = vpack.c.bf16 %v6706, %v6705
    %v6718 = vpack.c.bf16 %v6708, %v6707
    %v6719 = vpack.c.bf16 %v6710, %v6709
    %v6720 = vpack.c.bf16 %v6712, %v6711
    %v6721 = vpack.c.bf16 %v6714, %v6713
    %v6722 = vpack.c.bf16 %v6716, %v6715
    %s6723 = scalar_lea.vmem [#allocation6], 768
    %v6724 = vld [vmem:[%s6723] sm:$0xff]
    %v6725 = vld [vmem:[%s6723 + $0x8] sm:$0xff]
    %v6726 = vld [vmem:[%s6723 + $0x10] sm:$0xff]
    %v6727 = vld [vmem:[%s6723 + $0x18] sm:$0xff]
    %v6728 = vld [vmem:[%s6723 + $0x20] sm:$0xff]
    %v6729 = vld [vmem:[%s6723 + $0x28] sm:$0xff]
    %v6730 = vld [vmem:[%s6723 + $0x30] sm:$0xff]
    %v6731 = vld [vmem:[%s6723 + $0x38] sm:$0xff]
    %v6732 = vld [vmem:[%s6723 + $0x40] sm:$0xff]
    %v6733 = vld [vmem:[%s6723 + $0x48] sm:$0xff]
    %v6734 = vld [vmem:[%s6723 + $0x50] sm:$0xff]
    %v6735 = vld [vmem:[%s6723 + $0x58] sm:$0xff]
    %v6736 = vld [vmem:[%s6723 + $0x60] sm:$0xff]
    %v6737 = vld [vmem:[%s6723 + $0x68] sm:$0xff]
    %v6738 = vld [vmem:[%s6723 + $0x70] sm:$0xff]
    %v6739 = vld [vmem:[%s6723 + $0x78] sm:$0xff]
    %v6741 = vsel %vm1963, %v6717, 0
    %v6744 = vsel %vm1963, %v6718, 0
    %v6747 = vsel %vm1963, %v6719, 0
    %v6750 = vsel %vm1963, %v6720, 0
    %v6753 = vsel %vm1963, %v6721, 0
    %v6756 = vsel %vm1963, %v6722, 0
    %6758 = vmatprep.subr.bf16.mxu0 %v6725
    %6759 = vmatpush1.bf16.msra.mxu0 %v6724
    %6760 = vmatprep.subr.bf16.mxu0 %v6729
    %6761 = vmatpush1.bf16.msra.mxu0 %v6728
    %6762 = vmatprep.subr.bf16.mxu0 %v6733
    %6763 = vmatpush1.bf16.msra.mxu0 %v6732
    %6764 = vmatprep.subr.bf16.mxu0 %v6737
    %6765 = vmatpush1.bf16.msra.mxu0 %v6736
    %6766 = vmatprep.subr.bf16.mxu0 0
    %6767 = vmatpush1.bf16.msra.mxu0 0
    %6768 = vmatprep.subr.bf16.mxu0 0
    %6769 = vmatpush1.bf16.msra.mxu0 0
    %6770 = vmatprep.subr.bf16.mxu0 0
    %6771 = vmatpush1.bf16.msra.mxu0 0
    %6772 = vmatprep.subr.bf16.mxu0 0
    %6773 = vmatpush1.bf16.msra.mxu0 0
    %6774 = vmatprep.subr.bf16.mxu0 0
    %6775 = vmatpush1.bf16.msra.mxu0 0
    %6776 = vmatprep.subr.bf16.mxu0 0
    %6777 = vmatpush1.bf16.msra.mxu0 0
    %6778 = vmatprep.subr.bf16.mxu0 0
    %6779 = vmatpush1.bf16.msra.mxu0 0
    %6780 = vmatprep.subr.bf16.mxu0 0
    %6781 = vmatpush1.bf16.msra.mxu0 0
    %6782 = vmatprep.subr.bf16.mxu0 0
    %6783 = vmatpush1.bf16.msra.mxu0 0
    %6784 = vmatprep.subr.bf16.mxu0 0
    %6785 = vmatpush1.bf16.msra.mxu0 0
    %6786 = vmatprep.subr.bf16.mxu0 0
    %6787 = vmatpush1.bf16.msra.mxu0 0
    %6788 = vmatprep.subr.bf16.mxu0 0
    %6789 = vmatpush1.bf16.msra.mxu0 0
    %6790 = vmatprep.mubr.bf16.mxu0 0
    %6791 = vmatmul.mubr.bf16.gmra.mrb[0].mxu0 %v6741
    %v6792 = vpop.f32.mrb[0].mxu0
    %v6793 = vadd.f32 0.0, %v6792
    %v6794 = vpop.f32.mrb[0].mxu0
    %v6795 = vadd.f32 0.0, %v6794
    %v6796 = vpop.f32.mrb[0].mxu0
    %v6797 = vadd.f32 0.0, %v6796
    %v6798 = vpop.f32.mrb[0].mxu0
    %v6799 = vadd.f32 0.0, %v6798
    %6800 = vmatprep.mubr.bf16.mxu0 0
    %6801 = vmatmul.mubr.bf16.gmra.mrb[0].mxu0 %v6744
    %v6802 = vpop.f32.mrb[0].mxu0
    %v6803 = vadd.f32 0.0, %v6802
    %v6804 = vpop.f32.mrb[0].mxu0
    %v6805 = vadd.f32 0.0, %v6804
    %v6806 = vpop.f32.mrb[0].mxu0
    %v6807 = vadd.f32 0.0, %v6806
    %v6808 = vpop.f32.mrb[0].mxu0
    %v6809 = vadd.f32 0.0, %v6808
    %6810 = vmatprep.mubr.bf16.mxu0 0
    %6811 = vmatmul.mubr.bf16.gmra.mrb[0].mxu0 %v6747
    %v6812 = vpop.f32.mrb[0].mxu0
    %v6813 = vadd.f32 0.0, %v6812
    %v6814 = vpop.f32.mrb[0].mxu0
    %v6815 = vadd.f32 0.0, %v6814
    %v6816 = vpop.f32.mrb[0].mxu0
    %v6817 = vadd.f32 0.0, %v6816
    %v6818 = vpop.f32.mrb[0].mxu0
    %v6819 = vadd.f32 0.0, %v6818
    %6820 = vmatprep.mubr.bf16.mxu0 0
    %6821 = vmatmul.mubr.bf16.gmra.mrb[0].mxu0 %v6750
    %v6822 = vpop.f32.mrb[0].mxu0
    %v6823 = vadd.f32 0.0, %v6822
    %v6824 = vpop.f32.mrb[0].mxu0
    %v6825 = vadd.f32 0.0, %v6824
    %v6826 = vpop.f32.mrb[0].mxu0
    %v6827 = vadd.f32 0.0, %v6826
    %v6828 = vpop.f32.mrb[0].mxu0
    %v6829 = vadd.f32 0.0, %v6828
    %6830 = vmatprep.mubr.bf16.mxu0 0
    %6831 = vmatmul.mubr.bf16.gmra.mrb[0].mxu0 %v6753
    %v6832 = vpop.f32.mrb[0].mxu0
    %v6833 = vadd.f32 0.0, %v6832
    %v6834 = vpop.f32.mrb[0].mxu0
    %v6835 = vadd.f32 0.0, %v6834
    %v6836 = vpop.f32.mrb[0].mxu0
    %v6837 = vadd.f32 0.0, %v6836
    %v6838 = vpop.f32.mrb[0].mxu0
    %v6839 = vadd.f32 0.0, %v6838
    %6840 = vmatprep.mubr.bf16.mxu0 0
    %6841 = vmatmul.mubr.bf16.gmra.mrb[0].mxu0 %v6756
    %v6842 = vpop.f32.mrb[0].mxu0
    %v6843 = vadd.f32 0.0, %v6842
    %v6844 = vpop.f32.mrb[0].mxu0
    %v6845 = vadd.f32 0.0, %v6844
    %v6846 = vpop.f32.mrb[0].mxu0
    %v6847 = vadd.f32 0.0, %v6846
    %v6848 = vpop.f32.mrb[0].mxu0
    %v6849 = vadd.f32 0.0, %v6848
    %6850 = vdwg.mxu0
    %6851 = vmatprep.subr.bf16.mxu0 %v6727
    %6852 = vmatpush1.bf16.msra.mxu0 %v6726
    %6853 = vmatprep.subr.bf16.mxu0 %v6731
    %6854 = vmatpush1.bf16.msra.mxu0 %v6730
    %6855 = vmatprep.subr.bf16.mxu0 %v6735
    %6856 = vmatpush1.bf16.msra.mxu0 %v6734
    %6857 = vmatprep.subr.bf16.mxu0 %v6739
    %6858 = vmatpush1.bf16.msra.mxu0 %v6738
    %6859 = vmatprep.subr.bf16.mxu0 0
    %6860 = vmatpush1.bf16.msra.mxu0 0
    %6861 = vmatprep.subr.bf16.mxu0 0
    %6862 = vmatpush1.bf16.msra.mxu0 0
    %6863 = vmatprep.subr.bf16.mxu0 0
    %6864 = vmatpush1.bf16.msra.mxu0 0
    %6865 = vmatprep.subr.bf16.mxu0 0
    %6866 = vmatpush1.bf16.msra.mxu0 0
    %6867 = vmatprep.subr.bf16.mxu0 0
    %6868 = vmatpush1.bf16.msra.mxu0 0
    %6869 = vmatprep.subr.bf16.mxu0 0
    %6870 = vmatpush1.bf16.msra.mxu0 0
    %6871 = vmatprep.subr.bf16.mxu0 0
    %6872 = vmatpush1.bf16.msra.mxu0 0
    %6873 = vmatprep.subr.bf16.mxu0 0
    %6874 = vmatpush1.bf16.msra.mxu0 0
    %6875 = vmatprep.subr.bf16.mxu0 0
    %6876 = vmatpush1.bf16.msra.mxu0 0
    %6877 = vmatprep.subr.bf16.mxu0 0
    %6878 = vmatpush1.bf16.msra.mxu0 0
    %6879 = vmatprep.subr.bf16.mxu0 0
    %6880 = vmatpush1.bf16.msra.mxu0 0
    %6881 = vmatprep.subr.bf16.mxu0 0
    %6882 = vmatpush1.bf16.msra.mxu0 0
    %6883 = vmatprep.mubr.bf16.mxu0 0
    %6884 = vmatmul.mubr.bf16.gmra.mrb[0].mxu0 %v6741
    %v6885 = vpop.f32.mrb[0].mxu0
    %v6886 = vadd.f32 0.0, %v6885
    %v6887 = vpop.f32.mrb[0].mxu0
    %v6888 = vadd.f32 0.0, %v6887
    %v6889 = vpop.f32.mrb[0].mxu0
    %v6890 = vadd.f32 0.0, %v6889
    %v6891 = vpop.f32.mrb[0].mxu0
    %v6892 = vadd.f32 0.0, %v6891
    %6893 = vmatprep.mubr.bf16.mxu0 0
    %6894 = vmatmul.mubr.bf16.gmra.mrb[0].mxu0 %v6744
    %v6895 = vpop.f32.mrb[0].mxu0
    %v6896 = vadd.f32 0.0, %v6895
    %v6897 = vpop.f32.mrb[0].mxu0
    %v6898 = vadd.f32 0.0, %v6897
    %v6899 = vpop.f32.mrb[0].mxu0
    %v6900 = vadd.f32 0.0, %v6899
    %v6901 = vpop.f32.mrb[0].mxu0
    %v6902 = vadd.f32 0.0, %v6901
    %6903 = vmatprep.mubr.bf16.mxu0 0
    %6904 = vmatmul.mubr.bf16.gmra.mrb[0].mxu0 %v6747
    %v6905 = vpop.f32.mrb[0].mxu0
    %v6906 = vadd.f32 0.0, %v6905
    %v6907 = vpop.f32.mrb[0].mxu0
    %v6908 = vadd.f32 0.0, %v6907
    %v6909 = vpop.f32.mrb[0].mxu0
    %v6910 = vadd.f32 0.0, %v6909
    %v6911 = vpop.f32.mrb[0].mxu0
    %v6912 = vadd.f32 0.0, %v6911
    %6913 = vmatprep.mubr.bf16.mxu0 0
    %6914 = vmatmul.mubr.bf16.gmra.mrb[0].mxu0 %v6750
    %v6915 = vpop.f32.mrb[0].mxu0
    %v6916 = vadd.f32 0.0, %v6915
    %v6917 = vpop.f32.mrb[0].mxu0
    %v6918 = vadd.f32 0.0, %v6917
    %v6919 = vpop.f32.mrb[0].mxu0
    %v6920 = vadd.f32 0.0, %v6919
    %v6921 = vpop.f32.mrb[0].mxu0
    %v6922 = vadd.f32 0.0, %v6921
    %6923 = vmatprep.mubr.bf16.mxu0 0
    %6924 = vmatmul.mubr.bf16.gmra.mrb[0].mxu0 %v6753
    %v6925 = vpop.f32.mrb[0].mxu0
    %v6926 = vadd.f32 0.0, %v6925
    %v6927 = vpop.f32.mrb[0].mxu0
    %v6928 = vadd.f32 0.0, %v6927
    %v6929 = vpop.f32.mrb[0].mxu0
    %v6930 = vadd.f32 0.0, %v6929
    %v6931 = vpop.f32.mrb[0].mxu0
    %v6932 = vadd.f32 0.0, %v6931
    %6933 = vmatprep.mubr.bf16.mxu0 0
    %6934 = vmatmul.mubr.bf16.gmra.mrb[0].mxu0 %v6756
    %v6935 = vpop.f32.mrb[0].mxu0
    %v6936 = vadd.f32 0.0, %v6935
    %v6937 = vpop.f32.mrb[0].mxu0
    %v6938 = vadd.f32 0.0, %v6937
    %v6939 = vpop.f32.mrb[0].mxu0
    %v6940 = vadd.f32 0.0, %v6939
    %v6941 = vpop.f32.mrb[0].mxu0
    %v6942 = vadd.f32 0.0, %v6941
    %6943 = vdwg.mxu0
    %v6944 = vld [vmem:[#allocation5] sm:$0xff]
    %v6945 = vld [vmem:[#allocation5 + $0x8] sm:$0xff]
    %v6946 = vld [vmem:[#allocation5 + $0x10] sm:$0xff]
    %v6947 = vld [vmem:[#allocation5 + $0x18] sm:$0xff]
    %v6948 = vld [vmem:[#allocation5 + $0x20] sm:$0xff]
    %v6949 = vld [vmem:[#allocation5 + $0x28] sm:$0xff]
    %v6950 = vld [vmem:[#allocation5 + $0x30] sm:$0xff]
    %v6951 = vld [vmem:[#allocation5 + $0x38] sm:$0xff]
    %v6952 = vld [vmem:[#allocation5 + $0x40] sm:$0xff]
    %v6953 = vld [vmem:[#allocation5 + $0x48] sm:$0xff]
    %v6954 = vld [vmem:[#allocation5 + $0x50] sm:$0xff]
    %v6955 = vld [vmem:[#allocation5 + $0x58] sm:$0xff]
    %v6956 = vld [vmem:[#allocation5 + $0x60] sm:$0xff]
    %v6957 = vld [vmem:[#allocation5 + $0x68] sm:$0xff]
    %v6958 = vld [vmem:[#allocation5 + $0x70] sm:$0xff]
    %v6959 = vld [vmem:[#allocation5 + $0x78] sm:$0xff]
    %v6960 = vld [vmem:[#allocation5 + $0x80] sm:$0xff]
    %v6961 = vld [vmem:[#allocation5 + $0x88] sm:$0xff]
    %v6962 = vld [vmem:[#allocation5 + $0x90] sm:$0xff]
    %v6963 = vld [vmem:[#allocation5 + $0x98] sm:$0xff]
    %v6964 = vld [vmem:[#allocation5 + $0xa0] sm:$0xff]
    %v6965 = vld [vmem:[#allocation5 + $0xa8] sm:$0xff]
    %v6966 = vld [vmem:[#allocation5 + $0xb0] sm:$0xff]
    %v6967 = vld [vmem:[#allocation5 + $0xb8] sm:$0xff]
    %v6968 = vld [vmem:[#allocation5 + $0xc0] sm:$0xff]
    %v6969 = vld [vmem:[#allocation5 + $0xc8] sm:$0xff]
    %v6970 = vld [vmem:[#allocation5 + $0xd0] sm:$0xff]
    %v6971 = vld [vmem:[#allocation5 + $0xd8] sm:$0xff]
    %v6972 = vld [vmem:[#allocation5 + $0xe0] sm:$0xff]
    %v6973 = vld [vmem:[#allocation5 + $0xe8] sm:$0xff]
    %v6974 = vld [vmem:[#allocation5 + $0xf0] sm:$0xff]
    %v6975 = vld [vmem:[#allocation5 + $0xf8] sm:$0xff]
    %v6976 = vld [vmem:[#allocation5 + $0x100] sm:$0xff]
    %v6977 = vld [vmem:[#allocation5 + $0x108] sm:$0xff]
    %v6978 = vld [vmem:[#allocation5 + $0x110] sm:$0xff]
    %v6979 = vld [vmem:[#allocation5 + $0x118] sm:$0xff]
    %v6980 = vld [vmem:[#allocation5 + $0x120] sm:$0xff]
    %v6981 = vld [vmem:[#allocation5 + $0x128] sm:$0xff]
    %v6982 = vld [vmem:[#allocation5 + $0x130] sm:$0xff]
    %v6983 = vld [vmem:[#allocation5 + $0x138] sm:$0xff]
    %v6984 = vld [vmem:[#allocation5 + $0x140] sm:$0xff]
    %v6985 = vld [vmem:[#allocation5 + $0x148] sm:$0xff]
    %v6986 = vld [vmem:[#allocation5 + $0x150] sm:$0xff]
    %v6987 = vld [vmem:[#allocation5 + $0x158] sm:$0xff]
    %v6988 = vld [vmem:[#allocation5 + $0x160] sm:$0xff]
    %v6989 = vld [vmem:[#allocation5 + $0x168] sm:$0xff]
    %v6990 = vld [vmem:[#allocation5 + $0x170] sm:$0xff]
    %v6991 = vld [vmem:[#allocation5 + $0x178] sm:$0xff]
    %v6992 = vadd.f32 %v6944, %v6793
    %v6993 = vadd.f32 %v6945, %v6795
    %v6994 = vadd.f32 %v6946, %v6886
    %v6995 = vadd.f32 %v6947, %v6888
    %v6996 = vadd.f32 %v6948, %v6797
    %v6997 = vadd.f32 %v6949, %v6799
    %v6998 = vadd.f32 %v6950, %v6890
    %v6999 = vadd.f32 %v6951, %v6892
    %v7000 = vadd.f32 %v6952, %v6803
    %v7001 = vadd.f32 %v6953, %v6805
    %v7002 = vadd.f32 %v6954, %v6896
    %v7003 = vadd.f32 %v6955, %v6898
    %v7004 = vadd.f32 %v6956, %v6807
    %v7005 = vadd.f32 %v6957, %v6809
    %v7006 = vadd.f32 %v6958, %v6900
    %v7007 = vadd.f32 %v6959, %v6902
    %v7008 = vadd.f32 %v6960, %v6813
    %v7009 = vadd.f32 %v6961, %v6815
    %v7010 = vadd.f32 %v6962, %v6906
    %v7011 = vadd.f32 %v6963, %v6908
    %v7012 = vadd.f32 %v6964, %v6817
    %v7013 = vadd.f32 %v6965, %v6819
    %v7014 = vadd.f32 %v6966, %v6910
    %v7015 = vadd.f32 %v6967, %v6912
    %v7016 = vadd.f32 %v6968, %v6823
    %v7017 = vadd.f32 %v6969, %v6825
    %v7018 = vadd.f32 %v6970, %v6916
    %v7019 = vadd.f32 %v6971, %v6918
    %v7020 = vadd.f32 %v6972, %v6827
    %v7021 = vadd.f32 %v6973, %v6829
    %v7022 = vadd.f32 %v6974, %v6920
    %v7023 = vadd.f32 %v6975, %v6922
    %v7024 = vadd.f32 %v6976, %v6833
    %v7025 = vadd.f32 %v6977, %v6835
    %v7026 = vadd.f32 %v6978, %v6926
    %v7027 = vadd.f32 %v6979, %v6928
    %v7028 = vadd.f32 %v6980, %v6837
    %v7029 = vadd.f32 %v6981, %v6839
    %v7030 = vadd.f32 %v6982, %v6930
    %v7031 = vadd.f32 %v6983, %v6932
    %v7032 = vadd.f32 %v6984, %v6843
    %v7033 = vadd.f32 %v6985, %v6845
    %v7034 = vadd.f32 %v6986, %v6936
    %v7035 = vadd.f32 %v6987, %v6938
    %v7036 = vadd.f32 %v6988, %v6847
    %v7037 = vadd.f32 %v6989, %v6849
    %v7038 = vadd.f32 %v6990, %v6940
    %v7039 = vadd.f32 %v6991, %v6942
    %7040 = vst [vmem:[#allocation5] sm:$0xff] %v6992
    %7041 = vst [vmem:[#allocation5 + $0x8] sm:$0xff] %v6993
    %7042 = vst [vmem:[#allocation5 + $0x10] sm:$0xff] %v6994
    %7043 = vst [vmem:[#allocation5 + $0x18] sm:$0xff] %v6995
    %7044 = vst [vmem:[#allocation5 + $0x20] sm:$0xff] %v6996
    %7045 = vst [vmem:[#allocation5 + $0x28] sm:$0xff] %v6997
    %7046 = vst [vmem:[#allocation5 + $0x30] sm:$0xff] %v6998
    %7047 = vst [vmem:[#allocation5 + $0x38] sm:$0xff] %v6999
    %7048 = vst [vmem:[#allocation5 + $0x40] sm:$0xff] %v7000
    %7049 = vst [vmem:[#allocation5 + $0x48] sm:$0xff] %v7001
    %7050 = vst [vmem:[#allocation5 + $0x50] sm:$0xff] %v7002
    %7051 = vst [vmem:[#allocation5 + $0x58] sm:$0xff] %v7003
    %7052 = vst [vmem:[#allocation5 + $0x60] sm:$0xff] %v7004
    %7053 = vst [vmem:[#allocation5 + $0x68] sm:$0xff] %v7005
    %7054 = vst [vmem:[#allocation5 + $0x70] sm:$0xff] %v7006
    %7055 = vst [vmem:[#allocation5 + $0x78] sm:$0xff] %v7007
    %7056 = vst [vmem:[#allocation5 + $0x80] sm:$0xff] %v7008
    %7057 = vst [vmem:[#allocation5 + $0x88] sm:$0xff] %v7009
    %7058 = vst [vmem:[#allocation5 + $0x90] sm:$0xff] %v7010
    %7059 = vst [vmem:[#allocation5 + $0x98] sm:$0xff] %v7011
    %7060 = vst [vmem:[#allocation5 + $0xa0] sm:$0xff] %v7012
    %7061 = vst [vmem:[#allocation5 + $0xa8] sm:$0xff] %v7013
    %7062 = vst [vmem:[#allocation5 + $0xb0] sm:$0xff] %v7014
    %7063 = vst [vmem:[#allocation5 + $0xb8] sm:$0xff] %v7015
    %7064 = vst [vmem:[#allocation5 + $0xc0] sm:$0xff] %v7016
    %7065 = vst [vmem:[#allocation5 + $0xc8] sm:$0xff] %v7017
    %7066 = vst [vmem:[#allocation5 + $0xd0] sm:$0xff] %v7018
    %7067 = vst [vmem:[#allocation5 + $0xd8] sm:$0xff] %v7019
    %7068 = vst [vmem:[#allocation5 + $0xe0] sm:$0xff] %v7020
    %7069 = vst [vmem:[#allocation5 + $0xe8] sm:$0xff] %v7021
    %7070 = vst [vmem:[#allocation5 + $0xf0] sm:$0xff] %v7022
    %7071 = vst [vmem:[#allocation5 + $0xf8] sm:$0xff] %v7023
    %7072 = vst [vmem:[#allocation5 + $0x100] sm:$0xff] %v7024
    %7073 = vst [vmem:[#allocation5 + $0x108] sm:$0xff] %v7025
    %7074 = vst [vmem:[#allocation5 + $0x110] sm:$0xff] %v7026
    %7075 = vst [vmem:[#allocation5 + $0x118] sm:$0xff] %v7027
    %7076 = vst [vmem:[#allocation5 + $0x120] sm:$0xff] %v7028
    %7077 = vst [vmem:[#allocation5 + $0x128] sm:$0xff] %v7029
    %7078 = vst [vmem:[#allocation5 + $0x130] sm:$0xff] %v7030
    %7079 = vst [vmem:[#allocation5 + $0x138] sm:$0xff] %v7031
    %7080 = vst [vmem:[#allocation5 + $0x140] sm:$0xff] %v7032
    %7081 = vst [vmem:[#allocation5 + $0x148] sm:$0xff] %v7033
    %7082 = vst [vmem:[#allocation5 + $0x150] sm:$0xff] %v7034
    %7083 = vst [vmem:[#allocation5 + $0x158] sm:$0xff] %v7035
    %7084 = vst [vmem:[#allocation5 + $0x160] sm:$0xff] %v7036
    %7085 = vst [vmem:[#allocation5 + $0x168] sm:$0xff] %v7037
    %7086 = vst [vmem:[#allocation5 + $0x170] sm:$0xff] %v7038
    %7087 = vst [vmem:[#allocation5 + $0x178] sm:$0xff] %v7039
    %v7088 = vld [vmem:[%s6704 + $0x1] sm:$0xff]
    %v7089 = vld [vmem:[%s6704 + $0x11] sm:$0xff]
    %v7090 = vld [vmem:[%s6704 + $0x21] sm:$0xff]
    %v7091 = vld [vmem:[%s6704 + $0x31] sm:$0xff]
    %v7092 = vld [vmem:[%s6704 + $0x41] sm:$0xff]
    %v7093 = vld [vmem:[%s6704 + $0x51] sm:$0xff]
    %v7094 = vld [vmem:[%s6704 + $0x81] sm:$0xff]
    %v7095 = vld [vmem:[%s6704 + $0x91] sm:$0xff]
    %v7096 = vld [vmem:[%s6704 + $0xa1] sm:$0xff]
    %v7097 = vld [vmem:[%s6704 + $0xb1] sm:$0xff]
    %v7098 = vld [vmem:[%s6704 + $0xc1] sm:$0xff]
    %v7099 = vld [vmem:[%s6704 + $0xd1] sm:$0xff]
    %v7100 = vpack.c.bf16 %v7089, %v7088
    %v7101 = vpack.c.bf16 %v7091, %v7090
    %v7102 = vpack.c.bf16 %v7093, %v7092
    %v7103 = vpack.c.bf16 %v7095, %v7094
    %v7104 = vpack.c.bf16 %v7097, %v7096
    %v7105 = vpack.c.bf16 %v7099, %v7098
    %s7106 = scalar_lea.vmem [#allocation6], 896
    %v7107 = vld [vmem:[%s7106] sm:$0xff]
    %v7108 = vld [vmem:[%s7106 + $0x8] sm:$0xff]
    %v7109 = vld [vmem:[%s7106 + $0x10] sm:$0xff]
    %v7110 = vld [vmem:[%s7106 + $0x18] sm:$0xff]
    %v7111 = vld [vmem:[%s7106 + $0x20] sm:$0xff]
    %v7112 = vld [vmem:[%s7106 + $0x28] sm:$0xff]
    %v7113 = vld [vmem:[%s7106 + $0x30] sm:$0xff]
    %v7114 = vld [vmem:[%s7106 + $0x38] sm:$0xff]
    %v7115 = vld [vmem:[%s7106 + $0x40] sm:$0xff]
    %v7116 = vld [vmem:[%s7106 + $0x48] sm:$0xff]
    %v7117 = vld [vmem:[%s7106 + $0x50] sm:$0xff]
    %v7118 = vld [vmem:[%s7106 + $0x58] sm:$0xff]
    %v7119 = vld [vmem:[%s7106 + $0x60] sm:$0xff]
    %v7120 = vld [vmem:[%s7106 + $0x68] sm:$0xff]
    %v7121 = vld [vmem:[%s7106 + $0x70] sm:$0xff]
    %v7122 = vld [vmem:[%s7106 + $0x78] sm:$0xff]
    %v7124 = vsel %vm1963, %v7100, 0
    %v7127 = vsel %vm1963, %v7101, 0
    %v7130 = vsel %vm1963, %v7102, 0
    %v7133 = vsel %vm1963, %v7103, 0
    %v7136 = vsel %vm1963, %v7104, 0
    %v7139 = vsel %vm1963, %v7105, 0
    %7141 = vmatprep.subr.bf16.mxu0 %v7108
    %7142 = vmatpush1.bf16.msra.mxu0 %v7107
    %7143 = vmatprep.subr.bf16.mxu0 %v7112
    %7144 = vmatpush1.bf16.msra.mxu0 %v7111
    %7145 = vmatprep.subr.bf16.mxu0 %v7116
    %7146 = vmatpush1.bf16.msra.mxu0 %v7115
    %7147 = vmatprep.subr.bf16.mxu0 %v7120
    %7148 = vmatpush1.bf16.msra.mxu0 %v7119
    %7149 = vmatprep.subr.bf16.mxu0 0
    %7150 = vmatpush1.bf16.msra.mxu0 0
    %7151 = vmatprep.subr.bf16.mxu0 0
    %7152 = vmatpush1.bf16.msra.mxu0 0
    %7153 = vmatprep.subr.bf16.mxu0 0
    %7154 = vmatpush1.bf16.msra.mxu0 0
    %7155 = vmatprep.subr.bf16.mxu0 0
    %7156 = vmatpush1.bf16.msra.mxu0 0
    %7157 = vmatprep.subr.bf16.mxu0 0
    %7158 = vmatpush1.bf16.msra.mxu0 0
    %7159 = vmatprep.subr.bf16.mxu0 0
    %7160 = vmatpush1.bf16.msra.mxu0 0
    %7161 = vmatprep.subr.bf16.mxu0 0
    %7162 = vmatpush1.bf16.msra.mxu0 0
    %7163 = vmatprep.subr.bf16.mxu0 0
    %7164 = vmatpush1.bf16.msra.mxu0 0
    %7165 = vmatprep.subr.bf16.mxu0 0
    %7166 = vmatpush1.bf16.msra.mxu0 0
    %7167 = vmatprep.subr.bf16.mxu0 0
    %7168 = vmatpush1.bf16.msra.mxu0 0
    %7169 = vmatprep.subr.bf16.mxu0 0
    %7170 = vmatpush1.bf16.msra.mxu0 0
    %7171 = vmatprep.subr.bf16.mxu0 0
    %7172 = vmatpush1.bf16.msra.mxu0 0
    %7173 = vmatprep.mubr.bf16.mxu0 0
    %7174 = vmatmul.mubr.bf16.gmra.mrb[0].mxu0 %v7124
    %v7175 = vpop.f32.mrb[0].mxu0
    %v7176 = vadd.f32 0.0, %v7175
    %v7177 = vpop.f32.mrb[0].mxu0
    %v7178 = vadd.f32 0.0, %v7177
    %v7179 = vpop.f32.mrb[0].mxu0
    %v7180 = vadd.f32 0.0, %v7179
    %v7181 = vpop.f32.mrb[0].mxu0
    %v7182 = vadd.f32 0.0, %v7181
    %7183 = vmatprep.mubr.bf16.mxu0 0
    %7184 = vmatmul.mubr.bf16.gmra.mrb[0].mxu0 %v7127
    %v7185 = vpop.f32.mrb[0].mxu0
    %v7186 = vadd.f32 0.0, %v7185
    %v7187 = vpop.f32.mrb[0].mxu0
    %v7188 = vadd.f32 0.0, %v7187
    %v7189 = vpop.f32.mrb[0].mxu0
    %v7190 = vadd.f32 0.0, %v7189
    %v7191 = vpop.f32.mrb[0].mxu0
    %v7192 = vadd.f32 0.0, %v7191
    %7193 = vmatprep.mubr.bf16.mxu0 0
    %7194 = vmatmul.mubr.bf16.gmra.mrb[0].mxu0 %v7130
    %v7195 = vpop.f32.mrb[0].mxu0
    %v7196 = vadd.f32 0.0, %v7195
    %v7197 = vpop.f32.mrb[0].mxu0
    %v7198 = vadd.f32 0.0, %v7197
    %v7199 = vpop.f32.mrb[0].mxu0
    %v7200 = vadd.f32 0.0, %v7199
    %v7201 = vpop.f32.mrb[0].mxu0
    %v7202 = vadd.f32 0.0, %v7201
    %7203 = vmatprep.mubr.bf16.mxu0 0
    %7204 = vmatmul.mubr.bf16.gmra.mrb[0].mxu0 %v7133
    %v7205 = vpop.f32.mrb[0].mxu0
    %v7206 = vadd.f32 0.0, %v7205
    %v7207 = vpop.f32.mrb[0].mxu0
    %v7208 = vadd.f32 0.0, %v7207
    %v7209 = vpop.f32.mrb[0].mxu0
    %v7210 = vadd.f32 0.0, %v7209
    %v7211 = vpop.f32.mrb[0].mxu0
    %v7212 = vadd.f32 0.0, %v7211
    %7213 = vmatprep.mubr.bf16.mxu0 0
    %7214 = vmatmul.mubr.bf16.gmra.mrb[0].mxu0 %v7136
    %v7215 = vpop.f32.mrb[0].mxu0
    %v7216 = vadd.f32 0.0, %v7215
    %v7217 = vpop.f32.mrb[0].mxu0
    %v7218 = vadd.f32 0.0, %v7217
    %v7219 = vpop.f32.mrb[0].mxu0
    %v7220 = vadd.f32 0.0, %v7219
    %v7221 = vpop.f32.mrb[0].mxu0
    %v7222 = vadd.f32 0.0, %v7221
    %7223 = vmatprep.mubr.bf16.mxu0 0
    %7224 = vmatmul.mubr.bf16.gmra.mrb[0].mxu0 %v7139
    %v7225 = vpop.f32.mrb[0].mxu0
    %v7226 = vadd.f32 0.0, %v7225
    %v7227 = vpop.f32.mrb[0].mxu0
    %v7228 = vadd.f32 0.0, %v7227
    %v7229 = vpop.f32.mrb[0].mxu0
    %v7230 = vadd.f32 0.0, %v7229
    %v7231 = vpop.f32.mrb[0].mxu0
    %v7232 = vadd.f32 0.0, %v7231
    %7233 = vdwg.mxu0
    %7234 = vmatprep.subr.bf16.mxu0 %v7110
    %7235 = vmatpush1.bf16.msra.mxu0 %v7109
    %7236 = vmatprep.subr.bf16.mxu0 %v7114
    %7237 = vmatpush1.bf16.msra.mxu0 %v7113
    %7238 = vmatprep.subr.bf16.mxu0 %v7118
    %7239 = vmatpush1.bf16.msra.mxu0 %v7117
    %7240 = vmatprep.subr.bf16.mxu0 %v7122
    %7241 = vmatpush1.bf16.msra.mxu0 %v7121
    %7242 = vmatprep.subr.bf16.mxu0 0
    %7243 = vmatpush1.bf16.msra.mxu0 0
    %7244 = vmatprep.subr.bf16.mxu0 0
    %7245 = vmatpush1.bf16.msra.mxu0 0
    %7246 = vmatprep.subr.bf16.mxu0 0
    %7247 = vmatpush1.bf16.msra.mxu0 0
    %7248 = vmatprep.subr.bf16.mxu0 0
    %7249 = vmatpush1.bf16.msra.mxu0 0
    %7250 = vmatprep.subr.bf16.mxu0 0
    %7251 = vmatpush1.bf16.msra.mxu0 0
    %7252 = vmatprep.subr.bf16.mxu0 0
    %7253 = vmatpush1.bf16.msra.mxu0 0
    %7254 = vmatprep.subr.bf16.mxu0 0
    %7255 = vmatpush1.bf16.msra.mxu0 0
    %7256 = vmatprep.subr.bf16.mxu0 0
    %7257 = vmatpush1.bf16.msra.mxu0 0
    %7258 = vmatprep.subr.bf16.mxu0 0
    %7259 = vmatpush1.bf16.msra.mxu0 0
    %7260 = vmatprep.subr.bf16.mxu0 0
    %7261 = vmatpush1.bf16.msra.mxu0 0
    %7262 = vmatprep.subr.bf16.mxu0 0
    %7263 = vmatpush1.bf16.msra.mxu0 0
    %7264 = vmatprep.subr.bf16.mxu0 0
    %7265 = vmatpush1.bf16.msra.mxu0 0
    %7266 = vmatprep.mubr.bf16.mxu0 0
    %7267 = vmatmul.mubr.bf16.gmra.mrb[0].mxu0 %v7124
    %v7268 = vpop.f32.mrb[0].mxu0
    %v7269 = vadd.f32 0.0, %v7268
    %v7270 = vpop.f32.mrb[0].mxu0
    %v7271 = vadd.f32 0.0, %v7270
    %v7272 = vpop.f32.mrb[0].mxu0
    %v7273 = vadd.f32 0.0, %v7272
    %v7274 = vpop.f32.mrb[0].mxu0
    %v7275 = vadd.f32 0.0, %v7274
    %7276 = vmatprep.mubr.bf16.mxu0 0
    %7277 = vmatmul.mubr.bf16.gmra.mrb[0].mxu0 %v7127
    %v7278 = vpop.f32.mrb[0].mxu0
    %v7279 = vadd.f32 0.0, %v7278
    %v7280 = vpop.f32.mrb[0].mxu0
    %v7281 = vadd.f32 0.0, %v7280
    %v7282 = vpop.f32.mrb[0].mxu0
    %v7283 = vadd.f32 0.0, %v7282
    %v7284 = vpop.f32.mrb[0].mxu0
    %v7285 = vadd.f32 0.0, %v7284
    %7286 = vmatprep.mubr.bf16.mxu0 0
    %7287 = vmatmul.mubr.bf16.gmra.mrb[0].mxu0 %v7130
    %v7288 = vpop.f32.mrb[0].mxu0
    %v7289 = vadd.f32 0.0, %v7288
    %v7290 = vpop.f32.mrb[0].mxu0
    %v7291 = vadd.f32 0.0, %v7290
    %v7292 = vpop.f32.mrb[0].mxu0
    %v7293 = vadd.f32 0.0, %v7292
    %v7294 = vpop.f32.mrb[0].mxu0
    %v7295 = vadd.f32 0.0, %v7294
    %7296 = vmatprep.mubr.bf16.mxu0 0
    %7297 = vmatmul.mubr.bf16.gmra.mrb[0].mxu0 %v7133
    %v7298 = vpop.f32.mrb[0].mxu0
    %v7299 = vadd.f32 0.0, %v7298
    %v7300 = vpop.f32.mrb[0].mxu0
    %v7301 = vadd.f32 0.0, %v7300
    %v7302 = vpop.f32.mrb[0].mxu0
    %v7303 = vadd.f32 0.0, %v7302
    %v7304 = vpop.f32.mrb[0].mxu0
    %v7305 = vadd.f32 0.0, %v7304
    %7306 = vmatprep.mubr.bf16.mxu0 0
    %7307 = vmatmul.mubr.bf16.gmra.mrb[0].mxu0 %v7136
    %v7308 = vpop.f32.mrb[0].mxu0
    %v7309 = vadd.f32 0.0, %v7308
    %v7310 = vpop.f32.mrb[0].mxu0
    %v7311 = vadd.f32 0.0, %v7310
    %v7312 = vpop.f32.mrb[0].mxu0
    %v7313 = vadd.f32 0.0, %v7312
    %v7314 = vpop.f32.mrb[0].mxu0
    %v7315 = vadd.f32 0.0, %v7314
    %7316 = vmatprep.mubr.bf16.mxu0 0
    %7317 = vmatmul.mubr.bf16.gmra.mrb[0].mxu0 %v7139
    %v7318 = vpop.f32.mrb[0].mxu0
    %v7319 = vadd.f32 0.0, %v7318
    %v7320 = vpop.f32.mrb[0].mxu0
    %v7321 = vadd.f32 0.0, %v7320
    %v7322 = vpop.f32.mrb[0].mxu0
    %v7323 = vadd.f32 0.0, %v7322
    %v7324 = vpop.f32.mrb[0].mxu0
    %v7325 = vadd.f32 0.0, %v7324
    %7326 = vdwg.mxu0
    %v7327 = vld [vmem:[#allocation5] sm:$0xff]
    %v7328 = vld [vmem:[#allocation5 + $0x8] sm:$0xff]
    %v7329 = vld [vmem:[#allocation5 + $0x10] sm:$0xff]
    %v7330 = vld [vmem:[#allocation5 + $0x18] sm:$0xff]
    %v7331 = vld [vmem:[#allocation5 + $0x20] sm:$0xff]
    %v7332 = vld [vmem:[#allocation5 + $0x28] sm:$0xff]
    %v7333 = vld [vmem:[#allocation5 + $0x30] sm:$0xff]
    %v7334 = vld [vmem:[#allocation5 + $0x38] sm:$0xff]
    %v7335 = vld [vmem:[#allocation5 + $0x40] sm:$0xff]
    %v7336 = vld [vmem:[#allocation5 + $0x48] sm:$0xff]
    %v7337 = vld [vmem:[#allocation5 + $0x50] sm:$0xff]
    %v7338 = vld [vmem:[#allocation5 + $0x58] sm:$0xff]
    %v7339 = vld [vmem:[#allocation5 + $0x60] sm:$0xff]
    %v7340 = vld [vmem:[#allocation5 + $0x68] sm:$0xff]
    %v7341 = vld [vmem:[#allocation5 + $0x70] sm:$0xff]
    %v7342 = vld [vmem:[#allocation5 + $0x78] sm:$0xff]
    %v7343 = vld [vmem:[#allocation5 + $0x80] sm:$0xff]
    %v7344 = vld [vmem:[#allocation5 + $0x88] sm:$0xff]
    %v7345 = vld [vmem:[#allocation5 + $0x90] sm:$0xff]
    %v7346 = vld [vmem:[#allocation5 + $0x98] sm:$0xff]
    %v7347 = vld [vmem:[#allocation5 + $0xa0] sm:$0xff]
    %v7348 = vld [vmem:[#allocation5 + $0xa8] sm:$0xff]
    %v7349 = vld [vmem:[#allocation5 + $0xb0] sm:$0xff]
    %v7350 = vld [vmem:[#allocation5 + $0xb8] sm:$0xff]
    %v7351 = vld [vmem:[#allocation5 + $0xc0] sm:$0xff]
    %v7352 = vld [vmem:[#allocation5 + $0xc8] sm:$0xff]
    %v7353 = vld [vmem:[#allocation5 + $0xd0] sm:$0xff]
    %v7354 = vld [vmem:[#allocation5 + $0xd8] sm:$0xff]
    %v7355 = vld [vmem:[#allocation5 + $0xe0] sm:$0xff]
    %v7356 = vld [vmem:[#allocation5 + $0xe8] sm:$0xff]
    %v7357 = vld [vmem:[#allocation5 + $0xf0] sm:$0xff]
    %v7358 = vld [vmem:[#allocation5 + $0xf8] sm:$0xff]
    %v7359 = vld [vmem:[#allocation5 + $0x100] sm:$0xff]
    %v7360 = vld [vmem:[#allocation5 + $0x108] sm:$0xff]
    %v7361 = vld [vmem:[#allocation5 + $0x110] sm:$0xff]
    %v7362 = vld [vmem:[#allocation5 + $0x118] sm:$0xff]
    %v7363 = vld [vmem:[#allocation5 + $0x120] sm:$0xff]
    %v7364 = vld [vmem:[#allocation5 + $0x128] sm:$0xff]
    %v7365 = vld [vmem:[#allocation5 + $0x130] sm:$0xff]
    %v7366 = vld [vmem:[#allocation5 + $0x138] sm:$0xff]
    %v7367 = vld [vmem:[#allocation5 + $0x140] sm:$0xff]
    %v7368 = vld [vmem:[#allocation5 + $0x148] sm:$0xff]
    %v7369 = vld [vmem:[#allocation5 + $0x150] sm:$0xff]
    %v7370 = vld [vmem:[#allocation5 + $0x158] sm:$0xff]
    %v7371 = vld [vmem:[#allocation5 + $0x160] sm:$0xff]
    %v7372 = vld [vmem:[#allocation5 + $0x168] sm:$0xff]
    %v7373 = vld [vmem:[#allocation5 + $0x170] sm:$0xff]
    %v7374 = vld [vmem:[#allocation5 + $0x178] sm:$0xff]
    %v7375 = vadd.f32 %v7327, %v7176
    %v7376 = vadd.f32 %v7328, %v7178
    %v7377 = vadd.f32 %v7329, %v7269
    %v7378 = vadd.f32 %v7330, %v7271
    %v7379 = vadd.f32 %v7331, %v7180
    %v7380 = vadd.f32 %v7332, %v7182
    %v7381 = vadd.f32 %v7333, %v7273
    %v7382 = vadd.f32 %v7334, %v7275
    %v7383 = vadd.f32 %v7335, %v7186
    %v7384 = vadd.f32 %v7336, %v7188
    %v7385 = vadd.f32 %v7337, %v7279
    %v7386 = vadd.f32 %v7338, %v7281
    %v7387 = vadd.f32 %v7339, %v7190
    %v7388 = vadd.f32 %v7340, %v7192
    %v7389 = vadd.f32 %v7341, %v7283
    %v7390 = vadd.f32 %v7342, %v7285
    %v7391 = vadd.f32 %v7343, %v7196
    %v7392 = vadd.f32 %v7344, %v7198
    %v7393 = vadd.f32 %v7345, %v7289
    %v7394 = vadd.f32 %v7346, %v7291
    %v7395 = vadd.f32 %v7347, %v7200
    %v7396 = vadd.f32 %v7348, %v7202
    %v7397 = vadd.f32 %v7349, %v7293
    %v7398 = vadd.f32 %v7350, %v7295
    %v7399 = vadd.f32 %v7351, %v7206
    %v7400 = vadd.f32 %v7352, %v7208
    %v7401 = vadd.f32 %v7353, %v7299
    %v7402 = vadd.f32 %v7354, %v7301
    %v7403 = vadd.f32 %v7355, %v7210
    %v7404 = vadd.f32 %v7356, %v7212
    %v7405 = vadd.f32 %v7357, %v7303
    %v7406 = vadd.f32 %v7358, %v7305
    %v7407 = vadd.f32 %v7359, %v7216
    %v7408 = vadd.f32 %v7360, %v7218
    %v7409 = vadd.f32 %v7361, %v7309
    %v7410 = vadd.f32 %v7362, %v7311
    %v7411 = vadd.f32 %v7363, %v7220
    %v7412 = vadd.f32 %v7364, %v7222
    %v7413 = vadd.f32 %v7365, %v7313
    %v7414 = vadd.f32 %v7366, %v7315
    %v7415 = vadd.f32 %v7367, %v7226
    %v7416 = vadd.f32 %v7368, %v7228
    %v7417 = vadd.f32 %v7369, %v7319
    %v7418 = vadd.f32 %v7370, %v7321
    %v7419 = vadd.f32 %v7371, %v7230
    %v7420 = vadd.f32 %v7372, %v7232
    %v7421 = vadd.f32 %v7373, %v7323
    %v7422 = vadd.f32 %v7374, %v7325
    %7423 = vst [vmem:[#allocation5] sm:$0xff] %v7375
    %7424 = vst [vmem:[#allocation5 + $0x8] sm:$0xff] %v7376
    %7425 = vst [vmem:[#allocation5 + $0x10] sm:$0xff] %v7377
    %7426 = vst [vmem:[#allocation5 + $0x18] sm:$0xff] %v7378
    %7427 = vst [vmem:[#allocation5 + $0x20] sm:$0xff] %v7379
    %7428 = vst [vmem:[#allocation5 + $0x28] sm:$0xff] %v7380
    %7429 = vst [vmem:[#allocation5 + $0x30] sm:$0xff] %v7381
    %7430 = vst [vmem:[#allocation5 + $0x38] sm:$0xff] %v7382
    %7431 = vst [vmem:[#allocation5 + $0x40] sm:$0xff] %v7383
    %7432 = vst [vmem:[#allocation5 + $0x48] sm:$0xff] %v7384
    %7433 = vst [vmem:[#allocation5 + $0x50] sm:$0xff] %v7385
    %7434 = vst [vmem:[#allocation5 + $0x58] sm:$0xff] %v7386
    %7435 = vst [vmem:[#allocation5 + $0x60] sm:$0xff] %v7387
    %7436 = vst [vmem:[#allocation5 + $0x68] sm:$0xff] %v7388
    %7437 = vst [vmem:[#allocation5 + $0x70] sm:$0xff] %v7389
    %7438 = vst [vmem:[#allocation5 + $0x78] sm:$0xff] %v7390
    %7439 = vst [vmem:[#allocation5 + $0x80] sm:$0xff] %v7391
    %7440 = vst [vmem:[#allocation5 + $0x88] sm:$0xff] %v7392
    %7441 = vst [vmem:[#allocation5 + $0x90] sm:$0xff] %v7393
    %7442 = vst [vmem:[#allocation5 + $0x98] sm:$0xff] %v7394
    %7443 = vst [vmem:[#allocation5 + $0xa0] sm:$0xff] %v7395
    %7444 = vst [vmem:[#allocation5 + $0xa8] sm:$0xff] %v7396
    %7445 = vst [vmem:[#allocation5 + $0xb0] sm:$0xff] %v7397
    %7446 = vst [vmem:[#allocation5 + $0xb8] sm:$0xff] %v7398
    %7447 = vst [vmem:[#allocation5 + $0xc0] sm:$0xff] %v7399
    %7448 = vst [vmem:[#allocation5 + $0xc8] sm:$0xff] %v7400
    %7449 = vst [vmem:[#allocation5 + $0xd0] sm:$0xff] %v7401
    %7450 = vst [vmem:[#allocation5 + $0xd8] sm:$0xff] %v7402
    %7451 = vst [vmem:[#allocation5 + $0xe0] sm:$0xff] %v7403
    %7452 = vst [vmem:[#allocation5 + $0xe8] sm:$0xff] %v7404
    %7453 = vst [vmem:[#allocation5 + $0xf0] sm:$0xff] %v7405
    %7454 = vst [vmem:[#allocation5 + $0xf8] sm:$0xff] %v7406
    %7455 = vst [vmem:[#allocation5 + $0x100] sm:$0xff] %v7407
    %7456 = vst [vmem:[#allocation5 + $0x108] sm:$0xff] %v7408
    %7457 = vst [vmem:[#allocation5 + $0x110] sm:$0xff] %v7409
    %7458 = vst [vmem:[#allocation5 + $0x118] sm:$0xff] %v7410
    %7459 = vst [vmem:[#allocation5 + $0x120] sm:$0xff] %v7411
    %7460 = vst [vmem:[#allocation5 + $0x128] sm:$0xff] %v7412
    %7461 = vst [vmem:[#allocation5 + $0x130] sm:$0xff] %v7413
    %7462 = vst [vmem:[#allocation5 + $0x138] sm:$0xff] %v7414
    %7463 = vst [vmem:[#allocation5 + $0x140] sm:$0xff] %v7415
    %7464 = vst [vmem:[#allocation5 + $0x148] sm:$0xff] %v7416
    %7465 = vst [vmem:[#allocation5 + $0x150] sm:$0xff] %v7417
    %7466 = vst [vmem:[#allocation5 + $0x158] sm:$0xff] %v7418
    %7467 = vst [vmem:[#allocation5 + $0x160] sm:$0xff] %v7419
    %7468 = vst [vmem:[#allocation5 + $0x168] sm:$0xff] %v7420
    %7469 = vst [vmem:[#allocation5 + $0x170] sm:$0xff] %v7421
    %7470 = vst [vmem:[#allocation5 + $0x178] sm:$0xff] %v7422
    %v7471 = vld [vmem:[%s6704 + $0x2] sm:$0xff]
    %v7472 = vld [vmem:[%s6704 + $0x12] sm:$0xff]
    %v7473 = vld [vmem:[%s6704 + $0x22] sm:$0xff]
    %v7474 = vld [vmem:[%s6704 + $0x32] sm:$0xff]
    %v7475 = vld [vmem:[%s6704 + $0x42] sm:$0xff]
    %v7476 = vld [vmem:[%s6704 + $0x52] sm:$0xff]
    %v7477 = vld [vmem:[%s6704 + $0x82] sm:$0xff]
    %v7478 = vld [vmem:[%s6704 + $0x92] sm:$0xff]
    %v7479 = vld [vmem:[%s6704 + $0xa2] sm:$0xff]
    %v7480 = vld [vmem:[%s6704 + $0xb2] sm:$0xff]
    %v7481 = vld [vmem:[%s6704 + $0xc2] sm:$0xff]
    %v7482 = vld [vmem:[%s6704 + $0xd2] sm:$0xff]
    %v7483 = vpack.c.bf16 %v7472, %v7471
    %v7484 = vpack.c.bf16 %v7474, %v7473
    %v7485 = vpack.c.bf16 %v7476, %v7475
    %v7486 = vpack.c.bf16 %v7478, %v7477
    %v7487 = vpack.c.bf16 %v7480, %v7479
    %v7488 = vpack.c.bf16 %v7482, %v7481
    %s7489 = scalar_lea.vmem [#allocation6], 1024
    %v7490 = vld [vmem:[%s7489] sm:$0xff]
    %v7491 = vld [vmem:[%s7489 + $0x8] sm:$0xff]
    %v7492 = vld [vmem:[%s7489 + $0x10] sm:$0xff]
    %v7493 = vld [vmem:[%s7489 + $0x18] sm:$0xff]
    %v7494 = vld [vmem:[%s7489 + $0x20] sm:$0xff]
    %v7495 = vld [vmem:[%s7489 + $0x28] sm:$0xff]
    %v7496 = vld [vmem:[%s7489 + $0x30] sm:$0xff]
    %v7497 = vld [vmem:[%s7489 + $0x38] sm:$0xff]
    %v7498 = vld [vmem:[%s7489 + $0x40] sm:$0xff]
    %v7499 = vld [vmem:[%s7489 + $0x48] sm:$0xff]
    %v7500 = vld [vmem:[%s7489 + $0x50] sm:$0xff]
    %v7501 = vld [vmem:[%s7489 + $0x58] sm:$0xff]
    %v7502 = vld [vmem:[%s7489 + $0x60] sm:$0xff]
    %v7503 = vld [vmem:[%s7489 + $0x68] sm:$0xff]
    %v7504 = vld [vmem:[%s7489 + $0x70] sm:$0xff]
    %v7505 = vld [vmem:[%s7489 + $0x78] sm:$0xff]
    %v7507 = vsel %vm1963, %v7483, 0
    %v7510 = vsel %vm1963, %v7484, 0
    %v7513 = vsel %vm1963, %v7485, 0
    %v7516 = vsel %vm1963, %v7486, 0
    %v7519 = vsel %vm1963, %v7487, 0
    %v7522 = vsel %vm1963, %v7488, 0
    %7524 = vmatprep.subr.bf16.mxu0 %v7491
    %7525 = vmatpush1.bf16.msra.mxu0 %v7490
    %7526 = vmatprep.subr.bf16.mxu0 %v7495
    %7527 = vmatpush1.bf16.msra.mxu0 %v7494
    %7528 = vmatprep.subr.bf16.mxu0 %v7499
    %7529 = vmatpush1.bf16.msra.mxu0 %v7498
    %7530 = vmatprep.subr.bf16.mxu0 %v7503
    %7531 = vmatpush1.bf16.msra.mxu0 %v7502
    %7532 = vmatprep.subr.bf16.mxu0 0
    %7533 = vmatpush1.bf16.msra.mxu0 0
    %7534 = vmatprep.subr.bf16.mxu0 0
    %7535 = vmatpush1.bf16.msra.mxu0 0
    %7536 = vmatprep.subr.bf16.mxu0 0
    %7537 = vmatpush1.bf16.msra.mxu0 0
    %7538 = vmatprep.subr.bf16.mxu0 0
    %7539 = vmatpush1.bf16.msra.mxu0 0
    %7540 = vmatprep.subr.bf16.mxu0 0
    %7541 = vmatpush1.bf16.msra.mxu0 0
    %7542 = vmatprep.subr.bf16.mxu0 0
    %7543 = vmatpush1.bf16.msra.mxu0 0
    %7544 = vmatprep.subr.bf16.mxu0 0
    %7545 = vmatpush1.bf16.msra.mxu0 0
    %7546 = vmatprep.subr.bf16.mxu0 0
    %7547 = vmatpush1.bf16.msra.mxu0 0
    %7548 = vmatprep.subr.bf16.mxu0 0
    %7549 = vmatpush1.bf16.msra.mxu0 0
    %7550 = vmatprep.subr.bf16.mxu0 0
    %7551 = vmatpush1.bf16.msra.mxu0 0
    %7552 = vmatprep.subr.bf16.mxu0 0
    %7553 = vmatpush1.bf16.msra.mxu0 0
    %7554 = vmatprep.subr.bf16.mxu0 0
    %7555 = vmatpush1.bf16.msra.mxu0 0
    %7556 = vmatprep.mubr.bf16.mxu0 0
    %7557 = vmatmul.mubr.bf16.gmra.mrb[0].mxu0 %v7507
    %v7558 = vpop.f32.mrb[0].mxu0
    %v7559 = vadd.f32 0.0, %v7558
    %v7560 = vpop.f32.mrb[0].mxu0
    %v7561 = vadd.f32 0.0, %v7560
    %v7562 = vpop.f32.mrb[0].mxu0
    %v7563 = vadd.f32 0.0, %v7562
    %v7564 = vpop.f32.mrb[0].mxu0
    %v7565 = vadd.f32 0.0, %v7564
    %7566 = vmatprep.mubr.bf16.mxu0 0
    %7567 = vmatmul.mubr.bf16.gmra.mrb[0].mxu0 %v7510
    %v7568 = vpop.f32.mrb[0].mxu0
    %v7569 = vadd.f32 0.0, %v7568
    %v7570 = vpop.f32.mrb[0].mxu0
    %v7571 = vadd.f32 0.0, %v7570
    %v7572 = vpop.f32.mrb[0].mxu0
    %v7573 = vadd.f32 0.0, %v7572
    %v7574 = vpop.f32.mrb[0].mxu0
    %v7575 = vadd.f32 0.0, %v7574
    %7576 = vmatprep.mubr.bf16.mxu0 0
    %7577 = vmatmul.mubr.bf16.gmra.mrb[0].mxu0 %v7513
    %v7578 = vpop.f32.mrb[0].mxu0
    %v7579 = vadd.f32 0.0, %v7578
    %v7580 = vpop.f32.mrb[0].mxu0
    %v7581 = vadd.f32 0.0, %v7580
    %v7582 = vpop.f32.mrb[0].mxu0
    %v7583 = vadd.f32 0.0, %v7582
    %v7584 = vpop.f32.mrb[0].mxu0
    %v7585 = vadd.f32 0.0, %v7584
    %7586 = vmatprep.mubr.bf16.mxu0 0
    %7587 = vmatmul.mubr.bf16.gmra.mrb[0].mxu0 %v7516
    %v7588 = vpop.f32.mrb[0].mxu0
    %v7589 = vadd.f32 0.0, %v7588
    %v7590 = vpop.f32.mrb[0].mxu0
    %v7591 = vadd.f32 0.0, %v7590
    %v7592 = vpop.f32.mrb[0].mxu0
    %v7593 = vadd.f32 0.0, %v7592
    %v7594 = vpop.f32.mrb[0].mxu0
    %v7595 = vadd.f32 0.0, %v7594
    %7596 = vmatprep.mubr.bf16.mxu0 0
    %7597 = vmatmul.mubr.bf16.gmra.mrb[0].mxu0 %v7519
    %v7598 = vpop.f32.mrb[0].mxu0
    %v7599 = vadd.f32 0.0, %v7598
    %v7600 = vpop.f32.mrb[0].mxu0
    %v7601 = vadd.f32 0.0, %v7600
    %v7602 = vpop.f32.mrb[0].mxu0
    %v7603 = vadd.f32 0.0, %v7602
    %v7604 = vpop.f32.mrb[0].mxu0
    %v7605 = vadd.f32 0.0, %v7604
    %7606 = vmatprep.mubr.bf16.mxu0 0
    %7607 = vmatmul.mubr.bf16.gmra.mrb[0].mxu0 %v7522
    %v7608 = vpop.f32.mrb[0].mxu0
    %v7609 = vadd.f32 0.0, %v7608
    %v7610 = vpop.f32.mrb[0].mxu0
    %v7611 = vadd.f32 0.0, %v7610
    %v7612 = vpop.f32.mrb[0].mxu0
    %v7613 = vadd.f32 0.0, %v7612
    %v7614 = vpop.f32.mrb[0].mxu0
    %v7615 = vadd.f32 0.0, %v7614
    %7616 = vdwg.mxu0
    %7617 = vmatprep.subr.bf16.mxu0 %v7493
    %7618 = vmatpush1.bf16.msra.mxu0 %v7492
    %7619 = vmatprep.subr.bf16.mxu0 %v7497
    %7620 = vmatpush1.bf16.msra.mxu0 %v7496
    %7621 = vmatprep.subr.bf16.mxu0 %v7501
    %7622 = vmatpush1.bf16.msra.mxu0 %v7500
    %7623 = vmatprep.subr.bf16.mxu0 %v7505
    %7624 = vmatpush1.bf16.msra.mxu0 %v7504
    %7625 = vmatprep.subr.bf16.mxu0 0
    %7626 = vmatpush1.bf16.msra.mxu0 0
    %7627 = vmatprep.subr.bf16.mxu0 0
    %7628 = vmatpush1.bf16.msra.mxu0 0
    %7629 = vmatprep.subr.bf16.mxu0 0
    %7630 = vmatpush1.bf16.msra.mxu0 0
    %7631 = vmatprep.subr.bf16.mxu0 0
    %7632 = vmatpush1.bf16.msra.mxu0 0
    %7633 = vmatprep.subr.bf16.mxu0 0
    %7634 = vmatpush1.bf16.msra.mxu0 0
    %7635 = vmatprep.subr.bf16.mxu0 0
    %7636 = vmatpush1.bf16.msra.mxu0 0
    %7637 = vmatprep.subr.bf16.mxu0 0
    %7638 = vmatpush1.bf16.msra.mxu0 0
    %7639 = vmatprep.subr.bf16.mxu0 0
    %7640 = vmatpush1.bf16.msra.mxu0 0
    %7641 = vmatprep.subr.bf16.mxu0 0
    %7642 = vmatpush1.bf16.msra.mxu0 0
    %7643 = vmatprep.subr.bf16.mxu0 0
    %7644 = vmatpush1.bf16.msra.mxu0 0
    %7645 = vmatprep.subr.bf16.mxu0 0
    %7646 = vmatpush1.bf16.msra.mxu0 0
    %7647 = vmatprep.subr.bf16.mxu0 0
    %7648 = vmatpush1.bf16.msra.mxu0 0
    %7649 = vmatprep.mubr.bf16.mxu0 0
    %7650 = vmatmul.mubr.bf16.gmra.mrb[0].mxu0 %v7507
    %v7651 = vpop.f32.mrb[0].mxu0
    %v7652 = vadd.f32 0.0, %v7651
    %v7653 = vpop.f32.mrb[0].mxu0
    %v7654 = vadd.f32 0.0, %v7653
    %v7655 = vpop.f32.mrb[0].mxu0
    %v7656 = vadd.f32 0.0, %v7655
    %v7657 = vpop.f32.mrb[0].mxu0
    %v7658 = vadd.f32 0.0, %v7657
    %7659 = vmatprep.mubr.bf16.mxu0 0
    %7660 = vmatmul.mubr.bf16.gmra.mrb[0].mxu0 %v7510
    %v7661 = vpop.f32.mrb[0].mxu0
    %v7662 = vadd.f32 0.0, %v7661
    %v7663 = vpop.f32.mrb[0].mxu0
    %v7664 = vadd.f32 0.0, %v7663
    %v7665 = vpop.f32.mrb[0].mxu0
    %v7666 = vadd.f32 0.0, %v7665
    %v7667 = vpop.f32.mrb[0].mxu0
    %v7668 = vadd.f32 0.0, %v7667
    %7669 = vmatprep.mubr.bf16.mxu0 0
    %7670 = vmatmul.mubr.bf16.gmra.mrb[0].mxu0 %v7513
    %v7671 = vpop.f32.mrb[0].mxu0
    %v7672 = vadd.f32 0.0, %v7671
    %v7673 = vpop.f32.mrb[0].mxu0
    %v7674 = vadd.f32 0.0, %v7673
    %v7675 = vpop.f32.mrb[0].mxu0
    %v7676 = vadd.f32 0.0, %v7675
    %v7677 = vpop.f32.mrb[0].mxu0
    %v7678 = vadd.f32 0.0, %v7677
    %7679 = vmatprep.mubr.bf16.mxu0 0
    %7680 = vmatmul.mubr.bf16.gmra.mrb[0].mxu0 %v7516
    %v7681 = vpop.f32.mrb[0].mxu0
    %v7682 = vadd.f32 0.0, %v7681
    %v7683 = vpop.f32.mrb[0].mxu0
    %v7684 = vadd.f32 0.0, %v7683
    %v7685 = vpop.f32.mrb[0].mxu0
    %v7686 = vadd.f32 0.0, %v7685
    %v7687 = vpop.f32.mrb[0].mxu0
    %v7688 = vadd.f32 0.0, %v7687
    %7689 = vmatprep.mubr.bf16.mxu0 0
    %7690 = vmatmul.mubr.bf16.gmra.mrb[0].mxu0 %v7519
    %v7691 = vpop.f32.mrb[0].mxu0
    %v7692 = vadd.f32 0.0, %v7691
    %v7693 = vpop.f32.mrb[0].mxu0
    %v7694 = vadd.f32 0.0, %v7693
    %v7695 = vpop.f32.mrb[0].mxu0
    %v7696 = vadd.f32 0.0, %v7695
    %v7697 = vpop.f32.mrb[0].mxu0
    %v7698 = vadd.f32 0.0, %v7697
    %7699 = vmatprep.mubr.bf16.mxu0 0
    %7700 = vmatmul.mubr.bf16.gmra.mrb[0].mxu0 %v7522
    %v7701 = vpop.f32.mrb[0].mxu0
    %v7702 = vadd.f32 0.0, %v7701
    %v7703 = vpop.f32.mrb[0].mxu0
    %v7704 = vadd.f32 0.0, %v7703
    %v7705 = vpop.f32.mrb[0].mxu0
    %v7706 = vadd.f32 0.0, %v7705
    %v7707 = vpop.f32.mrb[0].mxu0
    %v7708 = vadd.f32 0.0, %v7707
    %7709 = vdwg.mxu0
    %v7710 = vld [vmem:[#allocation5] sm:$0xff]
    %v7711 = vld [vmem:[#allocation5 + $0x8] sm:$0xff]
    %v7712 = vld [vmem:[#allocation5 + $0x10] sm:$0xff]
    %v7713 = vld [vmem:[#allocation5 + $0x18] sm:$0xff]
    %v7714 = vld [vmem:[#allocation5 + $0x20] sm:$0xff]
    %v7715 = vld [vmem:[#allocation5 + $0x28] sm:$0xff]
    %v7716 = vld [vmem:[#allocation5 + $0x30] sm:$0xff]
    %v7717 = vld [vmem:[#allocation5 + $0x38] sm:$0xff]
    %v7718 = vld [vmem:[#allocation5 + $0x40] sm:$0xff]
    %v7719 = vld [vmem:[#allocation5 + $0x48] sm:$0xff]
    %v7720 = vld [vmem:[#allocation5 + $0x50] sm:$0xff]
    %v7721 = vld [vmem:[#allocation5 + $0x58] sm:$0xff]
    %v7722 = vld [vmem:[#allocation5 + $0x60] sm:$0xff]
    %v7723 = vld [vmem:[#allocation5 + $0x68] sm:$0xff]
    %v7724 = vld [vmem:[#allocation5 + $0x70] sm:$0xff]
    %v7725 = vld [vmem:[#allocation5 + $0x78] sm:$0xff]
    %v7726 = vld [vmem:[#allocation5 + $0x80] sm:$0xff]
    %v7727 = vld [vmem:[#allocation5 + $0x88] sm:$0xff]
    %v7728 = vld [vmem:[#allocation5 + $0x90] sm:$0xff]
    %v7729 = vld [vmem:[#allocation5 + $0x98] sm:$0xff]
    %v7730 = vld [vmem:[#allocation5 + $0xa0] sm:$0xff]
    %v7731 = vld [vmem:[#allocation5 + $0xa8] sm:$0xff]
    %v7732 = vld [vmem:[#allocation5 + $0xb0] sm:$0xff]
    %v7733 = vld [vmem:[#allocation5 + $0xb8] sm:$0xff]
    %v7734 = vld [vmem:[#allocation5 + $0xc0] sm:$0xff]
    %v7735 = vld [vmem:[#allocation5 + $0xc8] sm:$0xff]
    %v7736 = vld [vmem:[#allocation5 + $0xd0] sm:$0xff]
    %v7737 = vld [vmem:[#allocation5 + $0xd8] sm:$0xff]
    %v7738 = vld [vmem:[#allocation5 + $0xe0] sm:$0xff]
    %v7739 = vld [vmem:[#allocation5 + $0xe8] sm:$0xff]
    %v7740 = vld [vmem:[#allocation5 + $0xf0] sm:$0xff]
    %v7741 = vld [vmem:[#allocation5 + $0xf8] sm:$0xff]
    %v7742 = vld [vmem:[#allocation5 + $0x100] sm:$0xff]
    %v7743 = vld [vmem:[#allocation5 + $0x108] sm:$0xff]
    %v7744 = vld [vmem:[#allocation5 + $0x110] sm:$0xff]
    %v7745 = vld [vmem:[#allocation5 + $0x118] sm:$0xff]
    %v7746 = vld [vmem:[#allocation5 + $0x120] sm:$0xff]
    %v7747 = vld [vmem:[#allocation5 + $0x128] sm:$0xff]
    %v7748 = vld [vmem:[#allocation5 + $0x130] sm:$0xff]
    %v7749 = vld [vmem:[#allocation5 + $0x138] sm:$0xff]
    %v7750 = vld [vmem:[#allocation5 + $0x140] sm:$0xff]
    %v7751 = vld [vmem:[#allocation5 + $0x148] sm:$0xff]
    %v7752 = vld [vmem:[#allocation5 + $0x150] sm:$0xff]
    %v7753 = vld [vmem:[#allocation5 + $0x158] sm:$0xff]
    %v7754 = vld [vmem:[#allocation5 + $0x160] sm:$0xff]
    %v7755 = vld [vmem:[#allocation5 + $0x168] sm:$0xff]
    %v7756 = vld [vmem:[#allocation5 + $0x170] sm:$0xff]
    %v7757 = vld [vmem:[#allocation5 + $0x178] sm:$0xff]
    %v7758 = vadd.f32 %v7710, %v7559
    %v7759 = vadd.f32 %v7711, %v7561
    %v7760 = vadd.f32 %v7712, %v7652
    %v7761 = vadd.f32 %v7713, %v7654
    %v7762 = vadd.f32 %v7714, %v7563
    %v7763 = vadd.f32 %v7715, %v7565
    %v7764 = vadd.f32 %v7716, %v7656
    %v7765 = vadd.f32 %v7717, %v7658
    %v7766 = vadd.f32 %v7718, %v7569
    %v7767 = vadd.f32 %v7719, %v7571
    %v7768 = vadd.f32 %v7720, %v7662
    %v7769 = vadd.f32 %v7721, %v7664
    %v7770 = vadd.f32 %v7722, %v7573
    %v7771 = vadd.f32 %v7723, %v7575
    %v7772 = vadd.f32 %v7724, %v7666
    %v7773 = vadd.f32 %v7725, %v7668
    %v7774 = vadd.f32 %v7726, %v7579
    %v7775 = vadd.f32 %v7727, %v7581
    %v7776 = vadd.f32 %v7728, %v7672
    %v7777 = vadd.f32 %v7729, %v7674
    %v7778 = vadd.f32 %v7730, %v7583
    %v7779 = vadd.f32 %v7731, %v7585
    %v7780 = vadd.f32 %v7732, %v7676
    %v7781 = vadd.f32 %v7733, %v7678
    %v7782 = vadd.f32 %v7734, %v7589
    %v7783 = vadd.f32 %v7735, %v7591
    %v7784 = vadd.f32 %v7736, %v7682
    %v7785 = vadd.f32 %v7737, %v7684
    %v7786 = vadd.f32 %v7738, %v7593
    %v7787 = vadd.f32 %v7739, %v7595
    %v7788 = vadd.f32 %v7740, %v7686
    %v7789 = vadd.f32 %v7741, %v7688
    %v7790 = vadd.f32 %v7742, %v7599
    %v7791 = vadd.f32 %v7743, %v7601
    %v7792 = vadd.f32 %v7744, %v7692
    %v7793 = vadd.f32 %v7745, %v7694
    %v7794 = vadd.f32 %v7746, %v7603
    %v7795 = vadd.f32 %v7747, %v7605
    %v7796 = vadd.f32 %v7748, %v7696
    %v7797 = vadd.f32 %v7749, %v7698
    %v7798 = vadd.f32 %v7750, %v7609
    %v7799 = vadd.f32 %v7751, %v7611
    %v7800 = vadd.f32 %v7752, %v7702
    %v7801 = vadd.f32 %v7753, %v7704
    %v7802 = vadd.f32 %v7754, %v7613
    %v7803 = vadd.f32 %v7755, %v7615
    %v7804 = vadd.f32 %v7756, %v7706
    %v7805 = vadd.f32 %v7757, %v7708
    %7806 = vst [vmem:[#allocation5] sm:$0xff] %v7758
    %7807 = vst [vmem:[#allocation5 + $0x8] sm:$0xff] %v7759
    %7808 = vst [vmem:[#allocation5 + $0x10] sm:$0xff] %v7760
    %7809 = vst [vmem:[#allocation5 + $0x18] sm:$0xff] %v7761
    %7810 = vst [vmem:[#allocation5 + $0x20] sm:$0xff] %v7762
    %7811 = vst [vmem:[#allocation5 + $0x28] sm:$0xff] %v7763
    %7812 = vst [vmem:[#allocation5 + $0x30] sm:$0xff] %v7764
    %7813 = vst [vmem:[#allocation5 + $0x38] sm:$0xff] %v7765
    %7814 = vst [vmem:[#allocation5 + $0x40] sm:$0xff] %v7766
    %7815 = vst [vmem:[#allocation5 + $0x48] sm:$0xff] %v7767
    %7816 = vst [vmem:[#allocation5 + $0x50] sm:$0xff] %v7768
    %7817 = vst [vmem:[#allocation5 + $0x58] sm:$0xff] %v7769
    %7818 = vst [vmem:[#allocation5 + $0x60] sm:$0xff] %v7770
    %7819 = vst [vmem:[#allocation5 + $0x68] sm:$0xff] %v7771
    %7820 = vst [vmem:[#allocation5 + $0x70] sm:$0xff] %v7772
    %7821 = vst [vmem:[#allocation5 + $0x78] sm:$0xff] %v7773
    %7822 = vst [vmem:[#allocation5 + $0x80] sm:$0xff] %v7774
    %7823 = vst [vmem:[#allocation5 + $0x88] sm:$0xff] %v7775
    %7824 = vst [vmem:[#allocation5 + $0x90] sm:$0xff] %v7776
    %7825 = vst [vmem:[#allocation5 + $0x98] sm:$0xff] %v7777
    %7826 = vst [vmem:[#allocation5 + $0xa0] sm:$0xff] %v7778
    %7827 = vst [vmem:[#allocation5 + $0xa8] sm:$0xff] %v7779
    %7828 = vst [vmem:[#allocation5 + $0xb0] sm:$0xff] %v7780
    %7829 = vst [vmem:[#allocation5 + $0xb8] sm:$0xff] %v7781
    %7830 = vst [vmem:[#allocation5 + $0xc0] sm:$0xff] %v7782
    %7831 = vst [vmem:[#allocation5 + $0xc8] sm:$0xff] %v7783
    %7832 = vst [vmem:[#allocation5 + $0xd0] sm:$0xff] %v7784
    %7833 = vst [vmem:[#allocation5 + $0xd8] sm:$0xff] %v7785
    %7834 = vst [vmem:[#allocation5 + $0xe0] sm:$0xff] %v7786
    %7835 = vst [vmem:[#allocation5 + $0xe8] sm:$0xff] %v7787
    %7836 = vst [vmem:[#allocation5 + $0xf0] sm:$0xff] %v7788
    %7837 = vst [vmem:[#allocation5 + $0xf8] sm:$0xff] %v7789
    %7838 = vst [vmem:[#allocation5 + $0x100] sm:$0xff] %v7790
    %7839 = vst [vmem:[#allocation5 + $0x108] sm:$0xff] %v7791
    %7840 = vst [vmem:[#allocation5 + $0x110] sm:$0xff] %v7792
    %7841 = vst [vmem:[#allocation5 + $0x118] sm:$0xff] %v7793
    %7842 = vst [vmem:[#allocation5 + $0x120] sm:$0xff] %v7794
    %7843 = vst [vmem:[#allocation5 + $0x128] sm:$0xff] %v7795
    %7844 = vst [vmem:[#allocation5 + $0x130] sm:$0xff] %v7796
    %7845 = vst [vmem:[#allocation5 + $0x138] sm:$0xff] %v7797
    %7846 = vst [vmem:[#allocation5 + $0x140] sm:$0xff] %v7798
    %7847 = vst [vmem:[#allocation5 + $0x148] sm:$0xff] %v7799
    %7848 = vst [vmem:[#allocation5 + $0x150] sm:$0xff] %v7800
    %7849 = vst [vmem:[#allocation5 + $0x158] sm:$0xff] %v7801
    %7850 = vst [vmem:[#allocation5 + $0x160] sm:$0xff] %v7802
    %7851 = vst [vmem:[#allocation5 + $0x168] sm:$0xff] %v7803
    %7852 = vst [vmem:[#allocation5 + $0x170] sm:$0xff] %v7804
    %7853 = vst [vmem:[#allocation5 + $0x178] sm:$0xff] %v7805
    %v7854 = vld [vmem:[#allocation5] sm:$0xff]
    %v7855 = vld [vmem:[#allocation5 + $0x8] sm:$0xff]
    %v7856 = vld [vmem:[#allocation5 + $0x10] sm:$0xff]
    %v7857 = vld [vmem:[#allocation5 + $0x18] sm:$0xff]
    %v7858 = vld [vmem:[#allocation5 + $0x20] sm:$0xff]
    %v7859 = vld [vmem:[#allocation5 + $0x28] sm:$0xff]
    %v7860 = vld [vmem:[#allocation5 + $0x30] sm:$0xff]
    %v7861 = vld [vmem:[#allocation5 + $0x38] sm:$0xff]
    %v7862 = vld [vmem:[#allocation5 + $0x40] sm:$0xff]
    %v7863 = vld [vmem:[#allocation5 + $0x48] sm:$0xff]
    %v7864 = vld [vmem:[#allocation5 + $0x50] sm:$0xff]
    %v7865 = vld [vmem:[#allocation5 + $0x58] sm:$0xff]
    %v7866 = vld [vmem:[#allocation5 + $0x60] sm:$0xff]
    %v7867 = vld [vmem:[#allocation5 + $0x68] sm:$0xff]
    %v7868 = vld [vmem:[#allocation5 + $0x70] sm:$0xff]
    %v7869 = vld [vmem:[#allocation5 + $0x78] sm:$0xff]
    %v7870 = vld [vmem:[#allocation5 + $0x80] sm:$0xff]
    %v7871 = vld [vmem:[#allocation5 + $0x88] sm:$0xff]
    %v7872 = vld [vmem:[#allocation5 + $0x90] sm:$0xff]
    %v7873 = vld [vmem:[#allocation5 + $0x98] sm:$0xff]
    %v7874 = vld [vmem:[#allocation5 + $0xa0] sm:$0xff]
    %v7875 = vld [vmem:[#allocation5 + $0xa8] sm:$0xff]
    %v7876 = vld [vmem:[#allocation5 + $0xb0] sm:$0xff]
    %v7877 = vld [vmem:[#allocation5 + $0xb8] sm:$0xff]
    %v7878 = vld [vmem:[#allocation5 + $0xc0] sm:$0xff]
    %v7879 = vld [vmem:[#allocation5 + $0xc8] sm:$0xff]
    %v7880 = vld [vmem:[#allocation5 + $0xd0] sm:$0xff]
    %v7881 = vld [vmem:[#allocation5 + $0xd8] sm:$0xff]
    %v7882 = vld [vmem:[#allocation5 + $0xe0] sm:$0xff]
    %v7883 = vld [vmem:[#allocation5 + $0xe8] sm:$0xff]
    %v7884 = vld [vmem:[#allocation5 + $0xf0] sm:$0xff]
    %v7885 = vld [vmem:[#allocation5 + $0xf8] sm:$0xff]
    %v7886 = vld [vmem:[#allocation5 + $0x100] sm:$0xff]
    %v7887 = vld [vmem:[#allocation5 + $0x108] sm:$0xff]
    %v7888 = vld [vmem:[#allocation5 + $0x110] sm:$0xff]
    %v7889 = vld [vmem:[#allocation5 + $0x118] sm:$0xff]
    %v7890 = vld [vmem:[#allocation5 + $0x120] sm:$0xff]
    %v7891 = vld [vmem:[#allocation5 + $0x128] sm:$0xff]
    %v7892 = vld [vmem:[#allocation5 + $0x130] sm:$0xff]
    %v7893 = vld [vmem:[#allocation5 + $0x138] sm:$0xff]
    %v7894 = vld [vmem:[#allocation5 + $0x140] sm:$0xff]
    %v7895 = vld [vmem:[#allocation5 + $0x148] sm:$0xff]
    %v7896 = vld [vmem:[#allocation5 + $0x150] sm:$0xff]
    %v7897 = vld [vmem:[#allocation5 + $0x158] sm:$0xff]
    %v7898 = vld [vmem:[#allocation5 + $0x160] sm:$0xff]
    %v7899 = vld [vmem:[#allocation5 + $0x168] sm:$0xff]
    %v7900 = vld [vmem:[#allocation5 + $0x170] sm:$0xff]
    %v7901 = vld [vmem:[#allocation5 + $0x178] sm:$0xff]
    %v7902 = vmax.f32 %v7854, %v7858
    %v7903 = vmax.f32 %v7855, %v7859
    %v7904 = vmax.f32 %v7856, %v7860
    %v7905 = vmax.f32 %v7857, %v7861
    %v7906 = vmax.f32 %v7862, %v7866
    %v7907 = vmax.f32 %v7863, %v7867
    %v7908 = vmax.f32 %v7864, %v7868
    %v7909 = vmax.f32 %v7865, %v7869
    %v7910 = vmax.f32 %v7870, %v7874
    %v7911 = vmax.f32 %v7871, %v7875
    %v7912 = vmax.f32 %v7872, %v7876
    %v7913 = vmax.f32 %v7873, %v7877
    %v7914 = vmax.f32 %v7878, %v7882
    %v7915 = vmax.f32 %v7879, %v7883
    %v7916 = vmax.f32 %v7880, %v7884
    %v7917 = vmax.f32 %v7881, %v7885
    %v7918 = vmax.f32 %v7886, %v7890
    %v7919 = vmax.f32 %v7887, %v7891
    %v7920 = vmax.f32 %v7888, %v7892
    %v7921 = vmax.f32 %v7889, %v7893
    %v7922 = vmax.f32 %v7894, %v7898
    %v7923 = vmax.f32 %v7895, %v7899
    %v7924 = vmax.f32 %v7896, %v7900
    %v7925 = vmax.f32 %v7897, %v7901
    %v7950 = vrot.slane %v7902, 1
    %v7951 = vrot.slane %v7903, 1
    %v7952 = vrot.slane %v7904, 1
    %v7953 = vrot.slane %v7905, 1
    %v7954 = vrot.slane %v7906, 1
    %v7955 = vrot.slane %v7907, 1
    %v7956 = vrot.slane %v7908, 1
    %v7957 = vrot.slane %v7909, 1
    %v7958 = vrot.slane %v7910, 1
    %v7959 = vrot.slane %v7911, 1
    %v7960 = vrot.slane %v7912, 1
    %v7961 = vrot.slane %v7913, 1
    %v7962 = vrot.slane %v7914, 1
    %v7963 = vrot.slane %v7915, 1
    %v7964 = vrot.slane %v7916, 1
    %v7965 = vrot.slane %v7917, 1
    %v7966 = vrot.slane %v7918, 1
    %v7967 = vrot.slane %v7919, 1
    %v7968 = vrot.slane %v7920, 1
    %v7969 = vrot.slane %v7921, 1
    %v7970 = vrot.slane %v7922, 1
    %v7971 = vrot.slane %v7923, 1
    %v7972 = vrot.slane %v7924, 1
    %v7973 = vrot.slane %v7925, 1
    %v7998 = vmax.f32 %v7902, %v7950
    %v7999 = vmax.f32 %v7903, %v7951
    %v8000 = vmax.f32 %v7904, %v7952
    %v8001 = vmax.f32 %v7905, %v7953
    %v8002 = vmax.f32 %v7906, %v7954
    %v8003 = vmax.f32 %v7907, %v7955
    %v8004 = vmax.f32 %v7908, %v7956
    %v8005 = vmax.f32 %v7909, %v7957
    %v8006 = vmax.f32 %v7910, %v7958
    %v8007 = vmax.f32 %v7911, %v7959
    %v8008 = vmax.f32 %v7912, %v7960
    %v8009 = vmax.f32 %v7913, %v7961
    %v8010 = vmax.f32 %v7914, %v7962
    %v8011 = vmax.f32 %v7915, %v7963
    %v8012 = vmax.f32 %v7916, %v7964
    %v8013 = vmax.f32 %v7917, %v7965
    %v8014 = vmax.f32 %v7918, %v7966
    %v8015 = vmax.f32 %v7919, %v7967
    %v8016 = vmax.f32 %v7920, %v7968
    %v8017 = vmax.f32 %v7921, %v7969
    %v8018 = vmax.f32 %v7922, %v7970
    %v8019 = vmax.f32 %v7923, %v7971
    %v8020 = vmax.f32 %v7924, %v7972
    %v8021 = vmax.f32 %v7925, %v7973
    %v8022 = vld [vmem:[%s4] sm:$0xf]
    %v8024 = vlaneseq
    %v8025 = vshrl.u32 %v8024, 7
    %v8026 = vsub.s32 0, %v8025
    %v8027 = vrot.slane %v8022, %v8026
    %v8028 = vlaneseq
    %v8029 = vshrl.u32 %v8028, 7
    %v8030 = vsub.s32 1, %v8029
    %v8031 = vrot.slane %v8022, %v8030
    %v8032 = vlaneseq
    %v8033 = vshrl.u32 %v8032, 7
    %v8034 = vsub.s32 2, %v8033
    %v8035 = vrot.slane %v8022, %v8034
    %v8036 = vlaneseq
    %v8037 = vshrl.u32 %v8036, 7
    %v8038 = vsub.s32 3, %v8037
    %v8039 = vrot.slane %v8022, %v8038
    %v8044 = vadd.f32 %v7998, %v8027
    %v8045 = vadd.f32 %v7999, %v8031
    %v8046 = vadd.f32 %v8000, %v8035
    %v8047 = vadd.f32 %v8001, %v8039
    %v8048 = vadd.f32 %v8002, %v8027
    %v8049 = vadd.f32 %v8003, %v8031
    %v8050 = vadd.f32 %v8004, %v8035
    %v8051 = vadd.f32 %v8005, %v8039
    %v8052 = vadd.f32 %v8006, %v8027
    %v8053 = vadd.f32 %v8007, %v8031
    %v8054 = vadd.f32 %v8008, %v8035
    %v8055 = vadd.f32 %v8009, %v8039
    %v8056 = vadd.f32 %v8010, %v8027
    %v8057 = vadd.f32 %v8011, %v8031
    %v8058 = vadd.f32 %v8012, %v8035
    %v8059 = vadd.f32 %v8013, %v8039
    %v8060 = vadd.f32 %v8014, %v8027
    %v8061 = vadd.f32 %v8015, %v8031
    %v8062 = vadd.f32 %v8016, %v8035
    %v8063 = vadd.f32 %v8017, %v8039
    %v8064 = vadd.f32 %v8018, %v8027
    %v8065 = vadd.f32 %v8019, %v8031
    %v8066 = vadd.f32 %v8020, %v8035
    %v8067 = vadd.f32 %v8021, %v8039
    %v8068 = vmax.f32 %v8044, 0.0
    %v8069 = vmax.f32 %v8045, 0.0
    %v8070 = vmax.f32 %v8046, 0.0
    %v8071 = vmax.f32 %v8047, 0.0
    %v8072 = vmax.f32 %v8048, 0.0
    %v8073 = vmax.f32 %v8049, 0.0
    %v8074 = vmax.f32 %v8050, 0.0
    %v8075 = vmax.f32 %v8051, 0.0
    %v8076 = vmax.f32 %v8052, 0.0
    %v8077 = vmax.f32 %v8053, 0.0
    %v8078 = vmax.f32 %v8054, 0.0
    %v8079 = vmax.f32 %v8055, 0.0
    %v8080 = vmax.f32 %v8056, 0.0
    %v8081 = vmax.f32 %v8057, 0.0
    %v8082 = vmax.f32 %v8058, 0.0
    %v8083 = vmax.f32 %v8059, 0.0
    %v8084 = vmax.f32 %v8060, 0.0
    %v8085 = vmax.f32 %v8061, 0.0
    %v8086 = vmax.f32 %v8062, 0.0
    %v8087 = vmax.f32 %v8063, 0.0
    %v8088 = vmax.f32 %v8064, 0.0
    %v8089 = vmax.f32 %v8065, 0.0
    %v8090 = vmax.f32 %v8066, 0.0
    %v8091 = vmax.f32 %v8067, 0.0
    %s8092 = smul.u32 4, 6
    %s8093 = smul.u32 %s8092, 64
    %s8094 = smul.u32 %s8093, 1
    %s8095 = sshll.u32 %s8094, 4
    %8096 = dma.done %s1224, %s8095
    %v8097 = vpack.c.bf16 %v8068, %v8068
    %v8098 = vpack.c.bf16 %v8069, %v8069
    %v8099 = vpack.c.bf16 %v8070, %v8070
    %v8100 = vpack.c.bf16 %v8071, %v8071
    %v8101 = vpack.c.bf16 %v8080, %v8080
    %v8102 = vpack.c.bf16 %v8081, %v8081
    %v8103 = vpack.c.bf16 %v8082, %v8082
    %v8104 = vpack.c.bf16 %v8083, %v8083
    %v8105 = vld [vmem:[#allocation7] sm:$0xff]
    %v8106 = vld [vmem:[#allocation7 + $0x8] sm:$0xff]
    %v8107 = vld [vmem:[#allocation7 + $0x10] sm:$0xff]
    %v8108 = vld [vmem:[#allocation7 + $0x18] sm:$0xff]
    %v8109 = vld [vmem:[#allocation7 + $0x20] sm:$0xff]
    %v8110 = vld [vmem:[#allocation7 + $0x28] sm:$0xff]
    %v8111 = vld [vmem:[#allocation7 + $0x30] sm:$0xff]
    %v8112 = vld [vmem:[#allocation7 + $0x38] sm:$0xff]
    %v8113 = vld [vmem:[#allocation7 + $0x40] sm:$0xff]
    %v8114 = vld [vmem:[#allocation7 + $0x48] sm:$0xff]
    %v8115 = vld [vmem:[#allocation7 + $0x50] sm:$0xff]
    %v8116 = vld [vmem:[#allocation7 + $0x58] sm:$0xff]
    %v8117 = vld [vmem:[#allocation7 + $0x60] sm:$0xff]
    %v8118 = vld [vmem:[#allocation7 + $0x68] sm:$0xff]
    %v8119 = vld [vmem:[#allocation7 + $0x70] sm:$0xff]
    %v8120 = vld [vmem:[#allocation7 + $0x78] sm:$0xff]
    %v8121 = vld [vmem:[#allocation7 + $0x80] sm:$0xff]
    %v8122 = vld [vmem:[#allocation7 + $0x88] sm:$0xff]
    %v8123 = vld [vmem:[#allocation7 + $0x90] sm:$0xff]
    %v8124 = vld [vmem:[#allocation7 + $0x98] sm:$0xff]
    %v8125 = vld [vmem:[#allocation7 + $0xa0] sm:$0xff]
    %v8126 = vld [vmem:[#allocation7 + $0xa8] sm:$0xff]
    %v8127 = vld [vmem:[#allocation7 + $0xb0] sm:$0xff]
    %v8128 = vld [vmem:[#allocation7 + $0xb8] sm:$0xff]
    %v8129 = vld [vmem:[#allocation7 + $0xc0] sm:$0xff]
    %v8130 = vld [vmem:[#allocation7 + $0xc8] sm:$0xff]
    %v8131 = vld [vmem:[#allocation7 + $0xd0] sm:$0xff]
    %v8132 = vld [vmem:[#allocation7 + $0xd8] sm:$0xff]
    %v8133 = vld [vmem:[#allocation7 + $0xe0] sm:$0xff]
    %v8134 = vld [vmem:[#allocation7 + $0xe8] sm:$0xff]
    %v8135 = vld [vmem:[#allocation7 + $0xf0] sm:$0xff]
    %v8136 = vld [vmem:[#allocation7 + $0xf8] sm:$0xff]
    %s8137 = scalar_lea.vmem [#allocation7], 256
    %v8138 = vld [vmem:[%s8137] sm:$0xff]
    %v8139 = vld [vmem:[%s8137 + $0x8] sm:$0xff]
    %v8140 = vld [vmem:[%s8137 + $0x10] sm:$0xff]
    %v8141 = vld [vmem:[%s8137 + $0x18] sm:$0xff]
    %v8142 = vld [vmem:[%s8137 + $0x20] sm:$0xff]
    %v8143 = vld [vmem:[%s8137 + $0x28] sm:$0xff]
    %v8144 = vld [vmem:[%s8137 + $0x30] sm:$0xff]
    %v8145 = vld [vmem:[%s8137 + $0x38] sm:$0xff]
    %v8146 = vld [vmem:[%s8137 + $0x40] sm:$0xff]
    %v8147 = vld [vmem:[%s8137 + $0x48] sm:$0xff]
    %v8148 = vld [vmem:[%s8137 + $0x50] sm:$0xff]
    %v8149 = vld [vmem:[%s8137 + $0x58] sm:$0xff]
    %v8150 = vld [vmem:[%s8137 + $0x60] sm:$0xff]
    %v8151 = vld [vmem:[%s8137 + $0x68] sm:$0xff]
    %v8152 = vld [vmem:[%s8137 + $0x70] sm:$0xff]
    %v8153 = vld [vmem:[%s8137 + $0x78] sm:$0xff]
    %v8154 = vld [vmem:[%s8137 + $0x80] sm:$0xff]
    %v8155 = vld [vmem:[%s8137 + $0x88] sm:$0xff]
    %v8156 = vld [vmem:[%s8137 + $0x90] sm:$0xff]
    %v8157 = vld [vmem:[%s8137 + $0x98] sm:$0xff]
    %v8158 = vld [vmem:[%s8137 + $0xa0] sm:$0xff]
    %v8159 = vld [vmem:[%s8137 + $0xa8] sm:$0xff]
    %v8160 = vld [vmem:[%s8137 + $0xb0] sm:$0xff]
    %v8161 = vld [vmem:[%s8137 + $0xb8] sm:$0xff]
    %v8162 = vld [vmem:[%s8137 + $0xc0] sm:$0xff]
    %v8163 = vld [vmem:[%s8137 + $0xc8] sm:$0xff]
    %v8164 = vld [vmem:[%s8137 + $0xd0] sm:$0xff]
    %v8165 = vld [vmem:[%s8137 + $0xd8] sm:$0xff]
    %v8166 = vld [vmem:[%s8137 + $0xe0] sm:$0xff]
    %v8167 = vld [vmem:[%s8137 + $0xe8] sm:$0xff]
    %v8168 = vld [vmem:[%s8137 + $0xf0] sm:$0xff]
    %v8169 = vld [vmem:[%s8137 + $0xf8] sm:$0xff]
    %v8178 = vunpack.c.l.b16 %v8097
    %v8179 = vunpack.c.l.b16 %v8098
    %v8180 = vunpack.c.l.b16 %v8099
    %v8181 = vunpack.c.l.b16 %v8100
    %v8182 = vunpack.c.l.b16 %v8101
    %v8183 = vunpack.c.l.b16 %v8102
    %v8184 = vunpack.c.l.b16 %v8103
    %v8185 = vunpack.c.l.b16 %v8104
    %v8186 = vrot.slane %v8178, 2
    %v8187 = vrot.slane %v8182, 1
    %vm8188 = vcmask 1041409
    %v8189 = vsel %vm8188, %v8187, %v8186
    %v8190 = vrot.slane %v8179, 2
    %v8191 = vrot.slane %v8183, 1
    %v8192 = vsel %vm8188, %v8191, %v8190
    %v8193 = vrot.slane %v8180, 2
    %v8194 = vrot.slane %v8184, 1
    %v8195 = vsel %vm8188, %v8194, %v8193
    %v8196 = vrot.slane %v8181, 2
    %v8197 = vrot.slane %v8185, 1
    %v8198 = vsel %vm8188, %v8197, %v8196
    %v8199 = vpack.c.b16 %v8189, %v8189
    %v8200 = vpack.c.b16 %v8192, %v8192
    %v8201 = vpack.c.b16 %v8195, %v8195
    %v8202 = vpack.c.b16 %v8198, %v8198
    %8207 = vmatprep.subr.bf16.mxu0 0
    %8208 = vmatpush1.bf16.msra.mxu0 %v8138
    %8209 = vmatprep.subr.bf16.mxu0 0
    %8210 = vmatpush1.bf16.msra.mxu0 %v8139
    %8211 = vmatprep.subr.bf16.mxu0 0
    %8212 = vmatpush1.bf16.msra.mxu0 %v8140
    %8213 = vmatprep.subr.bf16.mxu0 0
    %8214 = vmatpush1.bf16.msra.mxu0 %v8141
    %8215 = vmatprep.subr.bf16.mxu0 0
    %8216 = vmatpush1.bf16.msra.mxu0 %v8142
    %8217 = vmatprep.subr.bf16.mxu0 0
    %8218 = vmatpush1.bf16.msra.mxu0 %v8143
    %8219 = vmatprep.subr.bf16.mxu0 0
    %8220 = vmatpush1.bf16.msra.mxu0 %v8144
    %8221 = vmatprep.subr.bf16.mxu0 0
    %8222 = vmatpush1.bf16.msra.mxu0 %v8145
    %8223 = vmatprep.subr.bf16.mxu0 0
    %8224 = vmatpush1.bf16.msra.mxu0 %v8146
    %8225 = vmatprep.subr.bf16.mxu0 0
    %8226 = vmatpush1.bf16.msra.mxu0 %v8147
    %8227 = vmatprep.subr.bf16.mxu0 0
    %8228 = vmatpush1.bf16.msra.mxu0 %v8148
    %8229 = vmatprep.subr.bf16.mxu0 0
    %8230 = vmatpush1.bf16.msra.mxu0 %v8149
    %8231 = vmatprep.subr.bf16.mxu0 0
    %8232 = vmatpush1.bf16.msra.mxu0 %v8150
    %8233 = vmatprep.subr.bf16.mxu0 0
    %8234 = vmatpush1.bf16.msra.mxu0 %v8151
    %8235 = vmatprep.subr.bf16.mxu0 0
    %8236 = vmatpush1.bf16.msra.mxu0 %v8152
    %8237 = vmatprep.subr.bf16.mxu0 0
    %8238 = vmatpush1.bf16.msra.mxu0 %v8153
    %8239 = vmatprep.mubr.bf16.mxu0 %v8200
    %8240 = vmatmul.mubr.bf16.gmra.mrb[0].mxu0 %v8199
    %v8241 = vpop.f32.mrb[0].mxu0
    %v8242 = vadd.f32 0.0, %v8241
    %v8243 = vpop.f32.mrb[0].mxu0
    %v8244 = vpop.f32.mrb[0].mxu0
    %v8245 = vpop.f32.mrb[0].mxu0
    %8246 = vdwg.mxu0
    %8247 = vmatprep.subr.bf16.mxu0 0
    %8248 = vmatpush1.bf16.msra.mxu0 %v8154
    %8249 = vmatprep.subr.bf16.mxu0 0
    %8250 = vmatpush1.bf16.msra.mxu0 %v8155
    %8251 = vmatprep.subr.bf16.mxu0 0
    %8252 = vmatpush1.bf16.msra.mxu0 %v8156
    %8253 = vmatprep.subr.bf16.mxu0 0
    %8254 = vmatpush1.bf16.msra.mxu0 %v8157
    %8255 = vmatprep.subr.bf16.mxu0 0
    %8256 = vmatpush1.bf16.msra.mxu0 %v8158
    %8257 = vmatprep.subr.bf16.mxu0 0
    %8258 = vmatpush1.bf16.msra.mxu0 %v8159
    %8259 = vmatprep.subr.bf16.mxu0 0
    %8260 = vmatpush1.bf16.msra.mxu0 %v8160
    %8261 = vmatprep.subr.bf16.mxu0 0
    %8262 = vmatpush1.bf16.msra.mxu0 %v8161
    %8263 = vmatprep.subr.bf16.mxu0 0
    %8264 = vmatpush1.bf16.msra.mxu0 %v8162
    %8265 = vmatprep.subr.bf16.mxu0 0
    %8266 = vmatpush1.bf16.msra.mxu0 %v8163
    %8267 = vmatprep.subr.bf16.mxu0 0
    %8268 = vmatpush1.bf16.msra.mxu0 %v8164
    %8269 = vmatprep.subr.bf16.mxu0 0
    %8270 = vmatpush1.bf16.msra.mxu0 %v8165
    %8271 = vmatprep.subr.bf16.mxu0 0
    %8272 = vmatpush1.bf16.msra.mxu0 %v8166
    %8273 = vmatprep.subr.bf16.mxu0 0
    %8274 = vmatpush1.bf16.msra.mxu0 %v8167
    %8275 = vmatprep.subr.bf16.mxu0 0
    %8276 = vmatpush1.bf16.msra.mxu0 %v8168
    %8277 = vmatprep.subr.bf16.mxu0 0
    %8278 = vmatpush1.bf16.msra.mxu0 %v8169
    %8279 = vmatprep.mubr.bf16.mxu0 %v8202
    %8280 = vmatmul.mubr.bf16.gmra.mrb[0].mxu0 %v8201
    %v8281 = vpop.f32.mrb[0].mxu0
    %v8282 = vadd.f32 %v8242, %v8281
    %v8283 = vpop.f32.mrb[0].mxu0
    %v8284 = vpop.f32.mrb[0].mxu0
    %v8285 = vpop.f32.mrb[0].mxu0
    %8286 = vdwg.mxu0
    %v8287 = vrot.slane %v8182, 7
    %v8288 = vsel %vm8188, %v8287, %v8178
    %v8289 = vrot.slane %v8183, 7
    %v8290 = vsel %vm8188, %v8289, %v8179
    %v8291 = vrot.slane %v8184, 7
    %v8292 = vsel %vm8188, %v8291, %v8180
    %v8293 = vrot.slane %v8185, 7
    %v8294 = vsel %vm8188, %v8293, %v8181
    %v8295 = vpack.c.b16 %v8288, %v8288
    %v8296 = vpack.c.b16 %v8290, %v8290
    %v8297 = vpack.c.b16 %v8292, %v8292
    %v8298 = vpack.c.b16 %v8294, %v8294
    %8303 = vmatprep.subr.bf16.mxu0 0
    %8304 = vmatpush1.bf16.msra.mxu0 %v8105
    %8305 = vmatprep.subr.bf16.mxu0 0
    %8306 = vmatpush1.bf16.msra.mxu0 %v8106
    %8307 = vmatprep.subr.bf16.mxu0 0
    %8308 = vmatpush1.bf16.msra.mxu0 %v8107
    %8309 = vmatprep.subr.bf16.mxu0 0
    %8310 = vmatpush1.bf16.msra.mxu0 %v8108
    %8311 = vmatprep.subr.bf16.mxu0 0
    %8312 = vmatpush1.bf16.msra.mxu0 %v8109
    %8313 = vmatprep.subr.bf16.mxu0 0
    %8314 = vmatpush1.bf16.msra.mxu0 %v8110
    %8315 = vmatprep.subr.bf16.mxu0 0
    %8316 = vmatpush1.bf16.msra.mxu0 %v8111
    %8317 = vmatprep.subr.bf16.mxu0 0
    %8318 = vmatpush1.bf16.msra.mxu0 %v8112
    %8319 = vmatprep.subr.bf16.mxu0 0
    %8320 = vmatpush1.bf16.msra.mxu0 %v8113
    %8321 = vmatprep.subr.bf16.mxu0 0
    %8322 = vmatpush1.bf16.msra.mxu0 %v8114
    %8323 = vmatprep.subr.bf16.mxu0 0
    %8324 = vmatpush1.bf16.msra.mxu0 %v8115
    %8325 = vmatprep.subr.bf16.mxu0 0
    %8326 = vmatpush1.bf16.msra.mxu0 %v8116
    %8327 = vmatprep.subr.bf16.mxu0 0
    %8328 = vmatpush1.bf16.msra.mxu0 %v8117
    %8329 = vmatprep.subr.bf16.mxu0 0
    %8330 = vmatpush1.bf16.msra.mxu0 %v8118
    %8331 = vmatprep.subr.bf16.mxu0 0
    %8332 = vmatpush1.bf16.msra.mxu0 %v8119
    %8333 = vmatprep.subr.bf16.mxu0 0
    %8334 = vmatpush1.bf16.msra.mxu0 %v8120
    %8335 = vmatprep.mubr.bf16.mxu0 %v8296
    %8336 = vmatmul.mubr.bf16.gmra.mrb[0].mxu0 %v8295
    %v8337 = vpop.f32.mrb[0].mxu0
    %v8338 = vadd.f32 %v8282, %v8337
    %v8339 = vpop.f32.mrb[0].mxu0
    %v8340 = vpop.f32.mrb[0].mxu0
    %v8341 = vpop.f32.mrb[0].mxu0
    %8342 = vdwg.mxu0
    %8343 = vmatprep.subr.bf16.mxu0 0
    %8344 = vmatpush1.bf16.msra.mxu0 %v8121
    %8345 = vmatprep.subr.bf16.mxu0 0
    %8346 = vmatpush1.bf16.msra.mxu0 %v8122
    %8347 = vmatprep.subr.bf16.mxu0 0
    %8348 = vmatpush1.bf16.msra.mxu0 %v8123
    %8349 = vmatprep.subr.bf16.mxu0 0
    %8350 = vmatpush1.bf16.msra.mxu0 %v8124
    %8351 = vmatprep.subr.bf16.mxu0 0
    %8352 = vmatpush1.bf16.msra.mxu0 %v8125
    %8353 = vmatprep.subr.bf16.mxu0 0
    %8354 = vmatpush1.bf16.msra.mxu0 %v8126
    %8355 = vmatprep.subr.bf16.mxu0 0
    %8356 = vmatpush1.bf16.msra.mxu0 %v8127
    %8357 = vmatprep.subr.bf16.mxu0 0
    %8358 = vmatpush1.bf16.msra.mxu0 %v8128
    %8359 = vmatprep.subr.bf16.mxu0 0
    %8360 = vmatpush1.bf16.msra.mxu0 %v8129
    %8361 = vmatprep.subr.bf16.mxu0 0
    %8362 = vmatpush1.bf16.msra.mxu0 %v8130
    %8363 = vmatprep.subr.bf16.mxu0 0
    %8364 = vmatpush1.bf16.msra.mxu0 %v8131
    %8365 = vmatprep.subr.bf16.mxu0 0
    %8366 = vmatpush1.bf16.msra.mxu0 %v8132
    %8367 = vmatprep.subr.bf16.mxu0 0
    %8368 = vmatpush1.bf16.msra.mxu0 %v8133
    %8369 = vmatprep.subr.bf16.mxu0 0
    %8370 = vmatpush1.bf16.msra.mxu0 %v8134
    %8371 = vmatprep.subr.bf16.mxu0 0
    %8372 = vmatpush1.bf16.msra.mxu0 %v8135
    %8373 = vmatprep.subr.bf16.mxu0 0
    %8374 = vmatpush1.bf16.msra.mxu0 %v8136
    %8375 = vmatprep.mubr.bf16.mxu0 %v8298
    %8376 = vmatmul.mubr.bf16.gmra.mrb[0].mxu0 %v8297
    %v8377 = vpop.f32.mrb[0].mxu0
    %v8378 = vadd.f32 %v8338, %v8377
    %v8379 = vpop.f32.mrb[0].mxu0
    %v8380 = vpop.f32.mrb[0].mxu0
    %v8381 = vpop.f32.mrb[0].mxu0
    %8382 = vdwg.mxu0
    %v8383 = vpack.c.bf16 %v8072, %v8072
    %v8384 = vpack.c.bf16 %v8073, %v8073
    %v8385 = vpack.c.bf16 %v8074, %v8074
    %v8386 = vpack.c.bf16 %v8075, %v8075
    %v8387 = vpack.c.bf16 %v8084, %v8084
    %v8388 = vpack.c.bf16 %v8085, %v8085
    %v8389 = vpack.c.bf16 %v8086, %v8086
    %v8390 = vpack.c.bf16 %v8087, %v8087
    %s8391 = scalar_lea.vmem [#allocation7], 512
    %v8392 = vld [vmem:[%s8391] sm:$0xff]
    %v8393 = vld [vmem:[%s8391 + $0x8] sm:$0xff]
    %v8394 = vld [vmem:[%s8391 + $0x10] sm:$0xff]
    %v8395 = vld [vmem:[%s8391 + $0x18] sm:$0xff]
    %v8396 = vld [vmem:[%s8391 + $0x20] sm:$0xff]
    %v8397 = vld [vmem:[%s8391 + $0x28] sm:$0xff]
    %v8398 = vld [vmem:[%s8391 + $0x30] sm:$0xff]
    %v8399 = vld [vmem:[%s8391 + $0x38] sm:$0xff]
    %v8400 = vld [vmem:[%s8391 + $0x40] sm:$0xff]
    %v8401 = vld [vmem:[%s8391 + $0x48] sm:$0xff]
    %v8402 = vld [vmem:[%s8391 + $0x50] sm:$0xff]
    %v8403 = vld [vmem:[%s8391 + $0x58] sm:$0xff]
    %v8404 = vld [vmem:[%s8391 + $0x60] sm:$0xff]
    %v8405 = vld [vmem:[%s8391 + $0x68] sm:$0xff]
    %v8406 = vld [vmem:[%s8391 + $0x70] sm:$0xff]
    %v8407 = vld [vmem:[%s8391 + $0x78] sm:$0xff]
    %v8408 = vld [vmem:[%s8391 + $0x80] sm:$0xff]
    %v8409 = vld [vmem:[%s8391 + $0x88] sm:$0xff]
    %v8410 = vld [vmem:[%s8391 + $0x90] sm:$0xff]
    %v8411 = vld [vmem:[%s8391 + $0x98] sm:$0xff]
    %v8412 = vld [vmem:[%s8391 + $0xa0] sm:$0xff]
    %v8413 = vld [vmem:[%s8391 + $0xa8] sm:$0xff]
    %v8414 = vld [vmem:[%s8391 + $0xb0] sm:$0xff]
    %v8415 = vld [vmem:[%s8391 + $0xb8] sm:$0xff]
    %v8416 = vld [vmem:[%s8391 + $0xc0] sm:$0xff]
    %v8417 = vld [vmem:[%s8391 + $0xc8] sm:$0xff]
    %v8418 = vld [vmem:[%s8391 + $0xd0] sm:$0xff]
    %v8419 = vld [vmem:[%s8391 + $0xd8] sm:$0xff]
    %v8420 = vld [vmem:[%s8391 + $0xe0] sm:$0xff]
    %v8421 = vld [vmem:[%s8391 + $0xe8] sm:$0xff]
    %v8422 = vld [vmem:[%s8391 + $0xf0] sm:$0xff]
    %v8423 = vld [vmem:[%s8391 + $0xf8] sm:$0xff]
    %v8432 = vunpack.c.l.b16 %v8383
    %v8433 = vunpack.c.l.b16 %v8384
    %v8434 = vunpack.c.l.b16 %v8385
    %v8435 = vunpack.c.l.b16 %v8386
    %v8436 = vunpack.c.l.b16 %v8387
    %v8437 = vunpack.c.l.b16 %v8388
    %v8438 = vunpack.c.l.b16 %v8389
    %v8439 = vunpack.c.l.b16 %v8390
    %v8440 = vrot.slane %v8436, 7
    %v8441 = vsel %vm8188, %v8440, %v8432
    %v8442 = vrot.slane %v8437, 7
    %v8443 = vsel %vm8188, %v8442, %v8433
    %v8444 = vrot.slane %v8438, 7
    %v8445 = vsel %vm8188, %v8444, %v8434
    %v8446 = vrot.slane %v8439, 7
    %v8447 = vsel %vm8188, %v8446, %v8435
    %v8448 = vpack.c.b16 %v8441, %v8441
    %v8449 = vpack.c.b16 %v8443, %v8443
    %v8450 = vpack.c.b16 %v8445, %v8445
    %v8451 = vpack.c.b16 %v8447, %v8447
    %8456 = vmatprep.subr.bf16.mxu0 0
    %8457 = vmatpush1.bf16.msra.mxu0 %v8392
    %8458 = vmatprep.subr.bf16.mxu0 0
    %8459 = vmatpush1.bf16.msra.mxu0 %v8393
    %8460 = vmatprep.subr.bf16.mxu0 0
    %8461 = vmatpush1.bf16.msra.mxu0 %v8394
    %8462 = vmatprep.subr.bf16.mxu0 0
    %8463 = vmatpush1.bf16.msra.mxu0 %v8395
    %8464 = vmatprep.subr.bf16.mxu0 0
    %8465 = vmatpush1.bf16.msra.mxu0 %v8396
    %8466 = vmatprep.subr.bf16.mxu0 0
    %8467 = vmatpush1.bf16.msra.mxu0 %v8397
    %8468 = vmatprep.subr.bf16.mxu0 0
    %8469 = vmatpush1.bf16.msra.mxu0 %v8398
    %8470 = vmatprep.subr.bf16.mxu0 0
    %8471 = vmatpush1.bf16.msra.mxu0 %v8399
    %8472 = vmatprep.subr.bf16.mxu0 0
    %8473 = vmatpush1.bf16.msra.mxu0 %v8400
    %8474 = vmatprep.subr.bf16.mxu0 0
    %8475 = vmatpush1.bf16.msra.mxu0 %v8401
    %8476 = vmatprep.subr.bf16.mxu0 0
    %8477 = vmatpush1.bf16.msra.mxu0 %v8402
    %8478 = vmatprep.subr.bf16.mxu0 0
    %8479 = vmatpush1.bf16.msra.mxu0 %v8403
    %8480 = vmatprep.subr.bf16.mxu0 0
    %8481 = vmatpush1.bf16.msra.mxu0 %v8404
    %8482 = vmatprep.subr.bf16.mxu0 0
    %8483 = vmatpush1.bf16.msra.mxu0 %v8405
    %8484 = vmatprep.subr.bf16.mxu0 0
    %8485 = vmatpush1.bf16.msra.mxu0 %v8406
    %8486 = vmatprep.subr.bf16.mxu0 0
    %8487 = vmatpush1.bf16.msra.mxu0 %v8407
    %8488 = vmatprep.mubr.bf16.mxu0 %v8449
    %8489 = vmatmul.mubr.bf16.gmra.mrb[0].mxu0 %v8448
    %v8490 = vpop.f32.mrb[0].mxu0
    %v8491 = vadd.f32 0.0, %v8490
    %v8492 = vpop.f32.mrb[0].mxu0
    %v8493 = vpop.f32.mrb[0].mxu0
    %v8494 = vpop.f32.mrb[0].mxu0
    %8495 = vdwg.mxu0
    %8496 = vmatprep.subr.bf16.mxu0 0
    %8497 = vmatpush1.bf16.msra.mxu0 %v8408
    %8498 = vmatprep.subr.bf16.mxu0 0
    %8499 = vmatpush1.bf16.msra.mxu0 %v8409
    %8500 = vmatprep.subr.bf16.mxu0 0
    %8501 = vmatpush1.bf16.msra.mxu0 %v8410
    %8502 = vmatprep.subr.bf16.mxu0 0
    %8503 = vmatpush1.bf16.msra.mxu0 %v8411
    %8504 = vmatprep.subr.bf16.mxu0 0
    %8505 = vmatpush1.bf16.msra.mxu0 %v8412
    %8506 = vmatprep.subr.bf16.mxu0 0
    %8507 = vmatpush1.bf16.msra.mxu0 %v8413
    %8508 = vmatprep.subr.bf16.mxu0 0
    %8509 = vmatpush1.bf16.msra.mxu0 %v8414
    %8510 = vmatprep.subr.bf16.mxu0 0
    %8511 = vmatpush1.bf16.msra.mxu0 %v8415
    %8512 = vmatprep.subr.bf16.mxu0 0
    %8513 = vmatpush1.bf16.msra.mxu0 %v8416
    %8514 = vmatprep.subr.bf16.mxu0 0
    %8515 = vmatpush1.bf16.msra.mxu0 %v8417
    %8516 = vmatprep.subr.bf16.mxu0 0
    %8517 = vmatpush1.bf16.msra.mxu0 %v8418
    %8518 = vmatprep.subr.bf16.mxu0 0
    %8519 = vmatpush1.bf16.msra.mxu0 %v8419
    %8520 = vmatprep.subr.bf16.mxu0 0
    %8521 = vmatpush1.bf16.msra.mxu0 %v8420
    %8522 = vmatprep.subr.bf16.mxu0 0
    %8523 = vmatpush1.bf16.msra.mxu0 %v8421
    %8524 = vmatprep.subr.bf16.mxu0 0
    %8525 = vmatpush1.bf16.msra.mxu0 %v8422
    %8526 = vmatprep.subr.bf16.mxu0 0
    %8527 = vmatpush1.bf16.msra.mxu0 %v8423
    %8528 = vmatprep.mubr.bf16.mxu0 %v8451
    %8529 = vmatmul.mubr.bf16.gmra.mrb[0].mxu0 %v8450
    %v8530 = vpop.f32.mrb[0].mxu0
    %v8531 = vadd.f32 %v8491, %v8530
    %v8532 = vpop.f32.mrb[0].mxu0
    %v8533 = vpop.f32.mrb[0].mxu0
    %v8534 = vpop.f32.mrb[0].mxu0
    %8535 = vdwg.mxu0
    %v8536 = vadd.f32 %v8378, %v8531
    %s8537 = scalar_lea.vmem [#allocation7], 768
    %v8538 = vld [vmem:[%s8537] sm:$0xff]
    %v8539 = vld [vmem:[%s8537 + $0x8] sm:$0xff]
    %v8540 = vld [vmem:[%s8537 + $0x10] sm:$0xff]
    %v8541 = vld [vmem:[%s8537 + $0x18] sm:$0xff]
    %v8542 = vld [vmem:[%s8537 + $0x20] sm:$0xff]
    %v8543 = vld [vmem:[%s8537 + $0x28] sm:$0xff]
    %v8544 = vld [vmem:[%s8537 + $0x30] sm:$0xff]
    %v8545 = vld [vmem:[%s8537 + $0x38] sm:$0xff]
    %v8546 = vld [vmem:[%s8537 + $0x40] sm:$0xff]
    %v8547 = vld [vmem:[%s8537 + $0x48] sm:$0xff]
    %v8548 = vld [vmem:[%s8537 + $0x50] sm:$0xff]
    %v8549 = vld [vmem:[%s8537 + $0x58] sm:$0xff]
    %v8550 = vld [vmem:[%s8537 + $0x60] sm:$0xff]
    %v8551 = vld [vmem:[%s8537 + $0x68] sm:$0xff]
    %v8552 = vld [vmem:[%s8537 + $0x70] sm:$0xff]
    %v8553 = vld [vmem:[%s8537 + $0x78] sm:$0xff]
    %v8554 = vld [vmem:[%s8537 + $0x80] sm:$0xff]
    %v8555 = vld [vmem:[%s8537 + $0x88] sm:$0xff]
    %v8556 = vld [vmem:[%s8537 + $0x90] sm:$0xff]
    %v8557 = vld [vmem:[%s8537 + $0x98] sm:$0xff]
    %v8558 = vld [vmem:[%s8537 + $0xa0] sm:$0xff]
    %v8559 = vld [vmem:[%s8537 + $0xa8] sm:$0xff]
    %v8560 = vld [vmem:[%s8537 + $0xb0] sm:$0xff]
    %v8561 = vld [vmem:[%s8537 + $0xb8] sm:$0xff]
    %v8562 = vld [vmem:[%s8537 + $0xc0] sm:$0xff]
    %v8563 = vld [vmem:[%s8537 + $0xc8] sm:$0xff]
    %v8564 = vld [vmem:[%s8537 + $0xd0] sm:$0xff]
    %v8565 = vld [vmem:[%s8537 + $0xd8] sm:$0xff]
    %v8566 = vld [vmem:[%s8537 + $0xe0] sm:$0xff]
    %v8567 = vld [vmem:[%s8537 + $0xe8] sm:$0xff]
    %v8568 = vld [vmem:[%s8537 + $0xf0] sm:$0xff]
    %v8569 = vld [vmem:[%s8537 + $0xf8] sm:$0xff]
    %v8570 = vrot.slane %v8432, 2
    %v8571 = vrot.slane %v8436, 1
    %v8572 = vsel %vm8188, %v8571, %v8570
    %v8573 = vrot.slane %v8433, 2
    %v8574 = vrot.slane %v8437, 1
    %v8575 = vsel %vm8188, %v8574, %v8573
    %v8576 = vrot.slane %v8434, 2
    %v8577 = vrot.slane %v8438, 1
    %v8578 = vsel %vm8188, %v8577, %v8576
    %v8579 = vrot.slane %v8435, 2
    %v8580 = vrot.slane %v8439, 1
    %v8581 = vsel %vm8188, %v8580, %v8579
    %v8582 = vpack.c.b16 %v8572, %v8572
    %v8583 = vpack.c.b16 %v8575, %v8575
    %v8584 = vpack.c.b16 %v8578, %v8578
    %v8585 = vpack.c.b16 %v8581, %v8581
    %8590 = vmatprep.subr.bf16.mxu0 0
    %8591 = vmatpush1.bf16.msra.mxu0 %v8538
    %8592 = vmatprep.subr.bf16.mxu0 0
    %8593 = vmatpush1.bf16.msra.mxu0 %v8539
    %8594 = vmatprep.subr.bf16.mxu0 0
    %8595 = vmatpush1.bf16.msra.mxu0 %v8540
    %8596 = vmatprep.subr.bf16.mxu0 0
    %8597 = vmatpush1.bf16.msra.mxu0 %v8541
    %8598 = vmatprep.subr.bf16.mxu0 0
    %8599 = vmatpush1.bf16.msra.mxu0 %v8542
    %8600 = vmatprep.subr.bf16.mxu0 0
    %8601 = vmatpush1.bf16.msra.mxu0 %v8543
    %8602 = vmatprep.subr.bf16.mxu0 0
    %8603 = vmatpush1.bf16.msra.mxu0 %v8544
    %8604 = vmatprep.subr.bf16.mxu0 0
    %8605 = vmatpush1.bf16.msra.mxu0 %v8545
    %8606 = vmatprep.subr.bf16.mxu0 0
    %8607 = vmatpush1.bf16.msra.mxu0 %v8546
    %8608 = vmatprep.subr.bf16.mxu0 0
    %8609 = vmatpush1.bf16.msra.mxu0 %v8547
    %8610 = vmatprep.subr.bf16.mxu0 0
    %8611 = vmatpush1.bf16.msra.mxu0 %v8548
    %8612 = vmatprep.subr.bf16.mxu0 0
    %8613 = vmatpush1.bf16.msra.mxu0 %v8549
    %8614 = vmatprep.subr.bf16.mxu0 0
    %8615 = vmatpush1.bf16.msra.mxu0 %v8550
    %8616 = vmatprep.subr.bf16.mxu0 0
    %8617 = vmatpush1.bf16.msra.mxu0 %v8551
    %8618 = vmatprep.subr.bf16.mxu0 0
    %8619 = vmatpush1.bf16.msra.mxu0 %v8552
    %8620 = vmatprep.subr.bf16.mxu0 0
    %8621 = vmatpush1.bf16.msra.mxu0 %v8553
    %8622 = vmatprep.mubr.bf16.mxu0 %v8583
    %8623 = vmatmul.mubr.bf16.gmra.mrb[0].mxu0 %v8582
    %v8624 = vpop.f32.mrb[0].mxu0
    %v8625 = vadd.f32 0.0, %v8624
    %v8626 = vpop.f32.mrb[0].mxu0
    %v8627 = vpop.f32.mrb[0].mxu0
    %v8628 = vpop.f32.mrb[0].mxu0
    %8629 = vdwg.mxu0
    %8630 = vmatprep.subr.bf16.mxu0 0
    %8631 = vmatpush1.bf16.msra.mxu0 %v8554
    %8632 = vmatprep.subr.bf16.mxu0 0
    %8633 = vmatpush1.bf16.msra.mxu0 %v8555
    %8634 = vmatprep.subr.bf16.mxu0 0
    %8635 = vmatpush1.bf16.msra.mxu0 %v8556
    %8636 = vmatprep.subr.bf16.mxu0 0
    %8637 = vmatpush1.bf16.msra.mxu0 %v8557
    %8638 = vmatprep.subr.bf16.mxu0 0
    %8639 = vmatpush1.bf16.msra.mxu0 %v8558
    %8640 = vmatprep.subr.bf16.mxu0 0
    %8641 = vmatpush1.bf16.msra.mxu0 %v8559
    %8642 = vmatprep.subr.bf16.mxu0 0
    %8643 = vmatpush1.bf16.msra.mxu0 %v8560
    %8644 = vmatprep.subr.bf16.mxu0 0
    %8645 = vmatpush1.bf16.msra.mxu0 %v8561
    %8646 = vmatprep.subr.bf16.mxu0 0
    %8647 = vmatpush1.bf16.msra.mxu0 %v8562
    %8648 = vmatprep.subr.bf16.mxu0 0
    %8649 = vmatpush1.bf16.msra.mxu0 %v8563
    %8650 = vmatprep.subr.bf16.mxu0 0
    %8651 = vmatpush1.bf16.msra.mxu0 %v8564
    %8652 = vmatprep.subr.bf16.mxu0 0
    %8653 = vmatpush1.bf16.msra.mxu0 %v8565
    %8654 = vmatprep.subr.bf16.mxu0 0
    %8655 = vmatpush1.bf16.msra.mxu0 %v8566
    %8656 = vmatprep.subr.bf16.mxu0 0
    %8657 = vmatpush1.bf16.msra.mxu0 %v8567
    %8658 = vmatprep.subr.bf16.mxu0 0
    %8659 = vmatpush1.bf16.msra.mxu0 %v8568
    %8660 = vmatprep.subr.bf16.mxu0 0
    %8661 = vmatpush1.bf16.msra.mxu0 %v8569
    %8662 = vmatprep.mubr.bf16.mxu0 %v8585
    %8663 = vmatmul.mubr.bf16.gmra.mrb[0].mxu0 %v8584
    %v8664 = vpop.f32.mrb[0].mxu0
    %v8665 = vadd.f32 %v8625, %v8664
    %v8666 = vpop.f32.mrb[0].mxu0
    %v8667 = vpop.f32.mrb[0].mxu0
    %v8668 = vpop.f32.mrb[0].mxu0
    %8669 = vdwg.mxu0
    %v8670 = vadd.f32 %v8536, %v8665
    %v8671 = vpack.c.bf16 %v8076, %v8076
    %v8672 = vpack.c.bf16 %v8077, %v8077
    %v8673 = vpack.c.bf16 %v8078, %v8078
    %v8674 = vpack.c.bf16 %v8079, %v8079
    %v8675 = vpack.c.bf16 %v8088, %v8088
    %v8676 = vpack.c.bf16 %v8089, %v8089
    %v8677 = vpack.c.bf16 %v8090, %v8090
    %v8678 = vpack.c.bf16 %v8091, %v8091
    %s8679 = scalar_lea.vmem [#allocation7], 1024
    %v8680 = vld [vmem:[%s8679] sm:$0xff]
    %v8681 = vld [vmem:[%s8679 + $0x8] sm:$0xff]
    %v8682 = vld [vmem:[%s8679 + $0x10] sm:$0xff]
    %v8683 = vld [vmem:[%s8679 + $0x18] sm:$0xff]
    %v8684 = vld [vmem:[%s8679 + $0x20] sm:$0xff]
    %v8685 = vld [vmem:[%s8679 + $0x28] sm:$0xff]
    %v8686 = vld [vmem:[%s8679 + $0x30] sm:$0xff]
    %v8687 = vld [vmem:[%s8679 + $0x38] sm:$0xff]
    %v8688 = vld [vmem:[%s8679 + $0x40] sm:$0xff]
    %v8689 = vld [vmem:[%s8679 + $0x48] sm:$0xff]
    %v8690 = vld [vmem:[%s8679 + $0x50] sm:$0xff]
    %v8691 = vld [vmem:[%s8679 + $0x58] sm:$0xff]
    %v8692 = vld [vmem:[%s8679 + $0x60] sm:$0xff]
    %v8693 = vld [vmem:[%s8679 + $0x68] sm:$0xff]
    %v8694 = vld [vmem:[%s8679 + $0x70] sm:$0xff]
    %v8695 = vld [vmem:[%s8679 + $0x78] sm:$0xff]
    %v8696 = vld [vmem:[%s8679 + $0x80] sm:$0xff]
    %v8697 = vld [vmem:[%s8679 + $0x88] sm:$0xff]
    %v8698 = vld [vmem:[%s8679 + $0x90] sm:$0xff]
    %v8699 = vld [vmem:[%s8679 + $0x98] sm:$0xff]
    %v8700 = vld [vmem:[%s8679 + $0xa0] sm:$0xff]
    %v8701 = vld [vmem:[%s8679 + $0xa8] sm:$0xff]
    %v8702 = vld [vmem:[%s8679 + $0xb0] sm:$0xff]
    %v8703 = vld [vmem:[%s8679 + $0xb8] sm:$0xff]
    %v8704 = vld [vmem:[%s8679 + $0xc0] sm:$0xff]
    %v8705 = vld [vmem:[%s8679 + $0xc8] sm:$0xff]
    %v8706 = vld [vmem:[%s8679 + $0xd0] sm:$0xff]
    %v8707 = vld [vmem:[%s8679 + $0xd8] sm:$0xff]
    %v8708 = vld [vmem:[%s8679 + $0xe0] sm:$0xff]
    %v8709 = vld [vmem:[%s8679 + $0xe8] sm:$0xff]
    %v8710 = vld [vmem:[%s8679 + $0xf0] sm:$0xff]
    %v8711 = vld [vmem:[%s8679 + $0xf8] sm:$0xff]
    %v8720 = vunpack.c.l.b16 %v8671
    %v8721 = vunpack.c.l.b16 %v8672
    %v8722 = vunpack.c.l.b16 %v8673
    %v8723 = vunpack.c.l.b16 %v8674
    %v8724 = vunpack.c.l.b16 %v8675
    %v8725 = vunpack.c.l.b16 %v8676
    %v8726 = vunpack.c.l.b16 %v8677
    %v8727 = vunpack.c.l.b16 %v8678
    %v8728 = vrot.slane %v8724, 7
    %v8729 = vsel %vm8188, %v8728, %v8720
    %v8730 = vrot.slane %v8725, 7
    %v8731 = vsel %vm8188, %v8730, %v8721
    %v8732 = vrot.slane %v8726, 7
    %v8733 = vsel %vm8188, %v8732, %v8722
    %v8734 = vrot.slane %v8727, 7
    %v8735 = vsel %vm8188, %v8734, %v8723
    %v8736 = vpack.c.b16 %v8729, %v8729
    %v8737 = vpack.c.b16 %v8731, %v8731
    %v8738 = vpack.c.b16 %v8733, %v8733
    %v8739 = vpack.c.b16 %v8735, %v8735
    %8744 = vmatprep.subr.bf16.mxu0 0
    %8745 = vmatpush1.bf16.msra.mxu0 %v8680
    %8746 = vmatprep.subr.bf16.mxu0 0
    %8747 = vmatpush1.bf16.msra.mxu0 %v8681
    %8748 = vmatprep.subr.bf16.mxu0 0
    %8749 = vmatpush1.bf16.msra.mxu0 %v8682
    %8750 = vmatprep.subr.bf16.mxu0 0
    %8751 = vmatpush1.bf16.msra.mxu0 %v8683
    %8752 = vmatprep.subr.bf16.mxu0 0
    %8753 = vmatpush1.bf16.msra.mxu0 %v8684
    %8754 = vmatprep.subr.bf16.mxu0 0
    %8755 = vmatpush1.bf16.msra.mxu0 %v8685
    %8756 = vmatprep.subr.bf16.mxu0 0
    %8757 = vmatpush1.bf16.msra.mxu0 %v8686
    %8758 = vmatprep.subr.bf16.mxu0 0
    %8759 = vmatpush1.bf16.msra.mxu0 %v8687
    %8760 = vmatprep.subr.bf16.mxu0 0
    %8761 = vmatpush1.bf16.msra.mxu0 %v8688
    %8762 = vmatprep.subr.bf16.mxu0 0
    %8763 = vmatpush1.bf16.msra.mxu0 %v8689
    %8764 = vmatprep.subr.bf16.mxu0 0
    %8765 = vmatpush1.bf16.msra.mxu0 %v8690
    %8766 = vmatprep.subr.bf16.mxu0 0
    %8767 = vmatpush1.bf16.msra.mxu0 %v8691
    %8768 = vmatprep.subr.bf16.mxu0 0
    %8769 = vmatpush1.bf16.msra.mxu0 %v8692
    %8770 = vmatprep.subr.bf16.mxu0 0
    %8771 = vmatpush1.bf16.msra.mxu0 %v8693
    %8772 = vmatprep.subr.bf16.mxu0 0
    %8773 = vmatpush1.bf16.msra.mxu0 %v8694
    %8774 = vmatprep.subr.bf16.mxu0 0
    %8775 = vmatpush1.bf16.msra.mxu0 %v8695
    %8776 = vmatprep.mubr.bf16.mxu0 %v8737
    %8777 = vmatmul.mubr.bf16.gmra.mrb[0].mxu0 %v8736
    %v8778 = vpop.f32.mrb[0].mxu0
    %v8779 = vadd.f32 0.0, %v8778
    %v8780 = vpop.f32.mrb[0].mxu0
    %v8781 = vpop.f32.mrb[0].mxu0
    %v8782 = vpop.f32.mrb[0].mxu0
    %8783 = vdwg.mxu0
    %8784 = vmatprep.subr.bf16.mxu0 0
    %8785 = vmatpush1.bf16.msra.mxu0 %v8696
    %8786 = vmatprep.subr.bf16.mxu0 0
    %8787 = vmatpush1.bf16.msra.mxu0 %v8697
    %8788 = vmatprep.subr.bf16.mxu0 0
    %8789 = vmatpush1.bf16.msra.mxu0 %v8698
    %8790 = vmatprep.subr.bf16.mxu0 0
    %8791 = vmatpush1.bf16.msra.mxu0 %v8699
    %8792 = vmatprep.subr.bf16.mxu0 0
    %8793 = vmatpush1.bf16.msra.mxu0 %v8700
    %8794 = vmatprep.subr.bf16.mxu0 0
    %8795 = vmatpush1.bf16.msra.mxu0 %v8701
    %8796 = vmatprep.subr.bf16.mxu0 0
    %8797 = vmatpush1.bf16.msra.mxu0 %v8702
    %8798 = vmatprep.subr.bf16.mxu0 0
    %8799 = vmatpush1.bf16.msra.mxu0 %v8703
    %8800 = vmatprep.subr.bf16.mxu0 0
    %8801 = vmatpush1.bf16.msra.mxu0 %v8704
    %8802 = vmatprep.subr.bf16.mxu0 0
    %8803 = vmatpush1.bf16.msra.mxu0 %v8705
    %8804 = vmatprep.subr.bf16.mxu0 0
    %8805 = vmatpush1.bf16.msra.mxu0 %v8706
    %8806 = vmatprep.subr.bf16.mxu0 0
    %8807 = vmatpush1.bf16.msra.mxu0 %v8707
    %8808 = vmatprep.subr.bf16.mxu0 0
    %8809 = vmatpush1.bf16.msra.mxu0 %v8708
    %8810 = vmatprep.subr.bf16.mxu0 0
    %8811 = vmatpush1.bf16.msra.mxu0 %v8709
    %8812 = vmatprep.subr.bf16.mxu0 0
    %8813 = vmatpush1.bf16.msra.mxu0 %v8710
    %8814 = vmatprep.subr.bf16.mxu0 0
    %8815 = vmatpush1.bf16.msra.mxu0 %v8711
    %8816 = vmatprep.mubr.bf16.mxu0 %v8739
    %8817 = vmatmul.mubr.bf16.gmra.mrb[0].mxu0 %v8738
    %v8818 = vpop.f32.mrb[0].mxu0
    %v8819 = vadd.f32 %v8779, %v8818
    %v8820 = vpop.f32.mrb[0].mxu0
    %v8821 = vpop.f32.mrb[0].mxu0
    %v8822 = vpop.f32.mrb[0].mxu0
    %8823 = vdwg.mxu0
    %v8824 = vadd.f32 %v8670, %v8819
    %s8825 = scalar_lea.vmem [#allocation7], 1280
    %v8826 = vld [vmem:[%s8825] sm:$0xff]
    %v8827 = vld [vmem:[%s8825 + $0x8] sm:$0xff]
    %v8828 = vld [vmem:[%s8825 + $0x10] sm:$0xff]
    %v8829 = vld [vmem:[%s8825 + $0x18] sm:$0xff]
    %v8830 = vld [vmem:[%s8825 + $0x20] sm:$0xff]
    %v8831 = vld [vmem:[%s8825 + $0x28] sm:$0xff]
    %v8832 = vld [vmem:[%s8825 + $0x30] sm:$0xff]
    %v8833 = vld [vmem:[%s8825 + $0x38] sm:$0xff]
    %v8834 = vld [vmem:[%s8825 + $0x40] sm:$0xff]
    %v8835 = vld [vmem:[%s8825 + $0x48] sm:$0xff]
    %v8836 = vld [vmem:[%s8825 + $0x50] sm:$0xff]
    %v8837 = vld [vmem:[%s8825 + $0x58] sm:$0xff]
    %v8838 = vld [vmem:[%s8825 + $0x60] sm:$0xff]
    %v8839 = vld [vmem:[%s8825 + $0x68] sm:$0xff]
    %v8840 = vld [vmem:[%s8825 + $0x70] sm:$0xff]
    %v8841 = vld [vmem:[%s8825 + $0x78] sm:$0xff]
    %v8842 = vld [vmem:[%s8825 + $0x80] sm:$0xff]
    %v8843 = vld [vmem:[%s8825 + $0x88] sm:$0xff]
    %v8844 = vld [vmem:[%s8825 + $0x90] sm:$0xff]
    %v8845 = vld [vmem:[%s8825 + $0x98] sm:$0xff]
    %v8846 = vld [vmem:[%s8825 + $0xa0] sm:$0xff]
    %v8847 = vld [vmem:[%s8825 + $0xa8] sm:$0xff]
    %v8848 = vld [vmem:[%s8825 + $0xb0] sm:$0xff]
    %v8849 = vld [vmem:[%s8825 + $0xb8] sm:$0xff]
    %v8850 = vld [vmem:[%s8825 + $0xc0] sm:$0xff]
    %v8851 = vld [vmem:[%s8825 + $0xc8] sm:$0xff]
    %v8852 = vld [vmem:[%s8825 + $0xd0] sm:$0xff]
    %v8853 = vld [vmem:[%s8825 + $0xd8] sm:$0xff]
    %v8854 = vld [vmem:[%s8825 + $0xe0] sm:$0xff]
    %v8855 = vld [vmem:[%s8825 + $0xe8] sm:$0xff]
    %v8856 = vld [vmem:[%s8825 + $0xf0] sm:$0xff]
    %v8857 = vld [vmem:[%s8825 + $0xf8] sm:$0xff]
    %v8858 = vrot.slane %v8720, 2
    %v8859 = vrot.slane %v8724, 1
    %v8860 = vsel %vm8188, %v8859, %v8858
    %v8861 = vrot.slane %v8721, 2
    %v8862 = vrot.slane %v8725, 1
    %v8863 = vsel %vm8188, %v8862, %v8861
    %v8864 = vrot.slane %v8722, 2
    %v8865 = vrot.slane %v8726, 1
    %v8866 = vsel %vm8188, %v8865, %v8864
    %v8867 = vrot.slane %v8723, 2
    %v8868 = vrot.slane %v8727, 1
    %v8869 = vsel %vm8188, %v8868, %v8867
    %v8870 = vpack.c.b16 %v8860, %v8860
    %v8871 = vpack.c.b16 %v8863, %v8863
    %v8872 = vpack.c.b16 %v8866, %v8866
    %v8873 = vpack.c.b16 %v8869, %v8869
    %8878 = vmatprep.subr.bf16.mxu0 0
    %8879 = vmatpush1.bf16.msra.mxu0 %v8826
    %8880 = vmatprep.subr.bf16.mxu0 0
    %8881 = vmatpush1.bf16.msra.mxu0 %v8827
    %8882 = vmatprep.subr.bf16.mxu0 0
    %8883 = vmatpush1.bf16.msra.mxu0 %v8828
    %8884 = vmatprep.subr.bf16.mxu0 0
    %8885 = vmatpush1.bf16.msra.mxu0 %v8829
    %8886 = vmatprep.subr.bf16.mxu0 0
    %8887 = vmatpush1.bf16.msra.mxu0 %v8830
    %8888 = vmatprep.subr.bf16.mxu0 0
    %8889 = vmatpush1.bf16.msra.mxu0 %v8831
    %8890 = vmatprep.subr.bf16.mxu0 0
    %8891 = vmatpush1.bf16.msra.mxu0 %v8832
    %8892 = vmatprep.subr.bf16.mxu0 0
    %8893 = vmatpush1.bf16.msra.mxu0 %v8833
    %8894 = vmatprep.subr.bf16.mxu0 0
    %8895 = vmatpush1.bf16.msra.mxu0 %v8834
    %8896 = vmatprep.subr.bf16.mxu0 0
    %8897 = vmatpush1.bf16.msra.mxu0 %v8835
    %8898 = vmatprep.subr.bf16.mxu0 0
    %8899 = vmatpush1.bf16.msra.mxu0 %v8836
    %8900 = vmatprep.subr.bf16.mxu0 0
    %8901 = vmatpush1.bf16.msra.mxu0 %v8837
    %8902 = vmatprep.subr.bf16.mxu0 0
    %8903 = vmatpush1.bf16.msra.mxu0 %v8838
    %8904 = vmatprep.subr.bf16.mxu0 0
    %8905 = vmatpush1.bf16.msra.mxu0 %v8839
    %8906 = vmatprep.subr.bf16.mxu0 0
    %8907 = vmatpush1.bf16.msra.mxu0 %v8840
    %8908 = vmatprep.subr.bf16.mxu0 0
    %8909 = vmatpush1.bf16.msra.mxu0 %v8841
    %8910 = vmatprep.mubr.bf16.mxu0 %v8871
    %8911 = vmatmul.mubr.bf16.gmra.mrb[0].mxu0 %v8870
    %v8912 = vpop.f32.mrb[0].mxu0
    %v8913 = vadd.f32 0.0, %v8912
    %v8914 = vpop.f32.mrb[0].mxu0
    %v8915 = vpop.f32.mrb[0].mxu0
    %v8916 = vpop.f32.mrb[0].mxu0
    %8917 = vdwg.mxu0
    %8918 = vmatprep.subr.bf16.mxu0 0
    %8919 = vmatpush1.bf16.msra.mxu0 %v8842
    %8920 = vmatprep.subr.bf16.mxu0 0
    %8921 = vmatpush1.bf16.msra.mxu0 %v8843
    %8922 = vmatprep.subr.bf16.mxu0 0
    %8923 = vmatpush1.bf16.msra.mxu0 %v8844
    %8924 = vmatprep.subr.bf16.mxu0 0
    %8925 = vmatpush1.bf16.msra.mxu0 %v8845
    %8926 = vmatprep.subr.bf16.mxu0 0
    %8927 = vmatpush1.bf16.msra.mxu0 %v8846
    %8928 = vmatprep.subr.bf16.mxu0 0
    %8929 = vmatpush1.bf16.msra.mxu0 %v8847
    %8930 = vmatprep.subr.bf16.mxu0 0
    %8931 = vmatpush1.bf16.msra.mxu0 %v8848
    %8932 = vmatprep.subr.bf16.mxu0 0
    %8933 = vmatpush1.bf16.msra.mxu0 %v8849
    %8934 = vmatprep.subr.bf16.mxu0 0
    %8935 = vmatpush1.bf16.msra.mxu0 %v8850
    %8936 = vmatprep.subr.bf16.mxu0 0
    %8937 = vmatpush1.bf16.msra.mxu0 %v8851
    %8938 = vmatprep.subr.bf16.mxu0 0
    %8939 = vmatpush1.bf16.msra.mxu0 %v8852
    %8940 = vmatprep.subr.bf16.mxu0 0
    %8941 = vmatpush1.bf16.msra.mxu0 %v8853
    %8942 = vmatprep.subr.bf16.mxu0 0
    %8943 = vmatpush1.bf16.msra.mxu0 %v8854
    %8944 = vmatprep.subr.bf16.mxu0 0
    %8945 = vmatpush1.bf16.msra.mxu0 %v8855
    %8946 = vmatprep.subr.bf16.mxu0 0
    %8947 = vmatpush1.bf16.msra.mxu0 %v8856
    %8948 = vmatprep.subr.bf16.mxu0 0
    %8949 = vmatpush1.bf16.msra.mxu0 %v8857
    %8950 = vmatprep.mubr.bf16.mxu0 %v8873
    %8951 = vmatmul.mubr.bf16.gmra.mrb[0].mxu0 %v8872
    %v8952 = vpop.f32.mrb[0].mxu0
    %v8953 = vadd.f32 %v8913, %v8952
    %v8954 = vpop.f32.mrb[0].mxu0
    %v8955 = vpop.f32.mrb[0].mxu0
    %v8956 = vpop.f32.mrb[0].mxu0
    %8957 = vdwg.mxu0
    %v8958 = vadd.f32 %v8824, %v8953
    %v8959 = vld [vmem:[%s6] sm:$0x1]
    %v8961 = vlaneseq
    %v8962 = vshrl.u32 %v8961, 7
    %v8963 = vsub.s32 0, %v8962
    %v8964 = vrot.slane %v8959, %v8963
    %v8966 = vadd.f32 %v8958, %v8964
    %vm8967 = vcmask 123904
    %8968 = vst.msk [vmem:[#allocation9] sm:$0x3] %vm8967, %v8966
    // Predicated region
    $region93: #{yolov2_backbone_forward.1} parent=1 // pred_check
      _
    $region94: #{yolov2_backbone_forward.1} parent=1 // pred_check_branch
      %8970 = sbr.rel (0) target = $region96
    $region95: #{yolov2_backbone_forward.1} parent=1 // pred_region
      %s8972 = ssub.s32 32, 32
      %8973 = vsyncadd [#allocation10], %s8972
      %s8975 = sshll.u32 [#allocation9], 4
      %s8976 = int_to_ptr.vmem [resolvable:$true] %s8975
      %8978 = dma.vmem_to_hbm [thread:$0]  %s8976, 32, %s7, [#allocation10]
    $region96: #{yolov2_backbone_forward.1} parent=1 // pred_fallthru
      _
    // Predicated region
    $region97: #{yolov2_backbone_forward.1} parent=1 // pred_check
      _
    $region98: #{yolov2_backbone_forward.1} parent=1 // pred_check_branch
      %8980 = sbr.rel (0) target = $region100
    $region99: #{yolov2_backbone_forward.1} parent=1 // pred_region
      %8981 = dma.done [#allocation10], 32
    $region100: #{yolov2_backbone_forward.1} parent=1 // pred_fallthru
      _
    %8982 = vsyncpa [#allocation10], 1
  %8983 = vsyncmov [#allocation8]
  %s8984 = vpop.sfrf %8983
  %p8985 = scmp.eq.s32.totalorder %s8984, 0
  %p8986 = pneg %p8985
  %8988 = shalt.err (%p8986)
  %s8989 = scalar_lea.sflag [#allocation8], 1
  %8990 = vsyncmov %s8989
  %s8991 = vpop.sfrf %8990
  %p8992 = scmp.eq.s32.totalorder %s8991, 0
  %p8993 = pneg %p8992
  %8995 = shalt.err (%p8993)

</llo_original>
